<compile_context>
chip_gen: v7x
topology: tpu7x:2x2x1
jax: 0.10.0
libtpu: 0.0.40
codegen_flags: <defaults>
</compile_context>

<pallas_src>
import jax
import jax.numpy as jnp
import numpy as np
from jax import lax
from jax.experimental import pallas as pl
from jax.experimental.pallas import tpu as pltpu

HIDDEN = 100      # hidden_dim in the PyTorch module
DOC_MAXL = 20     # doc_max_len in the PyTorch module
EPS = -1e20       # self.eps

HPAD = 128        # feature dim padded to a full lane width
LPAD = 24         # doc len padded to a sublane multiple (8)


def reading_memory_kernel(sub_ref, mem_ref, raw_ref, len_ref,
                          w_ref, b_ref, out_ref):
    bt, lp, hp = sub_ref.shape
    m = bt * lp

    sub = sub_ref[...]                     # (bt, lp, hp)
    mem = mem_ref[...]
    raw = raw_ref[...]

    # lp % 8 == 0 and hp == 128, so these reshapes are layout no-ops.
    sub_f = sub.reshape(m, hp)
    mem_f = mem.reshape(m, hp)
    raw_f = raw.reshape(m, hp)

    # Packed weights: six (hp, hp) blocks
    #   0: transform_mem
    #   1: transform_sub (sub_emb part)     2: transform_sub (sub_emb_raw part)
    #   3: update_gate (sub_emb part)       4: update_gate (sub_mem part)
    #   5: update_gate (sub_mem*sub_emb part)
    w_mem = w_ref[0 * hp:1 * hp, :]
    w_sub_a = w_ref[1 * hp:2 * hp, :]
    w_sub_b = w_ref[2 * hp:3 * hp, :]
    w_g_a = w_ref[3 * hp:4 * hp, :]
    w_g_b = w_ref[4 * hp:5 * hp, :]
    w_g_c = w_ref[5 * hp:6 * hp, :]
    b_mem = b_ref[0:1, :]
    b_sub = b_ref[1:2, :]
    b_gate = b_ref[2:3, :]

    # transform_mem / transform_sub : Linear + Tanh (batch flattened into M).
    # The concat(sub, raw) of the original module is expressed as two partial
    # dots against the corresponding weight blocks (no (m, 2*hp) copy).
    mem4 = jnp.tanh(
        jnp.dot(mem_f, w_mem, preferred_element_type=jnp.float32) + b_mem)
    sub4 = jnp.tanh(
        jnp.dot(sub_f, w_sub_a, preferred_element_type=jnp.float32)
        + jnp.dot(raw_f, w_sub_b, preferred_element_type=jnp.float32)
        + b_sub)

    mem4_3 = mem4.reshape(bt, lp, hp)
    sub4_3 = sub4.reshape(bt, lp, hp)

    # bmm(sub_4att, mem_4att^T): contract last dims, batch over bt.
    att = lax.dot_general(
        sub4_3, mem4_3,
        dimension_numbers=(((2,), (2,)), ((0,), (0,))),
        preferred_element_type=jnp.float32)                     # (bt, lp, lp)

    # Query-row mask from sub_len, plus a static key mask for the padded
    # key rows (>= DOC_MAXL) introduced by LPAD.
    lens = len_ref[...]                                         # (bt, 1) int32
    q_idx = lax.broadcasted_iota(jnp.int32, (bt, lp), 1)
    q_masked = q_idx >= lens                                    # (bt, lp)
    inf_mask = jnp.where(q_masked, jnp.float32(EPS),
                         jnp.float32(0.0))[:, :, None]
    zero_mask = jnp.where(q_masked, jnp.float32(0.0),
                          jnp.float32(1.0))[:, :, None]
    k_idx = lax.broadcasted_iota(jnp.int32, (1, 1, lp), 2)
    key_inf = jnp.where(k_idx >= DOC_MAXL, jnp.float32(EPS), jnp.float32(0.0))

    att = att + inf_mask + key_inf
    att_max = jnp.max(att, axis=-1, keepdims=True)
    e = jnp.exp(att - att_max)
    denom = jnp.sum(e, axis=-1, keepdims=True)
    p = zero_mask * (e / denom)                                 # exact divide

    # bmm(att, memory)
    sub_mem = lax.dot_general(
        p, mem,
        dimension_numbers=(((2,), (1,)), ((0,), (0,))),
        preferred_element_type=jnp.float32)                     # (bt, lp, hp)
    sub_mem_f = sub_mem.reshape(m, hp)

    # update_gate(cat(sub_emb, sub_mem, sub_mem*sub_emb)): three partial dots
    # against the packed gate weight blocks (no (m, 3*hp) copy).
    pre = (jnp.dot(sub_f, w_g_a, preferred_element_type=jnp.float32)
           + jnp.dot(sub_mem_f, w_g_b, preferred_element_type=jnp.float32)
           + jnp.dot(sub_mem_f * sub_f, w_g_c,
                     preferred_element_type=jnp.float32)
           + b_gate)
    g = jax.nn.sigmoid(pre)

    out = (1.0 - g) * sub_f + g * sub_mem_f
    out_ref[...] = out.reshape(bt, lp, hp)


def _pack_params(params):
    """Pad Linear weights to lane-aligned (128,128) blocks and pack them."""
    H, HP = HIDDEN, HPAD

    def pad_block(w):                        # (H, H) -> (HP, HP)
        return jnp.pad(w.astype(jnp.float32), ((0, HP - H), (0, HP - H)))

    w_all = jnp.concatenate([
        pad_block(params["w_mem"]),
        pad_block(params["w_sub"][:H]),
        pad_block(params["w_sub"][H:2 * H]),
        pad_block(params["w_gate"][:H]),
        pad_block(params["w_gate"][H:2 * H]),
        pad_block(params["w_gate"][2 * H:3 * H]),
    ], axis=0)                               # (6*HP, HP)

    def pad_bias(b):                         # (H,) -> (HP,)
        return jnp.pad(b.astype(jnp.float32), (0, HP - H))

    b_all = jnp.stack([pad_bias(params["b_mem"]),
                       pad_bias(params["b_sub"]),
                       pad_bias(params["b_gate"])], axis=0)   # (3, HP)
    return w_all, b_all


def reading_memory(params, sub_emb, memory, sub_len, sub_emb_raw, *,
                   block_b=64):
    """Pallas forward. block_b: examples per grid step (multiple of 8).

    Guidance: 64-256 amortizes per-step overhead; on v7x keep
    ceil(B/block_b) >= 2 so both TensorCores get work.
    """
    B = sub_emb.shape[0]
    # Clamp the tile so tiny batches are not over-padded, keep it a multiple
    # of 8 (sublane alignment for the flatten reshapes).
    BT = max(8, min(block_b, ((B + 7) // 8) * 8))
    BT = ((BT + 7) // 8) * 8
    B_pad = ((B + BT - 1) // BT) * BT
    nb = B_pad // BT

    def pad_seq(x):
        return jnp.pad(x.astype(jnp.float32),
                       ((0, B_pad - B), (0, LPAD - DOC_MAXL),
                        (0, HPAD - HIDDEN)))

    sub_p = pad_seq(sub_emb)
    mem_p = pad_seq(memory)
    raw_p = pad_seq(sub_emb_raw)

    # Padded batch rows get length = DOC_MAXL (their outputs are sliced away;
    # their inputs are all-zero so everything stays finite).
    lens = jnp.pad(sub_len.astype(jnp.int32), (0, B_pad - B),
                   constant_values=DOC_MAXL).reshape(B_pad, 1)

    w_all, b_all = _pack_params(params)

    seq_spec = pl.BlockSpec((BT, LPAD, HPAD), lambda i: (i, 0, 0))
    len_spec = pl.BlockSpec((BT, 1), lambda i: (i, 0))
    w_spec = pl.BlockSpec((6 * HPAD, HPAD), lambda i: (0, 0))
    b_spec = pl.BlockSpec((3, HPAD), lambda i: (0, 0))

    out = pl.pallas_call(
        reading_memory_kernel,
        out_shape=jax.ShapeDtypeStruct((B_pad, LPAD, HPAD), jnp.float32),
        grid_spec=pltpu.PrefetchScalarGridSpec(
            num_scalar_prefetch=0,
            grid=(nb,),
            in_specs=[seq_spec, seq_spec, seq_spec, len_spec, w_spec, b_spec],
            out_specs=pl.BlockSpec((BT, LPAD, HPAD), lambda i: (i, 0, 0)),
        ),
        compiler_params=pltpu.CompilerParams(
            dimension_semantics=("parallel",),
            vmem_limit_bytes=64 * 1024 * 1024),
    )(sub_p, mem_p, raw_p, lens, w_all, b_all)

    return out[:B, :DOC_MAXL, :HIDDEN]


def reference_forward(params, sub_emb, memory, sub_len, sub_emb_raw):
    """Pure-JAX replica of the PyTorch forward (full f32 matmul precision)."""
    hi = lax.Precision.HIGHEST
    mem4 = jnp.tanh(jnp.dot(memory, params["w_mem"], precision=hi)
                    + params["b_mem"])
    sub4 = jnp.tanh(jnp.dot(jnp.concatenate([sub_emb, sub_emb_raw], -1),
                            params["w_sub"], precision=hi)
                    + params["b_sub"])
    att = jnp.einsum("bqh,bkh->bqk", sub4, mem4, precision=hi)

    q = jnp.arange(DOC_MAXL)[None, :, None]
    masked = q >= sub_len[:, None, None]
    inf_mask = jnp.where(masked, EPS, 0.0).astype(jnp.float32)
    zero_mask = jnp.where(masked, 0.0, 1.0).astype(jnp.float32)
    p = zero_mask * jax.nn.softmax(att + inf_mask, axis=-1)

    sub_mem = jnp.einsum("bqk,bkh->bqh", p, memory, precision=hi)
    gate_in = jnp.concatenate([sub_emb, sub_mem, sub_mem * sub_emb], -1)
    g = jax.nn.sigmoid(jnp.dot(gate_in, params["w_gate"], precision=hi)
                       + params["b_gate"])
    return (1.0 - g) * sub_emb + g * sub_mem


def init_params(key):
    ks = jax.random.split(key, 6)
    s = 0.1
    return {
        # stored pre-transposed: (in_features, out_features)
        "w_mem": s * jax.random.normal(ks[0], (HIDDEN, HIDDEN), jnp.float32),
        "b_mem": s * jax.random.normal(ks[1], (HIDDEN,), jnp.float32),
        "w_sub": s * jax.random.normal(ks[2], (2 * HIDDEN, HIDDEN), jnp.float32),
        "b_sub": s * jax.random.normal(ks[3], (HIDDEN,), jnp.float32),
        "w_gate": s * jax.random.normal(ks[4], (3 * HIDDEN, HIDDEN), jnp.float32),
        "b_gate": s * jax.random.normal(ks[5], (HIDDEN,), jnp.float32),
    }


if __name__ == "__main__":
    key = jax.random.PRNGKey(0)
    pkey, k1, k2, k3, k4 = jax.random.split(key, 5)

    # Small shapes: B=20 with block_b=16 -> 2 grid steps + a padded tail block.
    B = 20
    params = init_params(pkey)

    sub_emb = jax.random.normal(k1, (B, DOC_MAXL, HIDDEN), jnp.float32)
    memory = jax.random.normal(k2, (B, DOC_MAXL, HIDDEN), jnp.float32)
    sub_emb_raw = jax.random.normal(k3, (B, DOC_MAXL, HIDDEN), jnp.float32)
    sub_len = jax.random.randint(k4, (B,), 1, DOC_MAXL + 1).astype(jnp.int32)
    sub_len = sub_len.at[0].set(DOC_MAXL).at[1].set(7)  # full + partial lengths

    out = jax.block_until_ready(
        reading_memory(params, sub_emb, memory, sub_len, sub_emb_raw,
                       block_b=16))
    ref = jax.block_until_ready(
        reference_forward(params, sub_emb, memory, sub_len, sub_emb_raw))

    # Tolerance covers the difference between Mosaic's and XLA's f32-on-MXU
    # matmul decompositions (observed <= ~1e-2); semantic errors would be far
    # larger. Softmax/masking/gating math is exact f32 on both sides.
    np.testing.assert_allclose(np.asarray(out), np.asarray(ref),
                               rtol=2e-2, atol=2e-2)
    print("KERNEL_OK")
</pallas_src>

<mosaic_0001>
module attributes {stable_mosaic.version = 11 : i64} {
  func.func @reading_memory_kernel(%arg0: i32, %arg1: memref<16x24x128xf32, #tpu.memory_space<vmem>>, %arg2: memref<16x24x128xf32, #tpu.memory_space<vmem>>, %arg3: memref<16x24x128xf32, #tpu.memory_space<vmem>>, %arg4: memref<16x1xi32, #tpu.memory_space<vmem>>, %arg5: memref<768x128xf32, #tpu.memory_space<vmem>>, %arg6: memref<3x128xf32, #tpu.memory_space<vmem>>, %arg7: memref<16x24x128xf32, #tpu.memory_space<vmem>>) attributes {dimension_semantics = [#tpu.dimension_semantics<parallel>], iteration_bounds = array<i64: 2>, scalar_prefetch = 0 : i64, scratch_operands = 0 : i64, tpu.core_type = #tpu.core_type<tc>, window_params = [{transform_indices = @transform_0, window_bounds = array<i64: 16, 24, 128>}, {transform_indices = @transform_1, window_bounds = array<i64: 16, 24, 128>}, {transform_indices = @transform_2, window_bounds = array<i64: 16, 24, 128>}, {transform_indices = @transform_3, window_bounds = array<i64: 16, 1>}, {pipeline_mode = #tpu.pipeline_mode<synchronous>, transform_indices = @transform_4, window_bounds = array<i64: 768, 128>}, {pipeline_mode = #tpu.pipeline_mode<synchronous>, transform_indices = @transform_5, window_bounds = array<i64: 3, 128>}, {transform_indices = @transform_6, window_bounds = array<i64: 16, 24, 128>}]} {
    %c0 = arith.constant 0 : index
    %c0_0 = arith.constant 0 : index
    %c0_1 = arith.constant 0 : index
    %0 = vector.load %arg1[%c0, %c0_0, %c0_1] : memref<16x24x128xf32, #tpu.memory_space<vmem>>, vector<16x24x128xf32>
    %c0_2 = arith.constant 0 : index
    %c0_3 = arith.constant 0 : index
    %c0_4 = arith.constant 0 : index
    %1 = vector.load %arg2[%c0_2, %c0_3, %c0_4] : memref<16x24x128xf32, #tpu.memory_space<vmem>>, vector<16x24x128xf32>
    %c0_5 = arith.constant 0 : index
    %c0_6 = arith.constant 0 : index
    %c0_7 = arith.constant 0 : index
    %2 = vector.load %arg3[%c0_5, %c0_6, %c0_7] : memref<16x24x128xf32, #tpu.memory_space<vmem>>, vector<16x24x128xf32>
    %3 = vector.shape_cast %0 : vector<16x24x128xf32> to vector<384x128xf32>
    %4 = vector.shape_cast %1 : vector<16x24x128xf32> to vector<384x128xf32>
    %5 = vector.shape_cast %2 : vector<16x24x128xf32> to vector<384x128xf32>
    %c0_8 = arith.constant 0 : index
    %c0_9 = arith.constant 0 : index
    %6 = vector.load %arg5[%c0_8, %c0_9] : memref<768x128xf32, #tpu.memory_space<vmem>>, vector<128x128xf32>
    %c128 = arith.constant 128 : index
    %c0_10 = arith.constant 0 : index
    %7 = vector.load %arg5[%c128, %c0_10] : memref<768x128xf32, #tpu.memory_space<vmem>>, vector<128x128xf32>
    %c256 = arith.constant 256 : index
    %c0_11 = arith.constant 0 : index
    %8 = vector.load %arg5[%c256, %c0_11] : memref<768x128xf32, #tpu.memory_space<vmem>>, vector<128x128xf32>
    %c384 = arith.constant 384 : index
    %c0_12 = arith.constant 0 : index
    %9 = vector.load %arg5[%c384, %c0_12] : memref<768x128xf32, #tpu.memory_space<vmem>>, vector<128x128xf32>
    %c512 = arith.constant 512 : index
    %c0_13 = arith.constant 0 : index
    %10 = vector.load %arg5[%c512, %c0_13] : memref<768x128xf32, #tpu.memory_space<vmem>>, vector<128x128xf32>
    %c640 = arith.constant 640 : index
    %c0_14 = arith.constant 0 : index
    %11 = vector.load %arg5[%c640, %c0_14] : memref<768x128xf32, #tpu.memory_space<vmem>>, vector<128x128xf32>
    %c0_15 = arith.constant 0 : index
    %c0_16 = arith.constant 0 : index
    %12 = vector.load %arg6[%c0_15, %c0_16] : memref<3x128xf32, #tpu.memory_space<vmem>>, vector<1x128xf32>
    %c1 = arith.constant 1 : index
    %c0_17 = arith.constant 0 : index
    %13 = vector.load %arg6[%c1, %c0_17] : memref<3x128xf32, #tpu.memory_space<vmem>>, vector<1x128xf32>
    %c2 = arith.constant 2 : index
    %c0_18 = arith.constant 0 : index
    %14 = vector.load %arg6[%c2, %c0_18] : memref<3x128xf32, #tpu.memory_space<vmem>>, vector<1x128xf32>
    %cst = arith.constant dense<0.000000e+00> : vector<384x128xf32>
    %15 = tpu.matmul %4, %6, %cst {dimension_numbers = #tpu.dot_dimension_numbers<[1], [0], [0], [1], [0, 0, 1, 1], [], []>} : vector<384x128xf32>, vector<128x128xf32>, vector<384x128xf32> -> vector<384x128xf32>
    %16 = vector.broadcast %12 : vector<1x128xf32> to vector<384x128xf32>
    %17 = arith.addf %15, %16 : vector<384x128xf32>
    %18 = math.tanh %17 : vector<384x128xf32>
    %cst_19 = arith.constant dense<0.000000e+00> : vector<384x128xf32>
    %19 = tpu.matmul %3, %7, %cst_19 {dimension_numbers = #tpu.dot_dimension_numbers<[1], [0], [0], [1], [0, 0, 1, 1], [], []>} : vector<384x128xf32>, vector<128x128xf32>, vector<384x128xf32> -> vector<384x128xf32>
    %cst_20 = arith.constant dense<0.000000e+00> : vector<384x128xf32>
    %20 = tpu.matmul %5, %8, %cst_20 {dimension_numbers = #tpu.dot_dimension_numbers<[1], [0], [0], [1], [0, 0, 1, 1], [], []>} : vector<384x128xf32>, vector<128x128xf32>, vector<384x128xf32> -> vector<384x128xf32>
    %21 = arith.addf %19, %20 : vector<384x128xf32>
    %22 = vector.broadcast %13 : vector<1x128xf32> to vector<384x128xf32>
    %23 = arith.addf %21, %22 : vector<384x128xf32>
    %24 = math.tanh %23 : vector<384x128xf32>
    %25 = vector.shape_cast %18 : vector<384x128xf32> to vector<16x24x128xf32>
    %26 = vector.shape_cast %24 : vector<384x128xf32> to vector<16x24x128xf32>
    %cst_21 = arith.constant dense<0.000000e+00> : vector<16x24x24xf32>
    %27 = tpu.matmul %26, %25, %cst_21 {dimension_numbers = #tpu.dot_dimension_numbers<[2], [2], [1], [1], [0, 0, 0, 1, 1, 1], [0], [0]>} : vector<16x24x128xf32>, vector<16x24x128xf32>, vector<16x24x24xf32> -> vector<16x24x24xf32>
    %c0_22 = arith.constant 0 : index
    %c0_23 = arith.constant 0 : index
    %28 = vector.load %arg4[%c0_22, %c0_23] : memref<16x1xi32, #tpu.memory_space<vmem>>, vector<16x1xi32>
    %29 = tpu.iota {dimensions = array<i32: 1>} : vector<16x24xi32>
    %30 = vector.broadcast %28 : vector<16x1xi32> to vector<16x24xi32>
    %31 = arith.cmpi sge, %29, %30 : vector<16x24xi32>
    %cst_24 = arith.constant -1.000000e+20 : f32
    %cst_25 = arith.constant 0.000000e+00 : f32
    %32 = vector.broadcast %cst_24 : f32 to vector<16x24xf32>
    %33 = vector.broadcast %cst_25 : f32 to vector<16x24xf32>
    %34 = arith.select %31, %32, %33 : vector<16x24xi1>, vector<16x24xf32>
    %35 = vector.shape_cast %34 : vector<16x24xf32> to vector<16x24x1xf32>
    %cst_26 = arith.constant 0.000000e+00 : f32
    %cst_27 = arith.constant 1.000000e+00 : f32
    %36 = vector.broadcast %cst_26 : f32 to vector<16x24xf32>
    %37 = vector.broadcast %cst_27 : f32 to vector<16x24xf32>
    %38 = arith.select %31, %36, %37 : vector<16x24xi1>, vector<16x24xf32>
    %39 = vector.shape_cast %38 : vector<16x24xf32> to vector<16x24x1xf32>
    %40 = tpu.iota {dimensions = array<i32: 2>} : vector<1x1x24xi32>
    %c20_i32 = arith.constant 20 : i32
    %41 = vector.broadcast %c20_i32 : i32 to vector<1x1x24xi32>
    %42 = arith.cmpi sge, %40, %41 : vector<1x1x24xi32>
    %cst_28 = arith.constant -1.000000e+20 : f32
    %cst_29 = arith.constant 0.000000e+00 : f32
    %43 = vector.broadcast %cst_28 : f32 to vector<1x1x24xf32>
    %44 = vector.broadcast %cst_29 : f32 to vector<1x1x24xf32>
    %45 = arith.select %42, %43, %44 : vector<1x1x24xi1>, vector<1x1x24xf32>
    %46 = vector.broadcast %35 : vector<16x24x1xf32> to vector<16x24x24xf32>
    %47 = arith.addf %27, %46 : vector<16x24x24xf32>
    %48 = vector.broadcast %45 : vector<1x1x24xf32> to vector<16x24x24xf32>
    %49 = arith.addf %47, %48 : vector<16x24x24xf32>
    %cst_30 = arith.constant dense<0xFF800000> : vector<16x24xf32>
    %50 = vector.multi_reduction <maximumf>, %49, %cst_30 [2] : vector<16x24x24xf32> to vector<16x24xf32>
    %51 = vector.shape_cast %50 : vector<16x24xf32> to vector<16x24x1xf32>
    %52 = vector.broadcast %51 : vector<16x24x1xf32> to vector<16x24x24xf32>
    %53 = arith.subf %49, %52 : vector<16x24x24xf32>
    %54 = math.exp %53 : vector<16x24x24xf32>
    %cst_31 = arith.constant dense<0.000000e+00> : vector<16x24xf32>
    %55 = vector.multi_reduction <add>, %54, %cst_31 [2] : vector<16x24x24xf32> to vector<16x24xf32>
    %56 = vector.shape_cast %55 : vector<16x24xf32> to vector<16x24x1xf32>
    %57 = vector.broadcast %56 : vector<16x24x1xf32> to vector<16x24x24xf32>
    %58 = arith.divf %54, %57 : vector<16x24x24xf32>
    %59 = vector.broadcast %39 : vector<16x24x1xf32> to vector<16x24x24xf32>
    %60 = arith.mulf %59, %58 : vector<16x24x24xf32>
    %cst_32 = arith.constant dense<0.000000e+00> : vector<16x24x128xf32>
    %61 = tpu.matmul %60, %1, %cst_32 {dimension_numbers = #tpu.dot_dimension_numbers<[2], [1], [1], [2], [0, 0, 0, 1, 1, 2], [0], [0]>} : vector<16x24x24xf32>, vector<16x24x128xf32>, vector<16x24x128xf32> -> vector<16x24x128xf32>
    %62 = vector.shape_cast %61 : vector<16x24x128xf32> to vector<384x128xf32>
    %cst_33 = arith.constant dense<0.000000e+00> : vector<384x128xf32>
    %63 = tpu.matmul %3, %9, %cst_33 {dimension_numbers = #tpu.dot_dimension_numbers<[1], [0], [0], [1], [0, 0, 1, 1], [], []>} : vector<384x128xf32>, vector<128x128xf32>, vector<384x128xf32> -> vector<384x128xf32>
    %cst_34 = arith.constant dense<0.000000e+00> : vector<384x128xf32>
    %64 = tpu.matmul %62, %10, %cst_34 {dimension_numbers = #tpu.dot_dimension_numbers<[1], [0], [0], [1], [0, 0, 1, 1], [], []>} : vector<384x128xf32>, vector<128x128xf32>, vector<384x128xf32> -> vector<384x128xf32>
    %65 = arith.addf %63, %64 : vector<384x128xf32>
    %66 = arith.mulf %62, %3 : vector<384x128xf32>
    %cst_35 = arith.constant dense<0.000000e+00> : vector<384x128xf32>
    %67 = tpu.matmul %66, %11, %cst_35 {dimension_numbers = #tpu.dot_dimension_numbers<[1], [0], [0], [1], [0, 0, 1, 1], [], []>} : vector<384x128xf32>, vector<128x128xf32>, vector<384x128xf32> -> vector<384x128xf32>
    %68 = arith.addf %65, %67 : vector<384x128xf32>
    %69 = vector.broadcast %14 : vector<1x128xf32> to vector<384x128xf32>
    %70 = arith.addf %68, %69 : vector<384x128xf32>
    %71 = arith.negf %70 : vector<384x128xf32>
    %72 = math.exp %71 : vector<384x128xf32>
    %cst_36 = arith.constant 1.000000e+00 : f32
    %73 = vector.broadcast %cst_36 : f32 to vector<384x128xf32>
    %74 = arith.addf %73, %72 : vector<384x128xf32>
    %75 = arith.divf %73, %74 : vector<384x128xf32>
    %cst_37 = arith.constant 1.000000e+00 : f32
    %76 = vector.broadcast %cst_37 : f32 to vector<384x128xf32>
    %77 = arith.subf %76, %75 : vector<384x128xf32>
    %78 = arith.mulf %77, %3 : vector<384x128xf32>
    %79 = arith.mulf %75, %62 : vector<384x128xf32>
    %80 = arith.addf %78, %79 : vector<384x128xf32>
    %81 = vector.shape_cast %80 : vector<384x128xf32> to vector<16x24x128xf32>
    %c0_38 = arith.constant 0 : index
    %c0_39 = arith.constant 0 : index
    %c0_40 = arith.constant 0 : index
    %82 = vector.load %arg7[%c0_38, %c0_39, %c0_40] : memref<16x24x128xf32, #tpu.memory_space<vmem>>, vector<16x24x128xf32>
    tpu.vector_store %arg7[%c0_38, %c0_39, %c0_40], %81 {strides = array<i32>} : memref<16x24x128xf32, #tpu.memory_space<vmem>>, vector<16x24x128xf32>,
    return
  }
  func.func @transform_0(%arg0: i32) -> (i32, i32, i32) {
    %c0_i32 = arith.constant 0 : i32
    %c0_i32_0 = arith.constant 0 : i32
    %c0_i32_1 = arith.constant 0 : i32
    return %arg0, %c0_i32, %c0_i32_0 : i32, i32, i32
  }
  func.func @transform_1(%arg0: i32) -> (i32, i32, i32) {
    %c0_i32 = arith.constant 0 : i32
    %c0_i32_0 = arith.constant 0 : i32
    %c0_i32_1 = arith.constant 0 : i32
    return %arg0, %c0_i32, %c0_i32_0 : i32, i32, i32
  }
  func.func @transform_2(%arg0: i32) -> (i32, i32, i32) {
    %c0_i32 = arith.constant 0 : i32
    %c0_i32_0 = arith.constant 0 : i32
    %c0_i32_1 = arith.constant 0 : i32
    return %arg0, %c0_i32, %c0_i32_0 : i32, i32, i32
  }
  func.func @transform_3(%arg0: i32) -> (i32, i32) {
    %c0_i32 = arith.constant 0 : i32
    %c0_i32_0 = arith.constant 0 : i32
    return %arg0, %c0_i32 : i32, i32
  }
  func.func @transform_4(%arg0: i32) -> (i32, i32) {
    %c0_i32 = arith.constant 0 : i32
    %c0_i32_0 = arith.constant 0 : i32
    %c0_i32_1 = arith.constant 0 : i32
    return %c0_i32, %c0_i32_0 : i32, i32
  }
  func.func @transform_5(%arg0: i32) -> (i32, i32) {
    %c0_i32 = arith.constant 0 : i32
    %c0_i32_0 = arith.constant 0 : i32
    %c0_i32_1 = arith.constant 0 : i32
    return %c0_i32, %c0_i32_0 : i32, i32
  }
  func.func @transform_6(%arg0: i32) -> (i32, i32, i32) {
    %c0_i32 = arith.constant 0 : i32
    %c0_i32_0 = arith.constant 0 : i32
    %c0_i32_1 = arith.constant 0 : i32
    return %arg0, %c0_i32, %c0_i32_0 : i32, i32, i32
  }
}

</mosaic_0001>

<llo_original>
// kernel: tpu_custom_call.1
$region0: #{tpu_custom_call.1}
  #allocation0 [shape = 'u32[]', space=smem, size = 0x4, offset = 0x4, fixed_abs, tag = 'smem constant byte address 0x4 - core index']
  #allocation1 [shape = 'u32[144,128]{1,0:T(1,128)}', space=vmem, size = 0x12000, scoped, tag = 'internal scratch']
  %s0 = inlined_call_operand.hbm [shape: f32[32,24,128], index: 0, kind: input, shape index: {}]
  %s1 = inlined_call_operand.hbm [shape: f32[32,24,128], index: 1, kind: input, shape index: {}]
  %s2 = inlined_call_operand.hbm [shape: f32[32,24,128], index: 2, kind: input, shape index: {}]
  %s3 = inlined_call_operand.hbm [shape: s32[32,1], index: 3, kind: input, shape index: {}]
  %s4 = inlined_call_operand.hbm [shape: f32[768,128], index: 4, kind: input, shape index: {}]
  %s5 = inlined_call_operand.hbm [shape: f32[3,128], index: 5, kind: input, shape index: {}]
  %s6 = inlined_call_operand.hbm [shape: f32[32,24,128], index: 6, kind: output, shape index: {}]
  %s7 = sld [smem:[#allocation0]]
  $region81: #{tpu_custom_call.1} parent=0
    _
  %s9 = ssub.s32 1, %s7
  %s10 = scalar_select 0, %s9, %s7
  $region1: #{tpu_custom_call.1} parent=0
    #allocation2 [shape = 'u8[393216]{0}', space=vmem, size = 0x60000, scoped, tag = 'input window, operand 0']
    #allocation3 [shape = 's32[2]{0}', space=sflag, size = 0x8, scoped, tag = 'scoped memory for tpu_custom_call.1']
    #allocation4 [shape = 's32[2]{0}', space=sflag, size = 0x8, scoped, tag = 'scoped memory for tpu_custom_call.1']
    #allocation5 [shape = 'u8[393216]{0}', space=vmem, size = 0x60000, scoped, tag = 'input window, operand 1']
    #allocation6 [shape = 's32[2]{0}', space=sflag, size = 0x8, scoped, tag = 'scoped memory for tpu_custom_call.1']
    #allocation7 [shape = 'u8[393216]{0}', space=vmem, size = 0x60000, scoped, tag = 'input window, operand 2']
    #allocation8 [shape = 'u8[16384]{0}', space=vmem, size = 0x4000, scoped, tag = 'input window, operand 3']
    #allocation9 [shape = 's32[2]{0}', space=sflag, size = 0x8, scoped, tag = 'scoped memory for tpu_custom_call.1']
    #allocation10 [shape = 'u8[393216]{0}', space=vmem, size = 0x60000, scoped, tag = 'input window, operand 4, single buffered']
    #allocation11 [shape = 'u8[2048]{0}', space=vmem, size = 0x800, scoped, tag = 'input window, operand 5, single buffered']
    #allocation12 [shape = 's32[1]{0}', space=sflag, size = 0x4, scoped, tag = 'scoped memory for tpu_custom_call.1']
    #allocation13 [shape = 'u8[393216]{0}', space=vmem, size = 0x60000, scoped, tag = 'output window, operand 0']
    %11 = vsyncpa [#allocation3], 0
    %s12 = scalar_lea.sflag [#allocation3], 1
    %13 = vsyncpa %s12, 0
    %14 = vsyncpa [#allocation6], 0
    %s15 = scalar_lea.sflag [#allocation6], 1
    %16 = vsyncpa %s15, 0
    %17 = vsyncpa [#allocation9], 0
    %s18 = scalar_lea.sflag [#allocation9], 1
    %19 = vsyncpa %s18, 0
    %20 = vsyncpa [#allocation12], 0
    %21 = vsyncpa [#allocation4], 0
    %s22 = scalar_lea.sflag [#allocation4], 1
    %23 = vsyncpa %s22, 0
    loop: start=0, step=1, limit=4
    $region2: #{tpu_custom_call.1} parent=1 // loop_pre_header
      _
    $region3: #{tpu_custom_call.1} parent=1 // loop_header
      %s25 = sphi 0, %s29
      %p26 = scmp.ge.s32.totalorder %s25, 4
      %s35 = sphi 0, %s37
      %s38 = sphi 0, %s35
      %s39 = sphi 0, %s38
      %s55 = sphi 0, %s39
      %s61 = sphi 0, %s63
      %s64 = sphi 0, %s61
      %s65 = sphi 0, %s64
      %s81 = sphi 0, %s65
      %s87 = sphi 0, %s89
      %s90 = sphi 0, %s87
      %s91 = sphi 0, %s90
      %s107 = sphi 0, %s91
      %s113 = sphi 0, %s115
      %s116 = sphi 0, %s113
      %s117 = sphi 0, %s116
      %s133 = sphi 0, %s117
      %s137 = sphi 0, %s137
      %s139 = sphi 0, %s137
      %s140 = sphi 0, %s139
      %s154 = sphi 0, %s140
      %s158 = sphi 0, %s158
      %s160 = sphi 0, %s158
      %s161 = sphi 0, %s160
      %s175 = sphi 0, %s161
      %s181 = sphi 0, %s183
      %s184 = sphi 0, %s181
      %s185 = sphi 0, %s184
      %s201 = sphi 0, %s185
    $region4: #{tpu_custom_call.1} parent=1 // loop_header_branch
      %28 = sbr.rel (%p26) target = $region8
    $region5: #{tpu_custom_call.1} parent=1 // loop_body
      %s30 = ssub.s32 %s25, 1
      %s31 = ssub.s32 %s25, 2
      %s32 = sadd.s32 %s25, 1
      %s33 = ssub.s32 %s25, %s32
      %p34 = scmp.eq.s32.totalorder %s33, 0
      %s36 = sadd.s32 %s35, 1
      %s37 = scalar_select %p34, %s35, %s36
      %p40 = pneg %p34
      %p41 = scmp.eq.s32.totalorder %s25, 1
      %p42 = por %p40, %p41
      %p43 = scmp.ne.s32.totalorder %s35, %s38
      %p44 = scmp.eq.s32.totalorder %s25, 0
      %p45 = por %p43, %p44
      %p46 = scmp.ne.s32.totalorder %s35, %s38
      %p47 = scmp.eq.s32.totalorder %s30, 1
      %p48 = por %p46, %p47
      %p49 = scmp.ne.s32.totalorder %s38, %s39
      %p50 = scmp.eq.s32.totalorder %s30, 0
      %p51 = por %p49, %p50
      %p52 = scmp.ne.s32.totalorder %s38, %s39
      %p53 = scmp.eq.s32.totalorder %s31, 1
      %p54 = por %p52, %p53
      %p56 = scmp.ne.s32.totalorder %s39, %s55
      %p57 = scmp.eq.s32.totalorder %s31, 0
      %p58 = por %p56, %p57
      %s59 = ssub.s32 %s25, %s32
      %p60 = scmp.eq.s32.totalorder %s59, 0
      %s62 = sadd.s32 %s61, 1
      %s63 = scalar_select %p60, %s61, %s62
      %p66 = pneg %p60
      %p67 = scmp.eq.s32.totalorder %s25, 1
      %p68 = por %p66, %p67
      %p69 = scmp.ne.s32.totalorder %s61, %s64
      %p70 = scmp.eq.s32.totalorder %s25, 0
      %p71 = por %p69, %p70
      %p72 = scmp.ne.s32.totalorder %s61, %s64
      %p73 = scmp.eq.s32.totalorder %s30, 1
      %p74 = por %p72, %p73
      %p75 = scmp.ne.s32.totalorder %s64, %s65
      %p76 = scmp.eq.s32.totalorder %s30, 0
      %p77 = por %p75, %p76
      %p78 = scmp.ne.s32.totalorder %s64, %s65
      %p79 = scmp.eq.s32.totalorder %s31, 1
      %p80 = por %p78, %p79
      %p82 = scmp.ne.s32.totalorder %s65, %s81
      %p83 = scmp.eq.s32.totalorder %s31, 0
      %p84 = por %p82, %p83
      %s85 = ssub.s32 %s25, %s32
      %p86 = scmp.eq.s32.totalorder %s85, 0
      %s88 = sadd.s32 %s87, 1
      %s89 = scalar_select %p86, %s87, %s88
      %p92 = pneg %p86
      %p93 = scmp.eq.s32.totalorder %s25, 1
      %p94 = por %p92, %p93
      %p95 = scmp.ne.s32.totalorder %s87, %s90
      %p96 = scmp.eq.s32.totalorder %s25, 0
      %p97 = por %p95, %p96
      %p98 = scmp.ne.s32.totalorder %s87, %s90
      %p99 = scmp.eq.s32.totalorder %s30, 1
      %p100 = por %p98, %p99
      %p101 = scmp.ne.s32.totalorder %s90, %s91
      %p102 = scmp.eq.s32.totalorder %s30, 0
      %p103 = por %p101, %p102
      %p104 = scmp.ne.s32.totalorder %s90, %s91
      %p105 = scmp.eq.s32.totalorder %s31, 1
      %p106 = por %p104, %p105
      %p108 = scmp.ne.s32.totalorder %s91, %s107
      %p109 = scmp.eq.s32.totalorder %s31, 0
      %p110 = por %p108, %p109
      %s111 = ssub.s32 %s25, %s32
      %p112 = scmp.eq.s32.totalorder %s111, 0
      %s114 = sadd.s32 %s113, 1
      %s115 = scalar_select %p112, %s113, %s114
      %p118 = pneg %p112
      %p119 = scmp.eq.s32.totalorder %s25, 1
      %p120 = por %p118, %p119
      %p121 = scmp.ne.s32.totalorder %s113, %s116
      %p122 = scmp.eq.s32.totalorder %s25, 0
      %p123 = por %p121, %p122
      %p124 = scmp.ne.s32.totalorder %s113, %s116
      %p125 = scmp.eq.s32.totalorder %s30, 1
      %p126 = por %p124, %p125
      %p127 = scmp.ne.s32.totalorder %s116, %s117
      %p128 = scmp.eq.s32.totalorder %s30, 0
      %p129 = por %p127, %p128
      %p130 = scmp.ne.s32.totalorder %s116, %s117
      %p131 = scmp.eq.s32.totalorder %s31, 1
      %p132 = por %p130, %p131
      %p134 = scmp.ne.s32.totalorder %s117, %s133
      %p135 = scmp.eq.s32.totalorder %s31, 0
      %p136 = por %p134, %p135
      %s138 = sadd.s32 %s137, 1
      %p141 = scmp.eq.s32.totalorder %s25, 1
      %p142 = scmp.ne.s32.totalorder %s137, %s139
      %p143 = scmp.eq.s32.totalorder %s25, 0
      %p144 = por %p142, %p143
      %p145 = scmp.ne.s32.totalorder %s137, %s139
      %p146 = scmp.eq.s32.totalorder %s30, 1
      %p147 = por %p145, %p146
      %p148 = scmp.ne.s32.totalorder %s139, %s140
      %p149 = scmp.eq.s32.totalorder %s30, 0
      %p150 = por %p148, %p149
      %p151 = scmp.ne.s32.totalorder %s139, %s140
      %p152 = scmp.eq.s32.totalorder %s31, 1
      %p153 = por %p151, %p152
      %p155 = scmp.ne.s32.totalorder %s140, %s154
      %p156 = scmp.eq.s32.totalorder %s31, 0
      %p157 = por %p155, %p156
      %s159 = sadd.s32 %s158, 1
      %p162 = scmp.eq.s32.totalorder %s25, 1
      %p163 = scmp.ne.s32.totalorder %s158, %s160
      %p164 = scmp.eq.s32.totalorder %s25, 0
      %p165 = por %p163, %p164
      %p166 = scmp.ne.s32.totalorder %s158, %s160
      %p167 = scmp.eq.s32.totalorder %s30, 1
      %p168 = por %p166, %p167
      %p169 = scmp.ne.s32.totalorder %s160, %s161
      %p170 = scmp.eq.s32.totalorder %s30, 0
      %p171 = por %p169, %p170
      %p172 = scmp.ne.s32.totalorder %s160, %s161
      %p173 = scmp.eq.s32.totalorder %s31, 1
      %p174 = por %p172, %p173
      %p176 = scmp.ne.s32.totalorder %s161, %s175
      %p177 = scmp.eq.s32.totalorder %s31, 0
      %p178 = por %p176, %p177
      %s179 = ssub.s32 %s25, %s32
      %p180 = scmp.eq.s32.totalorder %s179, 0
      %s182 = sadd.s32 %s181, 1
      %s183 = scalar_select %p180, %s181, %s182
      %p186 = pneg %p180
      %p187 = scmp.eq.s32.totalorder %s25, 1
      %p188 = por %p186, %p187
      %p189 = scmp.ne.s32.totalorder %s181, %s184
      %p190 = scmp.eq.s32.totalorder %s25, 0
      %p191 = por %p189, %p190
      %p192 = scmp.ne.s32.totalorder %s181, %s184
      %p193 = scmp.eq.s32.totalorder %s30, 1
      %p194 = por %p192, %p193
      %p195 = scmp.ne.s32.totalorder %s184, %s185
      %p196 = scmp.eq.s32.totalorder %s30, 0
      %p197 = por %p195, %p196
      %p198 = scmp.ne.s32.totalorder %s184, %s185
      %p199 = scmp.eq.s32.totalorder %s31, 1
      %p200 = por %p198, %p199
      %p202 = scmp.ne.s32.totalorder %s185, %s201
      %p203 = scmp.eq.s32.totalorder %s31, 0
      %p204 = por %p202, %p203
      %p205 = scmp.le.s32.totalorder 1, %s25
      %p206 = scmp.lt.s32.totalorder %s25, 3
      %p207 = pnand %p205, %p206
      %p208 = pneg %p207
      // Predicated region
      $region9: #{tpu_custom_call.1} parent=5 // pred_check
        _
      $region10: #{tpu_custom_call.1} parent=5 // pred_check_branch
        %210 = sbr.rel (%p207) target = $region12
      $region11: #{tpu_custom_call.1} parent=5 // pred_region
        %s211 = ssub.s32 %s25, 1
        // Predicated region
        $region13: #{tpu_custom_call.1} parent=11 // pred_check
          %p212 = pneg %p150
        $region14: #{tpu_custom_call.1} parent=11 // pred_check_branch
          %214 = sbr.rel (%p212) target = $region16
        $region15: #{tpu_custom_call.1} parent=11 // pred_region
          %s216 = ssub.s32 12288, 12288
          %217 = vsyncadd [#allocation9], %s216
          %s218 = sshll.u32 [#allocation10], 4
          %s219 = int_to_ptr.vmem [resolvable:$true] %s218
          %224 = dma.hbm_to_vmem [thread:$0]  %s4, 12288, %s219, [#allocation9], 128, 128, 8
        $region16: #{tpu_custom_call.1} parent=11 // pred_fallthru
          _
        // Predicated region
        $region17: #{tpu_custom_call.1} parent=11 // pred_check
          %p225 = pneg %p171
        $region18: #{tpu_custom_call.1} parent=11 // pred_check_branch
          %227 = sbr.rel (%p225) target = $region20
        $region19: #{tpu_custom_call.1} parent=11 // pred_region
          %s229 = ssub.s32 64, 64
          %230 = vsyncadd [#allocation12], %s229
          %s232 = sshll.u32 [#allocation11], 4
          %s233 = int_to_ptr.vmem [resolvable:$true] %s232
          %235 = dma.hbm_to_vmem [thread:$0]  %s5, 64, %s233, [#allocation12]
        $region20: #{tpu_custom_call.1} parent=11 // pred_fallthru
          _
      $region12: #{tpu_custom_call.1} parent=5 // pred_fallthru
        _
      %p236 = scmp.lt.s32.totalorder %s25, 2
      // Predicated region
      $region21: #{tpu_custom_call.1} parent=5 // pred_check
        %p237 = pneg %p236
      $region22: #{tpu_custom_call.1} parent=5 // pred_check_branch
        %239 = sbr.rel (%p237) target = $region24
      $region23: #{tpu_custom_call.1} parent=5 // pred_region
        // Predicated region
        $region25: #{tpu_custom_call.1} parent=23 // pred_check
          %p240 = pneg %p45
        $region26: #{tpu_custom_call.1} parent=23 // pred_check_branch
          %242 = sbr.rel (%p240) target = $region28
        $region27: #{tpu_custom_call.1} parent=23 // pred_region
          %s243 = sand.u32 %s35, 1
          %s244 = scalar_lea.sflag [#allocation3], %s243
          %s245 = sand.u32 %s35, 1
          %s246 = smul.addr %s245, 384
          %s247 = scalar_lea.vmem [#allocation2], %s246
          %s248 = smul.u32 16, %s25
          %s250 = ssub.s32 6144, 6144
          %251 = vsyncadd %s244, %s250
          %s252 = smul.addr %s248, 3
          %s253 = smul.addr %s252, 128
          %s254 = scalar_lea.hbm %s0, %s253
          %s255 = sshll.u32 %s247, 4
          %s256 = int_to_ptr.vmem [resolvable:$true] %s255
          %261 = dma.hbm_to_vmem [thread:$0]  %s254, 6144, %s256, %s244, 128, 128, 8
        $region28: #{tpu_custom_call.1} parent=23 // pred_fallthru
          _
        // Predicated region
        $region29: #{tpu_custom_call.1} parent=23 // pred_check
          %p262 = pneg %p71
        $region30: #{tpu_custom_call.1} parent=23 // pred_check_branch
          %264 = sbr.rel (%p262) target = $region32
        $region31: #{tpu_custom_call.1} parent=23 // pred_region
          %s265 = sand.u32 %s25, 1
          %s266 = scalar_lea.sflag [#allocation6], %s265
          %s267 = sand.u32 %s61, 1
          %s268 = smul.addr %s267, 384
          %s269 = scalar_lea.vmem [#allocation5], %s268
          %s270 = smul.u32 16, %s25
          %s272 = ssub.s32 6144, 6144
          %273 = vsyncadd %s266, %s272
          %s274 = smul.addr %s270, 3
          %s275 = smul.addr %s274, 128
          %s276 = scalar_lea.hbm %s1, %s275
          %s277 = sshll.u32 %s269, 4
          %s278 = int_to_ptr.vmem [resolvable:$true] %s277
          %283 = dma.hbm_to_vmem [thread:$0]  %s276, 6144, %s278, %s266, 128, 128, 8
        $region32: #{tpu_custom_call.1} parent=23 // pred_fallthru
          _
        // Predicated region
        $region33: #{tpu_custom_call.1} parent=23 // pred_check
          %p284 = pneg %p97
        $region34: #{tpu_custom_call.1} parent=23 // pred_check_branch
          %286 = sbr.rel (%p284) target = $region36
        $region35: #{tpu_custom_call.1} parent=23 // pred_region
          %s287 = sand.u32 %s25, 1
          %s288 = scalar_lea.sflag [#allocation6], %s287
          %s289 = sand.u32 %s87, 1
          %s290 = smul.addr %s289, 384
          %s291 = scalar_lea.vmem [#allocation7], %s290
          %s292 = smul.u32 16, %s25
          %s294 = ssub.s32 6144, 6144
          %295 = vsyncadd %s288, %s294
          %s296 = smul.addr %s292, 3
          %s297 = smul.addr %s296, 128
          %s298 = scalar_lea.hbm %s2, %s297
          %s299 = sshll.u32 %s291, 4
          %s300 = int_to_ptr.vmem [resolvable:$true] %s299
          %305 = dma.hbm_to_vmem [thread:$0]  %s298, 6144, %s300, %s288, 128, 128, 8
        $region36: #{tpu_custom_call.1} parent=23 // pred_fallthru
          _
        // Predicated region
        $region37: #{tpu_custom_call.1} parent=23 // pred_check
          %p306 = pneg %p123
        $region38: #{tpu_custom_call.1} parent=23 // pred_check_branch
          %308 = sbr.rel (%p306) target = $region40
        $region39: #{tpu_custom_call.1} parent=23 // pred_region
          %s309 = sand.u32 %s25, 1
          %s310 = scalar_lea.sflag [#allocation9], %s309
          %s311 = sand.u32 %s113, 1
          %s312 = smul.addr %s311, 16
          %s313 = scalar_lea.vmem [#allocation8], %s312
          %s314 = smul.u32 2, %s25
          %s316 = ssub.s32 256, 256
          %317 = vsyncadd %s310, %s316
          %s318 = smul.addr %s314, 128
          %s319 = scalar_lea.hbm %s3, %s318
          %s320 = sshll.u32 %s313, 4
          %s321 = int_to_ptr.vmem [resolvable:$true] %s320
          %326 = dma.hbm_to_vmem [thread:$0]  %s319, 256, %s321, %s310, 128, 128, 8
        $region40: #{tpu_custom_call.1} parent=23 // pred_fallthru
          _
      $region24: #{tpu_custom_call.1} parent=5 // pred_fallthru
        _
      %p327 = scmp.le.s32.totalorder 1, %s25
      %p328 = scmp.lt.s32.totalorder %s25, 3
      %p329 = pnand %p327, %p328
      %p330 = pneg %p329
      // Predicated region
      $region41: #{tpu_custom_call.1} parent=5 // pred_check
        _
      $region42: #{tpu_custom_call.1} parent=5 // pred_check_branch
        %332 = sbr.rel (%p329) target = $region44
      $region43: #{tpu_custom_call.1} parent=5 // pred_region
        %s333 = ssub.s32 %s25, 1
        %s334 = sand.u32 %s38, 1
        %s335 = scalar_lea.sflag [#allocation3], %s334
        %s336 = sand.u32 %s38, 1
        %s337 = smul.addr %s336, 384
        %s338 = scalar_lea.vmem [#allocation2], %s337
        // Predicated region
        $region45: #{tpu_custom_call.1} parent=43 // pred_check
          %p339 = pneg %p51
        $region46: #{tpu_custom_call.1} parent=43 // pred_check_branch
          %341 = sbr.rel (%p339) target = $region48
        $region47: #{tpu_custom_call.1} parent=43 // pred_region
          %342 = dma.done %s335, 6144
        $region48: #{tpu_custom_call.1} parent=43 // pred_fallthru
          _
        %s343 = sand.u32 %s30, 1
        %s344 = scalar_lea.sflag [#allocation6], %s343
        %s345 = sand.u32 %s64, 1
        %s346 = smul.addr %s345, 384
        %s347 = scalar_lea.vmem [#allocation5], %s346
        // Predicated region
        $region49: #{tpu_custom_call.1} parent=43 // pred_check
          %p348 = pneg %p77
        $region50: #{tpu_custom_call.1} parent=43 // pred_check_branch
          %350 = sbr.rel (%p348) target = $region52
        $region51: #{tpu_custom_call.1} parent=43 // pred_region
          %351 = dma.done %s344, 6144
        $region52: #{tpu_custom_call.1} parent=43 // pred_fallthru
          _
        %s352 = sand.u32 %s30, 1
        %s353 = scalar_lea.sflag [#allocation6], %s352
        %s354 = sand.u32 %s90, 1
        %s355 = smul.addr %s354, 384
        %s356 = scalar_lea.vmem [#allocation7], %s355
        // Predicated region
        $region53: #{tpu_custom_call.1} parent=43 // pred_check
          %p357 = pneg %p103
        $region54: #{tpu_custom_call.1} parent=43 // pred_check_branch
          %359 = sbr.rel (%p357) target = $region56
        $region55: #{tpu_custom_call.1} parent=43 // pred_region
          %360 = dma.done %s353, 6144
        $region56: #{tpu_custom_call.1} parent=43 // pred_fallthru
          _
        %s361 = sand.u32 %s30, 1
        %s362 = scalar_lea.sflag [#allocation9], %s361
        %s363 = sand.u32 %s116, 1
        %s364 = smul.addr %s363, 16
        %s365 = scalar_lea.vmem [#allocation8], %s364
        // Predicated region
        $region57: #{tpu_custom_call.1} parent=43 // pred_check
          %p366 = pneg %p129
        $region58: #{tpu_custom_call.1} parent=43 // pred_check_branch
          %368 = sbr.rel (%p366) target = $region60
        $region59: #{tpu_custom_call.1} parent=43 // pred_region
          %369 = dma.done %s362, 256
        $region60: #{tpu_custom_call.1} parent=43 // pred_fallthru
          _
        // Predicated region
        $region61: #{tpu_custom_call.1} parent=43 // pred_check
          %p370 = pneg %p150
        $region62: #{tpu_custom_call.1} parent=43 // pred_check_branch
          %372 = sbr.rel (%p370) target = $region64
        $region63: #{tpu_custom_call.1} parent=43 // pred_region
          %373 = dma.done [#allocation9], 12288
        $region64: #{tpu_custom_call.1} parent=43 // pred_fallthru
          _
        // Predicated region
        $region65: #{tpu_custom_call.1} parent=43 // pred_check
          %p374 = pneg %p171
        $region66: #{tpu_custom_call.1} parent=43 // pred_check_branch
          %376 = sbr.rel (%p374) target = $region68
        $region67: #{tpu_custom_call.1} parent=43 // pred_region
          %377 = dma.done [#allocation12], 64
        $region68: #{tpu_custom_call.1} parent=43 // pred_fallthru
          _
        %s378 = sand.u32 %s38, 1
        %s379 = scalar_lea.sflag [#allocation3], %s378
        %s380 = sand.u32 %s38, 1
        %s381 = smul.addr %s380, 384
        %s382 = scalar_lea.vmem [#allocation2], %s381
        %p383 = pneg %p51
        %p384 = pneg %p48
        %s385 = sand.u32 %s30, 1
        %s386 = scalar_lea.sflag [#allocation6], %s385
        %s387 = sand.u32 %s64, 1
        %s388 = smul.addr %s387, 384
        %s389 = scalar_lea.vmem [#allocation5], %s388
        %p390 = pneg %p77
        %p391 = pneg %p74
        %s392 = sand.u32 %s30, 1
        %s393 = scalar_lea.sflag [#allocation6], %s392
        %s394 = sand.u32 %s90, 1
        %s395 = smul.addr %s394, 384
        %s396 = scalar_lea.vmem [#allocation7], %s395
        %p397 = pneg %p103
        %p398 = pneg %p100
        %s399 = sand.u32 %s30, 1
        %s400 = scalar_lea.sflag [#allocation9], %s399
        %s401 = sand.u32 %s116, 1
        %s402 = smul.addr %s401, 16
        %s403 = scalar_lea.vmem [#allocation8], %s402
        %p404 = pneg %p129
        %p405 = pneg %p126
        %p406 = pneg %p150
        %p407 = pneg %p147
        %p408 = pneg %p171
        %p409 = pneg %p168
        %p410 = pneg %p197
        %p411 = pneg %p194
        %s412 = sand.u32 %s184, 1
        %s413 = scalar_lea.sflag [#allocation4], %s412
        %s414 = sand.u32 %s184, 1
        %s415 = smul.addr %s414, 384
        %s416 = scalar_lea.vmem [#allocation13], %s415
        %s417 = smul.u32 16, %s30
        %s418 = smul.u32 16, %s30
        %s419 = smul.u32 16, %s30
        %s420 = smul.u32 2, %s30
        %s421 = smul.u32 16, %s30
        %v422 = vld [vmem:[%s338] sm:$0xff]
        %v423 = vld [vmem:[%s338 + $0x8] sm:$0xff]
        %v424 = vld [vmem:[%s338 + $0x10] sm:$0xff]
        %v425 = vld [vmem:[%s338 + $0x18] sm:$0xff]
        %v426 = vld [vmem:[%s338 + $0x20] sm:$0xff]
        %v427 = vld [vmem:[%s338 + $0x28] sm:$0xff]
        %v428 = vld [vmem:[%s338 + $0x30] sm:$0xff]
        %v429 = vld [vmem:[%s338 + $0x38] sm:$0xff]
        %v430 = vld [vmem:[%s338 + $0x40] sm:$0xff]
        %v431 = vld [vmem:[%s338 + $0x48] sm:$0xff]
        %v432 = vld [vmem:[%s338 + $0x50] sm:$0xff]
        %v433 = vld [vmem:[%s338 + $0x58] sm:$0xff]
        %v434 = vld [vmem:[%s338 + $0x60] sm:$0xff]
        %v435 = vld [vmem:[%s338 + $0x68] sm:$0xff]
        %v436 = vld [vmem:[%s338 + $0x70] sm:$0xff]
        %v437 = vld [vmem:[%s338 + $0x78] sm:$0xff]
        %v438 = vld [vmem:[%s338 + $0x80] sm:$0xff]
        %v439 = vld [vmem:[%s338 + $0x88] sm:$0xff]
        %v440 = vld [vmem:[%s338 + $0x90] sm:$0xff]
        %v441 = vld [vmem:[%s338 + $0x98] sm:$0xff]
        %v442 = vld [vmem:[%s338 + $0xa0] sm:$0xff]
        %v443 = vld [vmem:[%s338 + $0xa8] sm:$0xff]
        %v444 = vld [vmem:[%s338 + $0xb0] sm:$0xff]
        %v445 = vld [vmem:[%s338 + $0xb8] sm:$0xff]
        %v446 = vld [vmem:[%s338 + $0xc0] sm:$0xff]
        %v447 = vld [vmem:[%s338 + $0xc8] sm:$0xff]
        %v448 = vld [vmem:[%s338 + $0xd0] sm:$0xff]
        %v449 = vld [vmem:[%s338 + $0xd8] sm:$0xff]
        %v450 = vld [vmem:[%s338 + $0xe0] sm:$0xff]
        %v451 = vld [vmem:[%s338 + $0xe8] sm:$0xff]
        %v452 = vld [vmem:[%s338 + $0xf0] sm:$0xff]
        %v453 = vld [vmem:[%s338 + $0xf8] sm:$0xff]
        %v454 = vld [vmem:[%s338 + $0x100] sm:$0xff]
        %v455 = vld [vmem:[%s338 + $0x108] sm:$0xff]
        %v456 = vld [vmem:[%s338 + $0x110] sm:$0xff]
        %v457 = vld [vmem:[%s338 + $0x118] sm:$0xff]
        %v458 = vld [vmem:[%s338 + $0x120] sm:$0xff]
        %v459 = vld [vmem:[%s338 + $0x128] sm:$0xff]
        %v460 = vld [vmem:[%s338 + $0x130] sm:$0xff]
        %v461 = vld [vmem:[%s338 + $0x138] sm:$0xff]
        %v462 = vld [vmem:[%s338 + $0x140] sm:$0xff]
        %v463 = vld [vmem:[%s338 + $0x148] sm:$0xff]
        %v464 = vld [vmem:[%s338 + $0x150] sm:$0xff]
        %v465 = vld [vmem:[%s338 + $0x158] sm:$0xff]
        %v466 = vld [vmem:[%s338 + $0x160] sm:$0xff]
        %v467 = vld [vmem:[%s338 + $0x168] sm:$0xff]
        %v468 = vld [vmem:[%s338 + $0x170] sm:$0xff]
        %v469 = vld [vmem:[%s338 + $0x178] sm:$0xff]
        %v470 = vld [vmem:[%s347] sm:$0xff]
        %v471 = vld [vmem:[%s347 + $0x8] sm:$0xff]
        %v472 = vld [vmem:[%s347 + $0x10] sm:$0xff]
        %v473 = vld [vmem:[%s347 + $0x18] sm:$0xff]
        %v474 = vld [vmem:[%s347 + $0x20] sm:$0xff]
        %v475 = vld [vmem:[%s347 + $0x28] sm:$0xff]
        %v476 = vld [vmem:[%s347 + $0x30] sm:$0xff]
        %v477 = vld [vmem:[%s347 + $0x38] sm:$0xff]
        %v478 = vld [vmem:[%s347 + $0x40] sm:$0xff]
        %v479 = vld [vmem:[%s347 + $0x48] sm:$0xff]
        %v480 = vld [vmem:[%s347 + $0x50] sm:$0xff]
        %v481 = vld [vmem:[%s347 + $0x58] sm:$0xff]
        %v482 = vld [vmem:[%s347 + $0x60] sm:$0xff]
        %v483 = vld [vmem:[%s347 + $0x68] sm:$0xff]
        %v484 = vld [vmem:[%s347 + $0x70] sm:$0xff]
        %v485 = vld [vmem:[%s347 + $0x78] sm:$0xff]
        %v486 = vld [vmem:[%s347 + $0x80] sm:$0xff]
        %v487 = vld [vmem:[%s347 + $0x88] sm:$0xff]
        %v488 = vld [vmem:[%s347 + $0x90] sm:$0xff]
        %v489 = vld [vmem:[%s347 + $0x98] sm:$0xff]
        %v490 = vld [vmem:[%s347 + $0xa0] sm:$0xff]
        %v491 = vld [vmem:[%s347 + $0xa8] sm:$0xff]
        %v492 = vld [vmem:[%s347 + $0xb0] sm:$0xff]
        %v493 = vld [vmem:[%s347 + $0xb8] sm:$0xff]
        %v494 = vld [vmem:[%s347 + $0xc0] sm:$0xff]
        %v495 = vld [vmem:[%s347 + $0xc8] sm:$0xff]
        %v496 = vld [vmem:[%s347 + $0xd0] sm:$0xff]
        %v497 = vld [vmem:[%s347 + $0xd8] sm:$0xff]
        %v498 = vld [vmem:[%s347 + $0xe0] sm:$0xff]
        %v499 = vld [vmem:[%s347 + $0xe8] sm:$0xff]
        %v500 = vld [vmem:[%s347 + $0xf0] sm:$0xff]
        %v501 = vld [vmem:[%s347 + $0xf8] sm:$0xff]
        %v502 = vld [vmem:[%s347 + $0x100] sm:$0xff]
        %v503 = vld [vmem:[%s347 + $0x108] sm:$0xff]
        %v504 = vld [vmem:[%s347 + $0x110] sm:$0xff]
        %v505 = vld [vmem:[%s347 + $0x118] sm:$0xff]
        %v506 = vld [vmem:[%s347 + $0x120] sm:$0xff]
        %v507 = vld [vmem:[%s347 + $0x128] sm:$0xff]
        %v508 = vld [vmem:[%s347 + $0x130] sm:$0xff]
        %v509 = vld [vmem:[%s347 + $0x138] sm:$0xff]
        %v510 = vld [vmem:[%s347 + $0x140] sm:$0xff]
        %v511 = vld [vmem:[%s347 + $0x148] sm:$0xff]
        %v512 = vld [vmem:[%s347 + $0x150] sm:$0xff]
        %v513 = vld [vmem:[%s347 + $0x158] sm:$0xff]
        %v514 = vld [vmem:[%s347 + $0x160] sm:$0xff]
        %v515 = vld [vmem:[%s347 + $0x168] sm:$0xff]
        %v516 = vld [vmem:[%s347 + $0x170] sm:$0xff]
        %v517 = vld [vmem:[%s347 + $0x178] sm:$0xff]
        %v518 = vld [vmem:[%s356] sm:$0xff]
        %v519 = vld [vmem:[%s356 + $0x8] sm:$0xff]
        %v520 = vld [vmem:[%s356 + $0x10] sm:$0xff]
        %v521 = vld [vmem:[%s356 + $0x18] sm:$0xff]
        %v522 = vld [vmem:[%s356 + $0x20] sm:$0xff]
        %v523 = vld [vmem:[%s356 + $0x28] sm:$0xff]
        %v524 = vld [vmem:[%s356 + $0x30] sm:$0xff]
        %v525 = vld [vmem:[%s356 + $0x38] sm:$0xff]
        %v526 = vld [vmem:[%s356 + $0x40] sm:$0xff]
        %v527 = vld [vmem:[%s356 + $0x48] sm:$0xff]
        %v528 = vld [vmem:[%s356 + $0x50] sm:$0xff]
        %v529 = vld [vmem:[%s356 + $0x58] sm:$0xff]
        %v530 = vld [vmem:[%s356 + $0x60] sm:$0xff]
        %v531 = vld [vmem:[%s356 + $0x68] sm:$0xff]
        %v532 = vld [vmem:[%s356 + $0x70] sm:$0xff]
        %v533 = vld [vmem:[%s356 + $0x78] sm:$0xff]
        %v534 = vld [vmem:[%s356 + $0x80] sm:$0xff]
        %v535 = vld [vmem:[%s356 + $0x88] sm:$0xff]
        %v536 = vld [vmem:[%s356 + $0x90] sm:$0xff]
        %v537 = vld [vmem:[%s356 + $0x98] sm:$0xff]
        %v538 = vld [vmem:[%s356 + $0xa0] sm:$0xff]
        %v539 = vld [vmem:[%s356 + $0xa8] sm:$0xff]
        %v540 = vld [vmem:[%s356 + $0xb0] sm:$0xff]
        %v541 = vld [vmem:[%s356 + $0xb8] sm:$0xff]
        %v542 = vld [vmem:[%s356 + $0xc0] sm:$0xff]
        %v543 = vld [vmem:[%s356 + $0xc8] sm:$0xff]
        %v544 = vld [vmem:[%s356 + $0xd0] sm:$0xff]
        %v545 = vld [vmem:[%s356 + $0xd8] sm:$0xff]
        %v546 = vld [vmem:[%s356 + $0xe0] sm:$0xff]
        %v547 = vld [vmem:[%s356 + $0xe8] sm:$0xff]
        %v548 = vld [vmem:[%s356 + $0xf0] sm:$0xff]
        %v549 = vld [vmem:[%s356 + $0xf8] sm:$0xff]
        %v550 = vld [vmem:[%s356 + $0x100] sm:$0xff]
        %v551 = vld [vmem:[%s356 + $0x108] sm:$0xff]
        %v552 = vld [vmem:[%s356 + $0x110] sm:$0xff]
        %v553 = vld [vmem:[%s356 + $0x118] sm:$0xff]
        %v554 = vld [vmem:[%s356 + $0x120] sm:$0xff]
        %v555 = vld [vmem:[%s356 + $0x128] sm:$0xff]
        %v556 = vld [vmem:[%s356 + $0x130] sm:$0xff]
        %v557 = vld [vmem:[%s356 + $0x138] sm:$0xff]
        %v558 = vld [vmem:[%s356 + $0x140] sm:$0xff]
        %v559 = vld [vmem:[%s356 + $0x148] sm:$0xff]
        %v560 = vld [vmem:[%s356 + $0x150] sm:$0xff]
        %v561 = vld [vmem:[%s356 + $0x158] sm:$0xff]
        %v562 = vld [vmem:[%s356 + $0x160] sm:$0xff]
        %v563 = vld [vmem:[%s356 + $0x168] sm:$0xff]
        %v564 = vld [vmem:[%s356 + $0x170] sm:$0xff]
        %v565 = vld [vmem:[%s356 + $0x178] sm:$0xff]
        %v566 = vld [vmem:[#allocation10] sm:$0xff]
        %v567 = vld [vmem:[#allocation10 + $0x8] sm:$0xff]
        %v568 = vld [vmem:[#allocation10 + $0x10] sm:$0xff]
        %v569 = vld [vmem:[#allocation10 + $0x18] sm:$0xff]
        %v570 = vld [vmem:[#allocation10 + $0x20] sm:$0xff]
        %v571 = vld [vmem:[#allocation10 + $0x28] sm:$0xff]
        %v572 = vld [vmem:[#allocation10 + $0x30] sm:$0xff]
        %v573 = vld [vmem:[#allocation10 + $0x38] sm:$0xff]
        %v574 = vld [vmem:[#allocation10 + $0x40] sm:$0xff]
        %v575 = vld [vmem:[#allocation10 + $0x48] sm:$0xff]
        %v576 = vld [vmem:[#allocation10 + $0x50] sm:$0xff]
        %v577 = vld [vmem:[#allocation10 + $0x58] sm:$0xff]
        %v578 = vld [vmem:[#allocation10 + $0x60] sm:$0xff]
        %v579 = vld [vmem:[#allocation10 + $0x68] sm:$0xff]
        %v580 = vld [vmem:[#allocation10 + $0x70] sm:$0xff]
        %v581 = vld [vmem:[#allocation10 + $0x78] sm:$0xff]
        %v582 = vld [vmem:[#allocation10 + $0x80] sm:$0xff]
        %v583 = vld [vmem:[#allocation10 + $0x88] sm:$0xff]
        %v584 = vld [vmem:[#allocation10 + $0x90] sm:$0xff]
        %v585 = vld [vmem:[#allocation10 + $0x98] sm:$0xff]
        %v586 = vld [vmem:[#allocation10 + $0xa0] sm:$0xff]
        %v587 = vld [vmem:[#allocation10 + $0xa8] sm:$0xff]
        %v588 = vld [vmem:[#allocation10 + $0xb0] sm:$0xff]
        %v589 = vld [vmem:[#allocation10 + $0xb8] sm:$0xff]
        %v590 = vld [vmem:[#allocation10 + $0xc0] sm:$0xff]
        %v591 = vld [vmem:[#allocation10 + $0xc8] sm:$0xff]
        %v592 = vld [vmem:[#allocation10 + $0xd0] sm:$0xff]
        %v593 = vld [vmem:[#allocation10 + $0xd8] sm:$0xff]
        %v594 = vld [vmem:[#allocation10 + $0xe0] sm:$0xff]
        %v595 = vld [vmem:[#allocation10 + $0xe8] sm:$0xff]
        %v596 = vld [vmem:[#allocation10 + $0xf0] sm:$0xff]
        %v597 = vld [vmem:[#allocation10 + $0xf8] sm:$0xff]
        %v598 = vld [vmem:[#allocation10 + $0x100] sm:$0xff]
        %v599 = vld [vmem:[#allocation10 + $0x108] sm:$0xff]
        %v600 = vld [vmem:[#allocation10 + $0x110] sm:$0xff]
        %v601 = vld [vmem:[#allocation10 + $0x118] sm:$0xff]
        %v602 = vld [vmem:[#allocation10 + $0x120] sm:$0xff]
        %v603 = vld [vmem:[#allocation10 + $0x128] sm:$0xff]
        %v604 = vld [vmem:[#allocation10 + $0x130] sm:$0xff]
        %v605 = vld [vmem:[#allocation10 + $0x138] sm:$0xff]
        %v606 = vld [vmem:[#allocation10 + $0x140] sm:$0xff]
        %v607 = vld [vmem:[#allocation10 + $0x148] sm:$0xff]
        %v608 = vld [vmem:[#allocation10 + $0x150] sm:$0xff]
        %v609 = vld [vmem:[#allocation10 + $0x158] sm:$0xff]
        %v610 = vld [vmem:[#allocation10 + $0x160] sm:$0xff]
        %v611 = vld [vmem:[#allocation10 + $0x168] sm:$0xff]
        %v612 = vld [vmem:[#allocation10 + $0x170] sm:$0xff]
        %v613 = vld [vmem:[#allocation10 + $0x178] sm:$0xff]
        %v614 = vld [vmem:[#allocation10 + $0x180] sm:$0xff]
        %v615 = vld [vmem:[#allocation10 + $0x188] sm:$0xff]
        %v616 = vld [vmem:[#allocation10 + $0x190] sm:$0xff]
        %v617 = vld [vmem:[#allocation10 + $0x198] sm:$0xff]
        %v618 = vld [vmem:[#allocation10 + $0x1a0] sm:$0xff]
        %v619 = vld [vmem:[#allocation10 + $0x1a8] sm:$0xff]
        %v620 = vld [vmem:[#allocation10 + $0x1b0] sm:$0xff]
        %v621 = vld [vmem:[#allocation10 + $0x1b8] sm:$0xff]
        %v622 = vld [vmem:[#allocation10 + $0x1c0] sm:$0xff]
        %v623 = vld [vmem:[#allocation10 + $0x1c8] sm:$0xff]
        %v624 = vld [vmem:[#allocation10 + $0x1d0] sm:$0xff]
        %v625 = vld [vmem:[#allocation10 + $0x1d8] sm:$0xff]
        %v626 = vld [vmem:[#allocation10 + $0x1e0] sm:$0xff]
        %v627 = vld [vmem:[#allocation10 + $0x1e8] sm:$0xff]
        %v628 = vld [vmem:[#allocation10 + $0x1f0] sm:$0xff]
        %v629 = vld [vmem:[#allocation10 + $0x1f8] sm:$0xff]
        %v630 = vld [vmem:[#allocation10 + $0x200] sm:$0xff]
        %v631 = vld [vmem:[#allocation10 + $0x208] sm:$0xff]
        %v632 = vld [vmem:[#allocation10 + $0x210] sm:$0xff]
        %v633 = vld [vmem:[#allocation10 + $0x218] sm:$0xff]
        %v634 = vld [vmem:[#allocation10 + $0x220] sm:$0xff]
        %v635 = vld [vmem:[#allocation10 + $0x228] sm:$0xff]
        %v636 = vld [vmem:[#allocation10 + $0x230] sm:$0xff]
        %v637 = vld [vmem:[#allocation10 + $0x238] sm:$0xff]
        %v638 = vld [vmem:[#allocation10 + $0x240] sm:$0xff]
        %v639 = vld [vmem:[#allocation10 + $0x248] sm:$0xff]
        %v640 = vld [vmem:[#allocation10 + $0x250] sm:$0xff]
        %v641 = vld [vmem:[#allocation10 + $0x258] sm:$0xff]
        %v642 = vld [vmem:[#allocation10 + $0x260] sm:$0xff]
        %v643 = vld [vmem:[#allocation10 + $0x268] sm:$0xff]
        %v644 = vld [vmem:[#allocation10 + $0x270] sm:$0xff]
        %v645 = vld [vmem:[#allocation10 + $0x278] sm:$0xff]
        %v646 = vld [vmem:[#allocation10 + $0x280] sm:$0xff]
        %v647 = vld [vmem:[#allocation10 + $0x288] sm:$0xff]
        %v648 = vld [vmem:[#allocation10 + $0x290] sm:$0xff]
        %v649 = vld [vmem:[#allocation10 + $0x298] sm:$0xff]
        %v650 = vld [vmem:[#allocation10 + $0x2a0] sm:$0xff]
        %v651 = vld [vmem:[#allocation10 + $0x2a8] sm:$0xff]
        %v652 = vld [vmem:[#allocation10 + $0x2b0] sm:$0xff]
        %v653 = vld [vmem:[#allocation10 + $0x2b8] sm:$0xff]
        %v654 = vld [vmem:[#allocation10 + $0x2c0] sm:$0xff]
        %v655 = vld [vmem:[#allocation10 + $0x2c8] sm:$0xff]
        %v656 = vld [vmem:[#allocation10 + $0x2d0] sm:$0xff]
        %v657 = vld [vmem:[#allocation10 + $0x2d8] sm:$0xff]
        %v658 = vld [vmem:[#allocation10 + $0x2e0] sm:$0xff]
        %v659 = vld [vmem:[#allocation10 + $0x2e8] sm:$0xff]
        %v660 = vld [vmem:[#allocation10 + $0x2f0] sm:$0xff]
        %v661 = vld [vmem:[#allocation10 + $0x2f8] sm:$0xff]
        %v662 = vld [vmem:[#allocation11] sm:$0x1]
        %v663 = vld [vmem:[#allocation11 + $0x1] sm:$0x1]
        %v664 = vld [vmem:[#allocation11 + $0x2] sm:$0x1]
        %v665 = vlaneseq
        %v666 = vshrl.u32 %v665, 7
        %v667 = vsub.s32 0, %v666
        %v668 = vrot.slane %v662, %v667
        %669 = vmatprep.subr.mxu0 0.0
        %670 = vmatpush1.msra.mxu0 %v566
        %671 = vmatprep.subr.mxu0 0.0
        %672 = vmatpush1.msra.mxu0 %v567
        %673 = vmatprep.subr.mxu0 0.0
        %674 = vmatpush1.msra.mxu0 %v568
        %675 = vmatprep.subr.mxu0 0.0
        %676 = vmatpush1.msra.mxu0 %v569
        %677 = vmatprep.subr.mxu0 0.0
        %678 = vmatpush1.msra.mxu0 %v570
        %679 = vmatprep.subr.mxu0 0.0
        %680 = vmatpush1.msra.mxu0 %v571
        %681 = vmatprep.subr.mxu0 0.0
        %682 = vmatpush1.msra.mxu0 %v572
        %683 = vmatprep.subr.mxu0 0.0
        %684 = vmatpush1.msra.mxu0 %v573
        %685 = vmatprep.subr.mxu0 0.0
        %686 = vmatpush1.msra.mxu0 %v574
        %687 = vmatprep.subr.mxu0 0.0
        %688 = vmatpush1.msra.mxu0 %v575
        %689 = vmatprep.subr.mxu0 0.0
        %690 = vmatpush1.msra.mxu0 %v576
        %691 = vmatprep.subr.mxu0 0.0
        %692 = vmatpush1.msra.mxu0 %v577
        %693 = vmatprep.subr.mxu0 0.0
        %694 = vmatpush1.msra.mxu0 %v578
        %695 = vmatprep.subr.mxu0 0.0
        %696 = vmatpush1.msra.mxu0 %v579
        %697 = vmatprep.subr.mxu0 0.0
        %698 = vmatpush1.msra.mxu0 %v580
        %699 = vmatprep.subr.mxu0 0.0
        %700 = vmatpush1.msra.mxu0 %v581
        %701 = vmatprep.subr.mxu0 0.0
        %702 = vmatpush1.msra.mxu0 0.0
        %703 = vmatprep.subr.mxu0 0.0
        %704 = vmatpush1.msra.mxu0 0.0
        %705 = vmatprep.subr.mxu0 0.0
        %706 = vmatpush1.msra.mxu0 0.0
        %707 = vmatprep.subr.mxu0 0.0
        %708 = vmatpush1.msra.mxu0 0.0
        %709 = vmatprep.subr.mxu0 0.0
        %710 = vmatpush1.msra.mxu0 0.0
        %711 = vmatprep.subr.mxu0 0.0
        %712 = vmatpush1.msra.mxu0 0.0
        %713 = vmatprep.subr.mxu0 0.0
        %714 = vmatpush1.msra.mxu0 0.0
        %715 = vmatprep.subr.mxu0 0.0
        %716 = vmatpush1.msra.mxu0 0.0
        %717 = vmatprep.subr.mxu0 0.0
        %718 = vmatpush1.msra.mxu0 0.0
        %719 = vmatprep.subr.mxu0 0.0
        %720 = vmatpush1.msra.mxu0 0.0
        %721 = vmatprep.subr.mxu0 0.0
        %722 = vmatpush1.msra.mxu0 0.0
        %723 = vmatprep.subr.mxu0 0.0
        %724 = vmatpush1.msra.mxu0 0.0
        %725 = vmatprep.subr.mxu0 0.0
        %726 = vmatpush1.msra.mxu0 0.0
        %727 = vmatprep.subr.mxu0 0.0
        %728 = vmatpush1.msra.mxu0 0.0
        %729 = vmatprep.subr.mxu0 0.0
        %730 = vmatpush1.msra.mxu0 0.0
        %731 = vmatprep.subr.mxu0 0.0
        %732 = vmatpush1.msra.mxu0 0.0
        %733 = vmatprep.mubr.f32.mxu0 0.0
        %734 = vmatmul.mubr.f32.gmra.mrb[0].mxu0 %v470
        %v735 = vpop.f32.mrb[0].mxu0
        %v736 = vadd.f32 %v668, %v735
        %v737 = vpop.f32.mrb[0].mxu0
        %738 = vmatprep.mubr.f32.mxu0 0.0
        %739 = vmatmul.mubr.f32.gmra.mrb[0].mxu0 %v471
        %v740 = vpop.f32.mrb[0].mxu0
        %v741 = vadd.f32 %v668, %v740
        %v742 = vpop.f32.mrb[0].mxu0
        %743 = vmatprep.mubr.f32.mxu0 0.0
        %744 = vmatmul.mubr.f32.gmra.mrb[0].mxu0 %v472
        %v745 = vpop.f32.mrb[0].mxu0
        %v746 = vadd.f32 %v668, %v745
        %v747 = vpop.f32.mrb[0].mxu0
        %748 = vmatprep.mubr.f32.mxu0 0.0
        %749 = vmatmul.mubr.f32.gmra.mrb[0].mxu0 %v473
        %v750 = vpop.f32.mrb[0].mxu0
        %v751 = vadd.f32 %v668, %v750
        %v752 = vpop.f32.mrb[0].mxu0
        %753 = vmatprep.mubr.f32.mxu0 0.0
        %754 = vmatmul.mubr.f32.gmra.mrb[0].mxu0 %v474
        %v755 = vpop.f32.mrb[0].mxu0
        %v756 = vadd.f32 %v668, %v755
        %v757 = vpop.f32.mrb[0].mxu0
        %758 = vmatprep.mubr.f32.mxu0 0.0
        %759 = vmatmul.mubr.f32.gmra.mrb[0].mxu0 %v475
        %v760 = vpop.f32.mrb[0].mxu0
        %v761 = vadd.f32 %v668, %v760
        %v762 = vpop.f32.mrb[0].mxu0
        %763 = vmatprep.mubr.f32.mxu0 0.0
        %764 = vmatmul.mubr.f32.gmra.mrb[0].mxu0 %v476
        %v765 = vpop.f32.mrb[0].mxu0
        %v766 = vadd.f32 %v668, %v765
        %v767 = vpop.f32.mrb[0].mxu0
        %768 = vmatprep.mubr.f32.mxu0 0.0
        %769 = vmatmul.mubr.f32.gmra.mrb[0].mxu0 %v477
        %v770 = vpop.f32.mrb[0].mxu0
        %v771 = vadd.f32 %v668, %v770
        %v772 = vpop.f32.mrb[0].mxu0
        %773 = vmatprep.mubr.f32.mxu0 0.0
        %774 = vmatmul.mubr.f32.gmra.mrb[0].mxu0 %v478
        %v775 = vpop.f32.mrb[0].mxu0
        %v776 = vadd.f32 %v668, %v775
        %v777 = vpop.f32.mrb[0].mxu0
        %778 = vmatprep.mubr.f32.mxu0 0.0
        %779 = vmatmul.mubr.f32.gmra.mrb[0].mxu0 %v479
        %v780 = vpop.f32.mrb[0].mxu0
        %v781 = vadd.f32 %v668, %v780
        %v782 = vpop.f32.mrb[0].mxu0
        %783 = vmatprep.mubr.f32.mxu0 0.0
        %784 = vmatmul.mubr.f32.gmra.mrb[0].mxu0 %v480
        %v785 = vpop.f32.mrb[0].mxu0
        %v786 = vadd.f32 %v668, %v785
        %v787 = vpop.f32.mrb[0].mxu0
        %788 = vmatprep.mubr.f32.mxu0 0.0
        %789 = vmatmul.mubr.f32.gmra.mrb[0].mxu0 %v481
        %v790 = vpop.f32.mrb[0].mxu0
        %v791 = vadd.f32 %v668, %v790
        %v792 = vpop.f32.mrb[0].mxu0
        %793 = vmatprep.mubr.f32.mxu0 0.0
        %794 = vmatmul.mubr.f32.gmra.mrb[0].mxu0 %v482
        %v795 = vpop.f32.mrb[0].mxu0
        %v796 = vadd.f32 %v668, %v795
        %v797 = vpop.f32.mrb[0].mxu0
        %798 = vmatprep.mubr.f32.mxu0 0.0
        %799 = vmatmul.mubr.f32.gmra.mrb[0].mxu0 %v483
        %v800 = vpop.f32.mrb[0].mxu0
        %v801 = vadd.f32 %v668, %v800
        %v802 = vpop.f32.mrb[0].mxu0
        %803 = vmatprep.mubr.f32.mxu0 0.0
        %804 = vmatmul.mubr.f32.gmra.mrb[0].mxu0 %v484
        %v805 = vpop.f32.mrb[0].mxu0
        %v806 = vadd.f32 %v668, %v805
        %v807 = vpop.f32.mrb[0].mxu0
        %808 = vmatprep.mubr.f32.mxu0 0.0
        %809 = vmatmul.mubr.f32.gmra.mrb[0].mxu0 %v485
        %v810 = vpop.f32.mrb[0].mxu0
        %v811 = vadd.f32 %v668, %v810
        %v812 = vpop.f32.mrb[0].mxu0
        %813 = vmatprep.mubr.f32.mxu0 0.0
        %814 = vmatmul.mubr.f32.gmra.mrb[0].mxu0 %v486
        %v815 = vpop.f32.mrb[0].mxu0
        %v816 = vadd.f32 %v668, %v815
        %v817 = vpop.f32.mrb[0].mxu0
        %818 = vmatprep.mubr.f32.mxu0 0.0
        %819 = vmatmul.mubr.f32.gmra.mrb[0].mxu0 %v487
        %v820 = vpop.f32.mrb[0].mxu0
        %v821 = vadd.f32 %v668, %v820
        %v822 = vpop.f32.mrb[0].mxu0
        %823 = vmatprep.mubr.f32.mxu0 0.0
        %824 = vmatmul.mubr.f32.gmra.mrb[0].mxu0 %v488
        %v825 = vpop.f32.mrb[0].mxu0
        %v826 = vadd.f32 %v668, %v825
        %v827 = vpop.f32.mrb[0].mxu0
        %828 = vmatprep.mubr.f32.mxu0 0.0
        %829 = vmatmul.mubr.f32.gmra.mrb[0].mxu0 %v489
        %v830 = vpop.f32.mrb[0].mxu0
        %v831 = vadd.f32 %v668, %v830
        %v832 = vpop.f32.mrb[0].mxu0
        %833 = vmatprep.mubr.f32.mxu0 0.0
        %834 = vmatmul.mubr.f32.gmra.mrb[0].mxu0 %v490
        %v835 = vpop.f32.mrb[0].mxu0
        %v836 = vadd.f32 %v668, %v835
        %v837 = vpop.f32.mrb[0].mxu0
        %838 = vmatprep.mubr.f32.mxu0 0.0
        %839 = vmatmul.mubr.f32.gmra.mrb[0].mxu0 %v491
        %v840 = vpop.f32.mrb[0].mxu0
        %v841 = vadd.f32 %v668, %v840
        %v842 = vpop.f32.mrb[0].mxu0
        %843 = vmatprep.mubr.f32.mxu0 0.0
        %844 = vmatmul.mubr.f32.gmra.mrb[0].mxu0 %v492
        %v845 = vpop.f32.mrb[0].mxu0
        %v846 = vadd.f32 %v668, %v845
        %v847 = vpop.f32.mrb[0].mxu0
        %848 = vmatprep.mubr.f32.mxu0 0.0
        %849 = vmatmul.mubr.f32.gmra.mrb[0].mxu0 %v493
        %v850 = vpop.f32.mrb[0].mxu0
        %v851 = vadd.f32 %v668, %v850
        %v852 = vpop.f32.mrb[0].mxu0
        %853 = vmatprep.mubr.f32.mxu0 0.0
        %854 = vmatmul.mubr.f32.gmra.mrb[0].mxu0 %v494
        %v855 = vpop.f32.mrb[0].mxu0
        %v856 = vadd.f32 %v668, %v855
        %v857 = vpop.f32.mrb[0].mxu0
        %858 = vmatprep.mubr.f32.mxu0 0.0
        %859 = vmatmul.mubr.f32.gmra.mrb[0].mxu0 %v495
        %v860 = vpop.f32.mrb[0].mxu0
        %v861 = vadd.f32 %v668, %v860
        %v862 = vpop.f32.mrb[0].mxu0
        %863 = vmatprep.mubr.f32.mxu0 0.0
        %864 = vmatmul.mubr.f32.gmra.mrb[0].mxu0 %v496
        %v865 = vpop.f32.mrb[0].mxu0
        %v866 = vadd.f32 %v668, %v865
        %v867 = vpop.f32.mrb[0].mxu0
        %868 = vmatprep.mubr.f32.mxu0 0.0
        %869 = vmatmul.mubr.f32.gmra.mrb[0].mxu0 %v497
        %v870 = vpop.f32.mrb[0].mxu0
        %v871 = vadd.f32 %v668, %v870
        %v872 = vpop.f32.mrb[0].mxu0
        %873 = vmatprep.mubr.f32.mxu0 0.0
        %874 = vmatmul.mubr.f32.gmra.mrb[0].mxu0 %v498
        %v875 = vpop.f32.mrb[0].mxu0
        %v876 = vadd.f32 %v668, %v875
        %v877 = vpop.f32.mrb[0].mxu0
        %878 = vmatprep.mubr.f32.mxu0 0.0
        %879 = vmatmul.mubr.f32.gmra.mrb[0].mxu0 %v499
        %v880 = vpop.f32.mrb[0].mxu0
        %v881 = vadd.f32 %v668, %v880
        %v882 = vpop.f32.mrb[0].mxu0
        %883 = vmatprep.mubr.f32.mxu0 0.0
        %884 = vmatmul.mubr.f32.gmra.mrb[0].mxu0 %v500
        %v885 = vpop.f32.mrb[0].mxu0
        %v886 = vadd.f32 %v668, %v885
        %v887 = vpop.f32.mrb[0].mxu0
        %888 = vmatprep.mubr.f32.mxu0 0.0
        %889 = vmatmul.mubr.f32.gmra.mrb[0].mxu0 %v501
        %v890 = vpop.f32.mrb[0].mxu0
        %v891 = vadd.f32 %v668, %v890
        %v892 = vpop.f32.mrb[0].mxu0
        %893 = vmatprep.mubr.f32.mxu0 0.0
        %894 = vmatmul.mubr.f32.gmra.mrb[0].mxu0 %v502
        %v895 = vpop.f32.mrb[0].mxu0
        %v896 = vadd.f32 %v668, %v895
        %v897 = vpop.f32.mrb[0].mxu0
        %898 = vmatprep.mubr.f32.mxu0 0.0
        %899 = vmatmul.mubr.f32.gmra.mrb[0].mxu0 %v503
        %v900 = vpop.f32.mrb[0].mxu0
        %v901 = vadd.f32 %v668, %v900
        %v902 = vpop.f32.mrb[0].mxu0
        %903 = vmatprep.mubr.f32.mxu0 0.0
        %904 = vmatmul.mubr.f32.gmra.mrb[0].mxu0 %v504
        %v905 = vpop.f32.mrb[0].mxu0
        %v906 = vadd.f32 %v668, %v905
        %v907 = vpop.f32.mrb[0].mxu0
        %908 = vmatprep.mubr.f32.mxu0 0.0
        %909 = vmatmul.mubr.f32.gmra.mrb[0].mxu0 %v505
        %v910 = vpop.f32.mrb[0].mxu0
        %v911 = vadd.f32 %v668, %v910
        %v912 = vpop.f32.mrb[0].mxu0
        %913 = vmatprep.mubr.f32.mxu0 0.0
        %914 = vmatmul.mubr.f32.gmra.mrb[0].mxu0 %v506
        %v915 = vpop.f32.mrb[0].mxu0
        %v916 = vadd.f32 %v668, %v915
        %v917 = vpop.f32.mrb[0].mxu0
        %918 = vmatprep.mubr.f32.mxu0 0.0
        %919 = vmatmul.mubr.f32.gmra.mrb[0].mxu0 %v507
        %v920 = vpop.f32.mrb[0].mxu0
        %v921 = vadd.f32 %v668, %v920
        %v922 = vpop.f32.mrb[0].mxu0
        %923 = vmatprep.mubr.f32.mxu0 0.0
        %924 = vmatmul.mubr.f32.gmra.mrb[0].mxu0 %v508
        %v925 = vpop.f32.mrb[0].mxu0
        %v926 = vadd.f32 %v668, %v925
        %v927 = vpop.f32.mrb[0].mxu0
        %928 = vmatprep.mubr.f32.mxu0 0.0
        %929 = vmatmul.mubr.f32.gmra.mrb[0].mxu0 %v509
        %v930 = vpop.f32.mrb[0].mxu0
        %v931 = vadd.f32 %v668, %v930
        %v932 = vpop.f32.mrb[0].mxu0
        %933 = vmatprep.mubr.f32.mxu0 0.0
        %934 = vmatmul.mubr.f32.gmra.mrb[0].mxu0 %v510
        %v935 = vpop.f32.mrb[0].mxu0
        %v936 = vadd.f32 %v668, %v935
        %v937 = vpop.f32.mrb[0].mxu0
        %938 = vmatprep.mubr.f32.mxu0 0.0
        %939 = vmatmul.mubr.f32.gmra.mrb[0].mxu0 %v511
        %v940 = vpop.f32.mrb[0].mxu0
        %v941 = vadd.f32 %v668, %v940
        %v942 = vpop.f32.mrb[0].mxu0
        %943 = vmatprep.mubr.f32.mxu0 0.0
        %944 = vmatmul.mubr.f32.gmra.mrb[0].mxu0 %v512
        %v945 = vpop.f32.mrb[0].mxu0
        %v946 = vadd.f32 %v668, %v945
        %v947 = vpop.f32.mrb[0].mxu0
        %948 = vmatprep.mubr.f32.mxu0 0.0
        %949 = vmatmul.mubr.f32.gmra.mrb[0].mxu0 %v513
        %v950 = vpop.f32.mrb[0].mxu0
        %v951 = vadd.f32 %v668, %v950
        %v952 = vpop.f32.mrb[0].mxu0
        %953 = vmatprep.mubr.f32.mxu0 0.0
        %954 = vmatmul.mubr.f32.gmra.mrb[0].mxu0 %v514
        %v955 = vpop.f32.mrb[0].mxu0
        %v956 = vadd.f32 %v668, %v955
        %v957 = vpop.f32.mrb[0].mxu0
        %958 = vmatprep.mubr.f32.mxu0 0.0
        %959 = vmatmul.mubr.f32.gmra.mrb[0].mxu0 %v515
        %v960 = vpop.f32.mrb[0].mxu0
        %v961 = vadd.f32 %v668, %v960
        %v962 = vpop.f32.mrb[0].mxu0
        %963 = vmatprep.mubr.f32.mxu0 0.0
        %964 = vmatmul.mubr.f32.gmra.mrb[0].mxu0 %v516
        %v965 = vpop.f32.mrb[0].mxu0
        %v966 = vadd.f32 %v668, %v965
        %v967 = vpop.f32.mrb[0].mxu0
        %968 = vmatprep.mubr.f32.mxu0 0.0
        %969 = vmatmul.mubr.f32.gmra.mrb[0].mxu0 %v517
        %v970 = vpop.f32.mrb[0].mxu0
        %v971 = vadd.f32 %v668, %v970
        %v972 = vpop.f32.mrb[0].mxu0
        %973 = vdwg.mxu0
        %v974 = vtanh.pop %v736
        %v975 = vtanh.pop %v741
        %v976 = vtanh.pop %v746
        %v977 = vtanh.pop %v751
        %v978 = vtanh.pop %v756
        %v979 = vtanh.pop %v761
        %v980 = vtanh.pop %v766
        %v981 = vtanh.pop %v771
        %v982 = vtanh.pop %v776
        %v983 = vtanh.pop %v781
        %v984 = vtanh.pop %v786
        %v985 = vtanh.pop %v791
        %v986 = vtanh.pop %v796
        %v987 = vtanh.pop %v801
        %v988 = vtanh.pop %v806
        %v989 = vtanh.pop %v811
        %v990 = vtanh.pop %v816
        %v991 = vtanh.pop %v821
        %v992 = vtanh.pop %v826
        %v993 = vtanh.pop %v831
        %v994 = vtanh.pop %v836
        %v995 = vtanh.pop %v841
        %v996 = vtanh.pop %v846
        %v997 = vtanh.pop %v851
        %v998 = vtanh.pop %v856
        %v999 = vtanh.pop %v861
        %v1000 = vtanh.pop %v866
        %v1001 = vtanh.pop %v871
        %v1002 = vtanh.pop %v876
        %v1003 = vtanh.pop %v881
        %v1004 = vtanh.pop %v886
        %v1005 = vtanh.pop %v891
        %v1006 = vtanh.pop %v896
        %v1007 = vtanh.pop %v901
        %v1008 = vtanh.pop %v906
        %v1009 = vtanh.pop %v911
        %v1010 = vtanh.pop %v916
        %v1011 = vtanh.pop %v921
        %v1012 = vtanh.pop %v926
        %v1013 = vtanh.pop %v931
        %v1014 = vtanh.pop %v936
        %v1015 = vtanh.pop %v941
        %v1016 = vtanh.pop %v946
        %v1017 = vtanh.pop %v951
        %v1018 = vtanh.pop %v956
        %v1019 = vtanh.pop %v961
        %v1020 = vtanh.pop %v966
        %v1021 = vtanh.pop %v971
        %1022 = vmatprep.subr.mxu0 0.0
        %1023 = vmatpush1.msra.mxu0 %v598
        %1024 = vmatprep.subr.mxu0 0.0
        %1025 = vmatpush1.msra.mxu0 %v599
        %1026 = vmatprep.subr.mxu0 0.0
        %1027 = vmatpush1.msra.mxu0 %v600
        %1028 = vmatprep.subr.mxu0 0.0
        %1029 = vmatpush1.msra.mxu0 %v601
        %1030 = vmatprep.subr.mxu0 0.0
        %1031 = vmatpush1.msra.mxu0 %v602
        %1032 = vmatprep.subr.mxu0 0.0
        %1033 = vmatpush1.msra.mxu0 %v603
        %1034 = vmatprep.subr.mxu0 0.0
        %1035 = vmatpush1.msra.mxu0 %v604
        %1036 = vmatprep.subr.mxu0 0.0
        %1037 = vmatpush1.msra.mxu0 %v605
        %1038 = vmatprep.subr.mxu0 0.0
        %1039 = vmatpush1.msra.mxu0 %v606
        %1040 = vmatprep.subr.mxu0 0.0
        %1041 = vmatpush1.msra.mxu0 %v607
        %1042 = vmatprep.subr.mxu0 0.0
        %1043 = vmatpush1.msra.mxu0 %v608
        %1044 = vmatprep.subr.mxu0 0.0
        %1045 = vmatpush1.msra.mxu0 %v609
        %1046 = vmatprep.subr.mxu0 0.0
        %1047 = vmatpush1.msra.mxu0 %v610
        %1048 = vmatprep.subr.mxu0 0.0
        %1049 = vmatpush1.msra.mxu0 %v611
        %1050 = vmatprep.subr.mxu0 0.0
        %1051 = vmatpush1.msra.mxu0 %v612
        %1052 = vmatprep.subr.mxu0 0.0
        %1053 = vmatpush1.msra.mxu0 %v613
        %1054 = vmatprep.subr.mxu0 0.0
        %1055 = vmatpush1.msra.mxu0 0.0
        %1056 = vmatprep.subr.mxu0 0.0
        %1057 = vmatpush1.msra.mxu0 0.0
        %1058 = vmatprep.subr.mxu0 0.0
        %1059 = vmatpush1.msra.mxu0 0.0
        %1060 = vmatprep.subr.mxu0 0.0
        %1061 = vmatpush1.msra.mxu0 0.0
        %1062 = vmatprep.subr.mxu0 0.0
        %1063 = vmatpush1.msra.mxu0 0.0
        %1064 = vmatprep.subr.mxu0 0.0
        %1065 = vmatpush1.msra.mxu0 0.0
        %1066 = vmatprep.subr.mxu0 0.0
        %1067 = vmatpush1.msra.mxu0 0.0
        %1068 = vmatprep.subr.mxu0 0.0
        %1069 = vmatpush1.msra.mxu0 0.0
        %1070 = vmatprep.subr.mxu0 0.0
        %1071 = vmatpush1.msra.mxu0 0.0
        %1072 = vmatprep.subr.mxu0 0.0
        %1073 = vmatpush1.msra.mxu0 0.0
        %1074 = vmatprep.subr.mxu0 0.0
        %1075 = vmatpush1.msra.mxu0 0.0
        %1076 = vmatprep.subr.mxu0 0.0
        %1077 = vmatpush1.msra.mxu0 0.0
        %1078 = vmatprep.subr.mxu0 0.0
        %1079 = vmatpush1.msra.mxu0 0.0
        %1080 = vmatprep.subr.mxu0 0.0
        %1081 = vmatpush1.msra.mxu0 0.0
        %1082 = vmatprep.subr.mxu0 0.0
        %1083 = vmatpush1.msra.mxu0 0.0
        %1084 = vmatprep.subr.mxu0 0.0
        %1085 = vmatpush1.msra.mxu0 0.0
        %1086 = vmatprep.mubr.f32.mxu0 0.0
        %1087 = vmatmul.mubr.f32.gmra.mrb[0].mxu0 %v518
        %v1088 = vpop.f32.mrb[0].mxu0
        %v1089 = vadd.f32 0.0, %v1088
        %v1090 = vpop.f32.mrb[0].mxu0
        %1091 = vmatprep.mubr.f32.mxu0 0.0
        %1092 = vmatmul.mubr.f32.gmra.mrb[0].mxu0 %v519
        %v1093 = vpop.f32.mrb[0].mxu0
        %v1094 = vadd.f32 0.0, %v1093
        %v1095 = vpop.f32.mrb[0].mxu0
        %1096 = vmatprep.mubr.f32.mxu0 0.0
        %1097 = vmatmul.mubr.f32.gmra.mrb[0].mxu0 %v520
        %v1098 = vpop.f32.mrb[0].mxu0
        %v1099 = vadd.f32 0.0, %v1098
        %v1100 = vpop.f32.mrb[0].mxu0
        %1101 = vmatprep.mubr.f32.mxu0 0.0
        %1102 = vmatmul.mubr.f32.gmra.mrb[0].mxu0 %v521
        %v1103 = vpop.f32.mrb[0].mxu0
        %v1104 = vadd.f32 0.0, %v1103
        %v1105 = vpop.f32.mrb[0].mxu0
        %1106 = vmatprep.mubr.f32.mxu0 0.0
        %1107 = vmatmul.mubr.f32.gmra.mrb[0].mxu0 %v522
        %v1108 = vpop.f32.mrb[0].mxu0
        %v1109 = vadd.f32 0.0, %v1108
        %v1110 = vpop.f32.mrb[0].mxu0
        %1111 = vmatprep.mubr.f32.mxu0 0.0
        %1112 = vmatmul.mubr.f32.gmra.mrb[0].mxu0 %v523
        %v1113 = vpop.f32.mrb[0].mxu0
        %v1114 = vadd.f32 0.0, %v1113
        %v1115 = vpop.f32.mrb[0].mxu0
        %1116 = vmatprep.mubr.f32.mxu0 0.0
        %1117 = vmatmul.mubr.f32.gmra.mrb[0].mxu0 %v524
        %v1118 = vpop.f32.mrb[0].mxu0
        %v1119 = vadd.f32 0.0, %v1118
        %v1120 = vpop.f32.mrb[0].mxu0
        %1121 = vmatprep.mubr.f32.mxu0 0.0
        %1122 = vmatmul.mubr.f32.gmra.mrb[0].mxu0 %v525
        %v1123 = vpop.f32.mrb[0].mxu0
        %v1124 = vadd.f32 0.0, %v1123
        %v1125 = vpop.f32.mrb[0].mxu0
        %1126 = vmatprep.mubr.f32.mxu0 0.0
        %1127 = vmatmul.mubr.f32.gmra.mrb[0].mxu0 %v526
        %v1128 = vpop.f32.mrb[0].mxu0
        %v1129 = vadd.f32 0.0, %v1128
        %v1130 = vpop.f32.mrb[0].mxu0
        %1131 = vmatprep.mubr.f32.mxu0 0.0
        %1132 = vmatmul.mubr.f32.gmra.mrb[0].mxu0 %v527
        %v1133 = vpop.f32.mrb[0].mxu0
        %v1134 = vadd.f32 0.0, %v1133
        %v1135 = vpop.f32.mrb[0].mxu0
        %1136 = vmatprep.mubr.f32.mxu0 0.0
        %1137 = vmatmul.mubr.f32.gmra.mrb[0].mxu0 %v528
        %v1138 = vpop.f32.mrb[0].mxu0
        %v1139 = vadd.f32 0.0, %v1138
        %v1140 = vpop.f32.mrb[0].mxu0
        %1141 = vmatprep.mubr.f32.mxu0 0.0
        %1142 = vmatmul.mubr.f32.gmra.mrb[0].mxu0 %v529
        %v1143 = vpop.f32.mrb[0].mxu0
        %v1144 = vadd.f32 0.0, %v1143
        %v1145 = vpop.f32.mrb[0].mxu0
        %1146 = vmatprep.mubr.f32.mxu0 0.0
        %1147 = vmatmul.mubr.f32.gmra.mrb[0].mxu0 %v530
        %v1148 = vpop.f32.mrb[0].mxu0
        %v1149 = vadd.f32 0.0, %v1148
        %v1150 = vpop.f32.mrb[0].mxu0
        %1151 = vmatprep.mubr.f32.mxu0 0.0
        %1152 = vmatmul.mubr.f32.gmra.mrb[0].mxu0 %v531
        %v1153 = vpop.f32.mrb[0].mxu0
        %v1154 = vadd.f32 0.0, %v1153
        %v1155 = vpop.f32.mrb[0].mxu0
        %1156 = vmatprep.mubr.f32.mxu0 0.0
        %1157 = vmatmul.mubr.f32.gmra.mrb[0].mxu0 %v532
        %v1158 = vpop.f32.mrb[0].mxu0
        %v1159 = vadd.f32 0.0, %v1158
        %v1160 = vpop.f32.mrb[0].mxu0
        %1161 = vmatprep.mubr.f32.mxu0 0.0
        %1162 = vmatmul.mubr.f32.gmra.mrb[0].mxu0 %v533
        %v1163 = vpop.f32.mrb[0].mxu0
        %v1164 = vadd.f32 0.0, %v1163
        %v1165 = vpop.f32.mrb[0].mxu0
        %1166 = vmatprep.mubr.f32.mxu0 0.0
        %1167 = vmatmul.mubr.f32.gmra.mrb[0].mxu0 %v534
        %v1168 = vpop.f32.mrb[0].mxu0
        %v1169 = vadd.f32 0.0, %v1168
        %v1170 = vpop.f32.mrb[0].mxu0
        %1171 = vmatprep.mubr.f32.mxu0 0.0
        %1172 = vmatmul.mubr.f32.gmra.mrb[0].mxu0 %v535
        %v1173 = vpop.f32.mrb[0].mxu0
        %v1174 = vadd.f32 0.0, %v1173
        %v1175 = vpop.f32.mrb[0].mxu0
        %1176 = vmatprep.mubr.f32.mxu0 0.0
        %1177 = vmatmul.mubr.f32.gmra.mrb[0].mxu0 %v536
        %v1178 = vpop.f32.mrb[0].mxu0
        %v1179 = vadd.f32 0.0, %v1178
        %v1180 = vpop.f32.mrb[0].mxu0
        %1181 = vmatprep.mubr.f32.mxu0 0.0
        %1182 = vmatmul.mubr.f32.gmra.mrb[0].mxu0 %v537
        %v1183 = vpop.f32.mrb[0].mxu0
        %v1184 = vadd.f32 0.0, %v1183
        %v1185 = vpop.f32.mrb[0].mxu0
        %1186 = vmatprep.mubr.f32.mxu0 0.0
        %1187 = vmatmul.mubr.f32.gmra.mrb[0].mxu0 %v538
        %v1188 = vpop.f32.mrb[0].mxu0
        %v1189 = vadd.f32 0.0, %v1188
        %v1190 = vpop.f32.mrb[0].mxu0
        %1191 = vmatprep.mubr.f32.mxu0 0.0
        %1192 = vmatmul.mubr.f32.gmra.mrb[0].mxu0 %v539
        %v1193 = vpop.f32.mrb[0].mxu0
        %v1194 = vadd.f32 0.0, %v1193
        %v1195 = vpop.f32.mrb[0].mxu0
        %1196 = vmatprep.mubr.f32.mxu0 0.0
        %1197 = vmatmul.mubr.f32.gmra.mrb[0].mxu0 %v540
        %v1198 = vpop.f32.mrb[0].mxu0
        %v1199 = vadd.f32 0.0, %v1198
        %v1200 = vpop.f32.mrb[0].mxu0
        %1201 = vmatprep.mubr.f32.mxu0 0.0
        %1202 = vmatmul.mubr.f32.gmra.mrb[0].mxu0 %v541
        %v1203 = vpop.f32.mrb[0].mxu0
        %v1204 = vadd.f32 0.0, %v1203
        %v1205 = vpop.f32.mrb[0].mxu0
        %1206 = vmatprep.mubr.f32.mxu0 0.0
        %1207 = vmatmul.mubr.f32.gmra.mrb[0].mxu0 %v542
        %v1208 = vpop.f32.mrb[0].mxu0
        %v1209 = vadd.f32 0.0, %v1208
        %v1210 = vpop.f32.mrb[0].mxu0
        %1211 = vmatprep.mubr.f32.mxu0 0.0
        %1212 = vmatmul.mubr.f32.gmra.mrb[0].mxu0 %v543
        %v1213 = vpop.f32.mrb[0].mxu0
        %v1214 = vadd.f32 0.0, %v1213
        %v1215 = vpop.f32.mrb[0].mxu0
        %1216 = vmatprep.mubr.f32.mxu0 0.0
        %1217 = vmatmul.mubr.f32.gmra.mrb[0].mxu0 %v544
        %v1218 = vpop.f32.mrb[0].mxu0
        %v1219 = vadd.f32 0.0, %v1218
        %v1220 = vpop.f32.mrb[0].mxu0
        %1221 = vmatprep.mubr.f32.mxu0 0.0
        %1222 = vmatmul.mubr.f32.gmra.mrb[0].mxu0 %v545
        %v1223 = vpop.f32.mrb[0].mxu0
        %v1224 = vadd.f32 0.0, %v1223
        %v1225 = vpop.f32.mrb[0].mxu0
        %1226 = vmatprep.mubr.f32.mxu0 0.0
        %1227 = vmatmul.mubr.f32.gmra.mrb[0].mxu0 %v546
        %v1228 = vpop.f32.mrb[0].mxu0
        %v1229 = vadd.f32 0.0, %v1228
        %v1230 = vpop.f32.mrb[0].mxu0
        %1231 = vmatprep.mubr.f32.mxu0 0.0
        %1232 = vmatmul.mubr.f32.gmra.mrb[0].mxu0 %v547
        %v1233 = vpop.f32.mrb[0].mxu0
        %v1234 = vadd.f32 0.0, %v1233
        %v1235 = vpop.f32.mrb[0].mxu0
        %1236 = vmatprep.mubr.f32.mxu0 0.0
        %1237 = vmatmul.mubr.f32.gmra.mrb[0].mxu0 %v548
        %v1238 = vpop.f32.mrb[0].mxu0
        %v1239 = vadd.f32 0.0, %v1238
        %v1240 = vpop.f32.mrb[0].mxu0
        %1241 = vmatprep.mubr.f32.mxu0 0.0
        %1242 = vmatmul.mubr.f32.gmra.mrb[0].mxu0 %v549
        %v1243 = vpop.f32.mrb[0].mxu0
        %v1244 = vadd.f32 0.0, %v1243
        %v1245 = vpop.f32.mrb[0].mxu0
        %1246 = vmatprep.mubr.f32.mxu0 0.0
        %1247 = vmatmul.mubr.f32.gmra.mrb[0].mxu0 %v550
        %v1248 = vpop.f32.mrb[0].mxu0
        %v1249 = vadd.f32 0.0, %v1248
        %v1250 = vpop.f32.mrb[0].mxu0
        %1251 = vmatprep.mubr.f32.mxu0 0.0
        %1252 = vmatmul.mubr.f32.gmra.mrb[0].mxu0 %v551
        %v1253 = vpop.f32.mrb[0].mxu0
        %v1254 = vadd.f32 0.0, %v1253
        %v1255 = vpop.f32.mrb[0].mxu0
        %1256 = vmatprep.mubr.f32.mxu0 0.0
        %1257 = vmatmul.mubr.f32.gmra.mrb[0].mxu0 %v552
        %v1258 = vpop.f32.mrb[0].mxu0
        %v1259 = vadd.f32 0.0, %v1258
        %v1260 = vpop.f32.mrb[0].mxu0
        %1261 = vmatprep.mubr.f32.mxu0 0.0
        %1262 = vmatmul.mubr.f32.gmra.mrb[0].mxu0 %v553
        %v1263 = vpop.f32.mrb[0].mxu0
        %v1264 = vadd.f32 0.0, %v1263
        %v1265 = vpop.f32.mrb[0].mxu0
        %1266 = vmatprep.mubr.f32.mxu0 0.0
        %1267 = vmatmul.mubr.f32.gmra.mrb[0].mxu0 %v554
        %v1268 = vpop.f32.mrb[0].mxu0
        %v1269 = vadd.f32 0.0, %v1268
        %v1270 = vpop.f32.mrb[0].mxu0
        %1271 = vmatprep.mubr.f32.mxu0 0.0
        %1272 = vmatmul.mubr.f32.gmra.mrb[0].mxu0 %v555
        %v1273 = vpop.f32.mrb[0].mxu0
        %v1274 = vadd.f32 0.0, %v1273
        %v1275 = vpop.f32.mrb[0].mxu0
        %1276 = vmatprep.mubr.f32.mxu0 0.0
        %1277 = vmatmul.mubr.f32.gmra.mrb[0].mxu0 %v556
        %v1278 = vpop.f32.mrb[0].mxu0
        %v1279 = vadd.f32 0.0, %v1278
        %v1280 = vpop.f32.mrb[0].mxu0
        %1281 = vmatprep.mubr.f32.mxu0 0.0
        %1282 = vmatmul.mubr.f32.gmra.mrb[0].mxu0 %v557
        %v1283 = vpop.f32.mrb[0].mxu0
        %v1284 = vadd.f32 0.0, %v1283
        %v1285 = vpop.f32.mrb[0].mxu0
        %1286 = vmatprep.mubr.f32.mxu0 0.0
        %1287 = vmatmul.mubr.f32.gmra.mrb[0].mxu0 %v558
        %v1288 = vpop.f32.mrb[0].mxu0
        %v1289 = vadd.f32 0.0, %v1288
        %v1290 = vpop.f32.mrb[0].mxu0
        %1291 = vmatprep.mubr.f32.mxu0 0.0
        %1292 = vmatmul.mubr.f32.gmra.mrb[0].mxu0 %v559
        %v1293 = vpop.f32.mrb[0].mxu0
        %v1294 = vadd.f32 0.0, %v1293
        %v1295 = vpop.f32.mrb[0].mxu0
        %1296 = vmatprep.mubr.f32.mxu0 0.0
        %1297 = vmatmul.mubr.f32.gmra.mrb[0].mxu0 %v560
        %v1298 = vpop.f32.mrb[0].mxu0
        %v1299 = vadd.f32 0.0, %v1298
        %v1300 = vpop.f32.mrb[0].mxu0
        %1301 = vmatprep.mubr.f32.mxu0 0.0
        %1302 = vmatmul.mubr.f32.gmra.mrb[0].mxu0 %v561
        %v1303 = vpop.f32.mrb[0].mxu0
        %v1304 = vadd.f32 0.0, %v1303
        %v1305 = vpop.f32.mrb[0].mxu0
        %1306 = vmatprep.mubr.f32.mxu0 0.0
        %1307 = vmatmul.mubr.f32.gmra.mrb[0].mxu0 %v562
        %v1308 = vpop.f32.mrb[0].mxu0
        %v1309 = vadd.f32 0.0, %v1308
        %v1310 = vpop.f32.mrb[0].mxu0
        %1311 = vmatprep.mubr.f32.mxu0 0.0
        %1312 = vmatmul.mubr.f32.gmra.mrb[0].mxu0 %v563
        %v1313 = vpop.f32.mrb[0].mxu0
        %v1314 = vadd.f32 0.0, %v1313
        %v1315 = vpop.f32.mrb[0].mxu0
        %1316 = vmatprep.mubr.f32.mxu0 0.0
        %1317 = vmatmul.mubr.f32.gmra.mrb[0].mxu0 %v564
        %v1318 = vpop.f32.mrb[0].mxu0
        %v1319 = vadd.f32 0.0, %v1318
        %v1320 = vpop.f32.mrb[0].mxu0
        %1321 = vmatprep.mubr.f32.mxu0 0.0
        %1322 = vmatmul.mubr.f32.gmra.mrb[0].mxu0 %v565
        %v1323 = vpop.f32.mrb[0].mxu0
        %v1324 = vadd.f32 0.0, %v1323
        %v1325 = vpop.f32.mrb[0].mxu0
        %1326 = vdwg.mxu0
        %1327 = vmatprep.subr.mxu0 0.0
        %1328 = vmatpush1.msra.mxu0 %v582
        %1329 = vmatprep.subr.mxu0 0.0
        %1330 = vmatpush1.msra.mxu0 %v583
        %1331 = vmatprep.subr.mxu0 0.0
        %1332 = vmatpush1.msra.mxu0 %v584
        %1333 = vmatprep.subr.mxu0 0.0
        %1334 = vmatpush1.msra.mxu0 %v585
        %1335 = vmatprep.subr.mxu0 0.0
        %1336 = vmatpush1.msra.mxu0 %v586
        %1337 = vmatprep.subr.mxu0 0.0
        %1338 = vmatpush1.msra.mxu0 %v587
        %1339 = vmatprep.subr.mxu0 0.0
        %1340 = vmatpush1.msra.mxu0 %v588
        %1341 = vmatprep.subr.mxu0 0.0
        %1342 = vmatpush1.msra.mxu0 %v589
        %1343 = vmatprep.subr.mxu0 0.0
        %1344 = vmatpush1.msra.mxu0 %v590
        %1345 = vmatprep.subr.mxu0 0.0
        %1346 = vmatpush1.msra.mxu0 %v591
        %1347 = vmatprep.subr.mxu0 0.0
        %1348 = vmatpush1.msra.mxu0 %v592
        %1349 = vmatprep.subr.mxu0 0.0
        %1350 = vmatpush1.msra.mxu0 %v593
        %1351 = vmatprep.subr.mxu0 0.0
        %1352 = vmatpush1.msra.mxu0 %v594
        %1353 = vmatprep.subr.mxu0 0.0
        %1354 = vmatpush1.msra.mxu0 %v595
        %1355 = vmatprep.subr.mxu0 0.0
        %1356 = vmatpush1.msra.mxu0 %v596
        %1357 = vmatprep.subr.mxu0 0.0
        %1358 = vmatpush1.msra.mxu0 %v597
        %1359 = vmatprep.subr.mxu0 0.0
        %1360 = vmatpush1.msra.mxu0 0.0
        %1361 = vmatprep.subr.mxu0 0.0
        %1362 = vmatpush1.msra.mxu0 0.0
        %1363 = vmatprep.subr.mxu0 0.0
        %1364 = vmatpush1.msra.mxu0 0.0
        %1365 = vmatprep.subr.mxu0 0.0
        %1366 = vmatpush1.msra.mxu0 0.0
        %1367 = vmatprep.subr.mxu0 0.0
        %1368 = vmatpush1.msra.mxu0 0.0
        %1369 = vmatprep.subr.mxu0 0.0
        %1370 = vmatpush1.msra.mxu0 0.0
        %1371 = vmatprep.subr.mxu0 0.0
        %1372 = vmatpush1.msra.mxu0 0.0
        %1373 = vmatprep.subr.mxu0 0.0
        %1374 = vmatpush1.msra.mxu0 0.0
        %1375 = vmatprep.subr.mxu0 0.0
        %1376 = vmatpush1.msra.mxu0 0.0
        %1377 = vmatprep.subr.mxu0 0.0
        %1378 = vmatpush1.msra.mxu0 0.0
        %1379 = vmatprep.subr.mxu0 0.0
        %1380 = vmatpush1.msra.mxu0 0.0
        %1381 = vmatprep.subr.mxu0 0.0
        %1382 = vmatpush1.msra.mxu0 0.0
        %1383 = vmatprep.subr.mxu0 0.0
        %1384 = vmatpush1.msra.mxu0 0.0
        %1385 = vmatprep.subr.mxu0 0.0
        %1386 = vmatpush1.msra.mxu0 0.0
        %1387 = vmatprep.subr.mxu0 0.0
        %1388 = vmatpush1.msra.mxu0 0.0
        %1389 = vmatprep.subr.mxu0 0.0
        %1390 = vmatpush1.msra.mxu0 0.0
        %1391 = vmatprep.mubr.f32.mxu0 0.0
        %1392 = vmatmul.mubr.f32.gmra.mrb[0].mxu0 %v422
        %v1393 = vpop.f32.mrb[0].mxu0
        %v1394 = vadd.f32 %v1089, %v1393
        %v1395 = vpop.f32.mrb[0].mxu0
        %1396 = vmatprep.mubr.f32.mxu0 0.0
        %1397 = vmatmul.mubr.f32.gmra.mrb[0].mxu0 %v423
        %v1398 = vpop.f32.mrb[0].mxu0
        %v1399 = vadd.f32 %v1094, %v1398
        %v1400 = vpop.f32.mrb[0].mxu0
        %1401 = vmatprep.mubr.f32.mxu0 0.0
        %1402 = vmatmul.mubr.f32.gmra.mrb[0].mxu0 %v424
        %v1403 = vpop.f32.mrb[0].mxu0
        %v1404 = vadd.f32 %v1099, %v1403
        %v1405 = vpop.f32.mrb[0].mxu0
        %1406 = vmatprep.mubr.f32.mxu0 0.0
        %1407 = vmatmul.mubr.f32.gmra.mrb[0].mxu0 %v425
        %v1408 = vpop.f32.mrb[0].mxu0
        %v1409 = vadd.f32 %v1104, %v1408
        %v1410 = vpop.f32.mrb[0].mxu0
        %1411 = vmatprep.mubr.f32.mxu0 0.0
        %1412 = vmatmul.mubr.f32.gmra.mrb[0].mxu0 %v426
        %v1413 = vpop.f32.mrb[0].mxu0
        %v1414 = vadd.f32 %v1109, %v1413
        %v1415 = vpop.f32.mrb[0].mxu0
        %1416 = vmatprep.mubr.f32.mxu0 0.0
        %1417 = vmatmul.mubr.f32.gmra.mrb[0].mxu0 %v427
        %v1418 = vpop.f32.mrb[0].mxu0
        %v1419 = vadd.f32 %v1114, %v1418
        %v1420 = vpop.f32.mrb[0].mxu0
        %1421 = vmatprep.mubr.f32.mxu0 0.0
        %1422 = vmatmul.mubr.f32.gmra.mrb[0].mxu0 %v428
        %v1423 = vpop.f32.mrb[0].mxu0
        %v1424 = vadd.f32 %v1119, %v1423
        %v1425 = vpop.f32.mrb[0].mxu0
        %1426 = vmatprep.mubr.f32.mxu0 0.0
        %1427 = vmatmul.mubr.f32.gmra.mrb[0].mxu0 %v429
        %v1428 = vpop.f32.mrb[0].mxu0
        %v1429 = vadd.f32 %v1124, %v1428
        %v1430 = vpop.f32.mrb[0].mxu0
        %1431 = vmatprep.mubr.f32.mxu0 0.0
        %1432 = vmatmul.mubr.f32.gmra.mrb[0].mxu0 %v430
        %v1433 = vpop.f32.mrb[0].mxu0
        %v1434 = vadd.f32 %v1129, %v1433
        %v1435 = vpop.f32.mrb[0].mxu0
        %1436 = vmatprep.mubr.f32.mxu0 0.0
        %1437 = vmatmul.mubr.f32.gmra.mrb[0].mxu0 %v431
        %v1438 = vpop.f32.mrb[0].mxu0
        %v1439 = vadd.f32 %v1134, %v1438
        %v1440 = vpop.f32.mrb[0].mxu0
        %1441 = vmatprep.mubr.f32.mxu0 0.0
        %1442 = vmatmul.mubr.f32.gmra.mrb[0].mxu0 %v432
        %v1443 = vpop.f32.mrb[0].mxu0
        %v1444 = vadd.f32 %v1139, %v1443
        %v1445 = vpop.f32.mrb[0].mxu0
        %1446 = vmatprep.mubr.f32.mxu0 0.0
        %1447 = vmatmul.mubr.f32.gmra.mrb[0].mxu0 %v433
        %v1448 = vpop.f32.mrb[0].mxu0
        %v1449 = vadd.f32 %v1144, %v1448
        %v1450 = vpop.f32.mrb[0].mxu0
        %1451 = vmatprep.mubr.f32.mxu0 0.0
        %1452 = vmatmul.mubr.f32.gmra.mrb[0].mxu0 %v434
        %v1453 = vpop.f32.mrb[0].mxu0
        %v1454 = vadd.f32 %v1149, %v1453
        %v1455 = vpop.f32.mrb[0].mxu0
        %1456 = vmatprep.mubr.f32.mxu0 0.0
        %1457 = vmatmul.mubr.f32.gmra.mrb[0].mxu0 %v435
        %v1458 = vpop.f32.mrb[0].mxu0
        %v1459 = vadd.f32 %v1154, %v1458
        %v1460 = vpop.f32.mrb[0].mxu0
        %1461 = vmatprep.mubr.f32.mxu0 0.0
        %1462 = vmatmul.mubr.f32.gmra.mrb[0].mxu0 %v436
        %v1463 = vpop.f32.mrb[0].mxu0
        %v1464 = vadd.f32 %v1159, %v1463
        %v1465 = vpop.f32.mrb[0].mxu0
        %1466 = vmatprep.mubr.f32.mxu0 0.0
        %1467 = vmatmul.mubr.f32.gmra.mrb[0].mxu0 %v437
        %v1468 = vpop.f32.mrb[0].mxu0
        %v1469 = vadd.f32 %v1164, %v1468
        %v1470 = vpop.f32.mrb[0].mxu0
        %1471 = vmatprep.mubr.f32.mxu0 0.0
        %1472 = vmatmul.mubr.f32.gmra.mrb[0].mxu0 %v438
        %v1473 = vpop.f32.mrb[0].mxu0
        %v1474 = vadd.f32 %v1169, %v1473
        %v1475 = vpop.f32.mrb[0].mxu0
        %1476 = vmatprep.mubr.f32.mxu0 0.0
        %1477 = vmatmul.mubr.f32.gmra.mrb[0].mxu0 %v439
        %v1478 = vpop.f32.mrb[0].mxu0
        %v1479 = vadd.f32 %v1174, %v1478
        %v1480 = vpop.f32.mrb[0].mxu0
        %1481 = vmatprep.mubr.f32.mxu0 0.0
        %1482 = vmatmul.mubr.f32.gmra.mrb[0].mxu0 %v440
        %v1483 = vpop.f32.mrb[0].mxu0
        %v1484 = vadd.f32 %v1179, %v1483
        %v1485 = vpop.f32.mrb[0].mxu0
        %1486 = vmatprep.mubr.f32.mxu0 0.0
        %1487 = vmatmul.mubr.f32.gmra.mrb[0].mxu0 %v441
        %v1488 = vpop.f32.mrb[0].mxu0
        %v1489 = vadd.f32 %v1184, %v1488
        %v1490 = vpop.f32.mrb[0].mxu0
        %1491 = vmatprep.mubr.f32.mxu0 0.0
        %1492 = vmatmul.mubr.f32.gmra.mrb[0].mxu0 %v442
        %v1493 = vpop.f32.mrb[0].mxu0
        %v1494 = vadd.f32 %v1189, %v1493
        %v1495 = vpop.f32.mrb[0].mxu0
        %1496 = vmatprep.mubr.f32.mxu0 0.0
        %1497 = vmatmul.mubr.f32.gmra.mrb[0].mxu0 %v443
        %v1498 = vpop.f32.mrb[0].mxu0
        %v1499 = vadd.f32 %v1194, %v1498
        %v1500 = vpop.f32.mrb[0].mxu0
        %1501 = vmatprep.mubr.f32.mxu0 0.0
        %1502 = vmatmul.mubr.f32.gmra.mrb[0].mxu0 %v444
        %v1503 = vpop.f32.mrb[0].mxu0
        %v1504 = vadd.f32 %v1199, %v1503
        %v1505 = vpop.f32.mrb[0].mxu0
        %1506 = vmatprep.mubr.f32.mxu0 0.0
        %1507 = vmatmul.mubr.f32.gmra.mrb[0].mxu0 %v445
        %v1508 = vpop.f32.mrb[0].mxu0
        %v1509 = vadd.f32 %v1204, %v1508
        %v1510 = vpop.f32.mrb[0].mxu0
        %1511 = vmatprep.mubr.f32.mxu0 0.0
        %1512 = vmatmul.mubr.f32.gmra.mrb[0].mxu0 %v446
        %v1513 = vpop.f32.mrb[0].mxu0
        %v1514 = vadd.f32 %v1209, %v1513
        %v1515 = vpop.f32.mrb[0].mxu0
        %1516 = vmatprep.mubr.f32.mxu0 0.0
        %1517 = vmatmul.mubr.f32.gmra.mrb[0].mxu0 %v447
        %v1518 = vpop.f32.mrb[0].mxu0
        %v1519 = vadd.f32 %v1214, %v1518
        %v1520 = vpop.f32.mrb[0].mxu0
        %1521 = vmatprep.mubr.f32.mxu0 0.0
        %1522 = vmatmul.mubr.f32.gmra.mrb[0].mxu0 %v448
        %v1523 = vpop.f32.mrb[0].mxu0
        %v1524 = vadd.f32 %v1219, %v1523
        %v1525 = vpop.f32.mrb[0].mxu0
        %1526 = vmatprep.mubr.f32.mxu0 0.0
        %1527 = vmatmul.mubr.f32.gmra.mrb[0].mxu0 %v449
        %v1528 = vpop.f32.mrb[0].mxu0
        %v1529 = vadd.f32 %v1224, %v1528
        %v1530 = vpop.f32.mrb[0].mxu0
        %1531 = vmatprep.mubr.f32.mxu0 0.0
        %1532 = vmatmul.mubr.f32.gmra.mrb[0].mxu0 %v450
        %v1533 = vpop.f32.mrb[0].mxu0
        %v1534 = vadd.f32 %v1229, %v1533
        %v1535 = vpop.f32.mrb[0].mxu0
        %1536 = vmatprep.mubr.f32.mxu0 0.0
        %1537 = vmatmul.mubr.f32.gmra.mrb[0].mxu0 %v451
        %v1538 = vpop.f32.mrb[0].mxu0
        %v1539 = vadd.f32 %v1234, %v1538
        %v1540 = vpop.f32.mrb[0].mxu0
        %1541 = vmatprep.mubr.f32.mxu0 0.0
        %1542 = vmatmul.mubr.f32.gmra.mrb[0].mxu0 %v452
        %v1543 = vpop.f32.mrb[0].mxu0
        %v1544 = vadd.f32 %v1239, %v1543
        %v1545 = vpop.f32.mrb[0].mxu0
        %1546 = vmatprep.mubr.f32.mxu0 0.0
        %1547 = vmatmul.mubr.f32.gmra.mrb[0].mxu0 %v453
        %v1548 = vpop.f32.mrb[0].mxu0
        %v1549 = vadd.f32 %v1244, %v1548
        %v1550 = vpop.f32.mrb[0].mxu0
        %1551 = vmatprep.mubr.f32.mxu0 0.0
        %1552 = vmatmul.mubr.f32.gmra.mrb[0].mxu0 %v454
        %v1553 = vpop.f32.mrb[0].mxu0
        %v1554 = vadd.f32 %v1249, %v1553
        %v1555 = vpop.f32.mrb[0].mxu0
        %1556 = vmatprep.mubr.f32.mxu0 0.0
        %1557 = vmatmul.mubr.f32.gmra.mrb[0].mxu0 %v455
        %v1558 = vpop.f32.mrb[0].mxu0
        %v1559 = vadd.f32 %v1254, %v1558
        %v1560 = vpop.f32.mrb[0].mxu0
        %1561 = vmatprep.mubr.f32.mxu0 0.0
        %1562 = vmatmul.mubr.f32.gmra.mrb[0].mxu0 %v456
        %v1563 = vpop.f32.mrb[0].mxu0
        %v1564 = vadd.f32 %v1259, %v1563
        %v1565 = vpop.f32.mrb[0].mxu0
        %1566 = vmatprep.mubr.f32.mxu0 0.0
        %1567 = vmatmul.mubr.f32.gmra.mrb[0].mxu0 %v457
        %v1568 = vpop.f32.mrb[0].mxu0
        %v1569 = vadd.f32 %v1264, %v1568
        %v1570 = vpop.f32.mrb[0].mxu0
        %1571 = vmatprep.mubr.f32.mxu0 0.0
        %1572 = vmatmul.mubr.f32.gmra.mrb[0].mxu0 %v458
        %v1573 = vpop.f32.mrb[0].mxu0
        %v1574 = vadd.f32 %v1269, %v1573
        %v1575 = vpop.f32.mrb[0].mxu0
        %1576 = vmatprep.mubr.f32.mxu0 0.0
        %1577 = vmatmul.mubr.f32.gmra.mrb[0].mxu0 %v459
        %v1578 = vpop.f32.mrb[0].mxu0
        %v1579 = vadd.f32 %v1274, %v1578
        %v1580 = vpop.f32.mrb[0].mxu0
        %1581 = vmatprep.mubr.f32.mxu0 0.0
        %1582 = vmatmul.mubr.f32.gmra.mrb[0].mxu0 %v460
        %v1583 = vpop.f32.mrb[0].mxu0
        %v1584 = vadd.f32 %v1279, %v1583
        %v1585 = vpop.f32.mrb[0].mxu0
        %1586 = vmatprep.mubr.f32.mxu0 0.0
        %1587 = vmatmul.mubr.f32.gmra.mrb[0].mxu0 %v461
        %v1588 = vpop.f32.mrb[0].mxu0
        %v1589 = vadd.f32 %v1284, %v1588
        %v1590 = vpop.f32.mrb[0].mxu0
        %1591 = vmatprep.mubr.f32.mxu0 0.0
        %1592 = vmatmul.mubr.f32.gmra.mrb[0].mxu0 %v462
        %v1593 = vpop.f32.mrb[0].mxu0
        %v1594 = vadd.f32 %v1289, %v1593
        %v1595 = vpop.f32.mrb[0].mxu0
        %1596 = vmatprep.mubr.f32.mxu0 0.0
        %1597 = vmatmul.mubr.f32.gmra.mrb[0].mxu0 %v463
        %v1598 = vpop.f32.mrb[0].mxu0
        %v1599 = vadd.f32 %v1294, %v1598
        %v1600 = vpop.f32.mrb[0].mxu0
        %1601 = vmatprep.mubr.f32.mxu0 0.0
        %1602 = vmatmul.mubr.f32.gmra.mrb[0].mxu0 %v464
        %v1603 = vpop.f32.mrb[0].mxu0
        %v1604 = vadd.f32 %v1299, %v1603
        %v1605 = vpop.f32.mrb[0].mxu0
        %1606 = vmatprep.mubr.f32.mxu0 0.0
        %1607 = vmatmul.mubr.f32.gmra.mrb[0].mxu0 %v465
        %v1608 = vpop.f32.mrb[0].mxu0
        %v1609 = vadd.f32 %v1304, %v1608
        %v1610 = vpop.f32.mrb[0].mxu0
        %1611 = vmatprep.mubr.f32.mxu0 0.0
        %1612 = vmatmul.mubr.f32.gmra.mrb[0].mxu0 %v466
        %v1613 = vpop.f32.mrb[0].mxu0
        %v1614 = vadd.f32 %v1309, %v1613
        %v1615 = vpop.f32.mrb[0].mxu0
        %1616 = vmatprep.mubr.f32.mxu0 0.0
        %1617 = vmatmul.mubr.f32.gmra.mrb[0].mxu0 %v467
        %v1618 = vpop.f32.mrb[0].mxu0
        %v1619 = vadd.f32 %v1314, %v1618
        %v1620 = vpop.f32.mrb[0].mxu0
        %1621 = vmatprep.mubr.f32.mxu0 0.0
        %1622 = vmatmul.mubr.f32.gmra.mrb[0].mxu0 %v468
        %v1623 = vpop.f32.mrb[0].mxu0
        %v1624 = vadd.f32 %v1319, %v1623
        %v1625 = vpop.f32.mrb[0].mxu0
        %1626 = vmatprep.mubr.f32.mxu0 0.0
        %1627 = vmatmul.mubr.f32.gmra.mrb[0].mxu0 %v469
        %v1628 = vpop.f32.mrb[0].mxu0
        %v1629 = vadd.f32 %v1324, %v1628
        %v1630 = vpop.f32.mrb[0].mxu0
        %1631 = vdwg.mxu0
        %v1632 = vlaneseq
        %v1633 = vshrl.u32 %v1632, 7
        %v1634 = vsub.s32 0, %v1633
        %v1635 = vrot.slane %v663, %v1634
        %v1636 = vadd.f32 %v1394, %v1635
        %v1637 = vadd.f32 %v1399, %v1635
        %v1638 = vadd.f32 %v1404, %v1635
        %v1639 = vadd.f32 %v1409, %v1635
        %v1640 = vadd.f32 %v1414, %v1635
        %v1641 = vadd.f32 %v1419, %v1635
        %v1642 = vadd.f32 %v1424, %v1635
        %v1643 = vadd.f32 %v1429, %v1635
        %v1644 = vadd.f32 %v1434, %v1635
        %v1645 = vadd.f32 %v1439, %v1635
        %v1646 = vadd.f32 %v1444, %v1635
        %v1647 = vadd.f32 %v1449, %v1635
        %v1648 = vadd.f32 %v1454, %v1635
        %v1649 = vadd.f32 %v1459, %v1635
        %v1650 = vadd.f32 %v1464, %v1635
        %v1651 = vadd.f32 %v1469, %v1635
        %v1652 = vadd.f32 %v1474, %v1635
        %v1653 = vadd.f32 %v1479, %v1635
        %v1654 = vadd.f32 %v1484, %v1635
        %v1655 = vadd.f32 %v1489, %v1635
        %v1656 = vadd.f32 %v1494, %v1635
        %v1657 = vadd.f32 %v1499, %v1635
        %v1658 = vadd.f32 %v1504, %v1635
        %v1659 = vadd.f32 %v1509, %v1635
        %v1660 = vadd.f32 %v1514, %v1635
        %v1661 = vadd.f32 %v1519, %v1635
        %v1662 = vadd.f32 %v1524, %v1635
        %v1663 = vadd.f32 %v1529, %v1635
        %v1664 = vadd.f32 %v1534, %v1635
        %v1665 = vadd.f32 %v1539, %v1635
        %v1666 = vadd.f32 %v1544, %v1635
        %v1667 = vadd.f32 %v1549, %v1635
        %v1668 = vadd.f32 %v1554, %v1635
        %v1669 = vadd.f32 %v1559, %v1635
        %v1670 = vadd.f32 %v1564, %v1635
        %v1671 = vadd.f32 %v1569, %v1635
        %v1672 = vadd.f32 %v1574, %v1635
        %v1673 = vadd.f32 %v1579, %v1635
        %v1674 = vadd.f32 %v1584, %v1635
        %v1675 = vadd.f32 %v1589, %v1635
        %v1676 = vadd.f32 %v1594, %v1635
        %v1677 = vadd.f32 %v1599, %v1635
        %v1678 = vadd.f32 %v1604, %v1635
        %v1679 = vadd.f32 %v1609, %v1635
        %v1680 = vadd.f32 %v1614, %v1635
        %v1681 = vadd.f32 %v1619, %v1635
        %v1682 = vadd.f32 %v1624, %v1635
        %v1683 = vadd.f32 %v1629, %v1635
        %v1684 = vtanh.pop %v1636
        %v1685 = vtanh.pop %v1637
        %v1686 = vtanh.pop %v1638
        %v1687 = vtanh.pop %v1639
        %v1688 = vtanh.pop %v1640
        %v1689 = vtanh.pop %v1641
        %v1690 = vtanh.pop %v1642
        %v1691 = vtanh.pop %v1643
        %v1692 = vtanh.pop %v1644
        %v1693 = vtanh.pop %v1645
        %v1694 = vtanh.pop %v1646
        %v1695 = vtanh.pop %v1647
        %v1696 = vtanh.pop %v1648
        %v1697 = vtanh.pop %v1649
        %v1698 = vtanh.pop %v1650
        %v1699 = vtanh.pop %v1651
        %v1700 = vtanh.pop %v1652
        %v1701 = vtanh.pop %v1653
        %v1702 = vtanh.pop %v1654
        %v1703 = vtanh.pop %v1655
        %v1704 = vtanh.pop %v1656
        %v1705 = vtanh.pop %v1657
        %v1706 = vtanh.pop %v1658
        %v1707 = vtanh.pop %v1659
        %v1708 = vtanh.pop %v1660
        %v1709 = vtanh.pop %v1661
        %v1710 = vtanh.pop %v1662
        %v1711 = vtanh.pop %v1663
        %v1712 = vtanh.pop %v1664
        %v1713 = vtanh.pop %v1665
        %v1714 = vtanh.pop %v1666
        %v1715 = vtanh.pop %v1667
        %v1716 = vtanh.pop %v1668
        %v1717 = vtanh.pop %v1669
        %v1718 = vtanh.pop %v1670
        %v1719 = vtanh.pop %v1671
        %v1720 = vtanh.pop %v1672
        %v1721 = vtanh.pop %v1673
        %v1722 = vtanh.pop %v1674
        %v1723 = vtanh.pop %v1675
        %v1724 = vtanh.pop %v1676
        %v1725 = vtanh.pop %v1677
        %v1726 = vtanh.pop %v1678
        %v1727 = vtanh.pop %v1679
        %v1728 = vtanh.pop %v1680
        %v1729 = vtanh.pop %v1681
        %v1730 = vtanh.pop %v1682
        %v1731 = vtanh.pop %v1683
        %v1732 = vld [vmem:[%s365] sm:$0xff]
        %v1733 = vld [vmem:[%s365 + $0x8] sm:$0xff]
        %v1734 = vlaneseq
        %v1735 = vand.u32 %v1734, 127
        %1736 = vset.pattern.permute.xlu0 0
        %1737 = vperm.xlu0 %1736, %v1732
        %v1738 = vpop.permute.xlu0 %1737
        %1739 = vset.pattern.permute.xlu0 0
        %1740 = vperm.xlu0 %1739, %v1733
        %v1741 = vpop.permute.xlu0 %1740
        %vm1742 = vcmp.ge.s32.totalorder %v1735, %v1738
        %vm1743 = vcmp.ge.s32.totalorder %v1735, %v1741
        %v1744 = vsel %vm1742, -1e+20, 0.0
        %v1745 = vsel %vm1743, -1e+20, 0.0
        %v1746 = vlaneseq
        %v1747 = vshrl.u32 %v1746, 7
        %v1748 = vsub.s32 0, %v1747
        %v1749 = vrot.slane %v1744, %v1748
        %1751 = vbcast.lane.b32.xlu0 %v1749, 256
        %v1752 = vpop.permute.xlu0 %1751
        %s1754 = sor.u32 256, 8
        %1755 = vbcast.lane.b32.xlu0 %v1749, %s1754
        %v1756 = vpop.permute.xlu0 %1755
        %s1758 = sor.u32 256, 16
        %1759 = vbcast.lane.b32.xlu0 %v1749, %s1758
        %v1760 = vpop.permute.xlu0 %1759
        %v1761 = vlaneseq
        %v1762 = vshrl.u32 %v1761, 7
        %v1763 = vsub.s32 1, %v1762
        %v1764 = vrot.slane %v1744, %v1763
        %1766 = vbcast.lane.b32.xlu0 %v1764, 256
        %v1767 = vpop.permute.xlu0 %1766
        %s1769 = sor.u32 256, 8
        %1770 = vbcast.lane.b32.xlu0 %v1764, %s1769
        %v1771 = vpop.permute.xlu0 %1770
        %s1773 = sor.u32 256, 16
        %1774 = vbcast.lane.b32.xlu0 %v1764, %s1773
        %v1775 = vpop.permute.xlu0 %1774
        %v1776 = vlaneseq
        %v1777 = vshrl.u32 %v1776, 7
        %v1778 = vsub.s32 2, %v1777
        %v1779 = vrot.slane %v1744, %v1778
        %1781 = vbcast.lane.b32.xlu0 %v1779, 256
        %v1782 = vpop.permute.xlu0 %1781
        %s1784 = sor.u32 256, 8
        %1785 = vbcast.lane.b32.xlu0 %v1779, %s1784
        %v1786 = vpop.permute.xlu0 %1785
        %s1788 = sor.u32 256, 16
        %1789 = vbcast.lane.b32.xlu0 %v1779, %s1788
        %v1790 = vpop.permute.xlu0 %1789
        %v1791 = vlaneseq
        %v1792 = vshrl.u32 %v1791, 7
        %v1793 = vsub.s32 3, %v1792
        %v1794 = vrot.slane %v1744, %v1793
        %1796 = vbcast.lane.b32.xlu0 %v1794, 256
        %v1797 = vpop.permute.xlu0 %1796
        %s1799 = sor.u32 256, 8
        %1800 = vbcast.lane.b32.xlu0 %v1794, %s1799
        %v1801 = vpop.permute.xlu0 %1800
        %s1803 = sor.u32 256, 16
        %1804 = vbcast.lane.b32.xlu0 %v1794, %s1803
        %v1805 = vpop.permute.xlu0 %1804
        %v1806 = vlaneseq
        %v1807 = vshrl.u32 %v1806, 7
        %v1808 = vsub.s32 4, %v1807
        %v1809 = vrot.slane %v1744, %v1808
        %1811 = vbcast.lane.b32.xlu0 %v1809, 256
        %v1812 = vpop.permute.xlu0 %1811
        %s1814 = sor.u32 256, 8
        %1815 = vbcast.lane.b32.xlu0 %v1809, %s1814
        %v1816 = vpop.permute.xlu0 %1815
        %s1818 = sor.u32 256, 16
        %1819 = vbcast.lane.b32.xlu0 %v1809, %s1818
        %v1820 = vpop.permute.xlu0 %1819
        %v1821 = vlaneseq
        %v1822 = vshrl.u32 %v1821, 7
        %v1823 = vsub.s32 5, %v1822
        %v1824 = vrot.slane %v1744, %v1823
        %1826 = vbcast.lane.b32.xlu0 %v1824, 256
        %v1827 = vpop.permute.xlu0 %1826
        %s1829 = sor.u32 256, 8
        %1830 = vbcast.lane.b32.xlu0 %v1824, %s1829
        %v1831 = vpop.permute.xlu0 %1830
        %s1833 = sor.u32 256, 16
        %1834 = vbcast.lane.b32.xlu0 %v1824, %s1833
        %v1835 = vpop.permute.xlu0 %1834
        %v1836 = vlaneseq
        %v1837 = vshrl.u32 %v1836, 7
        %v1838 = vsub.s32 6, %v1837
        %v1839 = vrot.slane %v1744, %v1838
        %1841 = vbcast.lane.b32.xlu0 %v1839, 256
        %v1842 = vpop.permute.xlu0 %1841
        %s1844 = sor.u32 256, 8
        %1845 = vbcast.lane.b32.xlu0 %v1839, %s1844
        %v1846 = vpop.permute.xlu0 %1845
        %s1848 = sor.u32 256, 16
        %1849 = vbcast.lane.b32.xlu0 %v1839, %s1848
        %v1850 = vpop.permute.xlu0 %1849
        %v1851 = vlaneseq
        %v1852 = vshrl.u32 %v1851, 7
        %v1853 = vsub.s32 7, %v1852
        %v1854 = vrot.slane %v1744, %v1853
        %1856 = vbcast.lane.b32.xlu0 %v1854, 256
        %v1857 = vpop.permute.xlu0 %1856
        %s1859 = sor.u32 256, 8
        %1860 = vbcast.lane.b32.xlu0 %v1854, %s1859
        %v1861 = vpop.permute.xlu0 %1860
        %s1863 = sor.u32 256, 16
        %1864 = vbcast.lane.b32.xlu0 %v1854, %s1863
        %v1865 = vpop.permute.xlu0 %1864
        %v1866 = vlaneseq
        %v1867 = vshrl.u32 %v1866, 7
        %v1868 = vsub.s32 0, %v1867
        %v1869 = vrot.slane %v1745, %v1868
        %1871 = vbcast.lane.b32.xlu0 %v1869, 256
        %v1872 = vpop.permute.xlu0 %1871
        %s1874 = sor.u32 256, 8
        %1875 = vbcast.lane.b32.xlu0 %v1869, %s1874
        %v1876 = vpop.permute.xlu0 %1875
        %s1878 = sor.u32 256, 16
        %1879 = vbcast.lane.b32.xlu0 %v1869, %s1878
        %v1880 = vpop.permute.xlu0 %1879
        %v1881 = vlaneseq
        %v1882 = vshrl.u32 %v1881, 7
        %v1883 = vsub.s32 1, %v1882
        %v1884 = vrot.slane %v1745, %v1883
        %1886 = vbcast.lane.b32.xlu0 %v1884, 256
        %v1887 = vpop.permute.xlu0 %1886
        %s1889 = sor.u32 256, 8
        %1890 = vbcast.lane.b32.xlu0 %v1884, %s1889
        %v1891 = vpop.permute.xlu0 %1890
        %s1893 = sor.u32 256, 16
        %1894 = vbcast.lane.b32.xlu0 %v1884, %s1893
        %v1895 = vpop.permute.xlu0 %1894
        %v1896 = vlaneseq
        %v1897 = vshrl.u32 %v1896, 7
        %v1898 = vsub.s32 2, %v1897
        %v1899 = vrot.slane %v1745, %v1898
        %1901 = vbcast.lane.b32.xlu0 %v1899, 256
        %v1902 = vpop.permute.xlu0 %1901
        %s1904 = sor.u32 256, 8
        %1905 = vbcast.lane.b32.xlu0 %v1899, %s1904
        %v1906 = vpop.permute.xlu0 %1905
        %s1908 = sor.u32 256, 16
        %1909 = vbcast.lane.b32.xlu0 %v1899, %s1908
        %v1910 = vpop.permute.xlu0 %1909
        %v1911 = vlaneseq
        %v1912 = vshrl.u32 %v1911, 7
        %v1913 = vsub.s32 3, %v1912
        %v1914 = vrot.slane %v1745, %v1913
        %1916 = vbcast.lane.b32.xlu0 %v1914, 256
        %v1917 = vpop.permute.xlu0 %1916
        %s1919 = sor.u32 256, 8
        %1920 = vbcast.lane.b32.xlu0 %v1914, %s1919
        %v1921 = vpop.permute.xlu0 %1920
        %s1923 = sor.u32 256, 16
        %1924 = vbcast.lane.b32.xlu0 %v1914, %s1923
        %v1925 = vpop.permute.xlu0 %1924
        %v1926 = vlaneseq
        %v1927 = vshrl.u32 %v1926, 7
        %v1928 = vsub.s32 4, %v1927
        %v1929 = vrot.slane %v1745, %v1928
        %1931 = vbcast.lane.b32.xlu0 %v1929, 256
        %v1932 = vpop.permute.xlu0 %1931
        %s1934 = sor.u32 256, 8
        %1935 = vbcast.lane.b32.xlu0 %v1929, %s1934
        %v1936 = vpop.permute.xlu0 %1935
        %s1938 = sor.u32 256, 16
        %1939 = vbcast.lane.b32.xlu0 %v1929, %s1938
        %v1940 = vpop.permute.xlu0 %1939
        %v1941 = vlaneseq
        %v1942 = vshrl.u32 %v1941, 7
        %v1943 = vsub.s32 5, %v1942
        %v1944 = vrot.slane %v1745, %v1943
        %1946 = vbcast.lane.b32.xlu0 %v1944, 256
        %v1947 = vpop.permute.xlu0 %1946
        %s1949 = sor.u32 256, 8
        %1950 = vbcast.lane.b32.xlu0 %v1944, %s1949
        %v1951 = vpop.permute.xlu0 %1950
        %s1953 = sor.u32 256, 16
        %1954 = vbcast.lane.b32.xlu0 %v1944, %s1953
        %v1955 = vpop.permute.xlu0 %1954
        %v1956 = vlaneseq
        %v1957 = vshrl.u32 %v1956, 7
        %v1958 = vsub.s32 6, %v1957
        %v1959 = vrot.slane %v1745, %v1958
        %1961 = vbcast.lane.b32.xlu0 %v1959, 256
        %v1962 = vpop.permute.xlu0 %1961
        %s1964 = sor.u32 256, 8
        %1965 = vbcast.lane.b32.xlu0 %v1959, %s1964
        %v1966 = vpop.permute.xlu0 %1965
        %s1968 = sor.u32 256, 16
        %1969 = vbcast.lane.b32.xlu0 %v1959, %s1968
        %v1970 = vpop.permute.xlu0 %1969
        %v1971 = vlaneseq
        %v1972 = vshrl.u32 %v1971, 7
        %v1973 = vsub.s32 7, %v1972
        %v1974 = vrot.slane %v1745, %v1973
        %1976 = vbcast.lane.b32.xlu0 %v1974, 256
        %v1977 = vpop.permute.xlu0 %1976
        %s1979 = sor.u32 256, 8
        %1980 = vbcast.lane.b32.xlu0 %v1974, %s1979
        %v1981 = vpop.permute.xlu0 %1980
        %s1983 = sor.u32 256, 16
        %1984 = vbcast.lane.b32.xlu0 %v1974, %s1983
        %v1985 = vpop.permute.xlu0 %1984
        %v1986 = vsel %vm1742, 0.0, 1.0
        %v1987 = vsel %vm1743, 0.0, 1.0
        %v1988 = vlaneseq
        %v1989 = vshrl.u32 %v1988, 7
        %v1990 = vsub.s32 0, %v1989
        %v1991 = vrot.slane %v1986, %v1990
        %1993 = vbcast.lane.b32.xlu0 %v1991, 256
        %v1994 = vpop.permute.xlu0 %1993
        %s1996 = sor.u32 256, 8
        %1997 = vbcast.lane.b32.xlu0 %v1991, %s1996
        %v1998 = vpop.permute.xlu0 %1997
        %s2000 = sor.u32 256, 16
        %2001 = vbcast.lane.b32.xlu0 %v1991, %s2000
        %v2002 = vpop.permute.xlu0 %2001
        %v2003 = vlaneseq
        %v2004 = vshrl.u32 %v2003, 7
        %v2005 = vsub.s32 1, %v2004
        %v2006 = vrot.slane %v1986, %v2005
        %2008 = vbcast.lane.b32.xlu0 %v2006, 256
        %v2009 = vpop.permute.xlu0 %2008
        %s2011 = sor.u32 256, 8
        %2012 = vbcast.lane.b32.xlu0 %v2006, %s2011
        %v2013 = vpop.permute.xlu0 %2012
        %s2015 = sor.u32 256, 16
        %2016 = vbcast.lane.b32.xlu0 %v2006, %s2015
        %v2017 = vpop.permute.xlu0 %2016
        %v2018 = vlaneseq
        %v2019 = vshrl.u32 %v2018, 7
        %v2020 = vsub.s32 2, %v2019
        %v2021 = vrot.slane %v1986, %v2020
        %2023 = vbcast.lane.b32.xlu0 %v2021, 256
        %v2024 = vpop.permute.xlu0 %2023
        %s2026 = sor.u32 256, 8
        %2027 = vbcast.lane.b32.xlu0 %v2021, %s2026
        %v2028 = vpop.permute.xlu0 %2027
        %s2030 = sor.u32 256, 16
        %2031 = vbcast.lane.b32.xlu0 %v2021, %s2030
        %v2032 = vpop.permute.xlu0 %2031
        %v2033 = vlaneseq
        %v2034 = vshrl.u32 %v2033, 7
        %v2035 = vsub.s32 3, %v2034
        %v2036 = vrot.slane %v1986, %v2035
        %2038 = vbcast.lane.b32.xlu0 %v2036, 256
        %v2039 = vpop.permute.xlu0 %2038
        %s2041 = sor.u32 256, 8
        %2042 = vbcast.lane.b32.xlu0 %v2036, %s2041
        %v2043 = vpop.permute.xlu0 %2042
        %s2045 = sor.u32 256, 16
        %2046 = vbcast.lane.b32.xlu0 %v2036, %s2045
        %v2047 = vpop.permute.xlu0 %2046
        %v2048 = vlaneseq
        %v2049 = vshrl.u32 %v2048, 7
        %v2050 = vsub.s32 4, %v2049
        %v2051 = vrot.slane %v1986, %v2050
        %2053 = vbcast.lane.b32.xlu0 %v2051, 256
        %v2054 = vpop.permute.xlu0 %2053
        %s2056 = sor.u32 256, 8
        %2057 = vbcast.lane.b32.xlu0 %v2051, %s2056
        %v2058 = vpop.permute.xlu0 %2057
        %s2060 = sor.u32 256, 16
        %2061 = vbcast.lane.b32.xlu0 %v2051, %s2060
        %v2062 = vpop.permute.xlu0 %2061
        %v2063 = vlaneseq
        %v2064 = vshrl.u32 %v2063, 7
        %v2065 = vsub.s32 5, %v2064
        %v2066 = vrot.slane %v1986, %v2065
        %2068 = vbcast.lane.b32.xlu0 %v2066, 256
        %v2069 = vpop.permute.xlu0 %2068
        %s2071 = sor.u32 256, 8
        %2072 = vbcast.lane.b32.xlu0 %v2066, %s2071
        %v2073 = vpop.permute.xlu0 %2072
        %s2075 = sor.u32 256, 16
        %2076 = vbcast.lane.b32.xlu0 %v2066, %s2075
        %v2077 = vpop.permute.xlu0 %2076
        %v2078 = vlaneseq
        %v2079 = vshrl.u32 %v2078, 7
        %v2080 = vsub.s32 6, %v2079
        %v2081 = vrot.slane %v1986, %v2080
        %2083 = vbcast.lane.b32.xlu0 %v2081, 256
        %v2084 = vpop.permute.xlu0 %2083
        %s2086 = sor.u32 256, 8
        %2087 = vbcast.lane.b32.xlu0 %v2081, %s2086
        %v2088 = vpop.permute.xlu0 %2087
        %s2090 = sor.u32 256, 16
        %2091 = vbcast.lane.b32.xlu0 %v2081, %s2090
        %v2092 = vpop.permute.xlu0 %2091
        %v2093 = vlaneseq
        %v2094 = vshrl.u32 %v2093, 7
        %v2095 = vsub.s32 7, %v2094
        %v2096 = vrot.slane %v1986, %v2095
        %2098 = vbcast.lane.b32.xlu0 %v2096, 256
        %v2099 = vpop.permute.xlu0 %2098
        %s2101 = sor.u32 256, 8
        %2102 = vbcast.lane.b32.xlu0 %v2096, %s2101
        %v2103 = vpop.permute.xlu0 %2102
        %s2105 = sor.u32 256, 16
        %2106 = vbcast.lane.b32.xlu0 %v2096, %s2105
        %v2107 = vpop.permute.xlu0 %2106
        %v2108 = vlaneseq
        %v2109 = vshrl.u32 %v2108, 7
        %v2110 = vsub.s32 0, %v2109
        %v2111 = vrot.slane %v1987, %v2110
        %2113 = vbcast.lane.b32.xlu0 %v2111, 256
        %v2114 = vpop.permute.xlu0 %2113
        %s2116 = sor.u32 256, 8
        %2117 = vbcast.lane.b32.xlu0 %v2111, %s2116
        %v2118 = vpop.permute.xlu0 %2117
        %s2120 = sor.u32 256, 16
        %2121 = vbcast.lane.b32.xlu0 %v2111, %s2120
        %v2122 = vpop.permute.xlu0 %2121
        %v2123 = vlaneseq
        %v2124 = vshrl.u32 %v2123, 7
        %v2125 = vsub.s32 1, %v2124
        %v2126 = vrot.slane %v1987, %v2125
        %2128 = vbcast.lane.b32.xlu0 %v2126, 256
        %v2129 = vpop.permute.xlu0 %2128
        %s2131 = sor.u32 256, 8
        %2132 = vbcast.lane.b32.xlu0 %v2126, %s2131
        %v2133 = vpop.permute.xlu0 %2132
        %s2135 = sor.u32 256, 16
        %2136 = vbcast.lane.b32.xlu0 %v2126, %s2135
        %v2137 = vpop.permute.xlu0 %2136
        %v2138 = vlaneseq
        %v2139 = vshrl.u32 %v2138, 7
        %v2140 = vsub.s32 2, %v2139
        %v2141 = vrot.slane %v1987, %v2140
        %2143 = vbcast.lane.b32.xlu0 %v2141, 256
        %v2144 = vpop.permute.xlu0 %2143
        %s2146 = sor.u32 256, 8
        %2147 = vbcast.lane.b32.xlu0 %v2141, %s2146
        %v2148 = vpop.permute.xlu0 %2147
        %s2150 = sor.u32 256, 16
        %2151 = vbcast.lane.b32.xlu0 %v2141, %s2150
        %v2152 = vpop.permute.xlu0 %2151
        %v2153 = vlaneseq
        %v2154 = vshrl.u32 %v2153, 7
        %v2155 = vsub.s32 3, %v2154
        %v2156 = vrot.slane %v1987, %v2155
        %2158 = vbcast.lane.b32.xlu0 %v2156, 256
        %v2159 = vpop.permute.xlu0 %2158
        %s2161 = sor.u32 256, 8
        %2162 = vbcast.lane.b32.xlu0 %v2156, %s2161
        %v2163 = vpop.permute.xlu0 %2162
        %s2165 = sor.u32 256, 16
        %2166 = vbcast.lane.b32.xlu0 %v2156, %s2165
        %v2167 = vpop.permute.xlu0 %2166
        %v2168 = vlaneseq
        %v2169 = vshrl.u32 %v2168, 7
        %v2170 = vsub.s32 4, %v2169
        %v2171 = vrot.slane %v1987, %v2170
        %2173 = vbcast.lane.b32.xlu0 %v2171, 256
        %v2174 = vpop.permute.xlu0 %2173
        %s2176 = sor.u32 256, 8
        %2177 = vbcast.lane.b32.xlu0 %v2171, %s2176
        %v2178 = vpop.permute.xlu0 %2177
        %s2180 = sor.u32 256, 16
        %2181 = vbcast.lane.b32.xlu0 %v2171, %s2180
        %v2182 = vpop.permute.xlu0 %2181
        %v2183 = vlaneseq
        %v2184 = vshrl.u32 %v2183, 7
        %v2185 = vsub.s32 5, %v2184
        %v2186 = vrot.slane %v1987, %v2185
        %2188 = vbcast.lane.b32.xlu0 %v2186, 256
        %v2189 = vpop.permute.xlu0 %2188
        %s2191 = sor.u32 256, 8
        %2192 = vbcast.lane.b32.xlu0 %v2186, %s2191
        %v2193 = vpop.permute.xlu0 %2192
        %s2195 = sor.u32 256, 16
        %2196 = vbcast.lane.b32.xlu0 %v2186, %s2195
        %v2197 = vpop.permute.xlu0 %2196
        %v2198 = vlaneseq
        %v2199 = vshrl.u32 %v2198, 7
        %v2200 = vsub.s32 6, %v2199
        %v2201 = vrot.slane %v1987, %v2200
        %2203 = vbcast.lane.b32.xlu0 %v2201, 256
        %v2204 = vpop.permute.xlu0 %2203
        %s2206 = sor.u32 256, 8
        %2207 = vbcast.lane.b32.xlu0 %v2201, %s2206
        %v2208 = vpop.permute.xlu0 %2207
        %s2210 = sor.u32 256, 16
        %2211 = vbcast.lane.b32.xlu0 %v2201, %s2210
        %v2212 = vpop.permute.xlu0 %2211
        %v2213 = vlaneseq
        %v2214 = vshrl.u32 %v2213, 7
        %v2215 = vsub.s32 7, %v2214
        %v2216 = vrot.slane %v1987, %v2215
        %2218 = vbcast.lane.b32.xlu0 %v2216, 256
        %v2219 = vpop.permute.xlu0 %2218
        %s2221 = sor.u32 256, 8
        %2222 = vbcast.lane.b32.xlu0 %v2216, %s2221
        %v2223 = vpop.permute.xlu0 %2222
        %s2225 = sor.u32 256, 16
        %2226 = vbcast.lane.b32.xlu0 %v2216, %s2225
        %v2227 = vpop.permute.xlu0 %2226
        %vm2228 = vcmp.ge.s32.totalorder %v1735, 20
        %v2229 = vsel %vm2228, -1e+20, 0.0
        %2230 = vmatprep.subr.mxu0 0.0
        %2231 = vmatpush1.xpose.msra.mxu0 %v974
        %2232 = vmatprep.subr.mxu0 0.0
        %2233 = vmatpush1.xpose.msra.mxu0 %v975
        %2234 = vmatprep.subr.mxu0 0.0
        %2235 = vmatpush1.xpose.msra.mxu0 %v976
        %2236 = vmatprep.subr.mxu0 0.0
        %2237 = vmatpush1.xpose.msra.mxu0 0.0
        %2238 = vmatprep.subr.mxu0 0.0
        %2239 = vmatpush1.xpose.msra.mxu0 0.0
        %2240 = vmatprep.subr.mxu0 0.0
        %2241 = vmatpush1.xpose.msra.mxu0 0.0
        %2242 = vmatprep.subr.mxu0 0.0
        %2243 = vmatpush1.xpose.msra.mxu0 0.0
        %2244 = vmatprep.subr.mxu0 0.0
        %2245 = vmatpush1.xpose.msra.mxu0 0.0
        %2246 = vmatprep.subr.mxu0 0.0
        %2247 = vmatpush1.xpose.msra.mxu0 0.0
        %2248 = vmatprep.subr.mxu0 0.0
        %2249 = vmatpush1.xpose.msra.mxu0 0.0
        %2250 = vmatprep.subr.mxu0 0.0
        %2251 = vmatpush1.xpose.msra.mxu0 0.0
        %2252 = vmatprep.subr.mxu0 0.0
        %2253 = vmatpush1.xpose.msra.mxu0 0.0
        %2254 = vmatprep.subr.mxu0 0.0
        %2255 = vmatpush1.xpose.msra.mxu0 0.0
        %2256 = vmatprep.subr.mxu0 0.0
        %2257 = vmatpush1.xpose.msra.mxu0 0.0
        %2258 = vmatprep.subr.mxu0 0.0
        %2259 = vmatpush1.xpose.msra.mxu0 0.0
        %2260 = vmatprep.subr.mxu0 0.0
        %2261 = vmatpush1.xpose.msra.mxu0 0.0
        %2262 = vmatprep.subr.mxu0 0.0
        %2263 = vmatpush1.xpose.msra.mxu0 0.0
        %2264 = vmatprep.subr.mxu0 0.0
        %2265 = vmatpush1.xpose.msra.mxu0 0.0
        %2266 = vmatprep.subr.mxu0 0.0
        %2267 = vmatpush1.xpose.msra.mxu0 0.0
        %2268 = vmatprep.subr.mxu0 0.0
        %2269 = vmatpush1.xpose.msra.mxu0 0.0
        %2270 = vmatprep.subr.mxu0 0.0
        %2271 = vmatpush1.xpose.msra.mxu0 0.0
        %2272 = vmatprep.subr.mxu0 0.0
        %2273 = vmatpush1.xpose.msra.mxu0 0.0
        %2274 = vmatprep.subr.mxu0 0.0
        %2275 = vmatpush1.xpose.msra.mxu0 0.0
        %2276 = vmatprep.subr.mxu0 0.0
        %2277 = vmatpush1.xpose.msra.mxu0 0.0
        %2278 = vmatprep.subr.mxu0 0.0
        %2279 = vmatpush1.xpose.msra.mxu0 0.0
        %2280 = vmatprep.subr.mxu0 0.0
        %2281 = vmatpush1.xpose.msra.mxu0 0.0
        %2282 = vmatprep.subr.mxu0 0.0
        %2283 = vmatpush1.xpose.msra.mxu0 0.0
        %2284 = vmatprep.subr.mxu0 0.0
        %2285 = vmatpush1.xpose.msra.mxu0 0.0
        %2286 = vmatprep.subr.mxu0 0.0
        %2287 = vmatpush1.xpose.msra.mxu0 0.0
        %2288 = vmatprep.subr.mxu0 0.0
        %2289 = vmatpush1.xpose.msra.mxu0 0.0
        %2290 = vmatprep.subr.mxu0 0.0
        %2291 = vmatpush1.xpose.msra.mxu0 0.0
        %2292 = vmatprep.subr.mxu0 0.0
        %2293 = vmatpush1.xpose.msra.mxu0 0.0
        %2294 = vmatprep.mubr.f32.mxu0 0.0
        %2295 = vmatmul.mubr.f32.gmra.mrb[0].mxu0 %v1684
        %v2296 = vpop.f32.mrb[0].mxu0
        %v2297 = vadd.f32 %v1752, %v2296
        %v2298 = vpop.f32.mrb[0].mxu0
        %2299 = vmatprep.mubr.f32.mxu0 0.0
        %2300 = vmatmul.mubr.f32.gmra.mrb[0].mxu0 %v1685
        %v2301 = vpop.f32.mrb[0].mxu0
        %v2302 = vadd.f32 %v1756, %v2301
        %v2303 = vpop.f32.mrb[0].mxu0
        %2304 = vmatprep.mubr.f32.mxu0 0.0
        %2305 = vmatmul.mubr.f32.gmra.mrb[0].mxu0 %v1686
        %v2306 = vpop.f32.mrb[0].mxu0
        %v2307 = vadd.f32 %v1760, %v2306
        %v2308 = vpop.f32.mrb[0].mxu0
        %2309 = vdwg.mxu0
        %2310 = vmatprep.subr.mxu0 0.0
        %2311 = vmatpush1.xpose.msra.mxu0 %v977
        %2312 = vmatprep.subr.mxu0 0.0
        %2313 = vmatpush1.xpose.msra.mxu0 %v978
        %2314 = vmatprep.subr.mxu0 0.0
        %2315 = vmatpush1.xpose.msra.mxu0 %v979
        %2316 = vmatprep.subr.mxu0 0.0
        %2317 = vmatpush1.xpose.msra.mxu0 0.0
        %2318 = vmatprep.subr.mxu0 0.0
        %2319 = vmatpush1.xpose.msra.mxu0 0.0
        %2320 = vmatprep.subr.mxu0 0.0
        %2321 = vmatpush1.xpose.msra.mxu0 0.0
        %2322 = vmatprep.subr.mxu0 0.0
        %2323 = vmatpush1.xpose.msra.mxu0 0.0
        %2324 = vmatprep.subr.mxu0 0.0
        %2325 = vmatpush1.xpose.msra.mxu0 0.0
        %2326 = vmatprep.subr.mxu0 0.0
        %2327 = vmatpush1.xpose.msra.mxu0 0.0
        %2328 = vmatprep.subr.mxu0 0.0
        %2329 = vmatpush1.xpose.msra.mxu0 0.0
        %2330 = vmatprep.subr.mxu0 0.0
        %2331 = vmatpush1.xpose.msra.mxu0 0.0
        %2332 = vmatprep.subr.mxu0 0.0
        %2333 = vmatpush1.xpose.msra.mxu0 0.0
        %2334 = vmatprep.subr.mxu0 0.0
        %2335 = vmatpush1.xpose.msra.mxu0 0.0
        %2336 = vmatprep.subr.mxu0 0.0
        %2337 = vmatpush1.xpose.msra.mxu0 0.0
        %2338 = vmatprep.subr.mxu0 0.0
        %2339 = vmatpush1.xpose.msra.mxu0 0.0
        %2340 = vmatprep.subr.mxu0 0.0
        %2341 = vmatpush1.xpose.msra.mxu0 0.0
        %2342 = vmatprep.subr.mxu0 0.0
        %2343 = vmatpush1.xpose.msra.mxu0 0.0
        %2344 = vmatprep.subr.mxu0 0.0
        %2345 = vmatpush1.xpose.msra.mxu0 0.0
        %2346 = vmatprep.subr.mxu0 0.0
        %2347 = vmatpush1.xpose.msra.mxu0 0.0
        %2348 = vmatprep.subr.mxu0 0.0
        %2349 = vmatpush1.xpose.msra.mxu0 0.0
        %2350 = vmatprep.subr.mxu0 0.0
        %2351 = vmatpush1.xpose.msra.mxu0 0.0
        %2352 = vmatprep.subr.mxu0 0.0
        %2353 = vmatpush1.xpose.msra.mxu0 0.0
        %2354 = vmatprep.subr.mxu0 0.0
        %2355 = vmatpush1.xpose.msra.mxu0 0.0
        %2356 = vmatprep.subr.mxu0 0.0
        %2357 = vmatpush1.xpose.msra.mxu0 0.0
        %2358 = vmatprep.subr.mxu0 0.0
        %2359 = vmatpush1.xpose.msra.mxu0 0.0
        %2360 = vmatprep.subr.mxu0 0.0
        %2361 = vmatpush1.xpose.msra.mxu0 0.0
        %2362 = vmatprep.subr.mxu0 0.0
        %2363 = vmatpush1.xpose.msra.mxu0 0.0
        %2364 = vmatprep.subr.mxu0 0.0
        %2365 = vmatpush1.xpose.msra.mxu0 0.0
        %2366 = vmatprep.subr.mxu0 0.0
        %2367 = vmatpush1.xpose.msra.mxu0 0.0
        %2368 = vmatprep.subr.mxu0 0.0
        %2369 = vmatpush1.xpose.msra.mxu0 0.0
        %2370 = vmatprep.subr.mxu0 0.0
        %2371 = vmatpush1.xpose.msra.mxu0 0.0
        %2372 = vmatprep.subr.mxu0 0.0
        %2373 = vmatpush1.xpose.msra.mxu0 0.0
        %2374 = vmatprep.mubr.f32.mxu0 0.0
        %2375 = vmatmul.mubr.f32.gmra.mrb[0].mxu0 %v1687
        %v2376 = vpop.f32.mrb[0].mxu0
        %v2377 = vadd.f32 %v1767, %v2376
        %v2378 = vpop.f32.mrb[0].mxu0
        %2379 = vmatprep.mubr.f32.mxu0 0.0
        %2380 = vmatmul.mubr.f32.gmra.mrb[0].mxu0 %v1688
        %v2381 = vpop.f32.mrb[0].mxu0
        %v2382 = vadd.f32 %v1771, %v2381
        %v2383 = vpop.f32.mrb[0].mxu0
        %2384 = vmatprep.mubr.f32.mxu0 0.0
        %2385 = vmatmul.mubr.f32.gmra.mrb[0].mxu0 %v1689
        %v2386 = vpop.f32.mrb[0].mxu0
        %v2387 = vadd.f32 %v1775, %v2386
        %v2388 = vpop.f32.mrb[0].mxu0
        %2389 = vdwg.mxu0
        %2390 = vmatprep.subr.mxu0 0.0
        %2391 = vmatpush1.xpose.msra.mxu0 %v980
        %2392 = vmatprep.subr.mxu0 0.0
        %2393 = vmatpush1.xpose.msra.mxu0 %v981
        %2394 = vmatprep.subr.mxu0 0.0
        %2395 = vmatpush1.xpose.msra.mxu0 %v982
        %2396 = vmatprep.subr.mxu0 0.0
        %2397 = vmatpush1.xpose.msra.mxu0 0.0
        %2398 = vmatprep.subr.mxu0 0.0
        %2399 = vmatpush1.xpose.msra.mxu0 0.0
        %2400 = vmatprep.subr.mxu0 0.0
        %2401 = vmatpush1.xpose.msra.mxu0 0.0
        %2402 = vmatprep.subr.mxu0 0.0
        %2403 = vmatpush1.xpose.msra.mxu0 0.0
        %2404 = vmatprep.subr.mxu0 0.0
        %2405 = vmatpush1.xpose.msra.mxu0 0.0
        %2406 = vmatprep.subr.mxu0 0.0
        %2407 = vmatpush1.xpose.msra.mxu0 0.0
        %2408 = vmatprep.subr.mxu0 0.0
        %2409 = vmatpush1.xpose.msra.mxu0 0.0
        %2410 = vmatprep.subr.mxu0 0.0
        %2411 = vmatpush1.xpose.msra.mxu0 0.0
        %2412 = vmatprep.subr.mxu0 0.0
        %2413 = vmatpush1.xpose.msra.mxu0 0.0
        %2414 = vmatprep.subr.mxu0 0.0
        %2415 = vmatpush1.xpose.msra.mxu0 0.0
        %2416 = vmatprep.subr.mxu0 0.0
        %2417 = vmatpush1.xpose.msra.mxu0 0.0
        %2418 = vmatprep.subr.mxu0 0.0
        %2419 = vmatpush1.xpose.msra.mxu0 0.0
        %2420 = vmatprep.subr.mxu0 0.0
        %2421 = vmatpush1.xpose.msra.mxu0 0.0
        %2422 = vmatprep.subr.mxu0 0.0
        %2423 = vmatpush1.xpose.msra.mxu0 0.0
        %2424 = vmatprep.subr.mxu0 0.0
        %2425 = vmatpush1.xpose.msra.mxu0 0.0
        %2426 = vmatprep.subr.mxu0 0.0
        %2427 = vmatpush1.xpose.msra.mxu0 0.0
        %2428 = vmatprep.subr.mxu0 0.0
        %2429 = vmatpush1.xpose.msra.mxu0 0.0
        %2430 = vmatprep.subr.mxu0 0.0
        %2431 = vmatpush1.xpose.msra.mxu0 0.0
        %2432 = vmatprep.subr.mxu0 0.0
        %2433 = vmatpush1.xpose.msra.mxu0 0.0
        %2434 = vmatprep.subr.mxu0 0.0
        %2435 = vmatpush1.xpose.msra.mxu0 0.0
        %2436 = vmatprep.subr.mxu0 0.0
        %2437 = vmatpush1.xpose.msra.mxu0 0.0
        %2438 = vmatprep.subr.mxu0 0.0
        %2439 = vmatpush1.xpose.msra.mxu0 0.0
        %2440 = vmatprep.subr.mxu0 0.0
        %2441 = vmatpush1.xpose.msra.mxu0 0.0
        %2442 = vmatprep.subr.mxu0 0.0
        %2443 = vmatpush1.xpose.msra.mxu0 0.0
        %2444 = vmatprep.subr.mxu0 0.0
        %2445 = vmatpush1.xpose.msra.mxu0 0.0
        %2446 = vmatprep.subr.mxu0 0.0
        %2447 = vmatpush1.xpose.msra.mxu0 0.0
        %2448 = vmatprep.subr.mxu0 0.0
        %2449 = vmatpush1.xpose.msra.mxu0 0.0
        %2450 = vmatprep.subr.mxu0 0.0
        %2451 = vmatpush1.xpose.msra.mxu0 0.0
        %2452 = vmatprep.subr.mxu0 0.0
        %2453 = vmatpush1.xpose.msra.mxu0 0.0
        %2454 = vmatprep.mubr.f32.mxu0 0.0
        %2455 = vmatmul.mubr.f32.gmra.mrb[0].mxu0 %v1690
        %v2456 = vpop.f32.mrb[0].mxu0
        %v2457 = vadd.f32 %v1782, %v2456
        %v2458 = vpop.f32.mrb[0].mxu0
        %2459 = vmatprep.mubr.f32.mxu0 0.0
        %2460 = vmatmul.mubr.f32.gmra.mrb[0].mxu0 %v1691
        %v2461 = vpop.f32.mrb[0].mxu0
        %v2462 = vadd.f32 %v1786, %v2461
        %v2463 = vpop.f32.mrb[0].mxu0
        %2464 = vmatprep.mubr.f32.mxu0 0.0
        %2465 = vmatmul.mubr.f32.gmra.mrb[0].mxu0 %v1692
        %v2466 = vpop.f32.mrb[0].mxu0
        %v2467 = vadd.f32 %v1790, %v2466
        %v2468 = vpop.f32.mrb[0].mxu0
        %2469 = vdwg.mxu0
        %2470 = vmatprep.subr.mxu0 0.0
        %2471 = vmatpush1.xpose.msra.mxu0 %v983
        %2472 = vmatprep.subr.mxu0 0.0
        %2473 = vmatpush1.xpose.msra.mxu0 %v984
        %2474 = vmatprep.subr.mxu0 0.0
        %2475 = vmatpush1.xpose.msra.mxu0 %v985
        %2476 = vmatprep.subr.mxu0 0.0
        %2477 = vmatpush1.xpose.msra.mxu0 0.0
        %2478 = vmatprep.subr.mxu0 0.0
        %2479 = vmatpush1.xpose.msra.mxu0 0.0
        %2480 = vmatprep.subr.mxu0 0.0
        %2481 = vmatpush1.xpose.msra.mxu0 0.0
        %2482 = vmatprep.subr.mxu0 0.0
        %2483 = vmatpush1.xpose.msra.mxu0 0.0
        %2484 = vmatprep.subr.mxu0 0.0
        %2485 = vmatpush1.xpose.msra.mxu0 0.0
        %2486 = vmatprep.subr.mxu0 0.0
        %2487 = vmatpush1.xpose.msra.mxu0 0.0
        %2488 = vmatprep.subr.mxu0 0.0
        %2489 = vmatpush1.xpose.msra.mxu0 0.0
        %2490 = vmatprep.subr.mxu0 0.0
        %2491 = vmatpush1.xpose.msra.mxu0 0.0
        %2492 = vmatprep.subr.mxu0 0.0
        %2493 = vmatpush1.xpose.msra.mxu0 0.0
        %2494 = vmatprep.subr.mxu0 0.0
        %2495 = vmatpush1.xpose.msra.mxu0 0.0
        %2496 = vmatprep.subr.mxu0 0.0
        %2497 = vmatpush1.xpose.msra.mxu0 0.0
        %2498 = vmatprep.subr.mxu0 0.0
        %2499 = vmatpush1.xpose.msra.mxu0 0.0
        %2500 = vmatprep.subr.mxu0 0.0
        %2501 = vmatpush1.xpose.msra.mxu0 0.0
        %2502 = vmatprep.subr.mxu0 0.0
        %2503 = vmatpush1.xpose.msra.mxu0 0.0
        %2504 = vmatprep.subr.mxu0 0.0
        %2505 = vmatpush1.xpose.msra.mxu0 0.0
        %2506 = vmatprep.subr.mxu0 0.0
        %2507 = vmatpush1.xpose.msra.mxu0 0.0
        %2508 = vmatprep.subr.mxu0 0.0
        %2509 = vmatpush1.xpose.msra.mxu0 0.0
        %2510 = vmatprep.subr.mxu0 0.0
        %2511 = vmatpush1.xpose.msra.mxu0 0.0
        %2512 = vmatprep.subr.mxu0 0.0
        %2513 = vmatpush1.xpose.msra.mxu0 0.0
        %2514 = vmatprep.subr.mxu0 0.0
        %2515 = vmatpush1.xpose.msra.mxu0 0.0
        %2516 = vmatprep.subr.mxu0 0.0
        %2517 = vmatpush1.xpose.msra.mxu0 0.0
        %2518 = vmatprep.subr.mxu0 0.0
        %2519 = vmatpush1.xpose.msra.mxu0 0.0
        %2520 = vmatprep.subr.mxu0 0.0
        %2521 = vmatpush1.xpose.msra.mxu0 0.0
        %2522 = vmatprep.subr.mxu0 0.0
        %2523 = vmatpush1.xpose.msra.mxu0 0.0
        %2524 = vmatprep.subr.mxu0 0.0
        %2525 = vmatpush1.xpose.msra.mxu0 0.0
        %2526 = vmatprep.subr.mxu0 0.0
        %2527 = vmatpush1.xpose.msra.mxu0 0.0
        %2528 = vmatprep.subr.mxu0 0.0
        %2529 = vmatpush1.xpose.msra.mxu0 0.0
        %2530 = vmatprep.subr.mxu0 0.0
        %2531 = vmatpush1.xpose.msra.mxu0 0.0
        %2532 = vmatprep.subr.mxu0 0.0
        %2533 = vmatpush1.xpose.msra.mxu0 0.0
        %2534 = vmatprep.mubr.f32.mxu0 0.0
        %2535 = vmatmul.mubr.f32.gmra.mrb[0].mxu0 %v1693
        %v2536 = vpop.f32.mrb[0].mxu0
        %v2537 = vadd.f32 %v1797, %v2536
        %v2538 = vpop.f32.mrb[0].mxu0
        %2539 = vmatprep.mubr.f32.mxu0 0.0
        %2540 = vmatmul.mubr.f32.gmra.mrb[0].mxu0 %v1694
        %v2541 = vpop.f32.mrb[0].mxu0
        %v2542 = vadd.f32 %v1801, %v2541
        %v2543 = vpop.f32.mrb[0].mxu0
        %2544 = vmatprep.mubr.f32.mxu0 0.0
        %2545 = vmatmul.mubr.f32.gmra.mrb[0].mxu0 %v1695
        %v2546 = vpop.f32.mrb[0].mxu0
        %v2547 = vadd.f32 %v1805, %v2546
        %v2548 = vpop.f32.mrb[0].mxu0
        %2549 = vdwg.mxu0
        %2550 = vmatprep.subr.mxu0 0.0
        %2551 = vmatpush1.xpose.msra.mxu0 %v986
        %2552 = vmatprep.subr.mxu0 0.0
        %2553 = vmatpush1.xpose.msra.mxu0 %v987
        %2554 = vmatprep.subr.mxu0 0.0
        %2555 = vmatpush1.xpose.msra.mxu0 %v988
        %2556 = vmatprep.subr.mxu0 0.0
        %2557 = vmatpush1.xpose.msra.mxu0 0.0
        %2558 = vmatprep.subr.mxu0 0.0
        %2559 = vmatpush1.xpose.msra.mxu0 0.0
        %2560 = vmatprep.subr.mxu0 0.0
        %2561 = vmatpush1.xpose.msra.mxu0 0.0
        %2562 = vmatprep.subr.mxu0 0.0
        %2563 = vmatpush1.xpose.msra.mxu0 0.0
        %2564 = vmatprep.subr.mxu0 0.0
        %2565 = vmatpush1.xpose.msra.mxu0 0.0
        %2566 = vmatprep.subr.mxu0 0.0
        %2567 = vmatpush1.xpose.msra.mxu0 0.0
        %2568 = vmatprep.subr.mxu0 0.0
        %2569 = vmatpush1.xpose.msra.mxu0 0.0
        %2570 = vmatprep.subr.mxu0 0.0
        %2571 = vmatpush1.xpose.msra.mxu0 0.0
        %2572 = vmatprep.subr.mxu0 0.0
        %2573 = vmatpush1.xpose.msra.mxu0 0.0
        %2574 = vmatprep.subr.mxu0 0.0
        %2575 = vmatpush1.xpose.msra.mxu0 0.0
        %2576 = vmatprep.subr.mxu0 0.0
        %2577 = vmatpush1.xpose.msra.mxu0 0.0
        %2578 = vmatprep.subr.mxu0 0.0
        %2579 = vmatpush1.xpose.msra.mxu0 0.0
        %2580 = vmatprep.subr.mxu0 0.0
        %2581 = vmatpush1.xpose.msra.mxu0 0.0
        %2582 = vmatprep.subr.mxu0 0.0
        %2583 = vmatpush1.xpose.msra.mxu0 0.0
        %2584 = vmatprep.subr.mxu0 0.0
        %2585 = vmatpush1.xpose.msra.mxu0 0.0
        %2586 = vmatprep.subr.mxu0 0.0
        %2587 = vmatpush1.xpose.msra.mxu0 0.0
        %2588 = vmatprep.subr.mxu0 0.0
        %2589 = vmatpush1.xpose.msra.mxu0 0.0
        %2590 = vmatprep.subr.mxu0 0.0
        %2591 = vmatpush1.xpose.msra.mxu0 0.0
        %2592 = vmatprep.subr.mxu0 0.0
        %2593 = vmatpush1.xpose.msra.mxu0 0.0
        %2594 = vmatprep.subr.mxu0 0.0
        %2595 = vmatpush1.xpose.msra.mxu0 0.0
        %2596 = vmatprep.subr.mxu0 0.0
        %2597 = vmatpush1.xpose.msra.mxu0 0.0
        %2598 = vmatprep.subr.mxu0 0.0
        %2599 = vmatpush1.xpose.msra.mxu0 0.0
        %2600 = vmatprep.subr.mxu0 0.0
        %2601 = vmatpush1.xpose.msra.mxu0 0.0
        %2602 = vmatprep.subr.mxu0 0.0
        %2603 = vmatpush1.xpose.msra.mxu0 0.0
        %2604 = vmatprep.subr.mxu0 0.0
        %2605 = vmatpush1.xpose.msra.mxu0 0.0
        %2606 = vmatprep.subr.mxu0 0.0
        %2607 = vmatpush1.xpose.msra.mxu0 0.0
        %2608 = vmatprep.subr.mxu0 0.0
        %2609 = vmatpush1.xpose.msra.mxu0 0.0
        %2610 = vmatprep.subr.mxu0 0.0
        %2611 = vmatpush1.xpose.msra.mxu0 0.0
        %2612 = vmatprep.subr.mxu0 0.0
        %2613 = vmatpush1.xpose.msra.mxu0 0.0
        %2614 = vmatprep.mubr.f32.mxu0 0.0
        %2615 = vmatmul.mubr.f32.gmra.mrb[0].mxu0 %v1696
        %v2616 = vpop.f32.mrb[0].mxu0
        %v2617 = vadd.f32 %v1812, %v2616
        %v2618 = vpop.f32.mrb[0].mxu0
        %2619 = vmatprep.mubr.f32.mxu0 0.0
        %2620 = vmatmul.mubr.f32.gmra.mrb[0].mxu0 %v1697
        %v2621 = vpop.f32.mrb[0].mxu0
        %v2622 = vadd.f32 %v1816, %v2621
        %v2623 = vpop.f32.mrb[0].mxu0
        %2624 = vmatprep.mubr.f32.mxu0 0.0
        %2625 = vmatmul.mubr.f32.gmra.mrb[0].mxu0 %v1698
        %v2626 = vpop.f32.mrb[0].mxu0
        %v2627 = vadd.f32 %v1820, %v2626
        %v2628 = vpop.f32.mrb[0].mxu0
        %2629 = vdwg.mxu0
        %2630 = vmatprep.subr.mxu0 0.0
        %2631 = vmatpush1.xpose.msra.mxu0 %v989
        %2632 = vmatprep.subr.mxu0 0.0
        %2633 = vmatpush1.xpose.msra.mxu0 %v990
        %2634 = vmatprep.subr.mxu0 0.0
        %2635 = vmatpush1.xpose.msra.mxu0 %v991
        %2636 = vmatprep.subr.mxu0 0.0
        %2637 = vmatpush1.xpose.msra.mxu0 0.0
        %2638 = vmatprep.subr.mxu0 0.0
        %2639 = vmatpush1.xpose.msra.mxu0 0.0
        %2640 = vmatprep.subr.mxu0 0.0
        %2641 = vmatpush1.xpose.msra.mxu0 0.0
        %2642 = vmatprep.subr.mxu0 0.0
        %2643 = vmatpush1.xpose.msra.mxu0 0.0
        %2644 = vmatprep.subr.mxu0 0.0
        %2645 = vmatpush1.xpose.msra.mxu0 0.0
        %2646 = vmatprep.subr.mxu0 0.0
        %2647 = vmatpush1.xpose.msra.mxu0 0.0
        %2648 = vmatprep.subr.mxu0 0.0
        %2649 = vmatpush1.xpose.msra.mxu0 0.0
        %2650 = vmatprep.subr.mxu0 0.0
        %2651 = vmatpush1.xpose.msra.mxu0 0.0
        %2652 = vmatprep.subr.mxu0 0.0
        %2653 = vmatpush1.xpose.msra.mxu0 0.0
        %2654 = vmatprep.subr.mxu0 0.0
        %2655 = vmatpush1.xpose.msra.mxu0 0.0
        %2656 = vmatprep.subr.mxu0 0.0
        %2657 = vmatpush1.xpose.msra.mxu0 0.0
        %2658 = vmatprep.subr.mxu0 0.0
        %2659 = vmatpush1.xpose.msra.mxu0 0.0
        %2660 = vmatprep.subr.mxu0 0.0
        %2661 = vmatpush1.xpose.msra.mxu0 0.0
        %2662 = vmatprep.subr.mxu0 0.0
        %2663 = vmatpush1.xpose.msra.mxu0 0.0
        %2664 = vmatprep.subr.mxu0 0.0
        %2665 = vmatpush1.xpose.msra.mxu0 0.0
        %2666 = vmatprep.subr.mxu0 0.0
        %2667 = vmatpush1.xpose.msra.mxu0 0.0
        %2668 = vmatprep.subr.mxu0 0.0
        %2669 = vmatpush1.xpose.msra.mxu0 0.0
        %2670 = vmatprep.subr.mxu0 0.0
        %2671 = vmatpush1.xpose.msra.mxu0 0.0
        %2672 = vmatprep.subr.mxu0 0.0
        %2673 = vmatpush1.xpose.msra.mxu0 0.0
        %2674 = vmatprep.subr.mxu0 0.0
        %2675 = vmatpush1.xpose.msra.mxu0 0.0
        %2676 = vmatprep.subr.mxu0 0.0
        %2677 = vmatpush1.xpose.msra.mxu0 0.0
        %2678 = vmatprep.subr.mxu0 0.0
        %2679 = vmatpush1.xpose.msra.mxu0 0.0
        %2680 = vmatprep.subr.mxu0 0.0
        %2681 = vmatpush1.xpose.msra.mxu0 0.0
        %2682 = vmatprep.subr.mxu0 0.0
        %2683 = vmatpush1.xpose.msra.mxu0 0.0
        %2684 = vmatprep.subr.mxu0 0.0
        %2685 = vmatpush1.xpose.msra.mxu0 0.0
        %2686 = vmatprep.subr.mxu0 0.0
        %2687 = vmatpush1.xpose.msra.mxu0 0.0
        %2688 = vmatprep.subr.mxu0 0.0
        %2689 = vmatpush1.xpose.msra.mxu0 0.0
        %2690 = vmatprep.subr.mxu0 0.0
        %2691 = vmatpush1.xpose.msra.mxu0 0.0
        %2692 = vmatprep.subr.mxu0 0.0
        %2693 = vmatpush1.xpose.msra.mxu0 0.0
        %2694 = vmatprep.mubr.f32.mxu0 0.0
        %2695 = vmatmul.mubr.f32.gmra.mrb[0].mxu0 %v1699
        %v2696 = vpop.f32.mrb[0].mxu0
        %v2697 = vadd.f32 %v1827, %v2696
        %v2698 = vpop.f32.mrb[0].mxu0
        %2699 = vmatprep.mubr.f32.mxu0 0.0
        %2700 = vmatmul.mubr.f32.gmra.mrb[0].mxu0 %v1700
        %v2701 = vpop.f32.mrb[0].mxu0
        %v2702 = vadd.f32 %v1831, %v2701
        %v2703 = vpop.f32.mrb[0].mxu0
        %2704 = vmatprep.mubr.f32.mxu0 0.0
        %2705 = vmatmul.mubr.f32.gmra.mrb[0].mxu0 %v1701
        %v2706 = vpop.f32.mrb[0].mxu0
        %v2707 = vadd.f32 %v1835, %v2706
        %v2708 = vpop.f32.mrb[0].mxu0
        %2709 = vdwg.mxu0
        %2710 = vmatprep.subr.mxu0 0.0
        %2711 = vmatpush1.xpose.msra.mxu0 %v992
        %2712 = vmatprep.subr.mxu0 0.0
        %2713 = vmatpush1.xpose.msra.mxu0 %v993
        %2714 = vmatprep.subr.mxu0 0.0
        %2715 = vmatpush1.xpose.msra.mxu0 %v994
        %2716 = vmatprep.subr.mxu0 0.0
        %2717 = vmatpush1.xpose.msra.mxu0 0.0
        %2718 = vmatprep.subr.mxu0 0.0
        %2719 = vmatpush1.xpose.msra.mxu0 0.0
        %2720 = vmatprep.subr.mxu0 0.0
        %2721 = vmatpush1.xpose.msra.mxu0 0.0
        %2722 = vmatprep.subr.mxu0 0.0
        %2723 = vmatpush1.xpose.msra.mxu0 0.0
        %2724 = vmatprep.subr.mxu0 0.0
        %2725 = vmatpush1.xpose.msra.mxu0 0.0
        %2726 = vmatprep.subr.mxu0 0.0
        %2727 = vmatpush1.xpose.msra.mxu0 0.0
        %2728 = vmatprep.subr.mxu0 0.0
        %2729 = vmatpush1.xpose.msra.mxu0 0.0
        %2730 = vmatprep.subr.mxu0 0.0
        %2731 = vmatpush1.xpose.msra.mxu0 0.0
        %2732 = vmatprep.subr.mxu0 0.0
        %2733 = vmatpush1.xpose.msra.mxu0 0.0
        %2734 = vmatprep.subr.mxu0 0.0
        %2735 = vmatpush1.xpose.msra.mxu0 0.0
        %2736 = vmatprep.subr.mxu0 0.0
        %2737 = vmatpush1.xpose.msra.mxu0 0.0
        %2738 = vmatprep.subr.mxu0 0.0
        %2739 = vmatpush1.xpose.msra.mxu0 0.0
        %2740 = vmatprep.subr.mxu0 0.0
        %2741 = vmatpush1.xpose.msra.mxu0 0.0
        %2742 = vmatprep.subr.mxu0 0.0
        %2743 = vmatpush1.xpose.msra.mxu0 0.0
        %2744 = vmatprep.subr.mxu0 0.0
        %2745 = vmatpush1.xpose.msra.mxu0 0.0
        %2746 = vmatprep.subr.mxu0 0.0
        %2747 = vmatpush1.xpose.msra.mxu0 0.0
        %2748 = vmatprep.subr.mxu0 0.0
        %2749 = vmatpush1.xpose.msra.mxu0 0.0
        %2750 = vmatprep.subr.mxu0 0.0
        %2751 = vmatpush1.xpose.msra.mxu0 0.0
        %2752 = vmatprep.subr.mxu0 0.0
        %2753 = vmatpush1.xpose.msra.mxu0 0.0
        %2754 = vmatprep.subr.mxu0 0.0
        %2755 = vmatpush1.xpose.msra.mxu0 0.0
        %2756 = vmatprep.subr.mxu0 0.0
        %2757 = vmatpush1.xpose.msra.mxu0 0.0
        %2758 = vmatprep.subr.mxu0 0.0
        %2759 = vmatpush1.xpose.msra.mxu0 0.0
        %2760 = vmatprep.subr.mxu0 0.0
        %2761 = vmatpush1.xpose.msra.mxu0 0.0
        %2762 = vmatprep.subr.mxu0 0.0
        %2763 = vmatpush1.xpose.msra.mxu0 0.0
        %2764 = vmatprep.subr.mxu0 0.0
        %2765 = vmatpush1.xpose.msra.mxu0 0.0
        %2766 = vmatprep.subr.mxu0 0.0
        %2767 = vmatpush1.xpose.msra.mxu0 0.0
        %2768 = vmatprep.subr.mxu0 0.0
        %2769 = vmatpush1.xpose.msra.mxu0 0.0
        %2770 = vmatprep.subr.mxu0 0.0
        %2771 = vmatpush1.xpose.msra.mxu0 0.0
        %2772 = vmatprep.subr.mxu0 0.0
        %2773 = vmatpush1.xpose.msra.mxu0 0.0
        %2774 = vmatprep.mubr.f32.mxu0 0.0
        %2775 = vmatmul.mubr.f32.gmra.mrb[0].mxu0 %v1702
        %v2776 = vpop.f32.mrb[0].mxu0
        %v2777 = vadd.f32 %v1842, %v2776
        %v2778 = vpop.f32.mrb[0].mxu0
        %2779 = vmatprep.mubr.f32.mxu0 0.0
        %2780 = vmatmul.mubr.f32.gmra.mrb[0].mxu0 %v1703
        %v2781 = vpop.f32.mrb[0].mxu0
        %v2782 = vadd.f32 %v1846, %v2781
        %v2783 = vpop.f32.mrb[0].mxu0
        %2784 = vmatprep.mubr.f32.mxu0 0.0
        %2785 = vmatmul.mubr.f32.gmra.mrb[0].mxu0 %v1704
        %v2786 = vpop.f32.mrb[0].mxu0
        %v2787 = vadd.f32 %v1850, %v2786
        %v2788 = vpop.f32.mrb[0].mxu0
        %2789 = vdwg.mxu0
        %2790 = vmatprep.subr.mxu0 0.0
        %2791 = vmatpush1.xpose.msra.mxu0 %v995
        %2792 = vmatprep.subr.mxu0 0.0
        %2793 = vmatpush1.xpose.msra.mxu0 %v996
        %2794 = vmatprep.subr.mxu0 0.0
        %2795 = vmatpush1.xpose.msra.mxu0 %v997
        %2796 = vmatprep.subr.mxu0 0.0
        %2797 = vmatpush1.xpose.msra.mxu0 0.0
        %2798 = vmatprep.subr.mxu0 0.0
        %2799 = vmatpush1.xpose.msra.mxu0 0.0
        %2800 = vmatprep.subr.mxu0 0.0
        %2801 = vmatpush1.xpose.msra.mxu0 0.0
        %2802 = vmatprep.subr.mxu0 0.0
        %2803 = vmatpush1.xpose.msra.mxu0 0.0
        %2804 = vmatprep.subr.mxu0 0.0
        %2805 = vmatpush1.xpose.msra.mxu0 0.0
        %2806 = vmatprep.subr.mxu0 0.0
        %2807 = vmatpush1.xpose.msra.mxu0 0.0
        %2808 = vmatprep.subr.mxu0 0.0
        %2809 = vmatpush1.xpose.msra.mxu0 0.0
        %2810 = vmatprep.subr.mxu0 0.0
        %2811 = vmatpush1.xpose.msra.mxu0 0.0
        %2812 = vmatprep.subr.mxu0 0.0
        %2813 = vmatpush1.xpose.msra.mxu0 0.0
        %2814 = vmatprep.subr.mxu0 0.0
        %2815 = vmatpush1.xpose.msra.mxu0 0.0
        %2816 = vmatprep.subr.mxu0 0.0
        %2817 = vmatpush1.xpose.msra.mxu0 0.0
        %2818 = vmatprep.subr.mxu0 0.0
        %2819 = vmatpush1.xpose.msra.mxu0 0.0
        %2820 = vmatprep.subr.mxu0 0.0
        %2821 = vmatpush1.xpose.msra.mxu0 0.0
        %2822 = vmatprep.subr.mxu0 0.0
        %2823 = vmatpush1.xpose.msra.mxu0 0.0
        %2824 = vmatprep.subr.mxu0 0.0
        %2825 = vmatpush1.xpose.msra.mxu0 0.0
        %2826 = vmatprep.subr.mxu0 0.0
        %2827 = vmatpush1.xpose.msra.mxu0 0.0
        %2828 = vmatprep.subr.mxu0 0.0
        %2829 = vmatpush1.xpose.msra.mxu0 0.0
        %2830 = vmatprep.subr.mxu0 0.0
        %2831 = vmatpush1.xpose.msra.mxu0 0.0
        %2832 = vmatprep.subr.mxu0 0.0
        %2833 = vmatpush1.xpose.msra.mxu0 0.0
        %2834 = vmatprep.subr.mxu0 0.0
        %2835 = vmatpush1.xpose.msra.mxu0 0.0
        %2836 = vmatprep.subr.mxu0 0.0
        %2837 = vmatpush1.xpose.msra.mxu0 0.0
        %2838 = vmatprep.subr.mxu0 0.0
        %2839 = vmatpush1.xpose.msra.mxu0 0.0
        %2840 = vmatprep.subr.mxu0 0.0
        %2841 = vmatpush1.xpose.msra.mxu0 0.0
        %2842 = vmatprep.subr.mxu0 0.0
        %2843 = vmatpush1.xpose.msra.mxu0 0.0
        %2844 = vmatprep.subr.mxu0 0.0
        %2845 = vmatpush1.xpose.msra.mxu0 0.0
        %2846 = vmatprep.subr.mxu0 0.0
        %2847 = vmatpush1.xpose.msra.mxu0 0.0
        %2848 = vmatprep.subr.mxu0 0.0
        %2849 = vmatpush1.xpose.msra.mxu0 0.0
        %2850 = vmatprep.subr.mxu0 0.0
        %2851 = vmatpush1.xpose.msra.mxu0 0.0
        %2852 = vmatprep.subr.mxu0 0.0
        %2853 = vmatpush1.xpose.msra.mxu0 0.0
        %2854 = vmatprep.mubr.f32.mxu0 0.0
        %2855 = vmatmul.mubr.f32.gmra.mrb[0].mxu0 %v1705
        %v2856 = vpop.f32.mrb[0].mxu0
        %v2857 = vadd.f32 %v1857, %v2856
        %v2858 = vpop.f32.mrb[0].mxu0
        %2859 = vmatprep.mubr.f32.mxu0 0.0
        %2860 = vmatmul.mubr.f32.gmra.mrb[0].mxu0 %v1706
        %v2861 = vpop.f32.mrb[0].mxu0
        %v2862 = vadd.f32 %v1861, %v2861
        %v2863 = vpop.f32.mrb[0].mxu0
        %2864 = vmatprep.mubr.f32.mxu0 0.0
        %2865 = vmatmul.mubr.f32.gmra.mrb[0].mxu0 %v1707
        %v2866 = vpop.f32.mrb[0].mxu0
        %v2867 = vadd.f32 %v1865, %v2866
        %v2868 = vpop.f32.mrb[0].mxu0
        %2869 = vdwg.mxu0
        %2870 = vmatprep.subr.mxu0 0.0
        %2871 = vmatpush1.xpose.msra.mxu0 %v998
        %2872 = vmatprep.subr.mxu0 0.0
        %2873 = vmatpush1.xpose.msra.mxu0 %v999
        %2874 = vmatprep.subr.mxu0 0.0
        %2875 = vmatpush1.xpose.msra.mxu0 %v1000
        %2876 = vmatprep.subr.mxu0 0.0
        %2877 = vmatpush1.xpose.msra.mxu0 0.0
        %2878 = vmatprep.subr.mxu0 0.0
        %2879 = vmatpush1.xpose.msra.mxu0 0.0
        %2880 = vmatprep.subr.mxu0 0.0
        %2881 = vmatpush1.xpose.msra.mxu0 0.0
        %2882 = vmatprep.subr.mxu0 0.0
        %2883 = vmatpush1.xpose.msra.mxu0 0.0
        %2884 = vmatprep.subr.mxu0 0.0
        %2885 = vmatpush1.xpose.msra.mxu0 0.0
        %2886 = vmatprep.subr.mxu0 0.0
        %2887 = vmatpush1.xpose.msra.mxu0 0.0
        %2888 = vmatprep.subr.mxu0 0.0
        %2889 = vmatpush1.xpose.msra.mxu0 0.0
        %2890 = vmatprep.subr.mxu0 0.0
        %2891 = vmatpush1.xpose.msra.mxu0 0.0
        %2892 = vmatprep.subr.mxu0 0.0
        %2893 = vmatpush1.xpose.msra.mxu0 0.0
        %2894 = vmatprep.subr.mxu0 0.0
        %2895 = vmatpush1.xpose.msra.mxu0 0.0
        %2896 = vmatprep.subr.mxu0 0.0
        %2897 = vmatpush1.xpose.msra.mxu0 0.0
        %2898 = vmatprep.subr.mxu0 0.0
        %2899 = vmatpush1.xpose.msra.mxu0 0.0
        %2900 = vmatprep.subr.mxu0 0.0
        %2901 = vmatpush1.xpose.msra.mxu0 0.0
        %2902 = vmatprep.subr.mxu0 0.0
        %2903 = vmatpush1.xpose.msra.mxu0 0.0
        %2904 = vmatprep.subr.mxu0 0.0
        %2905 = vmatpush1.xpose.msra.mxu0 0.0
        %2906 = vmatprep.subr.mxu0 0.0
        %2907 = vmatpush1.xpose.msra.mxu0 0.0
        %2908 = vmatprep.subr.mxu0 0.0
        %2909 = vmatpush1.xpose.msra.mxu0 0.0
        %2910 = vmatprep.subr.mxu0 0.0
        %2911 = vmatpush1.xpose.msra.mxu0 0.0
        %2912 = vmatprep.subr.mxu0 0.0
        %2913 = vmatpush1.xpose.msra.mxu0 0.0
        %2914 = vmatprep.subr.mxu0 0.0
        %2915 = vmatpush1.xpose.msra.mxu0 0.0
        %2916 = vmatprep.subr.mxu0 0.0
        %2917 = vmatpush1.xpose.msra.mxu0 0.0
        %2918 = vmatprep.subr.mxu0 0.0
        %2919 = vmatpush1.xpose.msra.mxu0 0.0
        %2920 = vmatprep.subr.mxu0 0.0
        %2921 = vmatpush1.xpose.msra.mxu0 0.0
        %2922 = vmatprep.subr.mxu0 0.0
        %2923 = vmatpush1.xpose.msra.mxu0 0.0
        %2924 = vmatprep.subr.mxu0 0.0
        %2925 = vmatpush1.xpose.msra.mxu0 0.0
        %2926 = vmatprep.subr.mxu0 0.0
        %2927 = vmatpush1.xpose.msra.mxu0 0.0
        %2928 = vmatprep.subr.mxu0 0.0
        %2929 = vmatpush1.xpose.msra.mxu0 0.0
        %2930 = vmatprep.subr.mxu0 0.0
        %2931 = vmatpush1.xpose.msra.mxu0 0.0
        %2932 = vmatprep.subr.mxu0 0.0
        %2933 = vmatpush1.xpose.msra.mxu0 0.0
        %2934 = vmatprep.mubr.f32.mxu0 0.0
        %2935 = vmatmul.mubr.f32.gmra.mrb[0].mxu0 %v1708
        %v2936 = vpop.f32.mrb[0].mxu0
        %v2937 = vadd.f32 %v1872, %v2936
        %v2938 = vpop.f32.mrb[0].mxu0
        %2939 = vmatprep.mubr.f32.mxu0 0.0
        %2940 = vmatmul.mubr.f32.gmra.mrb[0].mxu0 %v1709
        %v2941 = vpop.f32.mrb[0].mxu0
        %v2942 = vadd.f32 %v1876, %v2941
        %v2943 = vpop.f32.mrb[0].mxu0
        %2944 = vmatprep.mubr.f32.mxu0 0.0
        %2945 = vmatmul.mubr.f32.gmra.mrb[0].mxu0 %v1710
        %v2946 = vpop.f32.mrb[0].mxu0
        %v2947 = vadd.f32 %v1880, %v2946
        %v2948 = vpop.f32.mrb[0].mxu0
        %2949 = vdwg.mxu0
        %2950 = vmatprep.subr.mxu0 0.0
        %2951 = vmatpush1.xpose.msra.mxu0 %v1001
        %2952 = vmatprep.subr.mxu0 0.0
        %2953 = vmatpush1.xpose.msra.mxu0 %v1002
        %2954 = vmatprep.subr.mxu0 0.0
        %2955 = vmatpush1.xpose.msra.mxu0 %v1003
        %2956 = vmatprep.subr.mxu0 0.0
        %2957 = vmatpush1.xpose.msra.mxu0 0.0
        %2958 = vmatprep.subr.mxu0 0.0
        %2959 = vmatpush1.xpose.msra.mxu0 0.0
        %2960 = vmatprep.subr.mxu0 0.0
        %2961 = vmatpush1.xpose.msra.mxu0 0.0
        %2962 = vmatprep.subr.mxu0 0.0
        %2963 = vmatpush1.xpose.msra.mxu0 0.0
        %2964 = vmatprep.subr.mxu0 0.0
        %2965 = vmatpush1.xpose.msra.mxu0 0.0
        %2966 = vmatprep.subr.mxu0 0.0
        %2967 = vmatpush1.xpose.msra.mxu0 0.0
        %2968 = vmatprep.subr.mxu0 0.0
        %2969 = vmatpush1.xpose.msra.mxu0 0.0
        %2970 = vmatprep.subr.mxu0 0.0
        %2971 = vmatpush1.xpose.msra.mxu0 0.0
        %2972 = vmatprep.subr.mxu0 0.0
        %2973 = vmatpush1.xpose.msra.mxu0 0.0
        %2974 = vmatprep.subr.mxu0 0.0
        %2975 = vmatpush1.xpose.msra.mxu0 0.0
        %2976 = vmatprep.subr.mxu0 0.0
        %2977 = vmatpush1.xpose.msra.mxu0 0.0
        %2978 = vmatprep.subr.mxu0 0.0
        %2979 = vmatpush1.xpose.msra.mxu0 0.0
        %2980 = vmatprep.subr.mxu0 0.0
        %2981 = vmatpush1.xpose.msra.mxu0 0.0
        %2982 = vmatprep.subr.mxu0 0.0
        %2983 = vmatpush1.xpose.msra.mxu0 0.0
        %2984 = vmatprep.subr.mxu0 0.0
        %2985 = vmatpush1.xpose.msra.mxu0 0.0
        %2986 = vmatprep.subr.mxu0 0.0
        %2987 = vmatpush1.xpose.msra.mxu0 0.0
        %2988 = vmatprep.subr.mxu0 0.0
        %2989 = vmatpush1.xpose.msra.mxu0 0.0
        %2990 = vmatprep.subr.mxu0 0.0
        %2991 = vmatpush1.xpose.msra.mxu0 0.0
        %2992 = vmatprep.subr.mxu0 0.0
        %2993 = vmatpush1.xpose.msra.mxu0 0.0
        %2994 = vmatprep.subr.mxu0 0.0
        %2995 = vmatpush1.xpose.msra.mxu0 0.0
        %2996 = vmatprep.subr.mxu0 0.0
        %2997 = vmatpush1.xpose.msra.mxu0 0.0
        %2998 = vmatprep.subr.mxu0 0.0
        %2999 = vmatpush1.xpose.msra.mxu0 0.0
        %3000 = vmatprep.subr.mxu0 0.0
        %3001 = vmatpush1.xpose.msra.mxu0 0.0
        %3002 = vmatprep.subr.mxu0 0.0
        %3003 = vmatpush1.xpose.msra.mxu0 0.0
        %3004 = vmatprep.subr.mxu0 0.0
        %3005 = vmatpush1.xpose.msra.mxu0 0.0
        %3006 = vmatprep.subr.mxu0 0.0
        %3007 = vmatpush1.xpose.msra.mxu0 0.0
        %3008 = vmatprep.subr.mxu0 0.0
        %3009 = vmatpush1.xpose.msra.mxu0 0.0
        %3010 = vmatprep.subr.mxu0 0.0
        %3011 = vmatpush1.xpose.msra.mxu0 0.0
        %3012 = vmatprep.subr.mxu0 0.0
        %3013 = vmatpush1.xpose.msra.mxu0 0.0
        %3014 = vmatprep.mubr.f32.mxu0 0.0
        %3015 = vmatmul.mubr.f32.gmra.mrb[0].mxu0 %v1711
        %v3016 = vpop.f32.mrb[0].mxu0
        %v3017 = vadd.f32 %v1887, %v3016
        %v3018 = vpop.f32.mrb[0].mxu0
        %3019 = vmatprep.mubr.f32.mxu0 0.0
        %3020 = vmatmul.mubr.f32.gmra.mrb[0].mxu0 %v1712
        %v3021 = vpop.f32.mrb[0].mxu0
        %v3022 = vadd.f32 %v1891, %v3021
        %v3023 = vpop.f32.mrb[0].mxu0
        %3024 = vmatprep.mubr.f32.mxu0 0.0
        %3025 = vmatmul.mubr.f32.gmra.mrb[0].mxu0 %v1713
        %v3026 = vpop.f32.mrb[0].mxu0
        %v3027 = vadd.f32 %v1895, %v3026
        %v3028 = vpop.f32.mrb[0].mxu0
        %3029 = vdwg.mxu0
        %3030 = vmatprep.subr.mxu0 0.0
        %3031 = vmatpush1.xpose.msra.mxu0 %v1004
        %3032 = vmatprep.subr.mxu0 0.0
        %3033 = vmatpush1.xpose.msra.mxu0 %v1005
        %3034 = vmatprep.subr.mxu0 0.0
        %3035 = vmatpush1.xpose.msra.mxu0 %v1006
        %3036 = vmatprep.subr.mxu0 0.0
        %3037 = vmatpush1.xpose.msra.mxu0 0.0
        %3038 = vmatprep.subr.mxu0 0.0
        %3039 = vmatpush1.xpose.msra.mxu0 0.0
        %3040 = vmatprep.subr.mxu0 0.0
        %3041 = vmatpush1.xpose.msra.mxu0 0.0
        %3042 = vmatprep.subr.mxu0 0.0
        %3043 = vmatpush1.xpose.msra.mxu0 0.0
        %3044 = vmatprep.subr.mxu0 0.0
        %3045 = vmatpush1.xpose.msra.mxu0 0.0
        %3046 = vmatprep.subr.mxu0 0.0
        %3047 = vmatpush1.xpose.msra.mxu0 0.0
        %3048 = vmatprep.subr.mxu0 0.0
        %3049 = vmatpush1.xpose.msra.mxu0 0.0
        %3050 = vmatprep.subr.mxu0 0.0
        %3051 = vmatpush1.xpose.msra.mxu0 0.0
        %3052 = vmatprep.subr.mxu0 0.0
        %3053 = vmatpush1.xpose.msra.mxu0 0.0
        %3054 = vmatprep.subr.mxu0 0.0
        %3055 = vmatpush1.xpose.msra.mxu0 0.0
        %3056 = vmatprep.subr.mxu0 0.0
        %3057 = vmatpush1.xpose.msra.mxu0 0.0
        %3058 = vmatprep.subr.mxu0 0.0
        %3059 = vmatpush1.xpose.msra.mxu0 0.0
        %3060 = vmatprep.subr.mxu0 0.0
        %3061 = vmatpush1.xpose.msra.mxu0 0.0
        %3062 = vmatprep.subr.mxu0 0.0
        %3063 = vmatpush1.xpose.msra.mxu0 0.0
        %3064 = vmatprep.subr.mxu0 0.0
        %3065 = vmatpush1.xpose.msra.mxu0 0.0
        %3066 = vmatprep.subr.mxu0 0.0
        %3067 = vmatpush1.xpose.msra.mxu0 0.0
        %3068 = vmatprep.subr.mxu0 0.0
        %3069 = vmatpush1.xpose.msra.mxu0 0.0
        %3070 = vmatprep.subr.mxu0 0.0
        %3071 = vmatpush1.xpose.msra.mxu0 0.0
        %3072 = vmatprep.subr.mxu0 0.0
        %3073 = vmatpush1.xpose.msra.mxu0 0.0
        %3074 = vmatprep.subr.mxu0 0.0
        %3075 = vmatpush1.xpose.msra.mxu0 0.0
        %3076 = vmatprep.subr.mxu0 0.0
        %3077 = vmatpush1.xpose.msra.mxu0 0.0
        %3078 = vmatprep.subr.mxu0 0.0
        %3079 = vmatpush1.xpose.msra.mxu0 0.0
        %3080 = vmatprep.subr.mxu0 0.0
        %3081 = vmatpush1.xpose.msra.mxu0 0.0
        %3082 = vmatprep.subr.mxu0 0.0
        %3083 = vmatpush1.xpose.msra.mxu0 0.0
        %3084 = vmatprep.subr.mxu0 0.0
        %3085 = vmatpush1.xpose.msra.mxu0 0.0
        %3086 = vmatprep.subr.mxu0 0.0
        %3087 = vmatpush1.xpose.msra.mxu0 0.0
        %3088 = vmatprep.subr.mxu0 0.0
        %3089 = vmatpush1.xpose.msra.mxu0 0.0
        %3090 = vmatprep.subr.mxu0 0.0
        %3091 = vmatpush1.xpose.msra.mxu0 0.0
        %3092 = vmatprep.subr.mxu0 0.0
        %3093 = vmatpush1.xpose.msra.mxu0 0.0
        %3094 = vmatprep.mubr.f32.mxu0 0.0
        %3095 = vmatmul.mubr.f32.gmra.mrb[0].mxu0 %v1714
        %v3096 = vpop.f32.mrb[0].mxu0
        %v3097 = vadd.f32 %v1902, %v3096
        %v3098 = vpop.f32.mrb[0].mxu0
        %3099 = vmatprep.mubr.f32.mxu0 0.0
        %3100 = vmatmul.mubr.f32.gmra.mrb[0].mxu0 %v1715
        %v3101 = vpop.f32.mrb[0].mxu0
        %v3102 = vadd.f32 %v1906, %v3101
        %v3103 = vpop.f32.mrb[0].mxu0
        %3104 = vmatprep.mubr.f32.mxu0 0.0
        %3105 = vmatmul.mubr.f32.gmra.mrb[0].mxu0 %v1716
        %v3106 = vpop.f32.mrb[0].mxu0
        %v3107 = vadd.f32 %v1910, %v3106
        %v3108 = vpop.f32.mrb[0].mxu0
        %3109 = vdwg.mxu0
        %3110 = vmatprep.subr.mxu0 0.0
        %3111 = vmatpush1.xpose.msra.mxu0 %v1007
        %3112 = vmatprep.subr.mxu0 0.0
        %3113 = vmatpush1.xpose.msra.mxu0 %v1008
        %3114 = vmatprep.subr.mxu0 0.0
        %3115 = vmatpush1.xpose.msra.mxu0 %v1009
        %3116 = vmatprep.subr.mxu0 0.0
        %3117 = vmatpush1.xpose.msra.mxu0 0.0
        %3118 = vmatprep.subr.mxu0 0.0
        %3119 = vmatpush1.xpose.msra.mxu0 0.0
        %3120 = vmatprep.subr.mxu0 0.0
        %3121 = vmatpush1.xpose.msra.mxu0 0.0
        %3122 = vmatprep.subr.mxu0 0.0
        %3123 = vmatpush1.xpose.msra.mxu0 0.0
        %3124 = vmatprep.subr.mxu0 0.0
        %3125 = vmatpush1.xpose.msra.mxu0 0.0
        %3126 = vmatprep.subr.mxu0 0.0
        %3127 = vmatpush1.xpose.msra.mxu0 0.0
        %3128 = vmatprep.subr.mxu0 0.0
        %3129 = vmatpush1.xpose.msra.mxu0 0.0
        %3130 = vmatprep.subr.mxu0 0.0
        %3131 = vmatpush1.xpose.msra.mxu0 0.0
        %3132 = vmatprep.subr.mxu0 0.0
        %3133 = vmatpush1.xpose.msra.mxu0 0.0
        %3134 = vmatprep.subr.mxu0 0.0
        %3135 = vmatpush1.xpose.msra.mxu0 0.0
        %3136 = vmatprep.subr.mxu0 0.0
        %3137 = vmatpush1.xpose.msra.mxu0 0.0
        %3138 = vmatprep.subr.mxu0 0.0
        %3139 = vmatpush1.xpose.msra.mxu0 0.0
        %3140 = vmatprep.subr.mxu0 0.0
        %3141 = vmatpush1.xpose.msra.mxu0 0.0
        %3142 = vmatprep.subr.mxu0 0.0
        %3143 = vmatpush1.xpose.msra.mxu0 0.0
        %3144 = vmatprep.subr.mxu0 0.0
        %3145 = vmatpush1.xpose.msra.mxu0 0.0
        %3146 = vmatprep.subr.mxu0 0.0
        %3147 = vmatpush1.xpose.msra.mxu0 0.0
        %3148 = vmatprep.subr.mxu0 0.0
        %3149 = vmatpush1.xpose.msra.mxu0 0.0
        %3150 = vmatprep.subr.mxu0 0.0
        %3151 = vmatpush1.xpose.msra.mxu0 0.0
        %3152 = vmatprep.subr.mxu0 0.0
        %3153 = vmatpush1.xpose.msra.mxu0 0.0
        %3154 = vmatprep.subr.mxu0 0.0
        %3155 = vmatpush1.xpose.msra.mxu0 0.0
        %3156 = vmatprep.subr.mxu0 0.0
        %3157 = vmatpush1.xpose.msra.mxu0 0.0
        %3158 = vmatprep.subr.mxu0 0.0
        %3159 = vmatpush1.xpose.msra.mxu0 0.0
        %3160 = vmatprep.subr.mxu0 0.0
        %3161 = vmatpush1.xpose.msra.mxu0 0.0
        %3162 = vmatprep.subr.mxu0 0.0
        %3163 = vmatpush1.xpose.msra.mxu0 0.0
        %3164 = vmatprep.subr.mxu0 0.0
        %3165 = vmatpush1.xpose.msra.mxu0 0.0
        %3166 = vmatprep.subr.mxu0 0.0
        %3167 = vmatpush1.xpose.msra.mxu0 0.0
        %3168 = vmatprep.subr.mxu0 0.0
        %3169 = vmatpush1.xpose.msra.mxu0 0.0
        %3170 = vmatprep.subr.mxu0 0.0
        %3171 = vmatpush1.xpose.msra.mxu0 0.0
        %3172 = vmatprep.subr.mxu0 0.0
        %3173 = vmatpush1.xpose.msra.mxu0 0.0
        %3174 = vmatprep.mubr.f32.mxu0 0.0
        %3175 = vmatmul.mubr.f32.gmra.mrb[0].mxu0 %v1717
        %v3176 = vpop.f32.mrb[0].mxu0
        %v3177 = vadd.f32 %v1917, %v3176
        %v3178 = vpop.f32.mrb[0].mxu0
        %3179 = vmatprep.mubr.f32.mxu0 0.0
        %3180 = vmatmul.mubr.f32.gmra.mrb[0].mxu0 %v1718
        %v3181 = vpop.f32.mrb[0].mxu0
        %v3182 = vadd.f32 %v1921, %v3181
        %v3183 = vpop.f32.mrb[0].mxu0
        %3184 = vmatprep.mubr.f32.mxu0 0.0
        %3185 = vmatmul.mubr.f32.gmra.mrb[0].mxu0 %v1719
        %v3186 = vpop.f32.mrb[0].mxu0
        %v3187 = vadd.f32 %v1925, %v3186
        %v3188 = vpop.f32.mrb[0].mxu0
        %3189 = vdwg.mxu0
        %3190 = vmatprep.subr.mxu0 0.0
        %3191 = vmatpush1.xpose.msra.mxu0 %v1010
        %3192 = vmatprep.subr.mxu0 0.0
        %3193 = vmatpush1.xpose.msra.mxu0 %v1011
        %3194 = vmatprep.subr.mxu0 0.0
        %3195 = vmatpush1.xpose.msra.mxu0 %v1012
        %3196 = vmatprep.subr.mxu0 0.0
        %3197 = vmatpush1.xpose.msra.mxu0 0.0
        %3198 = vmatprep.subr.mxu0 0.0
        %3199 = vmatpush1.xpose.msra.mxu0 0.0
        %3200 = vmatprep.subr.mxu0 0.0
        %3201 = vmatpush1.xpose.msra.mxu0 0.0
        %3202 = vmatprep.subr.mxu0 0.0
        %3203 = vmatpush1.xpose.msra.mxu0 0.0
        %3204 = vmatprep.subr.mxu0 0.0
        %3205 = vmatpush1.xpose.msra.mxu0 0.0
        %3206 = vmatprep.subr.mxu0 0.0
        %3207 = vmatpush1.xpose.msra.mxu0 0.0
        %3208 = vmatprep.subr.mxu0 0.0
        %3209 = vmatpush1.xpose.msra.mxu0 0.0
        %3210 = vmatprep.subr.mxu0 0.0
        %3211 = vmatpush1.xpose.msra.mxu0 0.0
        %3212 = vmatprep.subr.mxu0 0.0
        %3213 = vmatpush1.xpose.msra.mxu0 0.0
        %3214 = vmatprep.subr.mxu0 0.0
        %3215 = vmatpush1.xpose.msra.mxu0 0.0
        %3216 = vmatprep.subr.mxu0 0.0
        %3217 = vmatpush1.xpose.msra.mxu0 0.0
        %3218 = vmatprep.subr.mxu0 0.0
        %3219 = vmatpush1.xpose.msra.mxu0 0.0
        %3220 = vmatprep.subr.mxu0 0.0
        %3221 = vmatpush1.xpose.msra.mxu0 0.0
        %3222 = vmatprep.subr.mxu0 0.0
        %3223 = vmatpush1.xpose.msra.mxu0 0.0
        %3224 = vmatprep.subr.mxu0 0.0
        %3225 = vmatpush1.xpose.msra.mxu0 0.0
        %3226 = vmatprep.subr.mxu0 0.0
        %3227 = vmatpush1.xpose.msra.mxu0 0.0
        %3228 = vmatprep.subr.mxu0 0.0
        %3229 = vmatpush1.xpose.msra.mxu0 0.0
        %3230 = vmatprep.subr.mxu0 0.0
        %3231 = vmatpush1.xpose.msra.mxu0 0.0
        %3232 = vmatprep.subr.mxu0 0.0
        %3233 = vmatpush1.xpose.msra.mxu0 0.0
        %3234 = vmatprep.subr.mxu0 0.0
        %3235 = vmatpush1.xpose.msra.mxu0 0.0
        %3236 = vmatprep.subr.mxu0 0.0
        %3237 = vmatpush1.xpose.msra.mxu0 0.0
        %3238 = vmatprep.subr.mxu0 0.0
        %3239 = vmatpush1.xpose.msra.mxu0 0.0
        %3240 = vmatprep.subr.mxu0 0.0
        %3241 = vmatpush1.xpose.msra.mxu0 0.0
        %3242 = vmatprep.subr.mxu0 0.0
        %3243 = vmatpush1.xpose.msra.mxu0 0.0
        %3244 = vmatprep.subr.mxu0 0.0
        %3245 = vmatpush1.xpose.msra.mxu0 0.0
        %3246 = vmatprep.subr.mxu0 0.0
        %3247 = vmatpush1.xpose.msra.mxu0 0.0
        %3248 = vmatprep.subr.mxu0 0.0
        %3249 = vmatpush1.xpose.msra.mxu0 0.0
        %3250 = vmatprep.subr.mxu0 0.0
        %3251 = vmatpush1.xpose.msra.mxu0 0.0
        %3252 = vmatprep.subr.mxu0 0.0
        %3253 = vmatpush1.xpose.msra.mxu0 0.0
        %3254 = vmatprep.mubr.f32.mxu0 0.0
        %3255 = vmatmul.mubr.f32.gmra.mrb[0].mxu0 %v1720
        %v3256 = vpop.f32.mrb[0].mxu0
        %v3257 = vadd.f32 %v1932, %v3256
        %v3258 = vpop.f32.mrb[0].mxu0
        %3259 = vmatprep.mubr.f32.mxu0 0.0
        %3260 = vmatmul.mubr.f32.gmra.mrb[0].mxu0 %v1721
        %v3261 = vpop.f32.mrb[0].mxu0
        %v3262 = vadd.f32 %v1936, %v3261
        %v3263 = vpop.f32.mrb[0].mxu0
        %3264 = vmatprep.mubr.f32.mxu0 0.0
        %3265 = vmatmul.mubr.f32.gmra.mrb[0].mxu0 %v1722
        %v3266 = vpop.f32.mrb[0].mxu0
        %v3267 = vadd.f32 %v1940, %v3266
        %v3268 = vpop.f32.mrb[0].mxu0
        %3269 = vdwg.mxu0
        %3270 = vmatprep.subr.mxu0 0.0
        %3271 = vmatpush1.xpose.msra.mxu0 %v1013
        %3272 = vmatprep.subr.mxu0 0.0
        %3273 = vmatpush1.xpose.msra.mxu0 %v1014
        %3274 = vmatprep.subr.mxu0 0.0
        %3275 = vmatpush1.xpose.msra.mxu0 %v1015
        %3276 = vmatprep.subr.mxu0 0.0
        %3277 = vmatpush1.xpose.msra.mxu0 0.0
        %3278 = vmatprep.subr.mxu0 0.0
        %3279 = vmatpush1.xpose.msra.mxu0 0.0
        %3280 = vmatprep.subr.mxu0 0.0
        %3281 = vmatpush1.xpose.msra.mxu0 0.0
        %3282 = vmatprep.subr.mxu0 0.0
        %3283 = vmatpush1.xpose.msra.mxu0 0.0
        %3284 = vmatprep.subr.mxu0 0.0
        %3285 = vmatpush1.xpose.msra.mxu0 0.0
        %3286 = vmatprep.subr.mxu0 0.0
        %3287 = vmatpush1.xpose.msra.mxu0 0.0
        %3288 = vmatprep.subr.mxu0 0.0
        %3289 = vmatpush1.xpose.msra.mxu0 0.0
        %3290 = vmatprep.subr.mxu0 0.0
        %3291 = vmatpush1.xpose.msra.mxu0 0.0
        %3292 = vmatprep.subr.mxu0 0.0
        %3293 = vmatpush1.xpose.msra.mxu0 0.0
        %3294 = vmatprep.subr.mxu0 0.0
        %3295 = vmatpush1.xpose.msra.mxu0 0.0
        %3296 = vmatprep.subr.mxu0 0.0
        %3297 = vmatpush1.xpose.msra.mxu0 0.0
        %3298 = vmatprep.subr.mxu0 0.0
        %3299 = vmatpush1.xpose.msra.mxu0 0.0
        %3300 = vmatprep.subr.mxu0 0.0
        %3301 = vmatpush1.xpose.msra.mxu0 0.0
        %3302 = vmatprep.subr.mxu0 0.0
        %3303 = vmatpush1.xpose.msra.mxu0 0.0
        %3304 = vmatprep.subr.mxu0 0.0
        %3305 = vmatpush1.xpose.msra.mxu0 0.0
        %3306 = vmatprep.subr.mxu0 0.0
        %3307 = vmatpush1.xpose.msra.mxu0 0.0
        %3308 = vmatprep.subr.mxu0 0.0
        %3309 = vmatpush1.xpose.msra.mxu0 0.0
        %3310 = vmatprep.subr.mxu0 0.0
        %3311 = vmatpush1.xpose.msra.mxu0 0.0
        %3312 = vmatprep.subr.mxu0 0.0
        %3313 = vmatpush1.xpose.msra.mxu0 0.0
        %3314 = vmatprep.subr.mxu0 0.0
        %3315 = vmatpush1.xpose.msra.mxu0 0.0
        %3316 = vmatprep.subr.mxu0 0.0
        %3317 = vmatpush1.xpose.msra.mxu0 0.0
        %3318 = vmatprep.subr.mxu0 0.0
        %3319 = vmatpush1.xpose.msra.mxu0 0.0
        %3320 = vmatprep.subr.mxu0 0.0
        %3321 = vmatpush1.xpose.msra.mxu0 0.0
        %3322 = vmatprep.subr.mxu0 0.0
        %3323 = vmatpush1.xpose.msra.mxu0 0.0
        %3324 = vmatprep.subr.mxu0 0.0
        %3325 = vmatpush1.xpose.msra.mxu0 0.0
        %3326 = vmatprep.subr.mxu0 0.0
        %3327 = vmatpush1.xpose.msra.mxu0 0.0
        %3328 = vmatprep.subr.mxu0 0.0
        %3329 = vmatpush1.xpose.msra.mxu0 0.0
        %3330 = vmatprep.subr.mxu0 0.0
        %3331 = vmatpush1.xpose.msra.mxu0 0.0
        %3332 = vmatprep.subr.mxu0 0.0
        %3333 = vmatpush1.xpose.msra.mxu0 0.0
        %3334 = vmatprep.mubr.f32.mxu0 0.0
        %3335 = vmatmul.mubr.f32.gmra.mrb[0].mxu0 %v1723
        %v3336 = vpop.f32.mrb[0].mxu0
        %v3337 = vadd.f32 %v1947, %v3336
        %v3338 = vpop.f32.mrb[0].mxu0
        %3339 = vmatprep.mubr.f32.mxu0 0.0
        %3340 = vmatmul.mubr.f32.gmra.mrb[0].mxu0 %v1724
        %v3341 = vpop.f32.mrb[0].mxu0
        %v3342 = vadd.f32 %v1951, %v3341
        %v3343 = vpop.f32.mrb[0].mxu0
        %3344 = vmatprep.mubr.f32.mxu0 0.0
        %3345 = vmatmul.mubr.f32.gmra.mrb[0].mxu0 %v1725
        %v3346 = vpop.f32.mrb[0].mxu0
        %v3347 = vadd.f32 %v1955, %v3346
        %v3348 = vpop.f32.mrb[0].mxu0
        %3349 = vdwg.mxu0
        %3350 = vmatprep.subr.mxu0 0.0
        %3351 = vmatpush1.xpose.msra.mxu0 %v1016
        %3352 = vmatprep.subr.mxu0 0.0
        %3353 = vmatpush1.xpose.msra.mxu0 %v1017
        %3354 = vmatprep.subr.mxu0 0.0
        %3355 = vmatpush1.xpose.msra.mxu0 %v1018
        %3356 = vmatprep.subr.mxu0 0.0
        %3357 = vmatpush1.xpose.msra.mxu0 0.0
        %3358 = vmatprep.subr.mxu0 0.0
        %3359 = vmatpush1.xpose.msra.mxu0 0.0
        %3360 = vmatprep.subr.mxu0 0.0
        %3361 = vmatpush1.xpose.msra.mxu0 0.0
        %3362 = vmatprep.subr.mxu0 0.0
        %3363 = vmatpush1.xpose.msra.mxu0 0.0
        %3364 = vmatprep.subr.mxu0 0.0
        %3365 = vmatpush1.xpose.msra.mxu0 0.0
        %3366 = vmatprep.subr.mxu0 0.0
        %3367 = vmatpush1.xpose.msra.mxu0 0.0
        %3368 = vmatprep.subr.mxu0 0.0
        %3369 = vmatpush1.xpose.msra.mxu0 0.0
        %3370 = vmatprep.subr.mxu0 0.0
        %3371 = vmatpush1.xpose.msra.mxu0 0.0
        %3372 = vmatprep.subr.mxu0 0.0
        %3373 = vmatpush1.xpose.msra.mxu0 0.0
        %3374 = vmatprep.subr.mxu0 0.0
        %3375 = vmatpush1.xpose.msra.mxu0 0.0
        %3376 = vmatprep.subr.mxu0 0.0
        %3377 = vmatpush1.xpose.msra.mxu0 0.0
        %3378 = vmatprep.subr.mxu0 0.0
        %3379 = vmatpush1.xpose.msra.mxu0 0.0
        %3380 = vmatprep.subr.mxu0 0.0
        %3381 = vmatpush1.xpose.msra.mxu0 0.0
        %3382 = vmatprep.subr.mxu0 0.0
        %3383 = vmatpush1.xpose.msra.mxu0 0.0
        %3384 = vmatprep.subr.mxu0 0.0
        %3385 = vmatpush1.xpose.msra.mxu0 0.0
        %3386 = vmatprep.subr.mxu0 0.0
        %3387 = vmatpush1.xpose.msra.mxu0 0.0
        %3388 = vmatprep.subr.mxu0 0.0
        %3389 = vmatpush1.xpose.msra.mxu0 0.0
        %3390 = vmatprep.subr.mxu0 0.0
        %3391 = vmatpush1.xpose.msra.mxu0 0.0
        %3392 = vmatprep.subr.mxu0 0.0
        %3393 = vmatpush1.xpose.msra.mxu0 0.0
        %3394 = vmatprep.subr.mxu0 0.0
        %3395 = vmatpush1.xpose.msra.mxu0 0.0
        %3396 = vmatprep.subr.mxu0 0.0
        %3397 = vmatpush1.xpose.msra.mxu0 0.0
        %3398 = vmatprep.subr.mxu0 0.0
        %3399 = vmatpush1.xpose.msra.mxu0 0.0
        %3400 = vmatprep.subr.mxu0 0.0
        %3401 = vmatpush1.xpose.msra.mxu0 0.0
        %3402 = vmatprep.subr.mxu0 0.0
        %3403 = vmatpush1.xpose.msra.mxu0 0.0
        %3404 = vmatprep.subr.mxu0 0.0
        %3405 = vmatpush1.xpose.msra.mxu0 0.0
        %3406 = vmatprep.subr.mxu0 0.0
        %3407 = vmatpush1.xpose.msra.mxu0 0.0
        %3408 = vmatprep.subr.mxu0 0.0
        %3409 = vmatpush1.xpose.msra.mxu0 0.0
        %3410 = vmatprep.subr.mxu0 0.0
        %3411 = vmatpush1.xpose.msra.mxu0 0.0
        %3412 = vmatprep.subr.mxu0 0.0
        %3413 = vmatpush1.xpose.msra.mxu0 0.0
        %3414 = vmatprep.mubr.f32.mxu0 0.0
        %3415 = vmatmul.mubr.f32.gmra.mrb[0].mxu0 %v1726
        %v3416 = vpop.f32.mrb[0].mxu0
        %v3417 = vadd.f32 %v1962, %v3416
        %v3418 = vpop.f32.mrb[0].mxu0
        %3419 = vmatprep.mubr.f32.mxu0 0.0
        %3420 = vmatmul.mubr.f32.gmra.mrb[0].mxu0 %v1727
        %v3421 = vpop.f32.mrb[0].mxu0
        %v3422 = vadd.f32 %v1966, %v3421
        %v3423 = vpop.f32.mrb[0].mxu0
        %3424 = vmatprep.mubr.f32.mxu0 0.0
        %3425 = vmatmul.mubr.f32.gmra.mrb[0].mxu0 %v1728
        %v3426 = vpop.f32.mrb[0].mxu0
        %v3427 = vadd.f32 %v1970, %v3426
        %v3428 = vpop.f32.mrb[0].mxu0
        %3429 = vdwg.mxu0
        %3430 = vmatprep.subr.mxu0 0.0
        %3431 = vmatpush1.xpose.msra.mxu0 %v1019
        %3432 = vmatprep.subr.mxu0 0.0
        %3433 = vmatpush1.xpose.msra.mxu0 %v1020
        %3434 = vmatprep.subr.mxu0 0.0
        %3435 = vmatpush1.xpose.msra.mxu0 %v1021
        %3436 = vmatprep.subr.mxu0 0.0
        %3437 = vmatpush1.xpose.msra.mxu0 0.0
        %3438 = vmatprep.subr.mxu0 0.0
        %3439 = vmatpush1.xpose.msra.mxu0 0.0
        %3440 = vmatprep.subr.mxu0 0.0
        %3441 = vmatpush1.xpose.msra.mxu0 0.0
        %3442 = vmatprep.subr.mxu0 0.0
        %3443 = vmatpush1.xpose.msra.mxu0 0.0
        %3444 = vmatprep.subr.mxu0 0.0
        %3445 = vmatpush1.xpose.msra.mxu0 0.0
        %3446 = vmatprep.subr.mxu0 0.0
        %3447 = vmatpush1.xpose.msra.mxu0 0.0
        %3448 = vmatprep.subr.mxu0 0.0
        %3449 = vmatpush1.xpose.msra.mxu0 0.0
        %3450 = vmatprep.subr.mxu0 0.0
        %3451 = vmatpush1.xpose.msra.mxu0 0.0
        %3452 = vmatprep.subr.mxu0 0.0
        %3453 = vmatpush1.xpose.msra.mxu0 0.0
        %3454 = vmatprep.subr.mxu0 0.0
        %3455 = vmatpush1.xpose.msra.mxu0 0.0
        %3456 = vmatprep.subr.mxu0 0.0
        %3457 = vmatpush1.xpose.msra.mxu0 0.0
        %3458 = vmatprep.subr.mxu0 0.0
        %3459 = vmatpush1.xpose.msra.mxu0 0.0
        %3460 = vmatprep.subr.mxu0 0.0
        %3461 = vmatpush1.xpose.msra.mxu0 0.0
        %3462 = vmatprep.subr.mxu0 0.0
        %3463 = vmatpush1.xpose.msra.mxu0 0.0
        %3464 = vmatprep.subr.mxu0 0.0
        %3465 = vmatpush1.xpose.msra.mxu0 0.0
        %3466 = vmatprep.subr.mxu0 0.0
        %3467 = vmatpush1.xpose.msra.mxu0 0.0
        %3468 = vmatprep.subr.mxu0 0.0
        %3469 = vmatpush1.xpose.msra.mxu0 0.0
        %3470 = vmatprep.subr.mxu0 0.0
        %3471 = vmatpush1.xpose.msra.mxu0 0.0
        %3472 = vmatprep.subr.mxu0 0.0
        %3473 = vmatpush1.xpose.msra.mxu0 0.0
        %3474 = vmatprep.subr.mxu0 0.0
        %3475 = vmatpush1.xpose.msra.mxu0 0.0
        %3476 = vmatprep.subr.mxu0 0.0
        %3477 = vmatpush1.xpose.msra.mxu0 0.0
        %3478 = vmatprep.subr.mxu0 0.0
        %3479 = vmatpush1.xpose.msra.mxu0 0.0
        %3480 = vmatprep.subr.mxu0 0.0
        %3481 = vmatpush1.xpose.msra.mxu0 0.0
        %3482 = vmatprep.subr.mxu0 0.0
        %3483 = vmatpush1.xpose.msra.mxu0 0.0
        %3484 = vmatprep.subr.mxu0 0.0
        %3485 = vmatpush1.xpose.msra.mxu0 0.0
        %3486 = vmatprep.subr.mxu0 0.0
        %3487 = vmatpush1.xpose.msra.mxu0 0.0
        %3488 = vmatprep.subr.mxu0 0.0
        %3489 = vmatpush1.xpose.msra.mxu0 0.0
        %3490 = vmatprep.subr.mxu0 0.0
        %3491 = vmatpush1.xpose.msra.mxu0 0.0
        %3492 = vmatprep.subr.mxu0 0.0
        %3493 = vmatpush1.xpose.msra.mxu0 0.0
        %3494 = vmatprep.mubr.f32.mxu0 0.0
        %3495 = vmatmul.mubr.f32.gmra.mrb[0].mxu0 %v1729
        %v3496 = vpop.f32.mrb[0].mxu0
        %v3497 = vadd.f32 %v1977, %v3496
        %v3498 = vpop.f32.mrb[0].mxu0
        %3499 = vmatprep.mubr.f32.mxu0 0.0
        %3500 = vmatmul.mubr.f32.gmra.mrb[0].mxu0 %v1730
        %v3501 = vpop.f32.mrb[0].mxu0
        %v3502 = vadd.f32 %v1981, %v3501
        %v3503 = vpop.f32.mrb[0].mxu0
        %3504 = vmatprep.mubr.f32.mxu0 0.0
        %3505 = vmatmul.mubr.f32.gmra.mrb[0].mxu0 %v1731
        %v3506 = vpop.f32.mrb[0].mxu0
        %v3507 = vadd.f32 %v1985, %v3506
        %v3508 = vpop.f32.mrb[0].mxu0
        %3509 = vdwg.mxu0
        %v3510 = vadd.f32 %v2297, %v2229
        %v3511 = vadd.f32 %v2302, %v2229
        %v3512 = vadd.f32 %v2307, %v2229
        %v3513 = vadd.f32 %v2377, %v2229
        %v3514 = vadd.f32 %v2382, %v2229
        %v3515 = vadd.f32 %v2387, %v2229
        %v3516 = vadd.f32 %v2457, %v2229
        %v3517 = vadd.f32 %v2462, %v2229
        %v3518 = vadd.f32 %v2467, %v2229
        %v3519 = vadd.f32 %v2537, %v2229
        %v3520 = vadd.f32 %v2542, %v2229
        %v3521 = vadd.f32 %v2547, %v2229
        %v3522 = vadd.f32 %v2617, %v2229
        %v3523 = vadd.f32 %v2622, %v2229
        %v3524 = vadd.f32 %v2627, %v2229
        %v3525 = vadd.f32 %v2697, %v2229
        %v3526 = vadd.f32 %v2702, %v2229
        %v3527 = vadd.f32 %v2707, %v2229
        %v3528 = vadd.f32 %v2777, %v2229
        %v3529 = vadd.f32 %v2782, %v2229
        %v3530 = vadd.f32 %v2787, %v2229
        %v3531 = vadd.f32 %v2857, %v2229
        %v3532 = vadd.f32 %v2862, %v2229
        %v3533 = vadd.f32 %v2867, %v2229
        %v3534 = vadd.f32 %v2937, %v2229
        %v3535 = vadd.f32 %v2942, %v2229
        %v3536 = vadd.f32 %v2947, %v2229
        %v3537 = vadd.f32 %v3017, %v2229
        %v3538 = vadd.f32 %v3022, %v2229
        %v3539 = vadd.f32 %v3027, %v2229
        %v3540 = vadd.f32 %v3097, %v2229
        %v3541 = vadd.f32 %v3102, %v2229
        %v3542 = vadd.f32 %v3107, %v2229
        %v3543 = vadd.f32 %v3177, %v2229
        %v3544 = vadd.f32 %v3182, %v2229
        %v3545 = vadd.f32 %v3187, %v2229
        %v3546 = vadd.f32 %v3257, %v2229
        %v3547 = vadd.f32 %v3262, %v2229
        %v3548 = vadd.f32 %v3267, %v2229
        %v3549 = vadd.f32 %v3337, %v2229
        %v3550 = vadd.f32 %v3342, %v2229
        %v3551 = vadd.f32 %v3347, %v2229
        %v3552 = vadd.f32 %v3417, %v2229
        %v3553 = vadd.f32 %v3422, %v2229
        %v3554 = vadd.f32 %v3427, %v2229
        %v3555 = vadd.f32 %v3497, %v2229
        %v3556 = vadd.f32 %v3502, %v2229
        %v3557 = vadd.f32 %v3507, %v2229
        %vm3558 = vcmask 195584
        %v3559 = vsel %vm3558, %v3510, -inf
        %3560 = vmax.xlane.f32.xlu0 %v3559
        %v3561 = vpop.xlane.xlu0 %3560
        %v3562 = vsel %vm3558, %v3511, -inf
        %3563 = vmax.xlane.f32.xlu0 %v3562
        %v3564 = vpop.xlane.xlu0 %3563
        %v3565 = vsel %vm3558, %v3512, -inf
        %3566 = vmax.xlane.f32.xlu0 %v3565
        %v3567 = vpop.xlane.xlu0 %3566
        %v3568 = vsel %vm3558, %v3513, -inf
        %3569 = vmax.xlane.f32.xlu0 %v3568
        %v3570 = vpop.xlane.xlu0 %3569
        %v3571 = vsel %vm3558, %v3514, -inf
        %3572 = vmax.xlane.f32.xlu0 %v3571
        %v3573 = vpop.xlane.xlu0 %3572
        %v3574 = vsel %vm3558, %v3515, -inf
        %3575 = vmax.xlane.f32.xlu0 %v3574
        %v3576 = vpop.xlane.xlu0 %3575
        %v3577 = vsel %vm3558, %v3516, -inf
        %3578 = vmax.xlane.f32.xlu0 %v3577
        %v3579 = vpop.xlane.xlu0 %3578
        %v3580 = vsel %vm3558, %v3517, -inf
        %3581 = vmax.xlane.f32.xlu0 %v3580
        %v3582 = vpop.xlane.xlu0 %3581
        %v3583 = vsel %vm3558, %v3518, -inf
        %3584 = vmax.xlane.f32.xlu0 %v3583
        %v3585 = vpop.xlane.xlu0 %3584
        %v3586 = vsel %vm3558, %v3519, -inf
        %3587 = vmax.xlane.f32.xlu0 %v3586
        %v3588 = vpop.xlane.xlu0 %3587
        %v3589 = vsel %vm3558, %v3520, -inf
        %3590 = vmax.xlane.f32.xlu0 %v3589
        %v3591 = vpop.xlane.xlu0 %3590
        %v3592 = vsel %vm3558, %v3521, -inf
        %3593 = vmax.xlane.f32.xlu0 %v3592
        %v3594 = vpop.xlane.xlu0 %3593
        %v3595 = vsel %vm3558, %v3522, -inf
        %3596 = vmax.xlane.f32.xlu0 %v3595
        %v3597 = vpop.xlane.xlu0 %3596
        %v3598 = vsel %vm3558, %v3523, -inf
        %3599 = vmax.xlane.f32.xlu0 %v3598
        %v3600 = vpop.xlane.xlu0 %3599
        %v3601 = vsel %vm3558, %v3524, -inf
        %3602 = vmax.xlane.f32.xlu0 %v3601
        %v3603 = vpop.xlane.xlu0 %3602
        %v3604 = vsel %vm3558, %v3525, -inf
        %3605 = vmax.xlane.f32.xlu0 %v3604
        %v3606 = vpop.xlane.xlu0 %3605
        %v3607 = vsel %vm3558, %v3526, -inf
        %3608 = vmax.xlane.f32.xlu0 %v3607
        %v3609 = vpop.xlane.xlu0 %3608
        %v3610 = vsel %vm3558, %v3527, -inf
        %3611 = vmax.xlane.f32.xlu0 %v3610
        %v3612 = vpop.xlane.xlu0 %3611
        %v3613 = vsel %vm3558, %v3528, -inf
        %3614 = vmax.xlane.f32.xlu0 %v3613
        %v3615 = vpop.xlane.xlu0 %3614
        %v3616 = vsel %vm3558, %v3529, -inf
        %3617 = vmax.xlane.f32.xlu0 %v3616
        %v3618 = vpop.xlane.xlu0 %3617
        %v3619 = vsel %vm3558, %v3530, -inf
        %3620 = vmax.xlane.f32.xlu0 %v3619
        %v3621 = vpop.xlane.xlu0 %3620
        %v3622 = vsel %vm3558, %v3531, -inf
        %3623 = vmax.xlane.f32.xlu0 %v3622
        %v3624 = vpop.xlane.xlu0 %3623
        %v3625 = vsel %vm3558, %v3532, -inf
        %3626 = vmax.xlane.f32.xlu0 %v3625
        %v3627 = vpop.xlane.xlu0 %3626
        %v3628 = vsel %vm3558, %v3533, -inf
        %3629 = vmax.xlane.f32.xlu0 %v3628
        %v3630 = vpop.xlane.xlu0 %3629
        %v3631 = vsel %vm3558, %v3534, -inf
        %3632 = vmax.xlane.f32.xlu0 %v3631
        %v3633 = vpop.xlane.xlu0 %3632
        %v3634 = vsel %vm3558, %v3535, -inf
        %3635 = vmax.xlane.f32.xlu0 %v3634
        %v3636 = vpop.xlane.xlu0 %3635
        %v3637 = vsel %vm3558, %v3536, -inf
        %3638 = vmax.xlane.f32.xlu0 %v3637
        %v3639 = vpop.xlane.xlu0 %3638
        %v3640 = vsel %vm3558, %v3537, -inf
        %3641 = vmax.xlane.f32.xlu0 %v3640
        %v3642 = vpop.xlane.xlu0 %3641
        %v3643 = vsel %vm3558, %v3538, -inf
        %3644 = vmax.xlane.f32.xlu0 %v3643
        %v3645 = vpop.xlane.xlu0 %3644
        %v3646 = vsel %vm3558, %v3539, -inf
        %3647 = vmax.xlane.f32.xlu0 %v3646
        %v3648 = vpop.xlane.xlu0 %3647
        %v3649 = vsel %vm3558, %v3540, -inf
        %3650 = vmax.xlane.f32.xlu0 %v3649
        %v3651 = vpop.xlane.xlu0 %3650
        %v3652 = vsel %vm3558, %v3541, -inf
        %3653 = vmax.xlane.f32.xlu0 %v3652
        %v3654 = vpop.xlane.xlu0 %3653
        %v3655 = vsel %vm3558, %v3542, -inf
        %3656 = vmax.xlane.f32.xlu0 %v3655
        %v3657 = vpop.xlane.xlu0 %3656
        %v3658 = vsel %vm3558, %v3543, -inf
        %3659 = vmax.xlane.f32.xlu0 %v3658
        %v3660 = vpop.xlane.xlu0 %3659
        %v3661 = vsel %vm3558, %v3544, -inf
        %3662 = vmax.xlane.f32.xlu0 %v3661
        %v3663 = vpop.xlane.xlu0 %3662
        %v3664 = vsel %vm3558, %v3545, -inf
        %3665 = vmax.xlane.f32.xlu0 %v3664
        %v3666 = vpop.xlane.xlu0 %3665
        %v3667 = vsel %vm3558, %v3546, -inf
        %3668 = vmax.xlane.f32.xlu0 %v3667
        %v3669 = vpop.xlane.xlu0 %3668
        %v3670 = vsel %vm3558, %v3547, -inf
        %3671 = vmax.xlane.f32.xlu0 %v3670
        %v3672 = vpop.xlane.xlu0 %3671
        %v3673 = vsel %vm3558, %v3548, -inf
        %3674 = vmax.xlane.f32.xlu0 %v3673
        %v3675 = vpop.xlane.xlu0 %3674
        %v3676 = vsel %vm3558, %v3549, -inf
        %3677 = vmax.xlane.f32.xlu0 %v3676
        %v3678 = vpop.xlane.xlu0 %3677
        %v3679 = vsel %vm3558, %v3550, -inf
        %3680 = vmax.xlane.f32.xlu0 %v3679
        %v3681 = vpop.xlane.xlu0 %3680
        %v3682 = vsel %vm3558, %v3551, -inf
        %3683 = vmax.xlane.f32.xlu0 %v3682
        %v3684 = vpop.xlane.xlu0 %3683
        %v3685 = vsel %vm3558, %v3552, -inf
        %3686 = vmax.xlane.f32.xlu0 %v3685
        %v3687 = vpop.xlane.xlu0 %3686
        %v3688 = vsel %vm3558, %v3553, -inf
        %3689 = vmax.xlane.f32.xlu0 %v3688
        %v3690 = vpop.xlane.xlu0 %3689
        %v3691 = vsel %vm3558, %v3554, -inf
        %3692 = vmax.xlane.f32.xlu0 %v3691
        %v3693 = vpop.xlane.xlu0 %3692
        %v3694 = vsel %vm3558, %v3555, -inf
        %3695 = vmax.xlane.f32.xlu0 %v3694
        %v3696 = vpop.xlane.xlu0 %3695
        %v3697 = vsel %vm3558, %v3556, -inf
        %3698 = vmax.xlane.f32.xlu0 %v3697
        %v3699 = vpop.xlane.xlu0 %3698
        %v3700 = vsel %vm3558, %v3557, -inf
        %3701 = vmax.xlane.f32.xlu0 %v3700
        %v3702 = vpop.xlane.xlu0 %3701
        %v3703 = vsub.f32 %v3510, %v3561
        %v3704 = vsub.f32 %v3511, %v3564
        %v3705 = vsub.f32 %v3512, %v3567
        %v3706 = vsub.f32 %v3513, %v3570
        %v3707 = vsub.f32 %v3514, %v3573
        %v3708 = vsub.f32 %v3515, %v3576
        %v3709 = vsub.f32 %v3516, %v3579
        %v3710 = vsub.f32 %v3517, %v3582
        %v3711 = vsub.f32 %v3518, %v3585
        %v3712 = vsub.f32 %v3519, %v3588
        %v3713 = vsub.f32 %v3520, %v3591
        %v3714 = vsub.f32 %v3521, %v3594
        %v3715 = vsub.f32 %v3522, %v3597
        %v3716 = vsub.f32 %v3523, %v3600
        %v3717 = vsub.f32 %v3524, %v3603
        %v3718 = vsub.f32 %v3525, %v3606
        %v3719 = vsub.f32 %v3526, %v3609
        %v3720 = vsub.f32 %v3527, %v3612
        %v3721 = vsub.f32 %v3528, %v3615
        %v3722 = vsub.f32 %v3529, %v3618
        %v3723 = vsub.f32 %v3530, %v3621
        %v3724 = vsub.f32 %v3531, %v3624
        %v3725 = vsub.f32 %v3532, %v3627
        %v3726 = vsub.f32 %v3533, %v3630
        %v3727 = vsub.f32 %v3534, %v3633
        %v3728 = vsub.f32 %v3535, %v3636
        %v3729 = vsub.f32 %v3536, %v3639
        %v3730 = vsub.f32 %v3537, %v3642
        %v3731 = vsub.f32 %v3538, %v3645
        %v3732 = vsub.f32 %v3539, %v3648
        %v3733 = vsub.f32 %v3540, %v3651
        %v3734 = vsub.f32 %v3541, %v3654
        %v3735 = vsub.f32 %v3542, %v3657
        %v3736 = vsub.f32 %v3543, %v3660
        %v3737 = vsub.f32 %v3544, %v3663
        %v3738 = vsub.f32 %v3545, %v3666
        %v3739 = vsub.f32 %v3546, %v3669
        %v3740 = vsub.f32 %v3547, %v3672
        %v3741 = vsub.f32 %v3548, %v3675
        %v3742 = vsub.f32 %v3549, %v3678
        %v3743 = vsub.f32 %v3550, %v3681
        %v3744 = vsub.f32 %v3551, %v3684
        %v3745 = vsub.f32 %v3552, %v3687
        %v3746 = vsub.f32 %v3553, %v3690
        %v3747 = vsub.f32 %v3554, %v3693
        %v3748 = vsub.f32 %v3555, %v3696
        %v3749 = vsub.f32 %v3556, %v3699
        %v3750 = vsub.f32 %v3557, %v3702
        %v3751 = vmul.f32 %v3703, 1.442695
        %v3752 = vpow.pop %v3751
        %v3753 = vmul.f32 %v3704, 1.442695
        %v3754 = vpow.pop %v3753
        %v3755 = vmul.f32 %v3705, 1.442695
        %v3756 = vpow.pop %v3755
        %v3757 = vmul.f32 %v3706, 1.442695
        %v3758 = vpow.pop %v3757
        %v3759 = vmul.f32 %v3707, 1.442695
        %v3760 = vpow.pop %v3759
        %v3761 = vmul.f32 %v3708, 1.442695
        %v3762 = vpow.pop %v3761
        %v3763 = vmul.f32 %v3709, 1.442695
        %v3764 = vpow.pop %v3763
        %v3765 = vmul.f32 %v3710, 1.442695
        %v3766 = vpow.pop %v3765
        %v3767 = vmul.f32 %v3711, 1.442695
        %v3768 = vpow.pop %v3767
        %v3769 = vmul.f32 %v3712, 1.442695
        %v3770 = vpow.pop %v3769
        %v3771 = vmul.f32 %v3713, 1.442695
        %v3772 = vpow.pop %v3771
        %v3773 = vmul.f32 %v3714, 1.442695
        %v3774 = vpow.pop %v3773
        %v3775 = vmul.f32 %v3715, 1.442695
        %v3776 = vpow.pop %v3775
        %v3777 = vmul.f32 %v3716, 1.442695
        %v3778 = vpow.pop %v3777
        %v3779 = vmul.f32 %v3717, 1.442695
        %v3780 = vpow.pop %v3779
        %v3781 = vmul.f32 %v3718, 1.442695
        %v3782 = vpow.pop %v3781
        %v3783 = vmul.f32 %v3719, 1.442695
        %v3784 = vpow.pop %v3783
        %v3785 = vmul.f32 %v3720, 1.442695
        %v3786 = vpow.pop %v3785
        %v3787 = vmul.f32 %v3721, 1.442695
        %v3788 = vpow.pop %v3787
        %v3789 = vmul.f32 %v3722, 1.442695
        %v3790 = vpow.pop %v3789
        %v3791 = vmul.f32 %v3723, 1.442695
        %v3792 = vpow.pop %v3791
        %v3793 = vmul.f32 %v3724, 1.442695
        %v3794 = vpow.pop %v3793
        %v3795 = vmul.f32 %v3725, 1.442695
        %v3796 = vpow.pop %v3795
        %v3797 = vmul.f32 %v3726, 1.442695
        %v3798 = vpow.pop %v3797
        %v3799 = vmul.f32 %v3727, 1.442695
        %v3800 = vpow.pop %v3799
        %v3801 = vmul.f32 %v3728, 1.442695
        %v3802 = vpow.pop %v3801
        %v3803 = vmul.f32 %v3729, 1.442695
        %v3804 = vpow.pop %v3803
        %v3805 = vmul.f32 %v3730, 1.442695
        %v3806 = vpow.pop %v3805
        %v3807 = vmul.f32 %v3731, 1.442695
        %v3808 = vpow.pop %v3807
        %v3809 = vmul.f32 %v3732, 1.442695
        %v3810 = vpow.pop %v3809
        %v3811 = vmul.f32 %v3733, 1.442695
        %v3812 = vpow.pop %v3811
        %v3813 = vmul.f32 %v3734, 1.442695
        %v3814 = vpow.pop %v3813
        %v3815 = vmul.f32 %v3735, 1.442695
        %v3816 = vpow.pop %v3815
        %v3817 = vmul.f32 %v3736, 1.442695
        %v3818 = vpow.pop %v3817
        %v3819 = vmul.f32 %v3737, 1.442695
        %v3820 = vpow.pop %v3819
        %v3821 = vmul.f32 %v3738, 1.442695
        %v3822 = vpow.pop %v3821
        %v3823 = vmul.f32 %v3739, 1.442695
        %v3824 = vpow.pop %v3823
        %v3825 = vmul.f32 %v3740, 1.442695
        %v3826 = vpow.pop %v3825
        %v3827 = vmul.f32 %v3741, 1.442695
        %v3828 = vpow.pop %v3827
        %v3829 = vmul.f32 %v3742, 1.442695
        %v3830 = vpow.pop %v3829
        %v3831 = vmul.f32 %v3743, 1.442695
        %v3832 = vpow.pop %v3831
        %v3833 = vmul.f32 %v3744, 1.442695
        %v3834 = vpow.pop %v3833
        %v3835 = vmul.f32 %v3745, 1.442695
        %v3836 = vpow.pop %v3835
        %v3837 = vmul.f32 %v3746, 1.442695
        %v3838 = vpow.pop %v3837
        %v3839 = vmul.f32 %v3747, 1.442695
        %v3840 = vpow.pop %v3839
        %v3841 = vmul.f32 %v3748, 1.442695
        %v3842 = vpow.pop %v3841
        %v3843 = vmul.f32 %v3749, 1.442695
        %v3844 = vpow.pop %v3843
        %v3845 = vmul.f32 %v3750, 1.442695
        %v3846 = vpow.pop %v3845
        %v3847 = vsel %vm3558, %v3752, 0.0
        %3848 = vadd.xlane.f32.xlu0 %v3847
        %v3849 = vpop.xlane.xlu0 %3848
        %v3850 = vsel %vm3558, %v3754, 0.0
        %3851 = vadd.xlane.f32.xlu0 %v3850
        %v3852 = vpop.xlane.xlu0 %3851
        %v3853 = vsel %vm3558, %v3756, 0.0
        %3854 = vadd.xlane.f32.xlu0 %v3853
        %v3855 = vpop.xlane.xlu0 %3854
        %v3856 = vsel %vm3558, %v3758, 0.0
        %3857 = vadd.xlane.f32.xlu0 %v3856
        %v3858 = vpop.xlane.xlu0 %3857
        %v3859 = vsel %vm3558, %v3760, 0.0
        %3860 = vadd.xlane.f32.xlu0 %v3859
        %v3861 = vpop.xlane.xlu0 %3860
        %v3862 = vsel %vm3558, %v3762, 0.0
        %3863 = vadd.xlane.f32.xlu0 %v3862
        %v3864 = vpop.xlane.xlu0 %3863
        %v3865 = vsel %vm3558, %v3764, 0.0
        %3866 = vadd.xlane.f32.xlu0 %v3865
        %v3867 = vpop.xlane.xlu0 %3866
        %v3868 = vsel %vm3558, %v3766, 0.0
        %3869 = vadd.xlane.f32.xlu0 %v3868
        %v3870 = vpop.xlane.xlu0 %3869
        %v3871 = vsel %vm3558, %v3768, 0.0
        %3872 = vadd.xlane.f32.xlu0 %v3871
        %v3873 = vpop.xlane.xlu0 %3872
        %v3874 = vsel %vm3558, %v3770, 0.0
        %3875 = vadd.xlane.f32.xlu0 %v3874
        %v3876 = vpop.xlane.xlu0 %3875
        %v3877 = vsel %vm3558, %v3772, 0.0
        %3878 = vadd.xlane.f32.xlu0 %v3877
        %v3879 = vpop.xlane.xlu0 %3878
        %v3880 = vsel %vm3558, %v3774, 0.0
        %3881 = vadd.xlane.f32.xlu0 %v3880
        %v3882 = vpop.xlane.xlu0 %3881
        %v3883 = vsel %vm3558, %v3776, 0.0
        %3884 = vadd.xlane.f32.xlu0 %v3883
        %v3885 = vpop.xlane.xlu0 %3884
        %v3886 = vsel %vm3558, %v3778, 0.0
        %3887 = vadd.xlane.f32.xlu0 %v3886
        %v3888 = vpop.xlane.xlu0 %3887
        %v3889 = vsel %vm3558, %v3780, 0.0
        %3890 = vadd.xlane.f32.xlu0 %v3889
        %v3891 = vpop.xlane.xlu0 %3890
        %v3892 = vsel %vm3558, %v3782, 0.0
        %3893 = vadd.xlane.f32.xlu0 %v3892
        %v3894 = vpop.xlane.xlu0 %3893
        %v3895 = vsel %vm3558, %v3784, 0.0
        %3896 = vadd.xlane.f32.xlu0 %v3895
        %v3897 = vpop.xlane.xlu0 %3896
        %v3898 = vsel %vm3558, %v3786, 0.0
        %3899 = vadd.xlane.f32.xlu0 %v3898
        %v3900 = vpop.xlane.xlu0 %3899
        %v3901 = vsel %vm3558, %v3788, 0.0
        %3902 = vadd.xlane.f32.xlu0 %v3901
        %v3903 = vpop.xlane.xlu0 %3902
        %v3904 = vsel %vm3558, %v3790, 0.0
        %3905 = vadd.xlane.f32.xlu0 %v3904
        %v3906 = vpop.xlane.xlu0 %3905
        %v3907 = vsel %vm3558, %v3792, 0.0
        %3908 = vadd.xlane.f32.xlu0 %v3907
        %v3909 = vpop.xlane.xlu0 %3908
        %v3910 = vsel %vm3558, %v3794, 0.0
        %3911 = vadd.xlane.f32.xlu0 %v3910
        %v3912 = vpop.xlane.xlu0 %3911
        %v3913 = vsel %vm3558, %v3796, 0.0
        %3914 = vadd.xlane.f32.xlu0 %v3913
        %v3915 = vpop.xlane.xlu0 %3914
        %v3916 = vsel %vm3558, %v3798, 0.0
        %3917 = vadd.xlane.f32.xlu0 %v3916
        %v3918 = vpop.xlane.xlu0 %3917
        %v3919 = vsel %vm3558, %v3800, 0.0
        %3920 = vadd.xlane.f32.xlu0 %v3919
        %v3921 = vpop.xlane.xlu0 %3920
        %v3922 = vsel %vm3558, %v3802, 0.0
        %3923 = vadd.xlane.f32.xlu0 %v3922
        %v3924 = vpop.xlane.xlu0 %3923
        %v3925 = vsel %vm3558, %v3804, 0.0
        %3926 = vadd.xlane.f32.xlu0 %v3925
        %v3927 = vpop.xlane.xlu0 %3926
        %v3928 = vsel %vm3558, %v3806, 0.0
        %3929 = vadd.xlane.f32.xlu0 %v3928
        %v3930 = vpop.xlane.xlu0 %3929
        %v3931 = vsel %vm3558, %v3808, 0.0
        %3932 = vadd.xlane.f32.xlu0 %v3931
        %v3933 = vpop.xlane.xlu0 %3932
        %v3934 = vsel %vm3558, %v3810, 0.0
        %3935 = vadd.xlane.f32.xlu0 %v3934
        %v3936 = vpop.xlane.xlu0 %3935
        %v3937 = vsel %vm3558, %v3812, 0.0
        %3938 = vadd.xlane.f32.xlu0 %v3937
        %v3939 = vpop.xlane.xlu0 %3938
        %v3940 = vsel %vm3558, %v3814, 0.0
        %3941 = vadd.xlane.f32.xlu0 %v3940
        %v3942 = vpop.xlane.xlu0 %3941
        %v3943 = vsel %vm3558, %v3816, 0.0
        %3944 = vadd.xlane.f32.xlu0 %v3943
        %v3945 = vpop.xlane.xlu0 %3944
        %v3946 = vsel %vm3558, %v3818, 0.0
        %3947 = vadd.xlane.f32.xlu0 %v3946
        %v3948 = vpop.xlane.xlu0 %3947
        %v3949 = vsel %vm3558, %v3820, 0.0
        %3950 = vadd.xlane.f32.xlu0 %v3949
        %v3951 = vpop.xlane.xlu0 %3950
        %v3952 = vsel %vm3558, %v3822, 0.0
        %3953 = vadd.xlane.f32.xlu0 %v3952
        %v3954 = vpop.xlane.xlu0 %3953
        %v3955 = vsel %vm3558, %v3824, 0.0
        %3956 = vadd.xlane.f32.xlu0 %v3955
        %v3957 = vpop.xlane.xlu0 %3956
        %v3958 = vsel %vm3558, %v3826, 0.0
        %3959 = vadd.xlane.f32.xlu0 %v3958
        %v3960 = vpop.xlane.xlu0 %3959
        %v3961 = vsel %vm3558, %v3828, 0.0
        %3962 = vadd.xlane.f32.xlu0 %v3961
        %v3963 = vpop.xlane.xlu0 %3962
        %v3964 = vsel %vm3558, %v3830, 0.0
        %3965 = vadd.xlane.f32.xlu0 %v3964
        %v3966 = vpop.xlane.xlu0 %3965
        %v3967 = vsel %vm3558, %v3832, 0.0
        %3968 = vadd.xlane.f32.xlu0 %v3967
        %v3969 = vpop.xlane.xlu0 %3968
        %v3970 = vsel %vm3558, %v3834, 0.0
        %3971 = vadd.xlane.f32.xlu0 %v3970
        %v3972 = vpop.xlane.xlu0 %3971
        %v3973 = vsel %vm3558, %v3836, 0.0
        %3974 = vadd.xlane.f32.xlu0 %v3973
        %v3975 = vpop.xlane.xlu0 %3974
        %v3976 = vsel %vm3558, %v3838, 0.0
        %3977 = vadd.xlane.f32.xlu0 %v3976
        %v3978 = vpop.xlane.xlu0 %3977
        %v3979 = vsel %vm3558, %v3840, 0.0
        %3980 = vadd.xlane.f32.xlu0 %v3979
        %v3981 = vpop.xlane.xlu0 %3980
        %v3982 = vsel %vm3558, %v3842, 0.0
        %3983 = vadd.xlane.f32.xlu0 %v3982
        %v3984 = vpop.xlane.xlu0 %3983
        %v3985 = vsel %vm3558, %v3844, 0.0
        %3986 = vadd.xlane.f32.xlu0 %v3985
        %v3987 = vpop.xlane.xlu0 %3986
        %v3988 = vsel %vm3558, %v3846, 0.0
        %3989 = vadd.xlane.f32.xlu0 %v3988
        %v3990 = vpop.xlane.xlu0 %3989
        %v3991 = vrcp.pop %v3849
        %v3992 = vmul.f32 %v3752, %v3991
        %v3993 = vrcp.pop %v3852
        %v3994 = vmul.f32 %v3754, %v3993
        %v3995 = vrcp.pop %v3855
        %v3996 = vmul.f32 %v3756, %v3995
        %v3997 = vrcp.pop %v3858
        %v3998 = vmul.f32 %v3758, %v3997
        %v3999 = vrcp.pop %v3861
        %v4000 = vmul.f32 %v3760, %v3999
        %v4001 = vrcp.pop %v3864
        %v4002 = vmul.f32 %v3762, %v4001
        %v4003 = vrcp.pop %v3867
        %v4004 = vmul.f32 %v3764, %v4003
        %v4005 = vrcp.pop %v3870
        %v4006 = vmul.f32 %v3766, %v4005
        %v4007 = vrcp.pop %v3873
        %v4008 = vmul.f32 %v3768, %v4007
        %v4009 = vrcp.pop %v3876
        %v4010 = vmul.f32 %v3770, %v4009
        %v4011 = vrcp.pop %v3879
        %v4012 = vmul.f32 %v3772, %v4011
        %v4013 = vrcp.pop %v3882
        %v4014 = vmul.f32 %v3774, %v4013
        %v4015 = vrcp.pop %v3885
        %v4016 = vmul.f32 %v3776, %v4015
        %v4017 = vrcp.pop %v3888
        %v4018 = vmul.f32 %v3778, %v4017
        %v4019 = vrcp.pop %v3891
        %v4020 = vmul.f32 %v3780, %v4019
        %v4021 = vrcp.pop %v3894
        %v4022 = vmul.f32 %v3782, %v4021
        %v4023 = vrcp.pop %v3897
        %v4024 = vmul.f32 %v3784, %v4023
        %v4025 = vrcp.pop %v3900
        %v4026 = vmul.f32 %v3786, %v4025
        %v4027 = vrcp.pop %v3903
        %v4028 = vmul.f32 %v3788, %v4027
        %v4029 = vrcp.pop %v3906
        %v4030 = vmul.f32 %v3790, %v4029
        %v4031 = vrcp.pop %v3909
        %v4032 = vmul.f32 %v3792, %v4031
        %v4033 = vrcp.pop %v3912
        %v4034 = vmul.f32 %v3794, %v4033
        %v4035 = vrcp.pop %v3915
        %v4036 = vmul.f32 %v3796, %v4035
        %v4037 = vrcp.pop %v3918
        %v4038 = vmul.f32 %v3798, %v4037
        %v4039 = vrcp.pop %v3921
        %v4040 = vmul.f32 %v3800, %v4039
        %v4041 = vrcp.pop %v3924
        %v4042 = vmul.f32 %v3802, %v4041
        %v4043 = vrcp.pop %v3927
        %v4044 = vmul.f32 %v3804, %v4043
        %v4045 = vrcp.pop %v3930
        %v4046 = vmul.f32 %v3806, %v4045
        %v4047 = vrcp.pop %v3933
        %v4048 = vmul.f32 %v3808, %v4047
        %v4049 = vrcp.pop %v3936
        %v4050 = vmul.f32 %v3810, %v4049
        %v4051 = vrcp.pop %v3939
        %v4052 = vmul.f32 %v3812, %v4051
        %v4053 = vrcp.pop %v3942
        %v4054 = vmul.f32 %v3814, %v4053
        %v4055 = vrcp.pop %v3945
        %v4056 = vmul.f32 %v3816, %v4055
        %v4057 = vrcp.pop %v3948
        %v4058 = vmul.f32 %v3818, %v4057
        %v4059 = vrcp.pop %v3951
        %v4060 = vmul.f32 %v3820, %v4059
        %v4061 = vrcp.pop %v3954
        %v4062 = vmul.f32 %v3822, %v4061
        %v4063 = vrcp.pop %v3957
        %v4064 = vmul.f32 %v3824, %v4063
        %v4065 = vrcp.pop %v3960
        %v4066 = vmul.f32 %v3826, %v4065
        %v4067 = vrcp.pop %v3963
        %v4068 = vmul.f32 %v3828, %v4067
        %v4069 = vrcp.pop %v3966
        %v4070 = vmul.f32 %v3830, %v4069
        %v4071 = vrcp.pop %v3969
        %v4072 = vmul.f32 %v3832, %v4071
        %v4073 = vrcp.pop %v3972
        %v4074 = vmul.f32 %v3834, %v4073
        %v4075 = vrcp.pop %v3975
        %v4076 = vmul.f32 %v3836, %v4075
        %v4077 = vrcp.pop %v3978
        %v4078 = vmul.f32 %v3838, %v4077
        %v4079 = vrcp.pop %v3981
        %v4080 = vmul.f32 %v3840, %v4079
        %v4081 = vrcp.pop %v3984
        %v4082 = vmul.f32 %v3842, %v4081
        %v4083 = vrcp.pop %v3987
        %v4084 = vmul.f32 %v3844, %v4083
        %v4085 = vrcp.pop %v3990
        %v4086 = vmul.f32 %v3846, %v4085
        %v4087 = vmul.f32 %v1994, %v3992
        %v4088 = vmul.f32 %v1998, %v3994
        %v4089 = vmul.f32 %v2002, %v3996
        %v4090 = vmul.f32 %v2009, %v3998
        %v4091 = vmul.f32 %v2013, %v4000
        %v4092 = vmul.f32 %v2017, %v4002
        %v4093 = vmul.f32 %v2024, %v4004
        %v4094 = vmul.f32 %v2028, %v4006
        %v4095 = vmul.f32 %v2032, %v4008
        %v4096 = vmul.f32 %v2039, %v4010
        %v4097 = vmul.f32 %v2043, %v4012
        %v4098 = vmul.f32 %v2047, %v4014
        %v4099 = vmul.f32 %v2054, %v4016
        %v4100 = vmul.f32 %v2058, %v4018
        %v4101 = vmul.f32 %v2062, %v4020
        %v4102 = vmul.f32 %v2069, %v4022
        %v4103 = vmul.f32 %v2073, %v4024
        %v4104 = vmul.f32 %v2077, %v4026
        %v4105 = vmul.f32 %v2084, %v4028
        %v4106 = vmul.f32 %v2088, %v4030
        %v4107 = vmul.f32 %v2092, %v4032
        %v4108 = vmul.f32 %v2099, %v4034
        %v4109 = vmul.f32 %v2103, %v4036
        %v4110 = vmul.f32 %v2107, %v4038
        %v4111 = vmul.f32 %v2114, %v4040
        %v4112 = vmul.f32 %v2118, %v4042
        %v4113 = vmul.f32 %v2122, %v4044
        %v4114 = vmul.f32 %v2129, %v4046
        %v4115 = vmul.f32 %v2133, %v4048
        %v4116 = vmul.f32 %v2137, %v4050
        %v4117 = vmul.f32 %v2144, %v4052
        %v4118 = vmul.f32 %v2148, %v4054
        %v4119 = vmul.f32 %v2152, %v4056
        %v4120 = vmul.f32 %v2159, %v4058
        %v4121 = vmul.f32 %v2163, %v4060
        %v4122 = vmul.f32 %v2167, %v4062
        %v4123 = vmul.f32 %v2174, %v4064
        %v4124 = vmul.f32 %v2178, %v4066
        %v4125 = vmul.f32 %v2182, %v4068
        %v4126 = vmul.f32 %v2189, %v4070
        %v4127 = vmul.f32 %v2193, %v4072
        %v4128 = vmul.f32 %v2197, %v4074
        %v4129 = vmul.f32 %v2204, %v4076
        %v4130 = vmul.f32 %v2208, %v4078
        %v4131 = vmul.f32 %v2212, %v4080
        %v4132 = vmul.f32 %v2219, %v4082
        %v4133 = vmul.f32 %v2223, %v4084
        %v4134 = vmul.f32 %v2227, %v4086
        %v4136 = vsel %vm3558, %v4087, 0
        %v4139 = vsel %vm3558, %v4088, 0
        %v4142 = vsel %vm3558, %v4089, 0
        %4144 = vmatprep.subr.mxu0 0.0
        %4145 = vmatpush1.msra.mxu0 %v470
        %4146 = vmatprep.subr.mxu0 0.0
        %4147 = vmatpush1.msra.mxu0 %v471
        %4148 = vmatprep.subr.mxu0 0.0
        %4149 = vmatpush1.msra.mxu0 %v472
        %4150 = vmatprep.subr.mxu0 0.0
        %4151 = vmatpush1.msra.mxu0 0.0
        %4152 = vmatprep.subr.mxu0 0.0
        %4153 = vmatpush1.msra.mxu0 0.0
        %4154 = vmatprep.subr.mxu0 0.0
        %4155 = vmatpush1.msra.mxu0 0.0
        %4156 = vmatprep.subr.mxu0 0.0
        %4157 = vmatpush1.msra.mxu0 0.0
        %4158 = vmatprep.subr.mxu0 0.0
        %4159 = vmatpush1.msra.mxu0 0.0
        %4160 = vmatprep.subr.mxu0 0.0
        %4161 = vmatpush1.msra.mxu0 0.0
        %4162 = vmatprep.subr.mxu0 0.0
        %4163 = vmatpush1.msra.mxu0 0.0
        %4164 = vmatprep.subr.mxu0 0.0
        %4165 = vmatpush1.msra.mxu0 0.0
        %4166 = vmatprep.subr.mxu0 0.0
        %4167 = vmatpush1.msra.mxu0 0.0
        %4168 = vmatprep.subr.mxu0 0.0
        %4169 = vmatpush1.msra.mxu0 0.0
        %4170 = vmatprep.subr.mxu0 0.0
        %4171 = vmatpush1.msra.mxu0 0.0
        %4172 = vmatprep.subr.mxu0 0.0
        %4173 = vmatpush1.msra.mxu0 0.0
        %4174 = vmatprep.subr.mxu0 0.0
        %4175 = vmatpush1.msra.mxu0 0.0
        %4176 = vmatprep.subr.mxu0 0.0
        %4177 = vmatpush1.msra.mxu0 0.0
        %4178 = vmatprep.subr.mxu0 0.0
        %4179 = vmatpush1.msra.mxu0 0.0
        %4180 = vmatprep.subr.mxu0 0.0
        %4181 = vmatpush1.msra.mxu0 0.0
        %4182 = vmatprep.subr.mxu0 0.0
        %4183 = vmatpush1.msra.mxu0 0.0
        %4184 = vmatprep.subr.mxu0 0.0
        %4185 = vmatpush1.msra.mxu0 0.0
        %4186 = vmatprep.subr.mxu0 0.0
        %4187 = vmatpush1.msra.mxu0 0.0
        %4188 = vmatprep.subr.mxu0 0.0
        %4189 = vmatpush1.msra.mxu0 0.0
        %4190 = vmatprep.subr.mxu0 0.0
        %4191 = vmatpush1.msra.mxu0 0.0
        %4192 = vmatprep.subr.mxu0 0.0
        %4193 = vmatpush1.msra.mxu0 0.0
        %4194 = vmatprep.subr.mxu0 0.0
        %4195 = vmatpush1.msra.mxu0 0.0
        %4196 = vmatprep.subr.mxu0 0.0
        %4197 = vmatpush1.msra.mxu0 0.0
        %4198 = vmatprep.subr.mxu0 0.0
        %4199 = vmatpush1.msra.mxu0 0.0
        %4200 = vmatprep.subr.mxu0 0.0
        %4201 = vmatpush1.msra.mxu0 0.0
        %4202 = vmatprep.subr.mxu0 0.0
        %4203 = vmatpush1.msra.mxu0 0.0
        %4204 = vmatprep.subr.mxu0 0.0
        %4205 = vmatpush1.msra.mxu0 0.0
        %4206 = vmatprep.subr.mxu0 0.0
        %4207 = vmatpush1.msra.mxu0 0.0
        %4208 = vmatprep.mubr.f32.mxu0 0.0
        %4209 = vmatmul.mubr.f32.gmra.mrb[0].mxu0 %v4136
        %v4210 = vpop.f32.mrb[0].mxu0
        %v4211 = vadd.f32 0.0, %v4210
        %v4212 = vpop.f32.mrb[0].mxu0
        %4213 = vmatprep.mubr.f32.mxu0 0.0
        %4214 = vmatmul.mubr.f32.gmra.mrb[0].mxu0 %v4139
        %v4215 = vpop.f32.mrb[0].mxu0
        %v4216 = vadd.f32 0.0, %v4215
        %v4217 = vpop.f32.mrb[0].mxu0
        %4218 = vmatprep.mubr.f32.mxu0 0.0
        %4219 = vmatmul.mubr.f32.gmra.mrb[0].mxu0 %v4142
        %v4220 = vpop.f32.mrb[0].mxu0
        %v4221 = vadd.f32 0.0, %v4220
        %v4222 = vpop.f32.mrb[0].mxu0
        %4223 = vdwg.mxu0
        %v4225 = vsel %vm3558, %v4090, 0
        %v4228 = vsel %vm3558, %v4091, 0
        %v4231 = vsel %vm3558, %v4092, 0
        %4233 = vmatprep.subr.mxu0 0.0
        %4234 = vmatpush1.msra.mxu0 %v473
        %4235 = vmatprep.subr.mxu0 0.0
        %4236 = vmatpush1.msra.mxu0 %v474
        %4237 = vmatprep.subr.mxu0 0.0
        %4238 = vmatpush1.msra.mxu0 %v475
        %4239 = vmatprep.subr.mxu0 0.0
        %4240 = vmatpush1.msra.mxu0 0.0
        %4241 = vmatprep.subr.mxu0 0.0
        %4242 = vmatpush1.msra.mxu0 0.0
        %4243 = vmatprep.subr.mxu0 0.0
        %4244 = vmatpush1.msra.mxu0 0.0
        %4245 = vmatprep.subr.mxu0 0.0
        %4246 = vmatpush1.msra.mxu0 0.0
        %4247 = vmatprep.subr.mxu0 0.0
        %4248 = vmatpush1.msra.mxu0 0.0
        %4249 = vmatprep.subr.mxu0 0.0
        %4250 = vmatpush1.msra.mxu0 0.0
        %4251 = vmatprep.subr.mxu0 0.0
        %4252 = vmatpush1.msra.mxu0 0.0
        %4253 = vmatprep.subr.mxu0 0.0
        %4254 = vmatpush1.msra.mxu0 0.0
        %4255 = vmatprep.subr.mxu0 0.0
        %4256 = vmatpush1.msra.mxu0 0.0
        %4257 = vmatprep.subr.mxu0 0.0
        %4258 = vmatpush1.msra.mxu0 0.0
        %4259 = vmatprep.subr.mxu0 0.0
        %4260 = vmatpush1.msra.mxu0 0.0
        %4261 = vmatprep.subr.mxu0 0.0
        %4262 = vmatpush1.msra.mxu0 0.0
        %4263 = vmatprep.subr.mxu0 0.0
        %4264 = vmatpush1.msra.mxu0 0.0
        %4265 = vmatprep.subr.mxu0 0.0
        %4266 = vmatpush1.msra.mxu0 0.0
        %4267 = vmatprep.subr.mxu0 0.0
        %4268 = vmatpush1.msra.mxu0 0.0
        %4269 = vmatprep.subr.mxu0 0.0
        %4270 = vmatpush1.msra.mxu0 0.0
        %4271 = vmatprep.subr.mxu0 0.0
        %4272 = vmatpush1.msra.mxu0 0.0
        %4273 = vmatprep.subr.mxu0 0.0
        %4274 = vmatpush1.msra.mxu0 0.0
        %4275 = vmatprep.subr.mxu0 0.0
        %4276 = vmatpush1.msra.mxu0 0.0
        %4277 = vmatprep.subr.mxu0 0.0
        %4278 = vmatpush1.msra.mxu0 0.0
        %4279 = vmatprep.subr.mxu0 0.0
        %4280 = vmatpush1.msra.mxu0 0.0
        %4281 = vmatprep.subr.mxu0 0.0
        %4282 = vmatpush1.msra.mxu0 0.0
        %4283 = vmatprep.subr.mxu0 0.0
        %4284 = vmatpush1.msra.mxu0 0.0
        %4285 = vmatprep.subr.mxu0 0.0
        %4286 = vmatpush1.msra.mxu0 0.0
        %4287 = vmatprep.subr.mxu0 0.0
        %4288 = vmatpush1.msra.mxu0 0.0
        %4289 = vmatprep.subr.mxu0 0.0
        %4290 = vmatpush1.msra.mxu0 0.0
        %4291 = vmatprep.subr.mxu0 0.0
        %4292 = vmatpush1.msra.mxu0 0.0
        %4293 = vmatprep.subr.mxu0 0.0
        %4294 = vmatpush1.msra.mxu0 0.0
        %4295 = vmatprep.subr.mxu0 0.0
        %4296 = vmatpush1.msra.mxu0 0.0
        %4297 = vmatprep.mubr.f32.mxu0 0.0
        %4298 = vmatmul.mubr.f32.gmra.mrb[0].mxu0 %v4225
        %v4299 = vpop.f32.mrb[0].mxu0
        %v4300 = vadd.f32 0.0, %v4299
        %v4301 = vpop.f32.mrb[0].mxu0
        %4302 = vmatprep.mubr.f32.mxu0 0.0
        %4303 = vmatmul.mubr.f32.gmra.mrb[0].mxu0 %v4228
        %v4304 = vpop.f32.mrb[0].mxu0
        %v4305 = vadd.f32 0.0, %v4304
        %v4306 = vpop.f32.mrb[0].mxu0
        %4307 = vmatprep.mubr.f32.mxu0 0.0
        %4308 = vmatmul.mubr.f32.gmra.mrb[0].mxu0 %v4231
        %v4309 = vpop.f32.mrb[0].mxu0
        %v4310 = vadd.f32 0.0, %v4309
        %v4311 = vpop.f32.mrb[0].mxu0
        %4312 = vdwg.mxu0
        %v4314 = vsel %vm3558, %v4093, 0
        %v4317 = vsel %vm3558, %v4094, 0
        %v4320 = vsel %vm3558, %v4095, 0
        %4322 = vmatprep.subr.mxu0 0.0
        %4323 = vmatpush1.msra.mxu0 %v476
        %4324 = vmatprep.subr.mxu0 0.0
        %4325 = vmatpush1.msra.mxu0 %v477
        %4326 = vmatprep.subr.mxu0 0.0
        %4327 = vmatpush1.msra.mxu0 %v478
        %4328 = vmatprep.subr.mxu0 0.0
        %4329 = vmatpush1.msra.mxu0 0.0
        %4330 = vmatprep.subr.mxu0 0.0
        %4331 = vmatpush1.msra.mxu0 0.0
        %4332 = vmatprep.subr.mxu0 0.0
        %4333 = vmatpush1.msra.mxu0 0.0
        %4334 = vmatprep.subr.mxu0 0.0
        %4335 = vmatpush1.msra.mxu0 0.0
        %4336 = vmatprep.subr.mxu0 0.0
        %4337 = vmatpush1.msra.mxu0 0.0
        %4338 = vmatprep.subr.mxu0 0.0
        %4339 = vmatpush1.msra.mxu0 0.0
        %4340 = vmatprep.subr.mxu0 0.0
        %4341 = vmatpush1.msra.mxu0 0.0
        %4342 = vmatprep.subr.mxu0 0.0
        %4343 = vmatpush1.msra.mxu0 0.0
        %4344 = vmatprep.subr.mxu0 0.0
        %4345 = vmatpush1.msra.mxu0 0.0
        %4346 = vmatprep.subr.mxu0 0.0
        %4347 = vmatpush1.msra.mxu0 0.0
        %4348 = vmatprep.subr.mxu0 0.0
        %4349 = vmatpush1.msra.mxu0 0.0
        %4350 = vmatprep.subr.mxu0 0.0
        %4351 = vmatpush1.msra.mxu0 0.0
        %4352 = vmatprep.subr.mxu0 0.0
        %4353 = vmatpush1.msra.mxu0 0.0
        %4354 = vmatprep.subr.mxu0 0.0
        %4355 = vmatpush1.msra.mxu0 0.0
        %4356 = vmatprep.subr.mxu0 0.0
        %4357 = vmatpush1.msra.mxu0 0.0
        %4358 = vmatprep.subr.mxu0 0.0
        %4359 = vmatpush1.msra.mxu0 0.0
        %4360 = vmatprep.subr.mxu0 0.0
        %4361 = vmatpush1.msra.mxu0 0.0
        %4362 = vmatprep.subr.mxu0 0.0
        %4363 = vmatpush1.msra.mxu0 0.0
        %4364 = vmatprep.subr.mxu0 0.0
        %4365 = vmatpush1.msra.mxu0 0.0
        %4366 = vmatprep.subr.mxu0 0.0
        %4367 = vmatpush1.msra.mxu0 0.0
        %4368 = vmatprep.subr.mxu0 0.0
        %4369 = vmatpush1.msra.mxu0 0.0
        %4370 = vmatprep.subr.mxu0 0.0
        %4371 = vmatpush1.msra.mxu0 0.0
        %4372 = vmatprep.subr.mxu0 0.0
        %4373 = vmatpush1.msra.mxu0 0.0
        %4374 = vmatprep.subr.mxu0 0.0
        %4375 = vmatpush1.msra.mxu0 0.0
        %4376 = vmatprep.subr.mxu0 0.0
        %4377 = vmatpush1.msra.mxu0 0.0
        %4378 = vmatprep.subr.mxu0 0.0
        %4379 = vmatpush1.msra.mxu0 0.0
        %4380 = vmatprep.subr.mxu0 0.0
        %4381 = vmatpush1.msra.mxu0 0.0
        %4382 = vmatprep.subr.mxu0 0.0
        %4383 = vmatpush1.msra.mxu0 0.0
        %4384 = vmatprep.subr.mxu0 0.0
        %4385 = vmatpush1.msra.mxu0 0.0
        %4386 = vmatprep.mubr.f32.mxu0 0.0
        %4387 = vmatmul.mubr.f32.gmra.mrb[0].mxu0 %v4314
        %v4388 = vpop.f32.mrb[0].mxu0
        %v4389 = vadd.f32 0.0, %v4388
        %v4390 = vpop.f32.mrb[0].mxu0
        %4391 = vmatprep.mubr.f32.mxu0 0.0
        %4392 = vmatmul.mubr.f32.gmra.mrb[0].mxu0 %v4317
        %v4393 = vpop.f32.mrb[0].mxu0
        %v4394 = vadd.f32 0.0, %v4393
        %v4395 = vpop.f32.mrb[0].mxu0
        %4396 = vmatprep.mubr.f32.mxu0 0.0
        %4397 = vmatmul.mubr.f32.gmra.mrb[0].mxu0 %v4320
        %v4398 = vpop.f32.mrb[0].mxu0
        %v4399 = vadd.f32 0.0, %v4398
        %v4400 = vpop.f32.mrb[0].mxu0
        %4401 = vdwg.mxu0
        %v4403 = vsel %vm3558, %v4096, 0
        %v4406 = vsel %vm3558, %v4097, 0
        %v4409 = vsel %vm3558, %v4098, 0
        %4411 = vmatprep.subr.mxu0 0.0
        %4412 = vmatpush1.msra.mxu0 %v479
        %4413 = vmatprep.subr.mxu0 0.0
        %4414 = vmatpush1.msra.mxu0 %v480
        %4415 = vmatprep.subr.mxu0 0.0
        %4416 = vmatpush1.msra.mxu0 %v481
        %4417 = vmatprep.subr.mxu0 0.0
        %4418 = vmatpush1.msra.mxu0 0.0
        %4419 = vmatprep.subr.mxu0 0.0
        %4420 = vmatpush1.msra.mxu0 0.0
        %4421 = vmatprep.subr.mxu0 0.0
        %4422 = vmatpush1.msra.mxu0 0.0
        %4423 = vmatprep.subr.mxu0 0.0
        %4424 = vmatpush1.msra.mxu0 0.0
        %4425 = vmatprep.subr.mxu0 0.0
        %4426 = vmatpush1.msra.mxu0 0.0
        %4427 = vmatprep.subr.mxu0 0.0
        %4428 = vmatpush1.msra.mxu0 0.0
        %4429 = vmatprep.subr.mxu0 0.0
        %4430 = vmatpush1.msra.mxu0 0.0
        %4431 = vmatprep.subr.mxu0 0.0
        %4432 = vmatpush1.msra.mxu0 0.0
        %4433 = vmatprep.subr.mxu0 0.0
        %4434 = vmatpush1.msra.mxu0 0.0
        %4435 = vmatprep.subr.mxu0 0.0
        %4436 = vmatpush1.msra.mxu0 0.0
        %4437 = vmatprep.subr.mxu0 0.0
        %4438 = vmatpush1.msra.mxu0 0.0
        %4439 = vmatprep.subr.mxu0 0.0
        %4440 = vmatpush1.msra.mxu0 0.0
        %4441 = vmatprep.subr.mxu0 0.0
        %4442 = vmatpush1.msra.mxu0 0.0
        %4443 = vmatprep.subr.mxu0 0.0
        %4444 = vmatpush1.msra.mxu0 0.0
        %4445 = vmatprep.subr.mxu0 0.0
        %4446 = vmatpush1.msra.mxu0 0.0
        %4447 = vmatprep.subr.mxu0 0.0
        %4448 = vmatpush1.msra.mxu0 0.0
        %4449 = vmatprep.subr.mxu0 0.0
        %4450 = vmatpush1.msra.mxu0 0.0
        %4451 = vmatprep.subr.mxu0 0.0
        %4452 = vmatpush1.msra.mxu0 0.0
        %4453 = vmatprep.subr.mxu0 0.0
        %4454 = vmatpush1.msra.mxu0 0.0
        %4455 = vmatprep.subr.mxu0 0.0
        %4456 = vmatpush1.msra.mxu0 0.0
        %4457 = vmatprep.subr.mxu0 0.0
        %4458 = vmatpush1.msra.mxu0 0.0
        %4459 = vmatprep.subr.mxu0 0.0
        %4460 = vmatpush1.msra.mxu0 0.0
        %4461 = vmatprep.subr.mxu0 0.0
        %4462 = vmatpush1.msra.mxu0 0.0
        %4463 = vmatprep.subr.mxu0 0.0
        %4464 = vmatpush1.msra.mxu0 0.0
        %4465 = vmatprep.subr.mxu0 0.0
        %4466 = vmatpush1.msra.mxu0 0.0
        %4467 = vmatprep.subr.mxu0 0.0
        %4468 = vmatpush1.msra.mxu0 0.0
        %4469 = vmatprep.subr.mxu0 0.0
        %4470 = vmatpush1.msra.mxu0 0.0
        %4471 = vmatprep.subr.mxu0 0.0
        %4472 = vmatpush1.msra.mxu0 0.0
        %4473 = vmatprep.subr.mxu0 0.0
        %4474 = vmatpush1.msra.mxu0 0.0
        %4475 = vmatprep.mubr.f32.mxu0 0.0
        %4476 = vmatmul.mubr.f32.gmra.mrb[0].mxu0 %v4403
        %v4477 = vpop.f32.mrb[0].mxu0
        %v4478 = vadd.f32 0.0, %v4477
        %v4479 = vpop.f32.mrb[0].mxu0
        %4480 = vmatprep.mubr.f32.mxu0 0.0
        %4481 = vmatmul.mubr.f32.gmra.mrb[0].mxu0 %v4406
        %v4482 = vpop.f32.mrb[0].mxu0
        %v4483 = vadd.f32 0.0, %v4482
        %v4484 = vpop.f32.mrb[0].mxu0
        %4485 = vmatprep.mubr.f32.mxu0 0.0
        %4486 = vmatmul.mubr.f32.gmra.mrb[0].mxu0 %v4409
        %v4487 = vpop.f32.mrb[0].mxu0
        %v4488 = vadd.f32 0.0, %v4487
        %v4489 = vpop.f32.mrb[0].mxu0
        %4490 = vdwg.mxu0
        %v4492 = vsel %vm3558, %v4099, 0
        %v4495 = vsel %vm3558, %v4100, 0
        %v4498 = vsel %vm3558, %v4101, 0
        %4500 = vmatprep.subr.mxu0 0.0
        %4501 = vmatpush1.msra.mxu0 %v482
        %4502 = vmatprep.subr.mxu0 0.0
        %4503 = vmatpush1.msra.mxu0 %v483
        %4504 = vmatprep.subr.mxu0 0.0
        %4505 = vmatpush1.msra.mxu0 %v484
        %4506 = vmatprep.subr.mxu0 0.0
        %4507 = vmatpush1.msra.mxu0 0.0
        %4508 = vmatprep.subr.mxu0 0.0
        %4509 = vmatpush1.msra.mxu0 0.0
        %4510 = vmatprep.subr.mxu0 0.0
        %4511 = vmatpush1.msra.mxu0 0.0
        %4512 = vmatprep.subr.mxu0 0.0
        %4513 = vmatpush1.msra.mxu0 0.0
        %4514 = vmatprep.subr.mxu0 0.0
        %4515 = vmatpush1.msra.mxu0 0.0
        %4516 = vmatprep.subr.mxu0 0.0
        %4517 = vmatpush1.msra.mxu0 0.0
        %4518 = vmatprep.subr.mxu0 0.0
        %4519 = vmatpush1.msra.mxu0 0.0
        %4520 = vmatprep.subr.mxu0 0.0
        %4521 = vmatpush1.msra.mxu0 0.0
        %4522 = vmatprep.subr.mxu0 0.0
        %4523 = vmatpush1.msra.mxu0 0.0
        %4524 = vmatprep.subr.mxu0 0.0
        %4525 = vmatpush1.msra.mxu0 0.0
        %4526 = vmatprep.subr.mxu0 0.0
        %4527 = vmatpush1.msra.mxu0 0.0
        %4528 = vmatprep.subr.mxu0 0.0
        %4529 = vmatpush1.msra.mxu0 0.0
        %4530 = vmatprep.subr.mxu0 0.0
        %4531 = vmatpush1.msra.mxu0 0.0
        %4532 = vmatprep.subr.mxu0 0.0
        %4533 = vmatpush1.msra.mxu0 0.0
        %4534 = vmatprep.subr.mxu0 0.0
        %4535 = vmatpush1.msra.mxu0 0.0
        %4536 = vmatprep.subr.mxu0 0.0
        %4537 = vmatpush1.msra.mxu0 0.0
        %4538 = vmatprep.subr.mxu0 0.0
        %4539 = vmatpush1.msra.mxu0 0.0
        %4540 = vmatprep.subr.mxu0 0.0
        %4541 = vmatpush1.msra.mxu0 0.0
        %4542 = vmatprep.subr.mxu0 0.0
        %4543 = vmatpush1.msra.mxu0 0.0
        %4544 = vmatprep.subr.mxu0 0.0
        %4545 = vmatpush1.msra.mxu0 0.0
        %4546 = vmatprep.subr.mxu0 0.0
        %4547 = vmatpush1.msra.mxu0 0.0
        %4548 = vmatprep.subr.mxu0 0.0
        %4549 = vmatpush1.msra.mxu0 0.0
        %4550 = vmatprep.subr.mxu0 0.0
        %4551 = vmatpush1.msra.mxu0 0.0
        %4552 = vmatprep.subr.mxu0 0.0
        %4553 = vmatpush1.msra.mxu0 0.0
        %4554 = vmatprep.subr.mxu0 0.0
        %4555 = vmatpush1.msra.mxu0 0.0
        %4556 = vmatprep.subr.mxu0 0.0
        %4557 = vmatpush1.msra.mxu0 0.0
        %4558 = vmatprep.subr.mxu0 0.0
        %4559 = vmatpush1.msra.mxu0 0.0
        %4560 = vmatprep.subr.mxu0 0.0
        %4561 = vmatpush1.msra.mxu0 0.0
        %4562 = vmatprep.subr.mxu0 0.0
        %4563 = vmatpush1.msra.mxu0 0.0
        %4564 = vmatprep.mubr.f32.mxu0 0.0
        %4565 = vmatmul.mubr.f32.gmra.mrb[0].mxu0 %v4492
        %v4566 = vpop.f32.mrb[0].mxu0
        %v4567 = vadd.f32 0.0, %v4566
        %v4568 = vpop.f32.mrb[0].mxu0
        %4569 = vmatprep.mubr.f32.mxu0 0.0
        %4570 = vmatmul.mubr.f32.gmra.mrb[0].mxu0 %v4495
        %v4571 = vpop.f32.mrb[0].mxu0
        %v4572 = vadd.f32 0.0, %v4571
        %v4573 = vpop.f32.mrb[0].mxu0
        %4574 = vmatprep.mubr.f32.mxu0 0.0
        %4575 = vmatmul.mubr.f32.gmra.mrb[0].mxu0 %v4498
        %v4576 = vpop.f32.mrb[0].mxu0
        %v4577 = vadd.f32 0.0, %v4576
        %v4578 = vpop.f32.mrb[0].mxu0
        %4579 = vdwg.mxu0
        %v4581 = vsel %vm3558, %v4102, 0
        %v4584 = vsel %vm3558, %v4103, 0
        %v4587 = vsel %vm3558, %v4104, 0
        %4589 = vmatprep.subr.mxu0 0.0
        %4590 = vmatpush1.msra.mxu0 %v485
        %4591 = vmatprep.subr.mxu0 0.0
        %4592 = vmatpush1.msra.mxu0 %v486
        %4593 = vmatprep.subr.mxu0 0.0
        %4594 = vmatpush1.msra.mxu0 %v487
        %4595 = vmatprep.subr.mxu0 0.0
        %4596 = vmatpush1.msra.mxu0 0.0
        %4597 = vmatprep.subr.mxu0 0.0
        %4598 = vmatpush1.msra.mxu0 0.0
        %4599 = vmatprep.subr.mxu0 0.0
        %4600 = vmatpush1.msra.mxu0 0.0
        %4601 = vmatprep.subr.mxu0 0.0
        %4602 = vmatpush1.msra.mxu0 0.0
        %4603 = vmatprep.subr.mxu0 0.0
        %4604 = vmatpush1.msra.mxu0 0.0
        %4605 = vmatprep.subr.mxu0 0.0
        %4606 = vmatpush1.msra.mxu0 0.0
        %4607 = vmatprep.subr.mxu0 0.0
        %4608 = vmatpush1.msra.mxu0 0.0
        %4609 = vmatprep.subr.mxu0 0.0
        %4610 = vmatpush1.msra.mxu0 0.0
        %4611 = vmatprep.subr.mxu0 0.0
        %4612 = vmatpush1.msra.mxu0 0.0
        %4613 = vmatprep.subr.mxu0 0.0
        %4614 = vmatpush1.msra.mxu0 0.0
        %4615 = vmatprep.subr.mxu0 0.0
        %4616 = vmatpush1.msra.mxu0 0.0
        %4617 = vmatprep.subr.mxu0 0.0
        %4618 = vmatpush1.msra.mxu0 0.0
        %4619 = vmatprep.subr.mxu0 0.0
        %4620 = vmatpush1.msra.mxu0 0.0
        %4621 = vmatprep.subr.mxu0 0.0
        %4622 = vmatpush1.msra.mxu0 0.0
        %4623 = vmatprep.subr.mxu0 0.0
        %4624 = vmatpush1.msra.mxu0 0.0
        %4625 = vmatprep.subr.mxu0 0.0
        %4626 = vmatpush1.msra.mxu0 0.0
        %4627 = vmatprep.subr.mxu0 0.0
        %4628 = vmatpush1.msra.mxu0 0.0
        %4629 = vmatprep.subr.mxu0 0.0
        %4630 = vmatpush1.msra.mxu0 0.0
        %4631 = vmatprep.subr.mxu0 0.0
        %4632 = vmatpush1.msra.mxu0 0.0
        %4633 = vmatprep.subr.mxu0 0.0
        %4634 = vmatpush1.msra.mxu0 0.0
        %4635 = vmatprep.subr.mxu0 0.0
        %4636 = vmatpush1.msra.mxu0 0.0
        %4637 = vmatprep.subr.mxu0 0.0
        %4638 = vmatpush1.msra.mxu0 0.0
        %4639 = vmatprep.subr.mxu0 0.0
        %4640 = vmatpush1.msra.mxu0 0.0
        %4641 = vmatprep.subr.mxu0 0.0
        %4642 = vmatpush1.msra.mxu0 0.0
        %4643 = vmatprep.subr.mxu0 0.0
        %4644 = vmatpush1.msra.mxu0 0.0
        %4645 = vmatprep.subr.mxu0 0.0
        %4646 = vmatpush1.msra.mxu0 0.0
        %4647 = vmatprep.subr.mxu0 0.0
        %4648 = vmatpush1.msra.mxu0 0.0
        %4649 = vmatprep.subr.mxu0 0.0
        %4650 = vmatpush1.msra.mxu0 0.0
        %4651 = vmatprep.subr.mxu0 0.0
        %4652 = vmatpush1.msra.mxu0 0.0
        %4653 = vmatprep.mubr.f32.mxu0 0.0
        %4654 = vmatmul.mubr.f32.gmra.mrb[0].mxu0 %v4581
        %v4655 = vpop.f32.mrb[0].mxu0
        %v4656 = vadd.f32 0.0, %v4655
        %v4657 = vpop.f32.mrb[0].mxu0
        %4658 = vmatprep.mubr.f32.mxu0 0.0
        %4659 = vmatmul.mubr.f32.gmra.mrb[0].mxu0 %v4584
        %v4660 = vpop.f32.mrb[0].mxu0
        %v4661 = vadd.f32 0.0, %v4660
        %v4662 = vpop.f32.mrb[0].mxu0
        %4663 = vmatprep.mubr.f32.mxu0 0.0
        %4664 = vmatmul.mubr.f32.gmra.mrb[0].mxu0 %v4587
        %v4665 = vpop.f32.mrb[0].mxu0
        %v4666 = vadd.f32 0.0, %v4665
        %v4667 = vpop.f32.mrb[0].mxu0
        %4668 = vdwg.mxu0
        %v4670 = vsel %vm3558, %v4105, 0
        %v4673 = vsel %vm3558, %v4106, 0
        %v4676 = vsel %vm3558, %v4107, 0
        %4678 = vmatprep.subr.mxu0 0.0
        %4679 = vmatpush1.msra.mxu0 %v488
        %4680 = vmatprep.subr.mxu0 0.0
        %4681 = vmatpush1.msra.mxu0 %v489
        %4682 = vmatprep.subr.mxu0 0.0
        %4683 = vmatpush1.msra.mxu0 %v490
        %4684 = vmatprep.subr.mxu0 0.0
        %4685 = vmatpush1.msra.mxu0 0.0
        %4686 = vmatprep.subr.mxu0 0.0
        %4687 = vmatpush1.msra.mxu0 0.0
        %4688 = vmatprep.subr.mxu0 0.0
        %4689 = vmatpush1.msra.mxu0 0.0
        %4690 = vmatprep.subr.mxu0 0.0
        %4691 = vmatpush1.msra.mxu0 0.0
        %4692 = vmatprep.subr.mxu0 0.0
        %4693 = vmatpush1.msra.mxu0 0.0
        %4694 = vmatprep.subr.mxu0 0.0
        %4695 = vmatpush1.msra.mxu0 0.0
        %4696 = vmatprep.subr.mxu0 0.0
        %4697 = vmatpush1.msra.mxu0 0.0
        %4698 = vmatprep.subr.mxu0 0.0
        %4699 = vmatpush1.msra.mxu0 0.0
        %4700 = vmatprep.subr.mxu0 0.0
        %4701 = vmatpush1.msra.mxu0 0.0
        %4702 = vmatprep.subr.mxu0 0.0
        %4703 = vmatpush1.msra.mxu0 0.0
        %4704 = vmatprep.subr.mxu0 0.0
        %4705 = vmatpush1.msra.mxu0 0.0
        %4706 = vmatprep.subr.mxu0 0.0
        %4707 = vmatpush1.msra.mxu0 0.0
        %4708 = vmatprep.subr.mxu0 0.0
        %4709 = vmatpush1.msra.mxu0 0.0
        %4710 = vmatprep.subr.mxu0 0.0
        %4711 = vmatpush1.msra.mxu0 0.0
        %4712 = vmatprep.subr.mxu0 0.0
        %4713 = vmatpush1.msra.mxu0 0.0
        %4714 = vmatprep.subr.mxu0 0.0
        %4715 = vmatpush1.msra.mxu0 0.0
        %4716 = vmatprep.subr.mxu0 0.0
        %4717 = vmatpush1.msra.mxu0 0.0
        %4718 = vmatprep.subr.mxu0 0.0
        %4719 = vmatpush1.msra.mxu0 0.0
        %4720 = vmatprep.subr.mxu0 0.0
        %4721 = vmatpush1.msra.mxu0 0.0
        %4722 = vmatprep.subr.mxu0 0.0
        %4723 = vmatpush1.msra.mxu0 0.0
        %4724 = vmatprep.subr.mxu0 0.0
        %4725 = vmatpush1.msra.mxu0 0.0
        %4726 = vmatprep.subr.mxu0 0.0
        %4727 = vmatpush1.msra.mxu0 0.0
        %4728 = vmatprep.subr.mxu0 0.0
        %4729 = vmatpush1.msra.mxu0 0.0
        %4730 = vmatprep.subr.mxu0 0.0
        %4731 = vmatpush1.msra.mxu0 0.0
        %4732 = vmatprep.subr.mxu0 0.0
        %4733 = vmatpush1.msra.mxu0 0.0
        %4734 = vmatprep.subr.mxu0 0.0
        %4735 = vmatpush1.msra.mxu0 0.0
        %4736 = vmatprep.subr.mxu0 0.0
        %4737 = vmatpush1.msra.mxu0 0.0
        %4738 = vmatprep.subr.mxu0 0.0
        %4739 = vmatpush1.msra.mxu0 0.0
        %4740 = vmatprep.subr.mxu0 0.0
        %4741 = vmatpush1.msra.mxu0 0.0
        %4742 = vmatprep.mubr.f32.mxu0 0.0
        %4743 = vmatmul.mubr.f32.gmra.mrb[0].mxu0 %v4670
        %v4744 = vpop.f32.mrb[0].mxu0
        %v4745 = vadd.f32 0.0, %v4744
        %v4746 = vpop.f32.mrb[0].mxu0
        %4747 = vmatprep.mubr.f32.mxu0 0.0
        %4748 = vmatmul.mubr.f32.gmra.mrb[0].mxu0 %v4673
        %v4749 = vpop.f32.mrb[0].mxu0
        %v4750 = vadd.f32 0.0, %v4749
        %v4751 = vpop.f32.mrb[0].mxu0
        %4752 = vmatprep.mubr.f32.mxu0 0.0
        %4753 = vmatmul.mubr.f32.gmra.mrb[0].mxu0 %v4676
        %v4754 = vpop.f32.mrb[0].mxu0
        %v4755 = vadd.f32 0.0, %v4754
        %v4756 = vpop.f32.mrb[0].mxu0
        %4757 = vdwg.mxu0
        %v4759 = vsel %vm3558, %v4108, 0
        %v4762 = vsel %vm3558, %v4109, 0
        %v4765 = vsel %vm3558, %v4110, 0
        %4767 = vmatprep.subr.mxu0 0.0
        %4768 = vmatpush1.msra.mxu0 %v491
        %4769 = vmatprep.subr.mxu0 0.0
        %4770 = vmatpush1.msra.mxu0 %v492
        %4771 = vmatprep.subr.mxu0 0.0
        %4772 = vmatpush1.msra.mxu0 %v493
        %4773 = vmatprep.subr.mxu0 0.0
        %4774 = vmatpush1.msra.mxu0 0.0
        %4775 = vmatprep.subr.mxu0 0.0
        %4776 = vmatpush1.msra.mxu0 0.0
        %4777 = vmatprep.subr.mxu0 0.0
        %4778 = vmatpush1.msra.mxu0 0.0
        %4779 = vmatprep.subr.mxu0 0.0
        %4780 = vmatpush1.msra.mxu0 0.0
        %4781 = vmatprep.subr.mxu0 0.0
        %4782 = vmatpush1.msra.mxu0 0.0
        %4783 = vmatprep.subr.mxu0 0.0
        %4784 = vmatpush1.msra.mxu0 0.0
        %4785 = vmatprep.subr.mxu0 0.0
        %4786 = vmatpush1.msra.mxu0 0.0
        %4787 = vmatprep.subr.mxu0 0.0
        %4788 = vmatpush1.msra.mxu0 0.0
        %4789 = vmatprep.subr.mxu0 0.0
        %4790 = vmatpush1.msra.mxu0 0.0
        %4791 = vmatprep.subr.mxu0 0.0
        %4792 = vmatpush1.msra.mxu0 0.0
        %4793 = vmatprep.subr.mxu0 0.0
        %4794 = vmatpush1.msra.mxu0 0.0
        %4795 = vmatprep.subr.mxu0 0.0
        %4796 = vmatpush1.msra.mxu0 0.0
        %4797 = vmatprep.subr.mxu0 0.0
        %4798 = vmatpush1.msra.mxu0 0.0
        %4799 = vmatprep.subr.mxu0 0.0
        %4800 = vmatpush1.msra.mxu0 0.0
        %4801 = vmatprep.subr.mxu0 0.0
        %4802 = vmatpush1.msra.mxu0 0.0
        %4803 = vmatprep.subr.mxu0 0.0
        %4804 = vmatpush1.msra.mxu0 0.0
        %4805 = vmatprep.subr.mxu0 0.0
        %4806 = vmatpush1.msra.mxu0 0.0
        %4807 = vmatprep.subr.mxu0 0.0
        %4808 = vmatpush1.msra.mxu0 0.0
        %4809 = vmatprep.subr.mxu0 0.0
        %4810 = vmatpush1.msra.mxu0 0.0
        %4811 = vmatprep.subr.mxu0 0.0
        %4812 = vmatpush1.msra.mxu0 0.0
        %4813 = vmatprep.subr.mxu0 0.0
        %4814 = vmatpush1.msra.mxu0 0.0
        %4815 = vmatprep.subr.mxu0 0.0
        %4816 = vmatpush1.msra.mxu0 0.0
        %4817 = vmatprep.subr.mxu0 0.0
        %4818 = vmatpush1.msra.mxu0 0.0
        %4819 = vmatprep.subr.mxu0 0.0
        %4820 = vmatpush1.msra.mxu0 0.0
        %4821 = vmatprep.subr.mxu0 0.0
        %4822 = vmatpush1.msra.mxu0 0.0
        %4823 = vmatprep.subr.mxu0 0.0
        %4824 = vmatpush1.msra.mxu0 0.0
        %4825 = vmatprep.subr.mxu0 0.0
        %4826 = vmatpush1.msra.mxu0 0.0
        %4827 = vmatprep.subr.mxu0 0.0
        %4828 = vmatpush1.msra.mxu0 0.0
        %4829 = vmatprep.subr.mxu0 0.0
        %4830 = vmatpush1.msra.mxu0 0.0
        %4831 = vmatprep.mubr.f32.mxu0 0.0
        %4832 = vmatmul.mubr.f32.gmra.mrb[0].mxu0 %v4759
        %v4833 = vpop.f32.mrb[0].mxu0
        %v4834 = vadd.f32 0.0, %v4833
        %v4835 = vpop.f32.mrb[0].mxu0
        %4836 = vmatprep.mubr.f32.mxu0 0.0
        %4837 = vmatmul.mubr.f32.gmra.mrb[0].mxu0 %v4762
        %v4838 = vpop.f32.mrb[0].mxu0
        %v4839 = vadd.f32 0.0, %v4838
        %v4840 = vpop.f32.mrb[0].mxu0
        %4841 = vmatprep.mubr.f32.mxu0 0.0
        %4842 = vmatmul.mubr.f32.gmra.mrb[0].mxu0 %v4765
        %v4843 = vpop.f32.mrb[0].mxu0
        %v4844 = vadd.f32 0.0, %v4843
        %v4845 = vpop.f32.mrb[0].mxu0
        %4846 = vdwg.mxu0
        %v4848 = vsel %vm3558, %v4111, 0
        %v4851 = vsel %vm3558, %v4112, 0
        %v4854 = vsel %vm3558, %v4113, 0
        %4856 = vmatprep.subr.mxu0 0.0
        %4857 = vmatpush1.msra.mxu0 %v494
        %4858 = vmatprep.subr.mxu0 0.0
        %4859 = vmatpush1.msra.mxu0 %v495
        %4860 = vmatprep.subr.mxu0 0.0
        %4861 = vmatpush1.msra.mxu0 %v496
        %4862 = vmatprep.subr.mxu0 0.0
        %4863 = vmatpush1.msra.mxu0 0.0
        %4864 = vmatprep.subr.mxu0 0.0
        %4865 = vmatpush1.msra.mxu0 0.0
        %4866 = vmatprep.subr.mxu0 0.0
        %4867 = vmatpush1.msra.mxu0 0.0
        %4868 = vmatprep.subr.mxu0 0.0
        %4869 = vmatpush1.msra.mxu0 0.0
        %4870 = vmatprep.subr.mxu0 0.0
        %4871 = vmatpush1.msra.mxu0 0.0
        %4872 = vmatprep.subr.mxu0 0.0
        %4873 = vmatpush1.msra.mxu0 0.0
        %4874 = vmatprep.subr.mxu0 0.0
        %4875 = vmatpush1.msra.mxu0 0.0
        %4876 = vmatprep.subr.mxu0 0.0
        %4877 = vmatpush1.msra.mxu0 0.0
        %4878 = vmatprep.subr.mxu0 0.0
        %4879 = vmatpush1.msra.mxu0 0.0
        %4880 = vmatprep.subr.mxu0 0.0
        %4881 = vmatpush1.msra.mxu0 0.0
        %4882 = vmatprep.subr.mxu0 0.0
        %4883 = vmatpush1.msra.mxu0 0.0
        %4884 = vmatprep.subr.mxu0 0.0
        %4885 = vmatpush1.msra.mxu0 0.0
        %4886 = vmatprep.subr.mxu0 0.0
        %4887 = vmatpush1.msra.mxu0 0.0
        %4888 = vmatprep.subr.mxu0 0.0
        %4889 = vmatpush1.msra.mxu0 0.0
        %4890 = vmatprep.subr.mxu0 0.0
        %4891 = vmatpush1.msra.mxu0 0.0
        %4892 = vmatprep.subr.mxu0 0.0
        %4893 = vmatpush1.msra.mxu0 0.0
        %4894 = vmatprep.subr.mxu0 0.0
        %4895 = vmatpush1.msra.mxu0 0.0
        %4896 = vmatprep.subr.mxu0 0.0
        %4897 = vmatpush1.msra.mxu0 0.0
        %4898 = vmatprep.subr.mxu0 0.0
        %4899 = vmatpush1.msra.mxu0 0.0
        %4900 = vmatprep.subr.mxu0 0.0
        %4901 = vmatpush1.msra.mxu0 0.0
        %4902 = vmatprep.subr.mxu0 0.0
        %4903 = vmatpush1.msra.mxu0 0.0
        %4904 = vmatprep.subr.mxu0 0.0
        %4905 = vmatpush1.msra.mxu0 0.0
        %4906 = vmatprep.subr.mxu0 0.0
        %4907 = vmatpush1.msra.mxu0 0.0
        %4908 = vmatprep.subr.mxu0 0.0
        %4909 = vmatpush1.msra.mxu0 0.0
        %4910 = vmatprep.subr.mxu0 0.0
        %4911 = vmatpush1.msra.mxu0 0.0
        %4912 = vmatprep.subr.mxu0 0.0
        %4913 = vmatpush1.msra.mxu0 0.0
        %4914 = vmatprep.subr.mxu0 0.0
        %4915 = vmatpush1.msra.mxu0 0.0
        %4916 = vmatprep.subr.mxu0 0.0
        %4917 = vmatpush1.msra.mxu0 0.0
        %4918 = vmatprep.subr.mxu0 0.0
        %4919 = vmatpush1.msra.mxu0 0.0
        %4920 = vmatprep.mubr.f32.mxu0 0.0
        %4921 = vmatmul.mubr.f32.gmra.mrb[0].mxu0 %v4848
        %v4922 = vpop.f32.mrb[0].mxu0
        %v4923 = vadd.f32 0.0, %v4922
        %v4924 = vpop.f32.mrb[0].mxu0
        %4925 = vmatprep.mubr.f32.mxu0 0.0
        %4926 = vmatmul.mubr.f32.gmra.mrb[0].mxu0 %v4851
        %v4927 = vpop.f32.mrb[0].mxu0
        %v4928 = vadd.f32 0.0, %v4927
        %v4929 = vpop.f32.mrb[0].mxu0
        %4930 = vmatprep.mubr.f32.mxu0 0.0
        %4931 = vmatmul.mubr.f32.gmra.mrb[0].mxu0 %v4854
        %v4932 = vpop.f32.mrb[0].mxu0
        %v4933 = vadd.f32 0.0, %v4932
        %v4934 = vpop.f32.mrb[0].mxu0
        %4935 = vdwg.mxu0
        %v4937 = vsel %vm3558, %v4114, 0
        %v4940 = vsel %vm3558, %v4115, 0
        %v4943 = vsel %vm3558, %v4116, 0
        %4945 = vmatprep.subr.mxu0 0.0
        %4946 = vmatpush1.msra.mxu0 %v497
        %4947 = vmatprep.subr.mxu0 0.0
        %4948 = vmatpush1.msra.mxu0 %v498
        %4949 = vmatprep.subr.mxu0 0.0
        %4950 = vmatpush1.msra.mxu0 %v499
        %4951 = vmatprep.subr.mxu0 0.0
        %4952 = vmatpush1.msra.mxu0 0.0
        %4953 = vmatprep.subr.mxu0 0.0
        %4954 = vmatpush1.msra.mxu0 0.0
        %4955 = vmatprep.subr.mxu0 0.0
        %4956 = vmatpush1.msra.mxu0 0.0
        %4957 = vmatprep.subr.mxu0 0.0
        %4958 = vmatpush1.msra.mxu0 0.0
        %4959 = vmatprep.subr.mxu0 0.0
        %4960 = vmatpush1.msra.mxu0 0.0
        %4961 = vmatprep.subr.mxu0 0.0
        %4962 = vmatpush1.msra.mxu0 0.0
        %4963 = vmatprep.subr.mxu0 0.0
        %4964 = vmatpush1.msra.mxu0 0.0
        %4965 = vmatprep.subr.mxu0 0.0
        %4966 = vmatpush1.msra.mxu0 0.0
        %4967 = vmatprep.subr.mxu0 0.0
        %4968 = vmatpush1.msra.mxu0 0.0
        %4969 = vmatprep.subr.mxu0 0.0
        %4970 = vmatpush1.msra.mxu0 0.0
        %4971 = vmatprep.subr.mxu0 0.0
        %4972 = vmatpush1.msra.mxu0 0.0
        %4973 = vmatprep.subr.mxu0 0.0
        %4974 = vmatpush1.msra.mxu0 0.0
        %4975 = vmatprep.subr.mxu0 0.0
        %4976 = vmatpush1.msra.mxu0 0.0
        %4977 = vmatprep.subr.mxu0 0.0
        %4978 = vmatpush1.msra.mxu0 0.0
        %4979 = vmatprep.subr.mxu0 0.0
        %4980 = vmatpush1.msra.mxu0 0.0
        %4981 = vmatprep.subr.mxu0 0.0
        %4982 = vmatpush1.msra.mxu0 0.0
        %4983 = vmatprep.subr.mxu0 0.0
        %4984 = vmatpush1.msra.mxu0 0.0
        %4985 = vmatprep.subr.mxu0 0.0
        %4986 = vmatpush1.msra.mxu0 0.0
        %4987 = vmatprep.subr.mxu0 0.0
        %4988 = vmatpush1.msra.mxu0 0.0
        %4989 = vmatprep.subr.mxu0 0.0
        %4990 = vmatpush1.msra.mxu0 0.0
        %4991 = vmatprep.subr.mxu0 0.0
        %4992 = vmatpush1.msra.mxu0 0.0
        %4993 = vmatprep.subr.mxu0 0.0
        %4994 = vmatpush1.msra.mxu0 0.0
        %4995 = vmatprep.subr.mxu0 0.0
        %4996 = vmatpush1.msra.mxu0 0.0
        %4997 = vmatprep.subr.mxu0 0.0
        %4998 = vmatpush1.msra.mxu0 0.0
        %4999 = vmatprep.subr.mxu0 0.0
        %5000 = vmatpush1.msra.mxu0 0.0
        %5001 = vmatprep.subr.mxu0 0.0
        %5002 = vmatpush1.msra.mxu0 0.0
        %5003 = vmatprep.subr.mxu0 0.0
        %5004 = vmatpush1.msra.mxu0 0.0
        %5005 = vmatprep.subr.mxu0 0.0
        %5006 = vmatpush1.msra.mxu0 0.0
        %5007 = vmatprep.subr.mxu0 0.0
        %5008 = vmatpush1.msra.mxu0 0.0
        %5009 = vmatprep.mubr.f32.mxu0 0.0
        %5010 = vmatmul.mubr.f32.gmra.mrb[0].mxu0 %v4937
        %v5011 = vpop.f32.mrb[0].mxu0
        %v5012 = vadd.f32 0.0, %v5011
        %v5013 = vpop.f32.mrb[0].mxu0
        %5014 = vmatprep.mubr.f32.mxu0 0.0
        %5015 = vmatmul.mubr.f32.gmra.mrb[0].mxu0 %v4940
        %v5016 = vpop.f32.mrb[0].mxu0
        %v5017 = vadd.f32 0.0, %v5016
        %v5018 = vpop.f32.mrb[0].mxu0
        %5019 = vmatprep.mubr.f32.mxu0 0.0
        %5020 = vmatmul.mubr.f32.gmra.mrb[0].mxu0 %v4943
        %v5021 = vpop.f32.mrb[0].mxu0
        %v5022 = vadd.f32 0.0, %v5021
        %v5023 = vpop.f32.mrb[0].mxu0
        %5024 = vdwg.mxu0
        %v5026 = vsel %vm3558, %v4117, 0
        %v5029 = vsel %vm3558, %v4118, 0
        %v5032 = vsel %vm3558, %v4119, 0
        %5034 = vmatprep.subr.mxu0 0.0
        %5035 = vmatpush1.msra.mxu0 %v500
        %5036 = vmatprep.subr.mxu0 0.0
        %5037 = vmatpush1.msra.mxu0 %v501
        %5038 = vmatprep.subr.mxu0 0.0
        %5039 = vmatpush1.msra.mxu0 %v502
        %5040 = vmatprep.subr.mxu0 0.0
        %5041 = vmatpush1.msra.mxu0 0.0
        %5042 = vmatprep.subr.mxu0 0.0
        %5043 = vmatpush1.msra.mxu0 0.0
        %5044 = vmatprep.subr.mxu0 0.0
        %5045 = vmatpush1.msra.mxu0 0.0
        %5046 = vmatprep.subr.mxu0 0.0
        %5047 = vmatpush1.msra.mxu0 0.0
        %5048 = vmatprep.subr.mxu0 0.0
        %5049 = vmatpush1.msra.mxu0 0.0
        %5050 = vmatprep.subr.mxu0 0.0
        %5051 = vmatpush1.msra.mxu0 0.0
        %5052 = vmatprep.subr.mxu0 0.0
        %5053 = vmatpush1.msra.mxu0 0.0
        %5054 = vmatprep.subr.mxu0 0.0
        %5055 = vmatpush1.msra.mxu0 0.0
        %5056 = vmatprep.subr.mxu0 0.0
        %5057 = vmatpush1.msra.mxu0 0.0
        %5058 = vmatprep.subr.mxu0 0.0
        %5059 = vmatpush1.msra.mxu0 0.0
        %5060 = vmatprep.subr.mxu0 0.0
        %5061 = vmatpush1.msra.mxu0 0.0
        %5062 = vmatprep.subr.mxu0 0.0
        %5063 = vmatpush1.msra.mxu0 0.0
        %5064 = vmatprep.subr.mxu0 0.0
        %5065 = vmatpush1.msra.mxu0 0.0
        %5066 = vmatprep.subr.mxu0 0.0
        %5067 = vmatpush1.msra.mxu0 0.0
        %5068 = vmatprep.subr.mxu0 0.0
        %5069 = vmatpush1.msra.mxu0 0.0
        %5070 = vmatprep.subr.mxu0 0.0
        %5071 = vmatpush1.msra.mxu0 0.0
        %5072 = vmatprep.subr.mxu0 0.0
        %5073 = vmatpush1.msra.mxu0 0.0
        %5074 = vmatprep.subr.mxu0 0.0
        %5075 = vmatpush1.msra.mxu0 0.0
        %5076 = vmatprep.subr.mxu0 0.0
        %5077 = vmatpush1.msra.mxu0 0.0
        %5078 = vmatprep.subr.mxu0 0.0
        %5079 = vmatpush1.msra.mxu0 0.0
        %5080 = vmatprep.subr.mxu0 0.0
        %5081 = vmatpush1.msra.mxu0 0.0
        %5082 = vmatprep.subr.mxu0 0.0
        %5083 = vmatpush1.msra.mxu0 0.0
        %5084 = vmatprep.subr.mxu0 0.0
        %5085 = vmatpush1.msra.mxu0 0.0
        %5086 = vmatprep.subr.mxu0 0.0
        %5087 = vmatpush1.msra.mxu0 0.0
        %5088 = vmatprep.subr.mxu0 0.0
        %5089 = vmatpush1.msra.mxu0 0.0
        %5090 = vmatprep.subr.mxu0 0.0
        %5091 = vmatpush1.msra.mxu0 0.0
        %5092 = vmatprep.subr.mxu0 0.0
        %5093 = vmatpush1.msra.mxu0 0.0
        %5094 = vmatprep.subr.mxu0 0.0
        %5095 = vmatpush1.msra.mxu0 0.0
        %5096 = vmatprep.subr.mxu0 0.0
        %5097 = vmatpush1.msra.mxu0 0.0
        %5098 = vmatprep.mubr.f32.mxu0 0.0
        %5099 = vmatmul.mubr.f32.gmra.mrb[0].mxu0 %v5026
        %v5100 = vpop.f32.mrb[0].mxu0
        %v5101 = vadd.f32 0.0, %v5100
        %v5102 = vpop.f32.mrb[0].mxu0
        %5103 = vmatprep.mubr.f32.mxu0 0.0
        %5104 = vmatmul.mubr.f32.gmra.mrb[0].mxu0 %v5029
        %v5105 = vpop.f32.mrb[0].mxu0
        %v5106 = vadd.f32 0.0, %v5105
        %v5107 = vpop.f32.mrb[0].mxu0
        %5108 = vmatprep.mubr.f32.mxu0 0.0
        %5109 = vmatmul.mubr.f32.gmra.mrb[0].mxu0 %v5032
        %v5110 = vpop.f32.mrb[0].mxu0
        %v5111 = vadd.f32 0.0, %v5110
        %v5112 = vpop.f32.mrb[0].mxu0
        %5113 = vdwg.mxu0
        %v5115 = vsel %vm3558, %v4120, 0
        %v5118 = vsel %vm3558, %v4121, 0
        %v5121 = vsel %vm3558, %v4122, 0
        %5123 = vmatprep.subr.mxu0 0.0
        %5124 = vmatpush1.msra.mxu0 %v503
        %5125 = vmatprep.subr.mxu0 0.0
        %5126 = vmatpush1.msra.mxu0 %v504
        %5127 = vmatprep.subr.mxu0 0.0
        %5128 = vmatpush1.msra.mxu0 %v505
        %5129 = vmatprep.subr.mxu0 0.0
        %5130 = vmatpush1.msra.mxu0 0.0
        %5131 = vmatprep.subr.mxu0 0.0
        %5132 = vmatpush1.msra.mxu0 0.0
        %5133 = vmatprep.subr.mxu0 0.0
        %5134 = vmatpush1.msra.mxu0 0.0
        %5135 = vmatprep.subr.mxu0 0.0
        %5136 = vmatpush1.msra.mxu0 0.0
        %5137 = vmatprep.subr.mxu0 0.0
        %5138 = vmatpush1.msra.mxu0 0.0
        %5139 = vmatprep.subr.mxu0 0.0
        %5140 = vmatpush1.msra.mxu0 0.0
        %5141 = vmatprep.subr.mxu0 0.0
        %5142 = vmatpush1.msra.mxu0 0.0
        %5143 = vmatprep.subr.mxu0 0.0
        %5144 = vmatpush1.msra.mxu0 0.0
        %5145 = vmatprep.subr.mxu0 0.0
        %5146 = vmatpush1.msra.mxu0 0.0
        %5147 = vmatprep.subr.mxu0 0.0
        %5148 = vmatpush1.msra.mxu0 0.0
        %5149 = vmatprep.subr.mxu0 0.0
        %5150 = vmatpush1.msra.mxu0 0.0
        %5151 = vmatprep.subr.mxu0 0.0
        %5152 = vmatpush1.msra.mxu0 0.0
        %5153 = vmatprep.subr.mxu0 0.0
        %5154 = vmatpush1.msra.mxu0 0.0
        %5155 = vmatprep.subr.mxu0 0.0
        %5156 = vmatpush1.msra.mxu0 0.0
        %5157 = vmatprep.subr.mxu0 0.0
        %5158 = vmatpush1.msra.mxu0 0.0
        %5159 = vmatprep.subr.mxu0 0.0
        %5160 = vmatpush1.msra.mxu0 0.0
        %5161 = vmatprep.subr.mxu0 0.0
        %5162 = vmatpush1.msra.mxu0 0.0
        %5163 = vmatprep.subr.mxu0 0.0
        %5164 = vmatpush1.msra.mxu0 0.0
        %5165 = vmatprep.subr.mxu0 0.0
        %5166 = vmatpush1.msra.mxu0 0.0
        %5167 = vmatprep.subr.mxu0 0.0
        %5168 = vmatpush1.msra.mxu0 0.0
        %5169 = vmatprep.subr.mxu0 0.0
        %5170 = vmatpush1.msra.mxu0 0.0
        %5171 = vmatprep.subr.mxu0 0.0
        %5172 = vmatpush1.msra.mxu0 0.0
        %5173 = vmatprep.subr.mxu0 0.0
        %5174 = vmatpush1.msra.mxu0 0.0
        %5175 = vmatprep.subr.mxu0 0.0
        %5176 = vmatpush1.msra.mxu0 0.0
        %5177 = vmatprep.subr.mxu0 0.0
        %5178 = vmatpush1.msra.mxu0 0.0
        %5179 = vmatprep.subr.mxu0 0.0
        %5180 = vmatpush1.msra.mxu0 0.0
        %5181 = vmatprep.subr.mxu0 0.0
        %5182 = vmatpush1.msra.mxu0 0.0
        %5183 = vmatprep.subr.mxu0 0.0
        %5184 = vmatpush1.msra.mxu0 0.0
        %5185 = vmatprep.subr.mxu0 0.0
        %5186 = vmatpush1.msra.mxu0 0.0
        %5187 = vmatprep.mubr.f32.mxu0 0.0
        %5188 = vmatmul.mubr.f32.gmra.mrb[0].mxu0 %v5115
        %v5189 = vpop.f32.mrb[0].mxu0
        %v5190 = vadd.f32 0.0, %v5189
        %v5191 = vpop.f32.mrb[0].mxu0
        %5192 = vmatprep.mubr.f32.mxu0 0.0
        %5193 = vmatmul.mubr.f32.gmra.mrb[0].mxu0 %v5118
        %v5194 = vpop.f32.mrb[0].mxu0
        %v5195 = vadd.f32 0.0, %v5194
        %v5196 = vpop.f32.mrb[0].mxu0
        %5197 = vmatprep.mubr.f32.mxu0 0.0
        %5198 = vmatmul.mubr.f32.gmra.mrb[0].mxu0 %v5121
        %v5199 = vpop.f32.mrb[0].mxu0
        %v5200 = vadd.f32 0.0, %v5199
        %v5201 = vpop.f32.mrb[0].mxu0
        %5202 = vdwg.mxu0
        %v5204 = vsel %vm3558, %v4123, 0
        %v5207 = vsel %vm3558, %v4124, 0
        %v5210 = vsel %vm3558, %v4125, 0
        %5212 = vmatprep.subr.mxu0 0.0
        %5213 = vmatpush1.msra.mxu0 %v506
        %5214 = vmatprep.subr.mxu0 0.0
        %5215 = vmatpush1.msra.mxu0 %v507
        %5216 = vmatprep.subr.mxu0 0.0
        %5217 = vmatpush1.msra.mxu0 %v508
        %5218 = vmatprep.subr.mxu0 0.0
        %5219 = vmatpush1.msra.mxu0 0.0
        %5220 = vmatprep.subr.mxu0 0.0
        %5221 = vmatpush1.msra.mxu0 0.0
        %5222 = vmatprep.subr.mxu0 0.0
        %5223 = vmatpush1.msra.mxu0 0.0
        %5224 = vmatprep.subr.mxu0 0.0
        %5225 = vmatpush1.msra.mxu0 0.0
        %5226 = vmatprep.subr.mxu0 0.0
        %5227 = vmatpush1.msra.mxu0 0.0
        %5228 = vmatprep.subr.mxu0 0.0
        %5229 = vmatpush1.msra.mxu0 0.0
        %5230 = vmatprep.subr.mxu0 0.0
        %5231 = vmatpush1.msra.mxu0 0.0
        %5232 = vmatprep.subr.mxu0 0.0
        %5233 = vmatpush1.msra.mxu0 0.0
        %5234 = vmatprep.subr.mxu0 0.0
        %5235 = vmatpush1.msra.mxu0 0.0
        %5236 = vmatprep.subr.mxu0 0.0
        %5237 = vmatpush1.msra.mxu0 0.0
        %5238 = vmatprep.subr.mxu0 0.0
        %5239 = vmatpush1.msra.mxu0 0.0
        %5240 = vmatprep.subr.mxu0 0.0
        %5241 = vmatpush1.msra.mxu0 0.0
        %5242 = vmatprep.subr.mxu0 0.0
        %5243 = vmatpush1.msra.mxu0 0.0
        %5244 = vmatprep.subr.mxu0 0.0
        %5245 = vmatpush1.msra.mxu0 0.0
        %5246 = vmatprep.subr.mxu0 0.0
        %5247 = vmatpush1.msra.mxu0 0.0
        %5248 = vmatprep.subr.mxu0 0.0
        %5249 = vmatpush1.msra.mxu0 0.0
        %5250 = vmatprep.subr.mxu0 0.0
        %5251 = vmatpush1.msra.mxu0 0.0
        %5252 = vmatprep.subr.mxu0 0.0
        %5253 = vmatpush1.msra.mxu0 0.0
        %5254 = vmatprep.subr.mxu0 0.0
        %5255 = vmatpush1.msra.mxu0 0.0
        %5256 = vmatprep.subr.mxu0 0.0
        %5257 = vmatpush1.msra.mxu0 0.0
        %5258 = vmatprep.subr.mxu0 0.0
        %5259 = vmatpush1.msra.mxu0 0.0
        %5260 = vmatprep.subr.mxu0 0.0
        %5261 = vmatpush1.msra.mxu0 0.0
        %5262 = vmatprep.subr.mxu0 0.0
        %5263 = vmatpush1.msra.mxu0 0.0
        %5264 = vmatprep.subr.mxu0 0.0
        %5265 = vmatpush1.msra.mxu0 0.0
        %5266 = vmatprep.subr.mxu0 0.0
        %5267 = vmatpush1.msra.mxu0 0.0
        %5268 = vmatprep.subr.mxu0 0.0
        %5269 = vmatpush1.msra.mxu0 0.0
        %5270 = vmatprep.subr.mxu0 0.0
        %5271 = vmatpush1.msra.mxu0 0.0
        %5272 = vmatprep.subr.mxu0 0.0
        %5273 = vmatpush1.msra.mxu0 0.0
        %5274 = vmatprep.subr.mxu0 0.0
        %5275 = vmatpush1.msra.mxu0 0.0
        %5276 = vmatprep.mubr.f32.mxu0 0.0
        %5277 = vmatmul.mubr.f32.gmra.mrb[0].mxu0 %v5204
        %v5278 = vpop.f32.mrb[0].mxu0
        %v5279 = vadd.f32 0.0, %v5278
        %v5280 = vpop.f32.mrb[0].mxu0
        %5281 = vmatprep.mubr.f32.mxu0 0.0
        %5282 = vmatmul.mubr.f32.gmra.mrb[0].mxu0 %v5207
        %v5283 = vpop.f32.mrb[0].mxu0
        %v5284 = vadd.f32 0.0, %v5283
        %v5285 = vpop.f32.mrb[0].mxu0
        %5286 = vmatprep.mubr.f32.mxu0 0.0
        %5287 = vmatmul.mubr.f32.gmra.mrb[0].mxu0 %v5210
        %v5288 = vpop.f32.mrb[0].mxu0
        %v5289 = vadd.f32 0.0, %v5288
        %v5290 = vpop.f32.mrb[0].mxu0
        %5291 = vdwg.mxu0
        %v5293 = vsel %vm3558, %v4126, 0
        %v5296 = vsel %vm3558, %v4127, 0
        %v5299 = vsel %vm3558, %v4128, 0
        %5301 = vmatprep.subr.mxu0 0.0
        %5302 = vmatpush1.msra.mxu0 %v509
        %5303 = vmatprep.subr.mxu0 0.0
        %5304 = vmatpush1.msra.mxu0 %v510
        %5305 = vmatprep.subr.mxu0 0.0
        %5306 = vmatpush1.msra.mxu0 %v511
        %5307 = vmatprep.subr.mxu0 0.0
        %5308 = vmatpush1.msra.mxu0 0.0
        %5309 = vmatprep.subr.mxu0 0.0
        %5310 = vmatpush1.msra.mxu0 0.0
        %5311 = vmatprep.subr.mxu0 0.0
        %5312 = vmatpush1.msra.mxu0 0.0
        %5313 = vmatprep.subr.mxu0 0.0
        %5314 = vmatpush1.msra.mxu0 0.0
        %5315 = vmatprep.subr.mxu0 0.0
        %5316 = vmatpush1.msra.mxu0 0.0
        %5317 = vmatprep.subr.mxu0 0.0
        %5318 = vmatpush1.msra.mxu0 0.0
        %5319 = vmatprep.subr.mxu0 0.0
        %5320 = vmatpush1.msra.mxu0 0.0
        %5321 = vmatprep.subr.mxu0 0.0
        %5322 = vmatpush1.msra.mxu0 0.0
        %5323 = vmatprep.subr.mxu0 0.0
        %5324 = vmatpush1.msra.mxu0 0.0
        %5325 = vmatprep.subr.mxu0 0.0
        %5326 = vmatpush1.msra.mxu0 0.0
        %5327 = vmatprep.subr.mxu0 0.0
        %5328 = vmatpush1.msra.mxu0 0.0
        %5329 = vmatprep.subr.mxu0 0.0
        %5330 = vmatpush1.msra.mxu0 0.0
        %5331 = vmatprep.subr.mxu0 0.0
        %5332 = vmatpush1.msra.mxu0 0.0
        %5333 = vmatprep.subr.mxu0 0.0
        %5334 = vmatpush1.msra.mxu0 0.0
        %5335 = vmatprep.subr.mxu0 0.0
        %5336 = vmatpush1.msra.mxu0 0.0
        %5337 = vmatprep.subr.mxu0 0.0
        %5338 = vmatpush1.msra.mxu0 0.0
        %5339 = vmatprep.subr.mxu0 0.0
        %5340 = vmatpush1.msra.mxu0 0.0
        %5341 = vmatprep.subr.mxu0 0.0
        %5342 = vmatpush1.msra.mxu0 0.0
        %5343 = vmatprep.subr.mxu0 0.0
        %5344 = vmatpush1.msra.mxu0 0.0
        %5345 = vmatprep.subr.mxu0 0.0
        %5346 = vmatpush1.msra.mxu0 0.0
        %5347 = vmatprep.subr.mxu0 0.0
        %5348 = vmatpush1.msra.mxu0 0.0
        %5349 = vmatprep.subr.mxu0 0.0
        %5350 = vmatpush1.msra.mxu0 0.0
        %5351 = vmatprep.subr.mxu0 0.0
        %5352 = vmatpush1.msra.mxu0 0.0
        %5353 = vmatprep.subr.mxu0 0.0
        %5354 = vmatpush1.msra.mxu0 0.0
        %5355 = vmatprep.subr.mxu0 0.0
        %5356 = vmatpush1.msra.mxu0 0.0
        %5357 = vmatprep.subr.mxu0 0.0
        %5358 = vmatpush1.msra.mxu0 0.0
        %5359 = vmatprep.subr.mxu0 0.0
        %5360 = vmatpush1.msra.mxu0 0.0
        %5361 = vmatprep.subr.mxu0 0.0
        %5362 = vmatpush1.msra.mxu0 0.0
        %5363 = vmatprep.subr.mxu0 0.0
        %5364 = vmatpush1.msra.mxu0 0.0
        %5365 = vmatprep.mubr.f32.mxu0 0.0
        %5366 = vmatmul.mubr.f32.gmra.mrb[0].mxu0 %v5293
        %v5367 = vpop.f32.mrb[0].mxu0
        %v5368 = vadd.f32 0.0, %v5367
        %v5369 = vpop.f32.mrb[0].mxu0
        %5370 = vmatprep.mubr.f32.mxu0 0.0
        %5371 = vmatmul.mubr.f32.gmra.mrb[0].mxu0 %v5296
        %v5372 = vpop.f32.mrb[0].mxu0
        %v5373 = vadd.f32 0.0, %v5372
        %v5374 = vpop.f32.mrb[0].mxu0
        %5375 = vmatprep.mubr.f32.mxu0 0.0
        %5376 = vmatmul.mubr.f32.gmra.mrb[0].mxu0 %v5299
        %v5377 = vpop.f32.mrb[0].mxu0
        %v5378 = vadd.f32 0.0, %v5377
        %v5379 = vpop.f32.mrb[0].mxu0
        %5380 = vdwg.mxu0
        %v5382 = vsel %vm3558, %v4129, 0
        %v5385 = vsel %vm3558, %v4130, 0
        %v5388 = vsel %vm3558, %v4131, 0
        %5390 = vmatprep.subr.mxu0 0.0
        %5391 = vmatpush1.msra.mxu0 %v512
        %5392 = vmatprep.subr.mxu0 0.0
        %5393 = vmatpush1.msra.mxu0 %v513
        %5394 = vmatprep.subr.mxu0 0.0
        %5395 = vmatpush1.msra.mxu0 %v514
        %5396 = vmatprep.subr.mxu0 0.0
        %5397 = vmatpush1.msra.mxu0 0.0
        %5398 = vmatprep.subr.mxu0 0.0
        %5399 = vmatpush1.msra.mxu0 0.0
        %5400 = vmatprep.subr.mxu0 0.0
        %5401 = vmatpush1.msra.mxu0 0.0
        %5402 = vmatprep.subr.mxu0 0.0
        %5403 = vmatpush1.msra.mxu0 0.0
        %5404 = vmatprep.subr.mxu0 0.0
        %5405 = vmatpush1.msra.mxu0 0.0
        %5406 = vmatprep.subr.mxu0 0.0
        %5407 = vmatpush1.msra.mxu0 0.0
        %5408 = vmatprep.subr.mxu0 0.0
        %5409 = vmatpush1.msra.mxu0 0.0
        %5410 = vmatprep.subr.mxu0 0.0
        %5411 = vmatpush1.msra.mxu0 0.0
        %5412 = vmatprep.subr.mxu0 0.0
        %5413 = vmatpush1.msra.mxu0 0.0
        %5414 = vmatprep.subr.mxu0 0.0
        %5415 = vmatpush1.msra.mxu0 0.0
        %5416 = vmatprep.subr.mxu0 0.0
        %5417 = vmatpush1.msra.mxu0 0.0
        %5418 = vmatprep.subr.mxu0 0.0
        %5419 = vmatpush1.msra.mxu0 0.0
        %5420 = vmatprep.subr.mxu0 0.0
        %5421 = vmatpush1.msra.mxu0 0.0
        %5422 = vmatprep.subr.mxu0 0.0
        %5423 = vmatpush1.msra.mxu0 0.0
        %5424 = vmatprep.subr.mxu0 0.0
        %5425 = vmatpush1.msra.mxu0 0.0
        %5426 = vmatprep.subr.mxu0 0.0
        %5427 = vmatpush1.msra.mxu0 0.0
        %5428 = vmatprep.subr.mxu0 0.0
        %5429 = vmatpush1.msra.mxu0 0.0
        %5430 = vmatprep.subr.mxu0 0.0
        %5431 = vmatpush1.msra.mxu0 0.0
        %5432 = vmatprep.subr.mxu0 0.0
        %5433 = vmatpush1.msra.mxu0 0.0
        %5434 = vmatprep.subr.mxu0 0.0
        %5435 = vmatpush1.msra.mxu0 0.0
        %5436 = vmatprep.subr.mxu0 0.0
        %5437 = vmatpush1.msra.mxu0 0.0
        %5438 = vmatprep.subr.mxu0 0.0
        %5439 = vmatpush1.msra.mxu0 0.0
        %5440 = vmatprep.subr.mxu0 0.0
        %5441 = vmatpush1.msra.mxu0 0.0
        %5442 = vmatprep.subr.mxu0 0.0
        %5443 = vmatpush1.msra.mxu0 0.0
        %5444 = vmatprep.subr.mxu0 0.0
        %5445 = vmatpush1.msra.mxu0 0.0
        %5446 = vmatprep.subr.mxu0 0.0
        %5447 = vmatpush1.msra.mxu0 0.0
        %5448 = vmatprep.subr.mxu0 0.0
        %5449 = vmatpush1.msra.mxu0 0.0
        %5450 = vmatprep.subr.mxu0 0.0
        %5451 = vmatpush1.msra.mxu0 0.0
        %5452 = vmatprep.subr.mxu0 0.0
        %5453 = vmatpush1.msra.mxu0 0.0
        %5454 = vmatprep.mubr.f32.mxu0 0.0
        %5455 = vmatmul.mubr.f32.gmra.mrb[0].mxu0 %v5382
        %v5456 = vpop.f32.mrb[0].mxu0
        %v5457 = vadd.f32 0.0, %v5456
        %v5458 = vpop.f32.mrb[0].mxu0
        %5459 = vmatprep.mubr.f32.mxu0 0.0
        %5460 = vmatmul.mubr.f32.gmra.mrb[0].mxu0 %v5385
        %v5461 = vpop.f32.mrb[0].mxu0
        %v5462 = vadd.f32 0.0, %v5461
        %v5463 = vpop.f32.mrb[0].mxu0
        %5464 = vmatprep.mubr.f32.mxu0 0.0
        %5465 = vmatmul.mubr.f32.gmra.mrb[0].mxu0 %v5388
        %v5466 = vpop.f32.mrb[0].mxu0
        %v5467 = vadd.f32 0.0, %v5466
        %v5468 = vpop.f32.mrb[0].mxu0
        %5469 = vdwg.mxu0
        %v5471 = vsel %vm3558, %v4132, 0
        %v5474 = vsel %vm3558, %v4133, 0
        %v5477 = vsel %vm3558, %v4134, 0
        %5479 = vmatprep.subr.mxu0 0.0
        %5480 = vmatpush1.msra.mxu0 %v515
        %5481 = vmatprep.subr.mxu0 0.0
        %5482 = vmatpush1.msra.mxu0 %v516
        %5483 = vmatprep.subr.mxu0 0.0
        %5484 = vmatpush1.msra.mxu0 %v517
        %5485 = vmatprep.subr.mxu0 0.0
        %5486 = vmatpush1.msra.mxu0 0.0
        %5487 = vmatprep.subr.mxu0 0.0
        %5488 = vmatpush1.msra.mxu0 0.0
        %5489 = vmatprep.subr.mxu0 0.0
        %5490 = vmatpush1.msra.mxu0 0.0
        %5491 = vmatprep.subr.mxu0 0.0
        %5492 = vmatpush1.msra.mxu0 0.0
        %5493 = vmatprep.subr.mxu0 0.0
        %5494 = vmatpush1.msra.mxu0 0.0
        %5495 = vmatprep.subr.mxu0 0.0
        %5496 = vmatpush1.msra.mxu0 0.0
        %5497 = vmatprep.subr.mxu0 0.0
        %5498 = vmatpush1.msra.mxu0 0.0
        %5499 = vmatprep.subr.mxu0 0.0
        %5500 = vmatpush1.msra.mxu0 0.0
        %5501 = vmatprep.subr.mxu0 0.0
        %5502 = vmatpush1.msra.mxu0 0.0
        %5503 = vmatprep.subr.mxu0 0.0
        %5504 = vmatpush1.msra.mxu0 0.0
        %5505 = vmatprep.subr.mxu0 0.0
        %5506 = vmatpush1.msra.mxu0 0.0
        %5507 = vmatprep.subr.mxu0 0.0
        %5508 = vmatpush1.msra.mxu0 0.0
        %5509 = vmatprep.subr.mxu0 0.0
        %5510 = vmatpush1.msra.mxu0 0.0
        %5511 = vmatprep.subr.mxu0 0.0
        %5512 = vmatpush1.msra.mxu0 0.0
        %5513 = vmatprep.subr.mxu0 0.0
        %5514 = vmatpush1.msra.mxu0 0.0
        %5515 = vmatprep.subr.mxu0 0.0
        %5516 = vmatpush1.msra.mxu0 0.0
        %5517 = vmatprep.subr.mxu0 0.0
        %5518 = vmatpush1.msra.mxu0 0.0
        %5519 = vmatprep.subr.mxu0 0.0
        %5520 = vmatpush1.msra.mxu0 0.0
        %5521 = vmatprep.subr.mxu0 0.0
        %5522 = vmatpush1.msra.mxu0 0.0
        %5523 = vmatprep.subr.mxu0 0.0
        %5524 = vmatpush1.msra.mxu0 0.0
        %5525 = vmatprep.subr.mxu0 0.0
        %5526 = vmatpush1.msra.mxu0 0.0
        %5527 = vmatprep.subr.mxu0 0.0
        %5528 = vmatpush1.msra.mxu0 0.0
        %5529 = vmatprep.subr.mxu0 0.0
        %5530 = vmatpush1.msra.mxu0 0.0
        %5531 = vmatprep.subr.mxu0 0.0
        %5532 = vmatpush1.msra.mxu0 0.0
        %5533 = vmatprep.subr.mxu0 0.0
        %5534 = vmatpush1.msra.mxu0 0.0
        %5535 = vmatprep.subr.mxu0 0.0
        %5536 = vmatpush1.msra.mxu0 0.0
        %5537 = vmatprep.subr.mxu0 0.0
        %5538 = vmatpush1.msra.mxu0 0.0
        %5539 = vmatprep.subr.mxu0 0.0
        %5540 = vmatpush1.msra.mxu0 0.0
        %5541 = vmatprep.subr.mxu0 0.0
        %5542 = vmatpush1.msra.mxu0 0.0
        %5543 = vmatprep.mubr.f32.mxu0 0.0
        %5544 = vmatmul.mubr.f32.gmra.mrb[0].mxu0 %v5471
        %v5545 = vpop.f32.mrb[0].mxu0
        %v5546 = vadd.f32 0.0, %v5545
        %v5547 = vpop.f32.mrb[0].mxu0
        %5548 = vmatprep.mubr.f32.mxu0 0.0
        %5549 = vmatmul.mubr.f32.gmra.mrb[0].mxu0 %v5474
        %v5550 = vpop.f32.mrb[0].mxu0
        %v5551 = vadd.f32 0.0, %v5550
        %v5552 = vpop.f32.mrb[0].mxu0
        %5553 = vmatprep.mubr.f32.mxu0 0.0
        %5554 = vmatmul.mubr.f32.gmra.mrb[0].mxu0 %v5477
        %v5555 = vpop.f32.mrb[0].mxu0
        %v5556 = vadd.f32 0.0, %v5555
        %v5557 = vpop.f32.mrb[0].mxu0
        %5558 = vdwg.mxu0
        %5559 = vmatprep.subr.mxu0 0.0
        %5560 = vmatpush1.msra.mxu0 %v630
        %5561 = vmatprep.subr.mxu0 0.0
        %5562 = vmatpush1.msra.mxu0 %v631
        %5563 = vmatprep.subr.mxu0 0.0
        %5564 = vmatpush1.msra.mxu0 %v632
        %5565 = vmatprep.subr.mxu0 0.0
        %5566 = vmatpush1.msra.mxu0 %v633
        %5567 = vmatprep.subr.mxu0 0.0
        %5568 = vmatpush1.msra.mxu0 %v634
        %5569 = vmatprep.subr.mxu0 0.0
        %5570 = vmatpush1.msra.mxu0 %v635
        %5571 = vmatprep.subr.mxu0 0.0
        %5572 = vmatpush1.msra.mxu0 %v636
        %5573 = vmatprep.subr.mxu0 0.0
        %5574 = vmatpush1.msra.mxu0 %v637
        %5575 = vmatprep.subr.mxu0 0.0
        %5576 = vmatpush1.msra.mxu0 %v638
        %5577 = vmatprep.subr.mxu0 0.0
        %5578 = vmatpush1.msra.mxu0 %v639
        %5579 = vmatprep.subr.mxu0 0.0
        %5580 = vmatpush1.msra.mxu0 %v640
        %5581 = vmatprep.subr.mxu0 0.0
        %5582 = vmatpush1.msra.mxu0 %v641
        %5583 = vmatprep.subr.mxu0 0.0
        %5584 = vmatpush1.msra.mxu0 %v642
        %5585 = vmatprep.subr.mxu0 0.0
        %5586 = vmatpush1.msra.mxu0 %v643
        %5587 = vmatprep.subr.mxu0 0.0
        %5588 = vmatpush1.msra.mxu0 %v644
        %5589 = vmatprep.subr.mxu0 0.0
        %5590 = vmatpush1.msra.mxu0 %v645
        %5591 = vmatprep.subr.mxu0 0.0
        %5592 = vmatpush1.msra.mxu0 0.0
        %5593 = vmatprep.subr.mxu0 0.0
        %5594 = vmatpush1.msra.mxu0 0.0
        %5595 = vmatprep.subr.mxu0 0.0
        %5596 = vmatpush1.msra.mxu0 0.0
        %5597 = vmatprep.subr.mxu0 0.0
        %5598 = vmatpush1.msra.mxu0 0.0
        %5599 = vmatprep.subr.mxu0 0.0
        %5600 = vmatpush1.msra.mxu0 0.0
        %5601 = vmatprep.subr.mxu0 0.0
        %5602 = vmatpush1.msra.mxu0 0.0
        %5603 = vmatprep.subr.mxu0 0.0
        %5604 = vmatpush1.msra.mxu0 0.0
        %5605 = vmatprep.subr.mxu0 0.0
        %5606 = vmatpush1.msra.mxu0 0.0
        %5607 = vmatprep.subr.mxu0 0.0
        %5608 = vmatpush1.msra.mxu0 0.0
        %5609 = vmatprep.subr.mxu0 0.0
        %5610 = vmatpush1.msra.mxu0 0.0
        %5611 = vmatprep.subr.mxu0 0.0
        %5612 = vmatpush1.msra.mxu0 0.0
        %5613 = vmatprep.subr.mxu0 0.0
        %5614 = vmatpush1.msra.mxu0 0.0
        %5615 = vmatprep.subr.mxu0 0.0
        %5616 = vmatpush1.msra.mxu0 0.0
        %5617 = vmatprep.subr.mxu0 0.0
        %5618 = vmatpush1.msra.mxu0 0.0
        %5619 = vmatprep.subr.mxu0 0.0
        %5620 = vmatpush1.msra.mxu0 0.0
        %5621 = vmatprep.subr.mxu0 0.0
        %5622 = vmatpush1.msra.mxu0 0.0
        %5623 = vmatprep.mubr.f32.mxu0 0.0
        %5624 = vmatmul.mubr.f32.gmra.mrb[0].mxu0 %v4211
        %v5625 = vpop.f32.mrb[0].mxu0
        %v5626 = vadd.f32 0.0, %v5625
        %v5627 = vpop.f32.mrb[0].mxu0
        %5628 = vmatprep.mubr.f32.mxu0 0.0
        %5629 = vmatmul.mubr.f32.gmra.mrb[0].mxu0 %v4216
        %v5630 = vpop.f32.mrb[0].mxu0
        %v5631 = vadd.f32 0.0, %v5630
        %v5632 = vpop.f32.mrb[0].mxu0
        %5633 = vmatprep.mubr.f32.mxu0 0.0
        %5634 = vmatmul.mubr.f32.gmra.mrb[0].mxu0 %v4221
        %v5635 = vpop.f32.mrb[0].mxu0
        %v5636 = vadd.f32 0.0, %v5635
        %v5637 = vpop.f32.mrb[0].mxu0
        %5638 = vmatprep.mubr.f32.mxu0 0.0
        %5639 = vmatmul.mubr.f32.gmra.mrb[0].mxu0 %v4300
        %v5640 = vpop.f32.mrb[0].mxu0
        %v5641 = vadd.f32 0.0, %v5640
        %v5642 = vpop.f32.mrb[0].mxu0
        %5643 = vmatprep.mubr.f32.mxu0 0.0
        %5644 = vmatmul.mubr.f32.gmra.mrb[0].mxu0 %v4305
        %v5645 = vpop.f32.mrb[0].mxu0
        %v5646 = vadd.f32 0.0, %v5645
        %v5647 = vpop.f32.mrb[0].mxu0
        %5648 = vmatprep.mubr.f32.mxu0 0.0
        %5649 = vmatmul.mubr.f32.gmra.mrb[0].mxu0 %v4310
        %v5650 = vpop.f32.mrb[0].mxu0
        %v5651 = vadd.f32 0.0, %v5650
        %v5652 = vpop.f32.mrb[0].mxu0
        %5653 = vmatprep.mubr.f32.mxu0 0.0
        %5654 = vmatmul.mubr.f32.gmra.mrb[0].mxu0 %v4389
        %v5655 = vpop.f32.mrb[0].mxu0
        %v5656 = vadd.f32 0.0, %v5655
        %v5657 = vpop.f32.mrb[0].mxu0
        %5658 = vmatprep.mubr.f32.mxu0 0.0
        %5659 = vmatmul.mubr.f32.gmra.mrb[0].mxu0 %v4394
        %v5660 = vpop.f32.mrb[0].mxu0
        %v5661 = vadd.f32 0.0, %v5660
        %v5662 = vpop.f32.mrb[0].mxu0
        %5663 = vmatprep.mubr.f32.mxu0 0.0
        %5664 = vmatmul.mubr.f32.gmra.mrb[0].mxu0 %v4399
        %v5665 = vpop.f32.mrb[0].mxu0
        %v5666 = vadd.f32 0.0, %v5665
        %v5667 = vpop.f32.mrb[0].mxu0
        %5668 = vmatprep.mubr.f32.mxu0 0.0
        %5669 = vmatmul.mubr.f32.gmra.mrb[0].mxu0 %v4478
        %v5670 = vpop.f32.mrb[0].mxu0
        %v5671 = vadd.f32 0.0, %v5670
        %v5672 = vpop.f32.mrb[0].mxu0
        %5673 = vmatprep.mubr.f32.mxu0 0.0
        %5674 = vmatmul.mubr.f32.gmra.mrb[0].mxu0 %v4483
        %v5675 = vpop.f32.mrb[0].mxu0
        %v5676 = vadd.f32 0.0, %v5675
        %v5677 = vpop.f32.mrb[0].mxu0
        %5678 = vmatprep.mubr.f32.mxu0 0.0
        %5679 = vmatmul.mubr.f32.gmra.mrb[0].mxu0 %v4488
        %v5680 = vpop.f32.mrb[0].mxu0
        %v5681 = vadd.f32 0.0, %v5680
        %v5682 = vpop.f32.mrb[0].mxu0
        %5683 = vmatprep.mubr.f32.mxu0 0.0
        %5684 = vmatmul.mubr.f32.gmra.mrb[0].mxu0 %v4567
        %v5685 = vpop.f32.mrb[0].mxu0
        %v5686 = vadd.f32 0.0, %v5685
        %v5687 = vpop.f32.mrb[0].mxu0
        %5688 = vmatprep.mubr.f32.mxu0 0.0
        %5689 = vmatmul.mubr.f32.gmra.mrb[0].mxu0 %v4572
        %v5690 = vpop.f32.mrb[0].mxu0
        %v5691 = vadd.f32 0.0, %v5690
        %v5692 = vpop.f32.mrb[0].mxu0
        %5693 = vmatprep.mubr.f32.mxu0 0.0
        %5694 = vmatmul.mubr.f32.gmra.mrb[0].mxu0 %v4577
        %v5695 = vpop.f32.mrb[0].mxu0
        %v5696 = vadd.f32 0.0, %v5695
        %v5697 = vpop.f32.mrb[0].mxu0
        %5698 = vmatprep.mubr.f32.mxu0 0.0
        %5699 = vmatmul.mubr.f32.gmra.mrb[0].mxu0 %v4656
        %v5700 = vpop.f32.mrb[0].mxu0
        %v5701 = vadd.f32 0.0, %v5700
        %v5702 = vpop.f32.mrb[0].mxu0
        %5703 = vmatprep.mubr.f32.mxu0 0.0
        %5704 = vmatmul.mubr.f32.gmra.mrb[0].mxu0 %v4661
        %v5705 = vpop.f32.mrb[0].mxu0
        %v5706 = vadd.f32 0.0, %v5705
        %v5707 = vpop.f32.mrb[0].mxu0
        %5708 = vmatprep.mubr.f32.mxu0 0.0
        %5709 = vmatmul.mubr.f32.gmra.mrb[0].mxu0 %v4666
        %v5710 = vpop.f32.mrb[0].mxu0
        %v5711 = vadd.f32 0.0, %v5710
        %v5712 = vpop.f32.mrb[0].mxu0
        %5713 = vmatprep.mubr.f32.mxu0 0.0
        %5714 = vmatmul.mubr.f32.gmra.mrb[0].mxu0 %v4745
        %v5715 = vpop.f32.mrb[0].mxu0
        %v5716 = vadd.f32 0.0, %v5715
        %v5717 = vpop.f32.mrb[0].mxu0
        %5718 = vmatprep.mubr.f32.mxu0 0.0
        %5719 = vmatmul.mubr.f32.gmra.mrb[0].mxu0 %v4750
        %v5720 = vpop.f32.mrb[0].mxu0
        %v5721 = vadd.f32 0.0, %v5720
        %v5722 = vpop.f32.mrb[0].mxu0
        %5723 = vmatprep.mubr.f32.mxu0 0.0
        %5724 = vmatmul.mubr.f32.gmra.mrb[0].mxu0 %v4755
        %v5725 = vpop.f32.mrb[0].mxu0
        %v5726 = vadd.f32 0.0, %v5725
        %v5727 = vpop.f32.mrb[0].mxu0
        %5728 = vmatprep.mubr.f32.mxu0 0.0
        %5729 = vmatmul.mubr.f32.gmra.mrb[0].mxu0 %v4834
        %v5730 = vpop.f32.mrb[0].mxu0
        %v5731 = vadd.f32 0.0, %v5730
        %v5732 = vpop.f32.mrb[0].mxu0
        %5733 = vmatprep.mubr.f32.mxu0 0.0
        %5734 = vmatmul.mubr.f32.gmra.mrb[0].mxu0 %v4839
        %v5735 = vpop.f32.mrb[0].mxu0
        %v5736 = vadd.f32 0.0, %v5735
        %v5737 = vpop.f32.mrb[0].mxu0
        %5738 = vmatprep.mubr.f32.mxu0 0.0
        %5739 = vmatmul.mubr.f32.gmra.mrb[0].mxu0 %v4844
        %v5740 = vpop.f32.mrb[0].mxu0
        %v5741 = vadd.f32 0.0, %v5740
        %v5742 = vpop.f32.mrb[0].mxu0
        %5743 = vmatprep.mubr.f32.mxu0 0.0
        %5744 = vmatmul.mubr.f32.gmra.mrb[0].mxu0 %v4923
        %v5745 = vpop.f32.mrb[0].mxu0
        %v5746 = vadd.f32 0.0, %v5745
        %v5747 = vpop.f32.mrb[0].mxu0
        %5748 = vmatprep.mubr.f32.mxu0 0.0
        %5749 = vmatmul.mubr.f32.gmra.mrb[0].mxu0 %v4928
        %v5750 = vpop.f32.mrb[0].mxu0
        %v5751 = vadd.f32 0.0, %v5750
        %v5752 = vpop.f32.mrb[0].mxu0
        %5753 = vmatprep.mubr.f32.mxu0 0.0
        %5754 = vmatmul.mubr.f32.gmra.mrb[0].mxu0 %v4933
        %v5755 = vpop.f32.mrb[0].mxu0
        %v5756 = vadd.f32 0.0, %v5755
        %v5757 = vpop.f32.mrb[0].mxu0
        %5758 = vmatprep.mubr.f32.mxu0 0.0
        %5759 = vmatmul.mubr.f32.gmra.mrb[0].mxu0 %v5012
        %v5760 = vpop.f32.mrb[0].mxu0
        %v5761 = vadd.f32 0.0, %v5760
        %v5762 = vpop.f32.mrb[0].mxu0
        %5763 = vmatprep.mubr.f32.mxu0 0.0
        %5764 = vmatmul.mubr.f32.gmra.mrb[0].mxu0 %v5017
        %v5765 = vpop.f32.mrb[0].mxu0
        %v5766 = vadd.f32 0.0, %v5765
        %v5767 = vpop.f32.mrb[0].mxu0
        %5768 = vmatprep.mubr.f32.mxu0 0.0
        %5769 = vmatmul.mubr.f32.gmra.mrb[0].mxu0 %v5022
        %v5770 = vpop.f32.mrb[0].mxu0
        %v5771 = vadd.f32 0.0, %v5770
        %v5772 = vpop.f32.mrb[0].mxu0
        %5773 = vmatprep.mubr.f32.mxu0 0.0
        %5774 = vmatmul.mubr.f32.gmra.mrb[0].mxu0 %v5101
        %v5775 = vpop.f32.mrb[0].mxu0
        %v5776 = vadd.f32 0.0, %v5775
        %v5777 = vpop.f32.mrb[0].mxu0
        %5778 = vmatprep.mubr.f32.mxu0 0.0
        %5779 = vmatmul.mubr.f32.gmra.mrb[0].mxu0 %v5106
        %v5780 = vpop.f32.mrb[0].mxu0
        %v5781 = vadd.f32 0.0, %v5780
        %v5782 = vpop.f32.mrb[0].mxu0
        %5783 = vmatprep.mubr.f32.mxu0 0.0
        %5784 = vmatmul.mubr.f32.gmra.mrb[0].mxu0 %v5111
        %v5785 = vpop.f32.mrb[0].mxu0
        %v5786 = vadd.f32 0.0, %v5785
        %v5787 = vpop.f32.mrb[0].mxu0
        %5788 = vmatprep.mubr.f32.mxu0 0.0
        %5789 = vmatmul.mubr.f32.gmra.mrb[0].mxu0 %v5190
        %v5790 = vpop.f32.mrb[0].mxu0
        %v5791 = vadd.f32 0.0, %v5790
        %v5792 = vpop.f32.mrb[0].mxu0
        %5793 = vmatprep.mubr.f32.mxu0 0.0
        %5794 = vmatmul.mubr.f32.gmra.mrb[0].mxu0 %v5195
        %v5795 = vpop.f32.mrb[0].mxu0
        %v5796 = vadd.f32 0.0, %v5795
        %v5797 = vpop.f32.mrb[0].mxu0
        %5798 = vmatprep.mubr.f32.mxu0 0.0
        %5799 = vmatmul.mubr.f32.gmra.mrb[0].mxu0 %v5200
        %v5800 = vpop.f32.mrb[0].mxu0
        %v5801 = vadd.f32 0.0, %v5800
        %v5802 = vpop.f32.mrb[0].mxu0
        %5803 = vmatprep.mubr.f32.mxu0 0.0
        %5804 = vmatmul.mubr.f32.gmra.mrb[0].mxu0 %v5279
        %v5805 = vpop.f32.mrb[0].mxu0
        %v5806 = vadd.f32 0.0, %v5805
        %v5807 = vpop.f32.mrb[0].mxu0
        %5808 = vmatprep.mubr.f32.mxu0 0.0
        %5809 = vmatmul.mubr.f32.gmra.mrb[0].mxu0 %v5284
        %v5810 = vpop.f32.mrb[0].mxu0
        %v5811 = vadd.f32 0.0, %v5810
        %v5812 = vpop.f32.mrb[0].mxu0
        %5813 = vmatprep.mubr.f32.mxu0 0.0
        %5814 = vmatmul.mubr.f32.gmra.mrb[0].mxu0 %v5289
        %v5815 = vpop.f32.mrb[0].mxu0
        %v5816 = vadd.f32 0.0, %v5815
        %v5817 = vpop.f32.mrb[0].mxu0
        %5818 = vmatprep.mubr.f32.mxu0 0.0
        %5819 = vmatmul.mubr.f32.gmra.mrb[0].mxu0 %v5368
        %v5820 = vpop.f32.mrb[0].mxu0
        %v5821 = vadd.f32 0.0, %v5820
        %v5822 = vpop.f32.mrb[0].mxu0
        %5823 = vmatprep.mubr.f32.mxu0 0.0
        %5824 = vmatmul.mubr.f32.gmra.mrb[0].mxu0 %v5373
        %v5825 = vpop.f32.mrb[0].mxu0
        %v5826 = vadd.f32 0.0, %v5825
        %v5827 = vpop.f32.mrb[0].mxu0
        %5828 = vmatprep.mubr.f32.mxu0 0.0
        %5829 = vmatmul.mubr.f32.gmra.mrb[0].mxu0 %v5378
        %v5830 = vpop.f32.mrb[0].mxu0
        %v5831 = vadd.f32 0.0, %v5830
        %v5832 = vpop.f32.mrb[0].mxu0
        %5833 = vmatprep.mubr.f32.mxu0 0.0
        %5834 = vmatmul.mubr.f32.gmra.mrb[0].mxu0 %v5457
        %v5835 = vpop.f32.mrb[0].mxu0
        %v5836 = vadd.f32 0.0, %v5835
        %v5837 = vpop.f32.mrb[0].mxu0
        %5838 = vmatprep.mubr.f32.mxu0 0.0
        %5839 = vmatmul.mubr.f32.gmra.mrb[0].mxu0 %v5462
        %v5840 = vpop.f32.mrb[0].mxu0
        %v5841 = vadd.f32 0.0, %v5840
        %v5842 = vpop.f32.mrb[0].mxu0
        %5843 = vmatprep.mubr.f32.mxu0 0.0
        %5844 = vmatmul.mubr.f32.gmra.mrb[0].mxu0 %v5467
        %v5845 = vpop.f32.mrb[0].mxu0
        %v5846 = vadd.f32 0.0, %v5845
        %v5847 = vpop.f32.mrb[0].mxu0
        %5848 = vmatprep.mubr.f32.mxu0 0.0
        %5849 = vmatmul.mubr.f32.gmra.mrb[0].mxu0 %v5546
        %v5850 = vpop.f32.mrb[0].mxu0
        %v5851 = vadd.f32 0.0, %v5850
        %v5852 = vpop.f32.mrb[0].mxu0
        %5853 = vmatprep.mubr.f32.mxu0 0.0
        %5854 = vmatmul.mubr.f32.gmra.mrb[0].mxu0 %v5551
        %v5855 = vpop.f32.mrb[0].mxu0
        %v5856 = vadd.f32 0.0, %v5855
        %v5857 = vpop.f32.mrb[0].mxu0
        %5858 = vmatprep.mubr.f32.mxu0 0.0
        %5859 = vmatmul.mubr.f32.gmra.mrb[0].mxu0 %v5556
        %v5860 = vpop.f32.mrb[0].mxu0
        %v5861 = vadd.f32 0.0, %v5860
        %v5862 = vpop.f32.mrb[0].mxu0
        %5863 = vdwg.mxu0
        %5864 = vmatprep.subr.mxu0 0.0
        %5865 = vmatpush1.msra.mxu0 %v614
        %5866 = vmatprep.subr.mxu0 0.0
        %5867 = vmatpush1.msra.mxu0 %v615
        %5868 = vmatprep.subr.mxu0 0.0
        %5869 = vmatpush1.msra.mxu0 %v616
        %5870 = vmatprep.subr.mxu0 0.0
        %5871 = vmatpush1.msra.mxu0 %v617
        %5872 = vmatprep.subr.mxu0 0.0
        %5873 = vmatpush1.msra.mxu0 %v618
        %5874 = vmatprep.subr.mxu0 0.0
        %5875 = vmatpush1.msra.mxu0 %v619
        %5876 = vmatprep.subr.mxu0 0.0
        %5877 = vmatpush1.msra.mxu0 %v620
        %5878 = vmatprep.subr.mxu0 0.0
        %5879 = vmatpush1.msra.mxu0 %v621
        %5880 = vmatprep.subr.mxu0 0.0
        %5881 = vmatpush1.msra.mxu0 %v622
        %5882 = vmatprep.subr.mxu0 0.0
        %5883 = vmatpush1.msra.mxu0 %v623
        %5884 = vmatprep.subr.mxu0 0.0
        %5885 = vmatpush1.msra.mxu0 %v624
        %5886 = vmatprep.subr.mxu0 0.0
        %5887 = vmatpush1.msra.mxu0 %v625
        %5888 = vmatprep.subr.mxu0 0.0
        %5889 = vmatpush1.msra.mxu0 %v626
        %5890 = vmatprep.subr.mxu0 0.0
        %5891 = vmatpush1.msra.mxu0 %v627
        %5892 = vmatprep.subr.mxu0 0.0
        %5893 = vmatpush1.msra.mxu0 %v628
        %5894 = vmatprep.subr.mxu0 0.0
        %5895 = vmatpush1.msra.mxu0 %v629
        %5896 = vmatprep.subr.mxu0 0.0
        %5897 = vmatpush1.msra.mxu0 0.0
        %5898 = vmatprep.subr.mxu0 0.0
        %5899 = vmatpush1.msra.mxu0 0.0
        %5900 = vmatprep.subr.mxu0 0.0
        %5901 = vmatpush1.msra.mxu0 0.0
        %5902 = vmatprep.subr.mxu0 0.0
        %5903 = vmatpush1.msra.mxu0 0.0
        %5904 = vmatprep.subr.mxu0 0.0
        %5905 = vmatpush1.msra.mxu0 0.0
        %5906 = vmatprep.subr.mxu0 0.0
        %5907 = vmatpush1.msra.mxu0 0.0
        %5908 = vmatprep.subr.mxu0 0.0
        %5909 = vmatpush1.msra.mxu0 0.0
        %5910 = vmatprep.subr.mxu0 0.0
        %5911 = vmatpush1.msra.mxu0 0.0
        %5912 = vmatprep.subr.mxu0 0.0
        %5913 = vmatpush1.msra.mxu0 0.0
        %5914 = vmatprep.subr.mxu0 0.0
        %5915 = vmatpush1.msra.mxu0 0.0
        %5916 = vmatprep.subr.mxu0 0.0
        %5917 = vmatpush1.msra.mxu0 0.0
        %5918 = vmatprep.subr.mxu0 0.0
        %5919 = vmatpush1.msra.mxu0 0.0
        %5920 = vmatprep.subr.mxu0 0.0
        %5921 = vmatpush1.msra.mxu0 0.0
        %5922 = vmatprep.subr.mxu0 0.0
        %5923 = vmatpush1.msra.mxu0 0.0
        %5924 = vmatprep.subr.mxu0 0.0
        %5925 = vmatpush1.msra.mxu0 0.0
        %5926 = vmatprep.subr.mxu0 0.0
        %5927 = vmatpush1.msra.mxu0 0.0
        %5928 = vmatprep.mubr.f32.mxu0 0.0
        %5929 = vmatmul.mubr.f32.gmra.mrb[0].mxu0 %v422
        %v5930 = vpop.f32.mrb[0].mxu0
        %v5931 = vadd.f32 %v5626, %v5930
        %v5932 = vpop.f32.mrb[0].mxu0
        %5933 = vmatprep.mubr.f32.mxu0 0.0
        %5934 = vmatmul.mubr.f32.gmra.mrb[0].mxu0 %v423
        %v5935 = vpop.f32.mrb[0].mxu0
        %v5936 = vadd.f32 %v5631, %v5935
        %v5937 = vpop.f32.mrb[0].mxu0
        %5938 = vmatprep.mubr.f32.mxu0 0.0
        %5939 = vmatmul.mubr.f32.gmra.mrb[0].mxu0 %v424
        %v5940 = vpop.f32.mrb[0].mxu0
        %v5941 = vadd.f32 %v5636, %v5940
        %v5942 = vpop.f32.mrb[0].mxu0
        %5943 = vmatprep.mubr.f32.mxu0 0.0
        %5944 = vmatmul.mubr.f32.gmra.mrb[0].mxu0 %v425
        %v5945 = vpop.f32.mrb[0].mxu0
        %v5946 = vadd.f32 %v5641, %v5945
        %v5947 = vpop.f32.mrb[0].mxu0
        %5948 = vmatprep.mubr.f32.mxu0 0.0
        %5949 = vmatmul.mubr.f32.gmra.mrb[0].mxu0 %v426
        %v5950 = vpop.f32.mrb[0].mxu0
        %v5951 = vadd.f32 %v5646, %v5950
        %v5952 = vpop.f32.mrb[0].mxu0
        %5953 = vmatprep.mubr.f32.mxu0 0.0
        %5954 = vmatmul.mubr.f32.gmra.mrb[0].mxu0 %v427
        %v5955 = vpop.f32.mrb[0].mxu0
        %v5956 = vadd.f32 %v5651, %v5955
        %v5957 = vpop.f32.mrb[0].mxu0
        %5958 = vmatprep.mubr.f32.mxu0 0.0
        %5959 = vmatmul.mubr.f32.gmra.mrb[0].mxu0 %v428
        %v5960 = vpop.f32.mrb[0].mxu0
        %v5961 = vadd.f32 %v5656, %v5960
        %v5962 = vpop.f32.mrb[0].mxu0
        %5963 = vmatprep.mubr.f32.mxu0 0.0
        %5964 = vmatmul.mubr.f32.gmra.mrb[0].mxu0 %v429
        %v5965 = vpop.f32.mrb[0].mxu0
        %v5966 = vadd.f32 %v5661, %v5965
        %v5967 = vpop.f32.mrb[0].mxu0
        %5968 = vmatprep.mubr.f32.mxu0 0.0
        %5969 = vmatmul.mubr.f32.gmra.mrb[0].mxu0 %v430
        %v5970 = vpop.f32.mrb[0].mxu0
        %v5971 = vadd.f32 %v5666, %v5970
        %v5972 = vpop.f32.mrb[0].mxu0
        %5973 = vmatprep.mubr.f32.mxu0 0.0
        %5974 = vmatmul.mubr.f32.gmra.mrb[0].mxu0 %v431
        %v5975 = vpop.f32.mrb[0].mxu0
        %v5976 = vadd.f32 %v5671, %v5975
        %v5977 = vpop.f32.mrb[0].mxu0
        %5978 = vmatprep.mubr.f32.mxu0 0.0
        %5979 = vmatmul.mubr.f32.gmra.mrb[0].mxu0 %v432
        %v5980 = vpop.f32.mrb[0].mxu0
        %v5981 = vadd.f32 %v5676, %v5980
        %v5982 = vpop.f32.mrb[0].mxu0
        %5983 = vmatprep.mubr.f32.mxu0 0.0
        %5984 = vmatmul.mubr.f32.gmra.mrb[0].mxu0 %v433
        %v5985 = vpop.f32.mrb[0].mxu0
        %v5986 = vadd.f32 %v5681, %v5985
        %v5987 = vpop.f32.mrb[0].mxu0
        %5988 = vmatprep.mubr.f32.mxu0 0.0
        %5989 = vmatmul.mubr.f32.gmra.mrb[0].mxu0 %v434
        %v5990 = vpop.f32.mrb[0].mxu0
        %v5991 = vadd.f32 %v5686, %v5990
        %v5992 = vpop.f32.mrb[0].mxu0
        %5993 = vmatprep.mubr.f32.mxu0 0.0
        %5994 = vmatmul.mubr.f32.gmra.mrb[0].mxu0 %v435
        %v5995 = vpop.f32.mrb[0].mxu0
        %v5996 = vadd.f32 %v5691, %v5995
        %v5997 = vpop.f32.mrb[0].mxu0
        %5998 = vmatprep.mubr.f32.mxu0 0.0
        %5999 = vmatmul.mubr.f32.gmra.mrb[0].mxu0 %v436
        %v6000 = vpop.f32.mrb[0].mxu0
        %v6001 = vadd.f32 %v5696, %v6000
        %v6002 = vpop.f32.mrb[0].mxu0
        %6003 = vmatprep.mubr.f32.mxu0 0.0
        %6004 = vmatmul.mubr.f32.gmra.mrb[0].mxu0 %v437
        %v6005 = vpop.f32.mrb[0].mxu0
        %v6006 = vadd.f32 %v5701, %v6005
        %v6007 = vpop.f32.mrb[0].mxu0
        %6008 = vmatprep.mubr.f32.mxu0 0.0
        %6009 = vmatmul.mubr.f32.gmra.mrb[0].mxu0 %v438
        %v6010 = vpop.f32.mrb[0].mxu0
        %v6011 = vadd.f32 %v5706, %v6010
        %v6012 = vpop.f32.mrb[0].mxu0
        %6013 = vmatprep.mubr.f32.mxu0 0.0
        %6014 = vmatmul.mubr.f32.gmra.mrb[0].mxu0 %v439
        %v6015 = vpop.f32.mrb[0].mxu0
        %v6016 = vadd.f32 %v5711, %v6015
        %v6017 = vpop.f32.mrb[0].mxu0
        %6018 = vmatprep.mubr.f32.mxu0 0.0
        %6019 = vmatmul.mubr.f32.gmra.mrb[0].mxu0 %v440
        %v6020 = vpop.f32.mrb[0].mxu0
        %v6021 = vadd.f32 %v5716, %v6020
        %v6022 = vpop.f32.mrb[0].mxu0
        %6023 = vmatprep.mubr.f32.mxu0 0.0
        %6024 = vmatmul.mubr.f32.gmra.mrb[0].mxu0 %v441
        %v6025 = vpop.f32.mrb[0].mxu0
        %v6026 = vadd.f32 %v5721, %v6025
        %v6027 = vpop.f32.mrb[0].mxu0
        %6028 = vmatprep.mubr.f32.mxu0 0.0
        %6029 = vmatmul.mubr.f32.gmra.mrb[0].mxu0 %v442
        %v6030 = vpop.f32.mrb[0].mxu0
        %v6031 = vadd.f32 %v5726, %v6030
        %v6032 = vpop.f32.mrb[0].mxu0
        %6033 = vmatprep.mubr.f32.mxu0 0.0
        %6034 = vmatmul.mubr.f32.gmra.mrb[0].mxu0 %v443
        %v6035 = vpop.f32.mrb[0].mxu0
        %v6036 = vadd.f32 %v5731, %v6035
        %v6037 = vpop.f32.mrb[0].mxu0
        %6038 = vmatprep.mubr.f32.mxu0 0.0
        %6039 = vmatmul.mubr.f32.gmra.mrb[0].mxu0 %v444
        %v6040 = vpop.f32.mrb[0].mxu0
        %v6041 = vadd.f32 %v5736, %v6040
        %v6042 = vpop.f32.mrb[0].mxu0
        %6043 = vmatprep.mubr.f32.mxu0 0.0
        %6044 = vmatmul.mubr.f32.gmra.mrb[0].mxu0 %v445
        %v6045 = vpop.f32.mrb[0].mxu0
        %v6046 = vadd.f32 %v5741, %v6045
        %v6047 = vpop.f32.mrb[0].mxu0
        %6048 = vmatprep.mubr.f32.mxu0 0.0
        %6049 = vmatmul.mubr.f32.gmra.mrb[0].mxu0 %v446
        %v6050 = vpop.f32.mrb[0].mxu0
        %v6051 = vadd.f32 %v5746, %v6050
        %v6052 = vpop.f32.mrb[0].mxu0
        %6053 = vmatprep.mubr.f32.mxu0 0.0
        %6054 = vmatmul.mubr.f32.gmra.mrb[0].mxu0 %v447
        %v6055 = vpop.f32.mrb[0].mxu0
        %v6056 = vadd.f32 %v5751, %v6055
        %v6057 = vpop.f32.mrb[0].mxu0
        %6058 = vmatprep.mubr.f32.mxu0 0.0
        %6059 = vmatmul.mubr.f32.gmra.mrb[0].mxu0 %v448
        %v6060 = vpop.f32.mrb[0].mxu0
        %v6061 = vadd.f32 %v5756, %v6060
        %v6062 = vpop.f32.mrb[0].mxu0
        %6063 = vmatprep.mubr.f32.mxu0 0.0
        %6064 = vmatmul.mubr.f32.gmra.mrb[0].mxu0 %v449
        %v6065 = vpop.f32.mrb[0].mxu0
        %v6066 = vadd.f32 %v5761, %v6065
        %v6067 = vpop.f32.mrb[0].mxu0
        %6068 = vmatprep.mubr.f32.mxu0 0.0
        %6069 = vmatmul.mubr.f32.gmra.mrb[0].mxu0 %v450
        %v6070 = vpop.f32.mrb[0].mxu0
        %v6071 = vadd.f32 %v5766, %v6070
        %v6072 = vpop.f32.mrb[0].mxu0
        %6073 = vmatprep.mubr.f32.mxu0 0.0
        %6074 = vmatmul.mubr.f32.gmra.mrb[0].mxu0 %v451
        %v6075 = vpop.f32.mrb[0].mxu0
        %v6076 = vadd.f32 %v5771, %v6075
        %v6077 = vpop.f32.mrb[0].mxu0
        %6078 = vmatprep.mubr.f32.mxu0 0.0
        %6079 = vmatmul.mubr.f32.gmra.mrb[0].mxu0 %v452
        %v6080 = vpop.f32.mrb[0].mxu0
        %v6081 = vadd.f32 %v5776, %v6080
        %v6082 = vpop.f32.mrb[0].mxu0
        %6083 = vmatprep.mubr.f32.mxu0 0.0
        %6084 = vmatmul.mubr.f32.gmra.mrb[0].mxu0 %v453
        %v6085 = vpop.f32.mrb[0].mxu0
        %v6086 = vadd.f32 %v5781, %v6085
        %v6087 = vpop.f32.mrb[0].mxu0
        %6088 = vmatprep.mubr.f32.mxu0 0.0
        %6089 = vmatmul.mubr.f32.gmra.mrb[0].mxu0 %v454
        %v6090 = vpop.f32.mrb[0].mxu0
        %v6091 = vadd.f32 %v5786, %v6090
        %v6092 = vpop.f32.mrb[0].mxu0
        %6093 = vmatprep.mubr.f32.mxu0 0.0
        %6094 = vmatmul.mubr.f32.gmra.mrb[0].mxu0 %v455
        %v6095 = vpop.f32.mrb[0].mxu0
        %v6096 = vadd.f32 %v5791, %v6095
        %v6097 = vpop.f32.mrb[0].mxu0
        %6098 = vmatprep.mubr.f32.mxu0 0.0
        %6099 = vmatmul.mubr.f32.gmra.mrb[0].mxu0 %v456
        %v6100 = vpop.f32.mrb[0].mxu0
        %v6101 = vadd.f32 %v5796, %v6100
        %v6102 = vpop.f32.mrb[0].mxu0
        %6103 = vmatprep.mubr.f32.mxu0 0.0
        %6104 = vmatmul.mubr.f32.gmra.mrb[0].mxu0 %v457
        %v6105 = vpop.f32.mrb[0].mxu0
        %v6106 = vadd.f32 %v5801, %v6105
        %v6107 = vpop.f32.mrb[0].mxu0
        %6108 = vmatprep.mubr.f32.mxu0 0.0
        %6109 = vmatmul.mubr.f32.gmra.mrb[0].mxu0 %v458
        %v6110 = vpop.f32.mrb[0].mxu0
        %v6111 = vadd.f32 %v5806, %v6110
        %v6112 = vpop.f32.mrb[0].mxu0
        %6113 = vmatprep.mubr.f32.mxu0 0.0
        %6114 = vmatmul.mubr.f32.gmra.mrb[0].mxu0 %v459
        %v6115 = vpop.f32.mrb[0].mxu0
        %v6116 = vadd.f32 %v5811, %v6115
        %v6117 = vpop.f32.mrb[0].mxu0
        %6118 = vmatprep.mubr.f32.mxu0 0.0
        %6119 = vmatmul.mubr.f32.gmra.mrb[0].mxu0 %v460
        %v6120 = vpop.f32.mrb[0].mxu0
        %v6121 = vadd.f32 %v5816, %v6120
        %v6122 = vpop.f32.mrb[0].mxu0
        %6123 = vmatprep.mubr.f32.mxu0 0.0
        %6124 = vmatmul.mubr.f32.gmra.mrb[0].mxu0 %v461
        %v6125 = vpop.f32.mrb[0].mxu0
        %v6126 = vadd.f32 %v5821, %v6125
        %v6127 = vpop.f32.mrb[0].mxu0
        %6128 = vmatprep.mubr.f32.mxu0 0.0
        %6129 = vmatmul.mubr.f32.gmra.mrb[0].mxu0 %v462
        %v6130 = vpop.f32.mrb[0].mxu0
        %v6131 = vadd.f32 %v5826, %v6130
        %v6132 = vpop.f32.mrb[0].mxu0
        %6133 = vmatprep.mubr.f32.mxu0 0.0
        %6134 = vmatmul.mubr.f32.gmra.mrb[0].mxu0 %v463
        %v6135 = vpop.f32.mrb[0].mxu0
        %v6136 = vadd.f32 %v5831, %v6135
        %v6137 = vpop.f32.mrb[0].mxu0
        %6138 = vmatprep.mubr.f32.mxu0 0.0
        %6139 = vmatmul.mubr.f32.gmra.mrb[0].mxu0 %v464
        %v6140 = vpop.f32.mrb[0].mxu0
        %v6141 = vadd.f32 %v5836, %v6140
        %v6142 = vpop.f32.mrb[0].mxu0
        %6143 = vmatprep.mubr.f32.mxu0 0.0
        %6144 = vmatmul.mubr.f32.gmra.mrb[0].mxu0 %v465
        %v6145 = vpop.f32.mrb[0].mxu0
        %v6146 = vadd.f32 %v5841, %v6145
        %v6147 = vpop.f32.mrb[0].mxu0
        %6148 = vmatprep.mubr.f32.mxu0 0.0
        %6149 = vmatmul.mubr.f32.gmra.mrb[0].mxu0 %v466
        %v6150 = vpop.f32.mrb[0].mxu0
        %v6151 = vadd.f32 %v5846, %v6150
        %v6152 = vpop.f32.mrb[0].mxu0
        %6153 = vmatprep.mubr.f32.mxu0 0.0
        %6154 = vmatmul.mubr.f32.gmra.mrb[0].mxu0 %v467
        %v6155 = vpop.f32.mrb[0].mxu0
        %v6156 = vadd.f32 %v5851, %v6155
        %v6157 = vpop.f32.mrb[0].mxu0
        %6158 = vmatprep.mubr.f32.mxu0 0.0
        %6159 = vmatmul.mubr.f32.gmra.mrb[0].mxu0 %v468
        %v6160 = vpop.f32.mrb[0].mxu0
        %v6161 = vadd.f32 %v5856, %v6160
        %v6162 = vpop.f32.mrb[0].mxu0
        %6163 = vmatprep.mubr.f32.mxu0 0.0
        %6164 = vmatmul.mubr.f32.gmra.mrb[0].mxu0 %v469
        %v6165 = vpop.f32.mrb[0].mxu0
        %v6166 = vadd.f32 %v5861, %v6165
        %v6167 = vpop.f32.mrb[0].mxu0
        %6168 = vdwg.mxu0
        %v6169 = vmul.f32 %v4211, %v422
        %v6170 = vmul.f32 %v4216, %v423
        %v6171 = vmul.f32 %v4221, %v424
        %v6172 = vmul.f32 %v4300, %v425
        %v6173 = vmul.f32 %v4305, %v426
        %v6174 = vmul.f32 %v4310, %v427
        %v6175 = vmul.f32 %v4389, %v428
        %v6176 = vmul.f32 %v4394, %v429
        %v6177 = vmul.f32 %v4399, %v430
        %v6178 = vmul.f32 %v4478, %v431
        %v6179 = vmul.f32 %v4483, %v432
        %v6180 = vmul.f32 %v4488, %v433
        %v6181 = vmul.f32 %v4567, %v434
        %v6182 = vmul.f32 %v4572, %v435
        %v6183 = vmul.f32 %v4577, %v436
        %v6184 = vmul.f32 %v4656, %v437
        %v6185 = vmul.f32 %v4661, %v438
        %v6186 = vmul.f32 %v4666, %v439
        %v6187 = vmul.f32 %v4745, %v440
        %v6188 = vmul.f32 %v4750, %v441
        %v6189 = vmul.f32 %v4755, %v442
        %v6190 = vmul.f32 %v4834, %v443
        %v6191 = vmul.f32 %v4839, %v444
        %v6192 = vmul.f32 %v4844, %v445
        %v6193 = vmul.f32 %v4923, %v446
        %v6194 = vmul.f32 %v4928, %v447
        %v6195 = vmul.f32 %v4933, %v448
        %v6196 = vmul.f32 %v5012, %v449
        %v6197 = vmul.f32 %v5017, %v450
        %v6198 = vmul.f32 %v5022, %v451
        %v6199 = vmul.f32 %v5101, %v452
        %v6200 = vmul.f32 %v5106, %v453
        %v6201 = vmul.f32 %v5111, %v454
        %v6202 = vmul.f32 %v5190, %v455
        %v6203 = vmul.f32 %v5195, %v456
        %v6204 = vmul.f32 %v5200, %v457
        %v6205 = vmul.f32 %v5279, %v458
        %v6206 = vmul.f32 %v5284, %v459
        %v6207 = vmul.f32 %v5289, %v460
        %v6208 = vmul.f32 %v5368, %v461
        %v6209 = vmul.f32 %v5373, %v462
        %v6210 = vmul.f32 %v5378, %v463
        %v6211 = vmul.f32 %v5457, %v464
        %v6212 = vmul.f32 %v5462, %v465
        %v6213 = vmul.f32 %v5467, %v466
        %v6214 = vmul.f32 %v5546, %v467
        %v6215 = vmul.f32 %v5551, %v468
        %v6216 = vmul.f32 %v5556, %v469
        %6217 = vmatprep.subr.mxu0 0.0
        %6218 = vmatpush1.msra.mxu0 %v646
        %6219 = vmatprep.subr.mxu0 0.0
        %6220 = vmatpush1.msra.mxu0 %v647
        %6221 = vmatprep.subr.mxu0 0.0
        %6222 = vmatpush1.msra.mxu0 %v648
        %6223 = vmatprep.subr.mxu0 0.0
        %6224 = vmatpush1.msra.mxu0 %v649
        %6225 = vmatprep.subr.mxu0 0.0
        %6226 = vmatpush1.msra.mxu0 %v650
        %6227 = vmatprep.subr.mxu0 0.0
        %6228 = vmatpush1.msra.mxu0 %v651
        %6229 = vmatprep.subr.mxu0 0.0
        %6230 = vmatpush1.msra.mxu0 %v652
        %6231 = vmatprep.subr.mxu0 0.0
        %6232 = vmatpush1.msra.mxu0 %v653
        %6233 = vmatprep.subr.mxu0 0.0
        %6234 = vmatpush1.msra.mxu0 %v654
        %6235 = vmatprep.subr.mxu0 0.0
        %6236 = vmatpush1.msra.mxu0 %v655
        %6237 = vmatprep.subr.mxu0 0.0
        %6238 = vmatpush1.msra.mxu0 %v656
        %6239 = vmatprep.subr.mxu0 0.0
        %6240 = vmatpush1.msra.mxu0 %v657
        %6241 = vmatprep.subr.mxu0 0.0
        %6242 = vmatpush1.msra.mxu0 %v658
        %6243 = vmatprep.subr.mxu0 0.0
        %6244 = vmatpush1.msra.mxu0 %v659
        %6245 = vmatprep.subr.mxu0 0.0
        %6246 = vmatpush1.msra.mxu0 %v660
        %6247 = vmatprep.subr.mxu0 0.0
        %6248 = vmatpush1.msra.mxu0 %v661
        %6249 = vmatprep.subr.mxu0 0.0
        %6250 = vmatpush1.msra.mxu0 0.0
        %6251 = vmatprep.subr.mxu0 0.0
        %6252 = vmatpush1.msra.mxu0 0.0
        %6253 = vmatprep.subr.mxu0 0.0
        %6254 = vmatpush1.msra.mxu0 0.0
        %6255 = vmatprep.subr.mxu0 0.0
        %6256 = vmatpush1.msra.mxu0 0.0
        %6257 = vmatprep.subr.mxu0 0.0
        %6258 = vmatpush1.msra.mxu0 0.0
        %6259 = vmatprep.subr.mxu0 0.0
        %6260 = vmatpush1.msra.mxu0 0.0
        %6261 = vmatprep.subr.mxu0 0.0
        %6262 = vmatpush1.msra.mxu0 0.0
        %6263 = vmatprep.subr.mxu0 0.0
        %6264 = vmatpush1.msra.mxu0 0.0
        %6265 = vmatprep.subr.mxu0 0.0
        %6266 = vmatpush1.msra.mxu0 0.0
        %6267 = vmatprep.subr.mxu0 0.0
        %6268 = vmatpush1.msra.mxu0 0.0
        %6269 = vmatprep.subr.mxu0 0.0
        %6270 = vmatpush1.msra.mxu0 0.0
        %6271 = vmatprep.subr.mxu0 0.0
        %6272 = vmatpush1.msra.mxu0 0.0
        %6273 = vmatprep.subr.mxu0 0.0
        %6274 = vmatpush1.msra.mxu0 0.0
        %6275 = vmatprep.subr.mxu0 0.0
        %6276 = vmatpush1.msra.mxu0 0.0
        %6277 = vmatprep.subr.mxu0 0.0
        %6278 = vmatpush1.msra.mxu0 0.0
        %6279 = vmatprep.subr.mxu0 0.0
        %6280 = vmatpush1.msra.mxu0 0.0
        %6281 = vmatprep.mubr.f32.mxu0 0.0
        %6282 = vmatmul.mubr.f32.gmra.mrb[0].mxu0 %v6169
        %v6283 = vpop.f32.mrb[0].mxu0
        %v6284 = vadd.f32 0.0, %v6283
        %v6285 = vpop.f32.mrb[0].mxu0
        %6286 = vmatprep.mubr.f32.mxu0 0.0
        %6287 = vmatmul.mubr.f32.gmra.mrb[0].mxu0 %v6170
        %v6288 = vpop.f32.mrb[0].mxu0
        %v6289 = vadd.f32 0.0, %v6288
        %v6290 = vpop.f32.mrb[0].mxu0
        %6291 = vmatprep.mubr.f32.mxu0 0.0
        %6292 = vmatmul.mubr.f32.gmra.mrb[0].mxu0 %v6171
        %v6293 = vpop.f32.mrb[0].mxu0
        %v6294 = vadd.f32 0.0, %v6293
        %v6295 = vpop.f32.mrb[0].mxu0
        %6296 = vmatprep.mubr.f32.mxu0 0.0
        %6297 = vmatmul.mubr.f32.gmra.mrb[0].mxu0 %v6172
        %v6298 = vpop.f32.mrb[0].mxu0
        %v6299 = vadd.f32 0.0, %v6298
        %v6300 = vpop.f32.mrb[0].mxu0
        %6301 = vmatprep.mubr.f32.mxu0 0.0
        %6302 = vmatmul.mubr.f32.gmra.mrb[0].mxu0 %v6173
        %v6303 = vpop.f32.mrb[0].mxu0
        %v6304 = vadd.f32 0.0, %v6303
        %v6305 = vpop.f32.mrb[0].mxu0
        %6306 = vmatprep.mubr.f32.mxu0 0.0
        %6307 = vmatmul.mubr.f32.gmra.mrb[0].mxu0 %v6174
        %v6308 = vpop.f32.mrb[0].mxu0
        %v6309 = vadd.f32 0.0, %v6308
        %v6310 = vpop.f32.mrb[0].mxu0
        %6311 = vmatprep.mubr.f32.mxu0 0.0
        %6312 = vmatmul.mubr.f32.gmra.mrb[0].mxu0 %v6175
        %v6313 = vpop.f32.mrb[0].mxu0
        %v6314 = vadd.f32 0.0, %v6313
        %v6315 = vpop.f32.mrb[0].mxu0
        %6316 = vmatprep.mubr.f32.mxu0 0.0
        %6317 = vmatmul.mubr.f32.gmra.mrb[0].mxu0 %v6176
        %v6318 = vpop.f32.mrb[0].mxu0
        %v6319 = vadd.f32 0.0, %v6318
        %v6320 = vpop.f32.mrb[0].mxu0
        %6321 = vmatprep.mubr.f32.mxu0 0.0
        %6322 = vmatmul.mubr.f32.gmra.mrb[0].mxu0 %v6177
        %v6323 = vpop.f32.mrb[0].mxu0
        %v6324 = vadd.f32 0.0, %v6323
        %v6325 = vpop.f32.mrb[0].mxu0
        %6326 = vmatprep.mubr.f32.mxu0 0.0
        %6327 = vmatmul.mubr.f32.gmra.mrb[0].mxu0 %v6178
        %v6328 = vpop.f32.mrb[0].mxu0
        %v6329 = vadd.f32 0.0, %v6328
        %v6330 = vpop.f32.mrb[0].mxu0
        %6331 = vmatprep.mubr.f32.mxu0 0.0
        %6332 = vmatmul.mubr.f32.gmra.mrb[0].mxu0 %v6179
        %v6333 = vpop.f32.mrb[0].mxu0
        %v6334 = vadd.f32 0.0, %v6333
        %v6335 = vpop.f32.mrb[0].mxu0
        %6336 = vmatprep.mubr.f32.mxu0 0.0
        %6337 = vmatmul.mubr.f32.gmra.mrb[0].mxu0 %v6180
        %v6338 = vpop.f32.mrb[0].mxu0
        %v6339 = vadd.f32 0.0, %v6338
        %v6340 = vpop.f32.mrb[0].mxu0
        %6341 = vmatprep.mubr.f32.mxu0 0.0
        %6342 = vmatmul.mubr.f32.gmra.mrb[0].mxu0 %v6181
        %v6343 = vpop.f32.mrb[0].mxu0
        %v6344 = vadd.f32 0.0, %v6343
        %v6345 = vpop.f32.mrb[0].mxu0
        %6346 = vmatprep.mubr.f32.mxu0 0.0
        %6347 = vmatmul.mubr.f32.gmra.mrb[0].mxu0 %v6182
        %v6348 = vpop.f32.mrb[0].mxu0
        %v6349 = vadd.f32 0.0, %v6348
        %v6350 = vpop.f32.mrb[0].mxu0
        %6351 = vmatprep.mubr.f32.mxu0 0.0
        %6352 = vmatmul.mubr.f32.gmra.mrb[0].mxu0 %v6183
        %v6353 = vpop.f32.mrb[0].mxu0
        %v6354 = vadd.f32 0.0, %v6353
        %v6355 = vpop.f32.mrb[0].mxu0
        %6356 = vmatprep.mubr.f32.mxu0 0.0
        %6357 = vmatmul.mubr.f32.gmra.mrb[0].mxu0 %v6184
        %v6358 = vpop.f32.mrb[0].mxu0
        %v6359 = vadd.f32 0.0, %v6358
        %v6360 = vpop.f32.mrb[0].mxu0
        %6361 = vmatprep.mubr.f32.mxu0 0.0
        %6362 = vmatmul.mubr.f32.gmra.mrb[0].mxu0 %v6185
        %v6363 = vpop.f32.mrb[0].mxu0
        %v6364 = vadd.f32 0.0, %v6363
        %v6365 = vpop.f32.mrb[0].mxu0
        %6366 = vmatprep.mubr.f32.mxu0 0.0
        %6367 = vmatmul.mubr.f32.gmra.mrb[0].mxu0 %v6186
        %v6368 = vpop.f32.mrb[0].mxu0
        %v6369 = vadd.f32 0.0, %v6368
        %v6370 = vpop.f32.mrb[0].mxu0
        %6371 = vmatprep.mubr.f32.mxu0 0.0
        %6372 = vmatmul.mubr.f32.gmra.mrb[0].mxu0 %v6187
        %v6373 = vpop.f32.mrb[0].mxu0
        %v6374 = vadd.f32 0.0, %v6373
        %v6375 = vpop.f32.mrb[0].mxu0
        %6376 = vmatprep.mubr.f32.mxu0 0.0
        %6377 = vmatmul.mubr.f32.gmra.mrb[0].mxu0 %v6188
        %v6378 = vpop.f32.mrb[0].mxu0
        %v6379 = vadd.f32 0.0, %v6378
        %v6380 = vpop.f32.mrb[0].mxu0
        %6381 = vmatprep.mubr.f32.mxu0 0.0
        %6382 = vmatmul.mubr.f32.gmra.mrb[0].mxu0 %v6189
        %v6383 = vpop.f32.mrb[0].mxu0
        %v6384 = vadd.f32 0.0, %v6383
        %v6385 = vpop.f32.mrb[0].mxu0
        %6386 = vmatprep.mubr.f32.mxu0 0.0
        %6387 = vmatmul.mubr.f32.gmra.mrb[0].mxu0 %v6190
        %v6388 = vpop.f32.mrb[0].mxu0
        %v6389 = vadd.f32 0.0, %v6388
        %v6390 = vpop.f32.mrb[0].mxu0
        %6391 = vmatprep.mubr.f32.mxu0 0.0
        %6392 = vmatmul.mubr.f32.gmra.mrb[0].mxu0 %v6191
        %v6393 = vpop.f32.mrb[0].mxu0
        %v6394 = vadd.f32 0.0, %v6393
        %v6395 = vpop.f32.mrb[0].mxu0
        %6396 = vmatprep.mubr.f32.mxu0 0.0
        %6397 = vmatmul.mubr.f32.gmra.mrb[0].mxu0 %v6192
        %v6398 = vpop.f32.mrb[0].mxu0
        %v6399 = vadd.f32 0.0, %v6398
        %v6400 = vpop.f32.mrb[0].mxu0
        %6401 = vmatprep.mubr.f32.mxu0 0.0
        %6402 = vmatmul.mubr.f32.gmra.mrb[0].mxu0 %v6193
        %v6403 = vpop.f32.mrb[0].mxu0
        %v6404 = vadd.f32 0.0, %v6403
        %v6405 = vpop.f32.mrb[0].mxu0
        %6406 = vmatprep.mubr.f32.mxu0 0.0
        %6407 = vmatmul.mubr.f32.gmra.mrb[0].mxu0 %v6194
        %v6408 = vpop.f32.mrb[0].mxu0
        %v6409 = vadd.f32 0.0, %v6408
        %v6410 = vpop.f32.mrb[0].mxu0
        %6411 = vmatprep.mubr.f32.mxu0 0.0
        %6412 = vmatmul.mubr.f32.gmra.mrb[0].mxu0 %v6195
        %v6413 = vpop.f32.mrb[0].mxu0
        %v6414 = vadd.f32 0.0, %v6413
        %v6415 = vpop.f32.mrb[0].mxu0
        %6416 = vmatprep.mubr.f32.mxu0 0.0
        %6417 = vmatmul.mubr.f32.gmra.mrb[0].mxu0 %v6196
        %v6418 = vpop.f32.mrb[0].mxu0
        %v6419 = vadd.f32 0.0, %v6418
        %v6420 = vpop.f32.mrb[0].mxu0
        %6421 = vmatprep.mubr.f32.mxu0 0.0
        %6422 = vmatmul.mubr.f32.gmra.mrb[0].mxu0 %v6197
        %v6423 = vpop.f32.mrb[0].mxu0
        %v6424 = vadd.f32 0.0, %v6423
        %v6425 = vpop.f32.mrb[0].mxu0
        %6426 = vmatprep.mubr.f32.mxu0 0.0
        %6427 = vmatmul.mubr.f32.gmra.mrb[0].mxu0 %v6198
        %v6428 = vpop.f32.mrb[0].mxu0
        %v6429 = vadd.f32 0.0, %v6428
        %v6430 = vpop.f32.mrb[0].mxu0
        %6431 = vmatprep.mubr.f32.mxu0 0.0
        %6432 = vmatmul.mubr.f32.gmra.mrb[0].mxu0 %v6199
        %v6433 = vpop.f32.mrb[0].mxu0
        %v6434 = vadd.f32 0.0, %v6433
        %v6435 = vpop.f32.mrb[0].mxu0
        %6436 = vmatprep.mubr.f32.mxu0 0.0
        %6437 = vmatmul.mubr.f32.gmra.mrb[0].mxu0 %v6200
        %v6438 = vpop.f32.mrb[0].mxu0
        %v6439 = vadd.f32 0.0, %v6438
        %v6440 = vpop.f32.mrb[0].mxu0
        %6441 = vmatprep.mubr.f32.mxu0 0.0
        %6442 = vmatmul.mubr.f32.gmra.mrb[0].mxu0 %v6201
        %v6443 = vpop.f32.mrb[0].mxu0
        %v6444 = vadd.f32 0.0, %v6443
        %v6445 = vpop.f32.mrb[0].mxu0
        %6446 = vmatprep.mubr.f32.mxu0 0.0
        %6447 = vmatmul.mubr.f32.gmra.mrb[0].mxu0 %v6202
        %v6448 = vpop.f32.mrb[0].mxu0
        %v6449 = vadd.f32 0.0, %v6448
        %v6450 = vpop.f32.mrb[0].mxu0
        %6451 = vmatprep.mubr.f32.mxu0 0.0
        %6452 = vmatmul.mubr.f32.gmra.mrb[0].mxu0 %v6203
        %v6453 = vpop.f32.mrb[0].mxu0
        %v6454 = vadd.f32 0.0, %v6453
        %v6455 = vpop.f32.mrb[0].mxu0
        %6456 = vmatprep.mubr.f32.mxu0 0.0
        %6457 = vmatmul.mubr.f32.gmra.mrb[0].mxu0 %v6204
        %v6458 = vpop.f32.mrb[0].mxu0
        %v6459 = vadd.f32 0.0, %v6458
        %v6460 = vpop.f32.mrb[0].mxu0
        %6461 = vmatprep.mubr.f32.mxu0 0.0
        %6462 = vmatmul.mubr.f32.gmra.mrb[0].mxu0 %v6205
        %v6463 = vpop.f32.mrb[0].mxu0
        %v6464 = vadd.f32 0.0, %v6463
        %v6465 = vpop.f32.mrb[0].mxu0
        %6466 = vmatprep.mubr.f32.mxu0 0.0
        %6467 = vmatmul.mubr.f32.gmra.mrb[0].mxu0 %v6206
        %v6468 = vpop.f32.mrb[0].mxu0
        %v6469 = vadd.f32 0.0, %v6468
        %v6470 = vpop.f32.mrb[0].mxu0
        %6471 = vmatprep.mubr.f32.mxu0 0.0
        %6472 = vmatmul.mubr.f32.gmra.mrb[0].mxu0 %v6207
        %v6473 = vpop.f32.mrb[0].mxu0
        %v6474 = vadd.f32 0.0, %v6473
        %v6475 = vpop.f32.mrb[0].mxu0
        %6476 = vmatprep.mubr.f32.mxu0 0.0
        %6477 = vmatmul.mubr.f32.gmra.mrb[0].mxu0 %v6208
        %v6478 = vpop.f32.mrb[0].mxu0
        %v6479 = vadd.f32 0.0, %v6478
        %v6480 = vpop.f32.mrb[0].mxu0
        %6481 = vmatprep.mubr.f32.mxu0 0.0
        %6482 = vmatmul.mubr.f32.gmra.mrb[0].mxu0 %v6209
        %v6483 = vpop.f32.mrb[0].mxu0
        %v6484 = vadd.f32 0.0, %v6483
        %v6485 = vpop.f32.mrb[0].mxu0
        %6486 = vmatprep.mubr.f32.mxu0 0.0
        %6487 = vmatmul.mubr.f32.gmra.mrb[0].mxu0 %v6210
        %v6488 = vpop.f32.mrb[0].mxu0
        %v6489 = vadd.f32 0.0, %v6488
        %v6490 = vpop.f32.mrb[0].mxu0
        %6491 = vmatprep.mubr.f32.mxu0 0.0
        %6492 = vmatmul.mubr.f32.gmra.mrb[0].mxu0 %v6211
        %v6493 = vpop.f32.mrb[0].mxu0
        %v6494 = vadd.f32 0.0, %v6493
        %v6495 = vpop.f32.mrb[0].mxu0
        %6496 = vmatprep.mubr.f32.mxu0 0.0
        %6497 = vmatmul.mubr.f32.gmra.mrb[0].mxu0 %v6212
        %v6498 = vpop.f32.mrb[0].mxu0
        %v6499 = vadd.f32 0.0, %v6498
        %v6500 = vpop.f32.mrb[0].mxu0
        %6501 = vmatprep.mubr.f32.mxu0 0.0
        %6502 = vmatmul.mubr.f32.gmra.mrb[0].mxu0 %v6213
        %v6503 = vpop.f32.mrb[0].mxu0
        %v6504 = vadd.f32 0.0, %v6503
        %v6505 = vpop.f32.mrb[0].mxu0
        %6506 = vmatprep.mubr.f32.mxu0 0.0
        %6507 = vmatmul.mubr.f32.gmra.mrb[0].mxu0 %v6214
        %v6508 = vpop.f32.mrb[0].mxu0
        %v6509 = vadd.f32 0.0, %v6508
        %v6510 = vpop.f32.mrb[0].mxu0
        %6511 = vmatprep.mubr.f32.mxu0 0.0
        %6512 = vmatmul.mubr.f32.gmra.mrb[0].mxu0 %v6215
        %v6513 = vpop.f32.mrb[0].mxu0
        %v6514 = vadd.f32 0.0, %v6513
        %v6515 = vpop.f32.mrb[0].mxu0
        %6516 = vmatprep.mubr.f32.mxu0 0.0
        %6517 = vmatmul.mubr.f32.gmra.mrb[0].mxu0 %v6216
        %v6518 = vpop.f32.mrb[0].mxu0
        %v6519 = vadd.f32 0.0, %v6518
        %v6520 = vpop.f32.mrb[0].mxu0
        %6521 = vdwg.mxu0
        %v6522 = vadd.f32 %v5931, %v6284
        %v6523 = vadd.f32 %v5936, %v6289
        %v6524 = vadd.f32 %v5941, %v6294
        %v6525 = vadd.f32 %v5946, %v6299
        %v6526 = vadd.f32 %v5951, %v6304
        %v6527 = vadd.f32 %v5956, %v6309
        %v6528 = vadd.f32 %v5961, %v6314
        %v6529 = vadd.f32 %v5966, %v6319
        %v6530 = vadd.f32 %v5971, %v6324
        %v6531 = vadd.f32 %v5976, %v6329
        %v6532 = vadd.f32 %v5981, %v6334
        %v6533 = vadd.f32 %v5986, %v6339
        %v6534 = vadd.f32 %v5991, %v6344
        %v6535 = vadd.f32 %v5996, %v6349
        %v6536 = vadd.f32 %v6001, %v6354
        %v6537 = vadd.f32 %v6006, %v6359
        %v6538 = vadd.f32 %v6011, %v6364
        %v6539 = vadd.f32 %v6016, %v6369
        %v6540 = vadd.f32 %v6021, %v6374
        %v6541 = vadd.f32 %v6026, %v6379
        %v6542 = vadd.f32 %v6031, %v6384
        %v6543 = vadd.f32 %v6036, %v6389
        %v6544 = vadd.f32 %v6041, %v6394
        %v6545 = vadd.f32 %v6046, %v6399
        %v6546 = vadd.f32 %v6051, %v6404
        %v6547 = vadd.f32 %v6056, %v6409
        %v6548 = vadd.f32 %v6061, %v6414
        %v6549 = vadd.f32 %v6066, %v6419
        %v6550 = vadd.f32 %v6071, %v6424
        %v6551 = vadd.f32 %v6076, %v6429
        %v6552 = vadd.f32 %v6081, %v6434
        %v6553 = vadd.f32 %v6086, %v6439
        %v6554 = vadd.f32 %v6091, %v6444
        %v6555 = vadd.f32 %v6096, %v6449
        %v6556 = vadd.f32 %v6101, %v6454
        %v6557 = vadd.f32 %v6106, %v6459
        %v6558 = vadd.f32 %v6111, %v6464
        %v6559 = vadd.f32 %v6116, %v6469
        %v6560 = vadd.f32 %v6121, %v6474
        %v6561 = vadd.f32 %v6126, %v6479
        %v6562 = vadd.f32 %v6131, %v6484
        %v6563 = vadd.f32 %v6136, %v6489
        %v6564 = vadd.f32 %v6141, %v6494
        %v6565 = vadd.f32 %v6146, %v6499
        %v6566 = vadd.f32 %v6151, %v6504
        %v6567 = vadd.f32 %v6156, %v6509
        %v6568 = vadd.f32 %v6161, %v6514
        %v6569 = vadd.f32 %v6166, %v6519
        %v6570 = vlaneseq
        %v6571 = vshrl.u32 %v6570, 7
        %v6572 = vsub.s32 0, %v6571
        %v6573 = vrot.slane %v664, %v6572
        %v6574 = vadd.f32 %v6522, %v6573
        %v6575 = vadd.f32 %v6523, %v6573
        %v6576 = vadd.f32 %v6524, %v6573
        %v6577 = vadd.f32 %v6525, %v6573
        %v6578 = vadd.f32 %v6526, %v6573
        %v6579 = vadd.f32 %v6527, %v6573
        %v6580 = vadd.f32 %v6528, %v6573
        %v6581 = vadd.f32 %v6529, %v6573
        %v6582 = vadd.f32 %v6530, %v6573
        %v6583 = vadd.f32 %v6531, %v6573
        %v6584 = vadd.f32 %v6532, %v6573
        %v6585 = vadd.f32 %v6533, %v6573
        %v6586 = vadd.f32 %v6534, %v6573
        %v6587 = vadd.f32 %v6535, %v6573
        %v6588 = vadd.f32 %v6536, %v6573
        %v6589 = vadd.f32 %v6537, %v6573
        %v6590 = vadd.f32 %v6538, %v6573
        %v6591 = vadd.f32 %v6539, %v6573
        %v6592 = vadd.f32 %v6540, %v6573
        %v6593 = vadd.f32 %v6541, %v6573
        %v6594 = vadd.f32 %v6542, %v6573
        %v6595 = vadd.f32 %v6543, %v6573
        %v6596 = vadd.f32 %v6544, %v6573
        %v6597 = vadd.f32 %v6545, %v6573
        %v6598 = vadd.f32 %v6546, %v6573
        %v6599 = vadd.f32 %v6547, %v6573
        %v6600 = vadd.f32 %v6548, %v6573
        %v6601 = vadd.f32 %v6549, %v6573
        %v6602 = vadd.f32 %v6550, %v6573
        %v6603 = vadd.f32 %v6551, %v6573
        %v6604 = vadd.f32 %v6552, %v6573
        %v6605 = vadd.f32 %v6553, %v6573
        %v6606 = vadd.f32 %v6554, %v6573
        %v6607 = vadd.f32 %v6555, %v6573
        %v6608 = vadd.f32 %v6556, %v6573
        %v6609 = vadd.f32 %v6557, %v6573
        %v6610 = vadd.f32 %v6558, %v6573
        %v6611 = vadd.f32 %v6559, %v6573
        %v6612 = vadd.f32 %v6560, %v6573
        %v6613 = vadd.f32 %v6561, %v6573
        %v6614 = vadd.f32 %v6562, %v6573
        %v6615 = vadd.f32 %v6563, %v6573
        %v6616 = vadd.f32 %v6564, %v6573
        %v6617 = vadd.f32 %v6565, %v6573
        %v6618 = vadd.f32 %v6566, %v6573
        %v6619 = vadd.f32 %v6567, %v6573
        %v6620 = vadd.f32 %v6568, %v6573
        %v6621 = vadd.f32 %v6569, %v6573
        %v6622 = vxor.u32 %v6574, 2147483648
        %v6623 = vxor.u32 %v6575, 2147483648
        %v6624 = vxor.u32 %v6576, 2147483648
        %v6625 = vxor.u32 %v6577, 2147483648
        %v6626 = vxor.u32 %v6578, 2147483648
        %v6627 = vxor.u32 %v6579, 2147483648
        %v6628 = vxor.u32 %v6580, 2147483648
        %v6629 = vxor.u32 %v6581, 2147483648
        %v6630 = vxor.u32 %v6582, 2147483648
        %v6631 = vxor.u32 %v6583, 2147483648
        %v6632 = vxor.u32 %v6584, 2147483648
        %v6633 = vxor.u32 %v6585, 2147483648
        %v6634 = vxor.u32 %v6586, 2147483648
        %v6635 = vxor.u32 %v6587, 2147483648
        %v6636 = vxor.u32 %v6588, 2147483648
        %v6637 = vxor.u32 %v6589, 2147483648
        %v6638 = vxor.u32 %v6590, 2147483648
        %v6639 = vxor.u32 %v6591, 2147483648
        %v6640 = vxor.u32 %v6592, 2147483648
        %v6641 = vxor.u32 %v6593, 2147483648
        %v6642 = vxor.u32 %v6594, 2147483648
        %v6643 = vxor.u32 %v6595, 2147483648
        %v6644 = vxor.u32 %v6596, 2147483648
        %v6645 = vxor.u32 %v6597, 2147483648
        %v6646 = vxor.u32 %v6598, 2147483648
        %v6647 = vxor.u32 %v6599, 2147483648
        %v6648 = vxor.u32 %v6600, 2147483648
        %v6649 = vxor.u32 %v6601, 2147483648
        %v6650 = vxor.u32 %v6602, 2147483648
        %v6651 = vxor.u32 %v6603, 2147483648
        %v6652 = vxor.u32 %v6604, 2147483648
        %v6653 = vxor.u32 %v6605, 2147483648
        %v6654 = vxor.u32 %v6606, 2147483648
        %v6655 = vxor.u32 %v6607, 2147483648
        %v6656 = vxor.u32 %v6608, 2147483648
        %v6657 = vxor.u32 %v6609, 2147483648
        %v6658 = vxor.u32 %v6610, 2147483648
        %v6659 = vxor.u32 %v6611, 2147483648
        %v6660 = vxor.u32 %v6612, 2147483648
        %v6661 = vxor.u32 %v6613, 2147483648
        %v6662 = vxor.u32 %v6614, 2147483648
        %v6663 = vxor.u32 %v6615, 2147483648
        %v6664 = vxor.u32 %v6616, 2147483648
        %v6665 = vxor.u32 %v6617, 2147483648
        %v6666 = vxor.u32 %v6618, 2147483648
        %v6667 = vxor.u32 %v6619, 2147483648
        %v6668 = vxor.u32 %v6620, 2147483648
        %v6669 = vxor.u32 %v6621, 2147483648
        %v6670 = vmul.f32 %v6622, 1.442695
        %v6671 = vpow.pop %v6670
        %v6672 = vmul.f32 %v6623, 1.442695
        %v6673 = vpow.pop %v6672
        %v6674 = vmul.f32 %v6624, 1.442695
        %v6675 = vpow.pop %v6674
        %v6676 = vmul.f32 %v6625, 1.442695
        %v6677 = vpow.pop %v6676
        %v6678 = vmul.f32 %v6626, 1.442695
        %v6679 = vpow.pop %v6678
        %v6680 = vmul.f32 %v6627, 1.442695
        %v6681 = vpow.pop %v6680
        %v6682 = vmul.f32 %v6628, 1.442695
        %v6683 = vpow.pop %v6682
        %v6684 = vmul.f32 %v6629, 1.442695
        %v6685 = vpow.pop %v6684
        %v6686 = vmul.f32 %v6630, 1.442695
        %v6687 = vpow.pop %v6686
        %v6688 = vmul.f32 %v6631, 1.442695
        %v6689 = vpow.pop %v6688
        %v6690 = vmul.f32 %v6632, 1.442695
        %v6691 = vpow.pop %v6690
        %v6692 = vmul.f32 %v6633, 1.442695
        %v6693 = vpow.pop %v6692
        %v6694 = vmul.f32 %v6634, 1.442695
        %v6695 = vpow.pop %v6694
        %v6696 = vmul.f32 %v6635, 1.442695
        %v6697 = vpow.pop %v6696
        %v6698 = vmul.f32 %v6636, 1.442695
        %v6699 = vpow.pop %v6698
        %v6700 = vmul.f32 %v6637, 1.442695
        %v6701 = vpow.pop %v6700
        %v6702 = vmul.f32 %v6638, 1.442695
        %v6703 = vpow.pop %v6702
        %v6704 = vmul.f32 %v6639, 1.442695
        %v6705 = vpow.pop %v6704
        %v6706 = vmul.f32 %v6640, 1.442695
        %v6707 = vpow.pop %v6706
        %v6708 = vmul.f32 %v6641, 1.442695
        %v6709 = vpow.pop %v6708
        %v6710 = vmul.f32 %v6642, 1.442695
        %v6711 = vpow.pop %v6710
        %v6712 = vmul.f32 %v6643, 1.442695
        %v6713 = vpow.pop %v6712
        %v6714 = vmul.f32 %v6644, 1.442695
        %v6715 = vpow.pop %v6714
        %v6716 = vmul.f32 %v6645, 1.442695
        %v6717 = vpow.pop %v6716
        %v6718 = vmul.f32 %v6646, 1.442695
        %v6719 = vpow.pop %v6718
        %v6720 = vmul.f32 %v6647, 1.442695
        %v6721 = vpow.pop %v6720
        %v6722 = vmul.f32 %v6648, 1.442695
        %v6723 = vpow.pop %v6722
        %v6724 = vmul.f32 %v6649, 1.442695
        %v6725 = vpow.pop %v6724
        %v6726 = vmul.f32 %v6650, 1.442695
        %v6727 = vpow.pop %v6726
        %v6728 = vmul.f32 %v6651, 1.442695
        %v6729 = vpow.pop %v6728
        %v6730 = vmul.f32 %v6652, 1.442695
        %v6731 = vpow.pop %v6730
        %v6732 = vmul.f32 %v6653, 1.442695
        %v6733 = vpow.pop %v6732
        %v6734 = vmul.f32 %v6654, 1.442695
        %v6735 = vpow.pop %v6734
        %v6736 = vmul.f32 %v6655, 1.442695
        %v6737 = vpow.pop %v6736
        %v6738 = vmul.f32 %v6656, 1.442695
        %v6739 = vpow.pop %v6738
        %v6740 = vmul.f32 %v6657, 1.442695
        %v6741 = vpow.pop %v6740
        %v6742 = vmul.f32 %v6658, 1.442695
        %v6743 = vpow.pop %v6742
        %v6744 = vmul.f32 %v6659, 1.442695
        %v6745 = vpow.pop %v6744
        %v6746 = vmul.f32 %v6660, 1.442695
        %v6747 = vpow.pop %v6746
        %v6748 = vmul.f32 %v6661, 1.442695
        %v6749 = vpow.pop %v6748
        %v6750 = vmul.f32 %v6662, 1.442695
        %v6751 = vpow.pop %v6750
        %v6752 = vmul.f32 %v6663, 1.442695
        %v6753 = vpow.pop %v6752
        %v6754 = vmul.f32 %v6664, 1.442695
        %v6755 = vpow.pop %v6754
        %v6756 = vmul.f32 %v6665, 1.442695
        %v6757 = vpow.pop %v6756
        %v6758 = vmul.f32 %v6666, 1.442695
        %v6759 = vpow.pop %v6758
        %v6760 = vmul.f32 %v6667, 1.442695
        %v6761 = vpow.pop %v6760
        %v6762 = vmul.f32 %v6668, 1.442695
        %v6763 = vpow.pop %v6762
        %v6764 = vmul.f32 %v6669, 1.442695
        %v6765 = vpow.pop %v6764
        %v6766 = vadd.f32 %v6671, 1.0
        %v6767 = vadd.f32 %v6673, 1.0
        %v6768 = vadd.f32 %v6675, 1.0
        %v6769 = vadd.f32 %v6677, 1.0
        %v6770 = vadd.f32 %v6679, 1.0
        %v6771 = vadd.f32 %v6681, 1.0
        %v6772 = vadd.f32 %v6683, 1.0
        %v6773 = vadd.f32 %v6685, 1.0
        %v6774 = vadd.f32 %v6687, 1.0
        %v6775 = vadd.f32 %v6689, 1.0
        %v6776 = vadd.f32 %v6691, 1.0
        %v6777 = vadd.f32 %v6693, 1.0
        %v6778 = vadd.f32 %v6695, 1.0
        %v6779 = vadd.f32 %v6697, 1.0
        %v6780 = vadd.f32 %v6699, 1.0
        %v6781 = vadd.f32 %v6701, 1.0
        %v6782 = vadd.f32 %v6703, 1.0
        %v6783 = vadd.f32 %v6705, 1.0
        %v6784 = vadd.f32 %v6707, 1.0
        %v6785 = vadd.f32 %v6709, 1.0
        %v6786 = vadd.f32 %v6711, 1.0
        %v6787 = vadd.f32 %v6713, 1.0
        %v6788 = vadd.f32 %v6715, 1.0
        %v6789 = vadd.f32 %v6717, 1.0
        %v6790 = vadd.f32 %v6719, 1.0
        %v6791 = vadd.f32 %v6721, 1.0
        %v6792 = vadd.f32 %v6723, 1.0
        %v6793 = vadd.f32 %v6725, 1.0
        %v6794 = vadd.f32 %v6727, 1.0
        %v6795 = vadd.f32 %v6729, 1.0
        %v6796 = vadd.f32 %v6731, 1.0
        %v6797 = vadd.f32 %v6733, 1.0
        %v6798 = vadd.f32 %v6735, 1.0
        %v6799 = vadd.f32 %v6737, 1.0
        %v6800 = vadd.f32 %v6739, 1.0
        %v6801 = vadd.f32 %v6741, 1.0
        %v6802 = vadd.f32 %v6743, 1.0
        %v6803 = vadd.f32 %v6745, 1.0
        %v6804 = vadd.f32 %v6747, 1.0
        %v6805 = vadd.f32 %v6749, 1.0
        %v6806 = vadd.f32 %v6751, 1.0
        %v6807 = vadd.f32 %v6753, 1.0
        %v6808 = vadd.f32 %v6755, 1.0
        %v6809 = vadd.f32 %v6757, 1.0
        %v6810 = vadd.f32 %v6759, 1.0
        %v6811 = vadd.f32 %v6761, 1.0
        %v6812 = vadd.f32 %v6763, 1.0
        %v6813 = vadd.f32 %v6765, 1.0
        %v6814 = vrcp.pop %v6766
        %v6815 = vmul.f32 1.0, %v6814
        %v6816 = vrcp.pop %v6767
        %v6817 = vmul.f32 1.0, %v6816
        %v6818 = vrcp.pop %v6768
        %v6819 = vmul.f32 1.0, %v6818
        %v6820 = vrcp.pop %v6769
        %v6821 = vmul.f32 1.0, %v6820
        %v6822 = vrcp.pop %v6770
        %v6823 = vmul.f32 1.0, %v6822
        %v6824 = vrcp.pop %v6771
        %v6825 = vmul.f32 1.0, %v6824
        %v6826 = vrcp.pop %v6772
        %v6827 = vmul.f32 1.0, %v6826
        %v6828 = vrcp.pop %v6773
        %v6829 = vmul.f32 1.0, %v6828
        %v6830 = vrcp.pop %v6774
        %v6831 = vmul.f32 1.0, %v6830
        %v6832 = vrcp.pop %v6775
        %v6833 = vmul.f32 1.0, %v6832
        %v6834 = vrcp.pop %v6776
        %v6835 = vmul.f32 1.0, %v6834
        %v6836 = vrcp.pop %v6777
        %v6837 = vmul.f32 1.0, %v6836
        %v6838 = vrcp.pop %v6778
        %v6839 = vmul.f32 1.0, %v6838
        %v6840 = vrcp.pop %v6779
        %v6841 = vmul.f32 1.0, %v6840
        %v6842 = vrcp.pop %v6780
        %v6843 = vmul.f32 1.0, %v6842
        %v6844 = vrcp.pop %v6781
        %v6845 = vmul.f32 1.0, %v6844
        %v6846 = vrcp.pop %v6782
        %v6847 = vmul.f32 1.0, %v6846
        %v6848 = vrcp.pop %v6783
        %v6849 = vmul.f32 1.0, %v6848
        %v6850 = vrcp.pop %v6784
        %v6851 = vmul.f32 1.0, %v6850
        %v6852 = vrcp.pop %v6785
        %v6853 = vmul.f32 1.0, %v6852
        %v6854 = vrcp.pop %v6786
        %v6855 = vmul.f32 1.0, %v6854
        %v6856 = vrcp.pop %v6787
        %v6857 = vmul.f32 1.0, %v6856
        %v6858 = vrcp.pop %v6788
        %v6859 = vmul.f32 1.0, %v6858
        %v6860 = vrcp.pop %v6789
        %v6861 = vmul.f32 1.0, %v6860
        %v6862 = vrcp.pop %v6790
        %v6863 = vmul.f32 1.0, %v6862
        %v6864 = vrcp.pop %v6791
        %v6865 = vmul.f32 1.0, %v6864
        %v6866 = vrcp.pop %v6792
        %v6867 = vmul.f32 1.0, %v6866
        %v6868 = vrcp.pop %v6793
        %v6869 = vmul.f32 1.0, %v6868
        %v6870 = vrcp.pop %v6794
        %v6871 = vmul.f32 1.0, %v6870
        %v6872 = vrcp.pop %v6795
        %v6873 = vmul.f32 1.0, %v6872
        %v6874 = vrcp.pop %v6796
        %v6875 = vmul.f32 1.0, %v6874
        %v6876 = vrcp.pop %v6797
        %v6877 = vmul.f32 1.0, %v6876
        %v6878 = vrcp.pop %v6798
        %v6879 = vmul.f32 1.0, %v6878
        %v6880 = vrcp.pop %v6799
        %v6881 = vmul.f32 1.0, %v6880
        %v6882 = vrcp.pop %v6800
        %v6883 = vmul.f32 1.0, %v6882
        %v6884 = vrcp.pop %v6801
        %v6885 = vmul.f32 1.0, %v6884
        %v6886 = vrcp.pop %v6802
        %v6887 = vmul.f32 1.0, %v6886
        %v6888 = vrcp.pop %v6803
        %v6889 = vmul.f32 1.0, %v6888
        %v6890 = vrcp.pop %v6804
        %v6891 = vmul.f32 1.0, %v6890
        %v6892 = vrcp.pop %v6805
        %v6893 = vmul.f32 1.0, %v6892
        %v6894 = vrcp.pop %v6806
        %v6895 = vmul.f32 1.0, %v6894
        %v6896 = vrcp.pop %v6807
        %v6897 = vmul.f32 1.0, %v6896
        %v6898 = vrcp.pop %v6808
        %v6899 = vmul.f32 1.0, %v6898
        %v6900 = vrcp.pop %v6809
        %v6901 = vmul.f32 1.0, %v6900
        %v6902 = vrcp.pop %v6810
        %v6903 = vmul.f32 1.0, %v6902
        %v6904 = vrcp.pop %v6811
        %v6905 = vmul.f32 1.0, %v6904
        %v6906 = vrcp.pop %v6812
        %v6907 = vmul.f32 1.0, %v6906
        %v6908 = vrcp.pop %v6813
        %v6909 = vmul.f32 1.0, %v6908
        %v6910 = vsub.f32 1.0, %v6815
        %v6911 = vsub.f32 1.0, %v6817
        %v6912 = vsub.f32 1.0, %v6819
        %v6913 = vsub.f32 1.0, %v6821
        %v6914 = vsub.f32 1.0, %v6823
        %v6915 = vsub.f32 1.0, %v6825
        %v6916 = vsub.f32 1.0, %v6827
        %v6917 = vsub.f32 1.0, %v6829
        %v6918 = vsub.f32 1.0, %v6831
        %v6919 = vsub.f32 1.0, %v6833
        %v6920 = vsub.f32 1.0, %v6835
        %v6921 = vsub.f32 1.0, %v6837
        %v6922 = vsub.f32 1.0, %v6839
        %v6923 = vsub.f32 1.0, %v6841
        %v6924 = vsub.f32 1.0, %v6843
        %v6925 = vsub.f32 1.0, %v6845
        %v6926 = vsub.f32 1.0, %v6847
        %v6927 = vsub.f32 1.0, %v6849
        %v6928 = vsub.f32 1.0, %v6851
        %v6929 = vsub.f32 1.0, %v6853
        %v6930 = vsub.f32 1.0, %v6855
        %v6931 = vsub.f32 1.0, %v6857
        %v6932 = vsub.f32 1.0, %v6859
        %v6933 = vsub.f32 1.0, %v6861
        %v6934 = vsub.f32 1.0, %v6863
        %v6935 = vsub.f32 1.0, %v6865
        %v6936 = vsub.f32 1.0, %v6867
        %v6937 = vsub.f32 1.0, %v6869
        %v6938 = vsub.f32 1.0, %v6871
        %v6939 = vsub.f32 1.0, %v6873
        %v6940 = vsub.f32 1.0, %v6875
        %v6941 = vsub.f32 1.0, %v6877
        %v6942 = vsub.f32 1.0, %v6879
        %v6943 = vsub.f32 1.0, %v6881
        %v6944 = vsub.f32 1.0, %v6883
        %v6945 = vsub.f32 1.0, %v6885
        %v6946 = vsub.f32 1.0, %v6887
        %v6947 = vsub.f32 1.0, %v6889
        %v6948 = vsub.f32 1.0, %v6891
        %v6949 = vsub.f32 1.0, %v6893
        %v6950 = vsub.f32 1.0, %v6895
        %v6951 = vsub.f32 1.0, %v6897
        %v6952 = vsub.f32 1.0, %v6899
        %v6953 = vsub.f32 1.0, %v6901
        %v6954 = vsub.f32 1.0, %v6903
        %v6955 = vsub.f32 1.0, %v6905
        %v6956 = vsub.f32 1.0, %v6907
        %v6957 = vsub.f32 1.0, %v6909
        %v6958 = vmul.f32 %v6910, %v422
        %v6959 = vmul.f32 %v6911, %v423
        %v6960 = vmul.f32 %v6912, %v424
        %v6961 = vmul.f32 %v6913, %v425
        %v6962 = vmul.f32 %v6914, %v426
        %v6963 = vmul.f32 %v6915, %v427
        %v6964 = vmul.f32 %v6916, %v428
        %v6965 = vmul.f32 %v6917, %v429
        %v6966 = vmul.f32 %v6918, %v430
        %v6967 = vmul.f32 %v6919, %v431
        %v6968 = vmul.f32 %v6920, %v432
        %v6969 = vmul.f32 %v6921, %v433
        %v6970 = vmul.f32 %v6922, %v434
        %v6971 = vmul.f32 %v6923, %v435
        %v6972 = vmul.f32 %v6924, %v436
        %v6973 = vmul.f32 %v6925, %v437
        %v6974 = vmul.f32 %v6926, %v438
        %v6975 = vmul.f32 %v6927, %v439
        %v6976 = vmul.f32 %v6928, %v440
        %v6977 = vmul.f32 %v6929, %v441
        %v6978 = vmul.f32 %v6930, %v442
        %v6979 = vmul.f32 %v6931, %v443
        %v6980 = vmul.f32 %v6932, %v444
        %v6981 = vmul.f32 %v6933, %v445
        %v6982 = vmul.f32 %v6934, %v446
        %v6983 = vmul.f32 %v6935, %v447
        %v6984 = vmul.f32 %v6936, %v448
        %v6985 = vmul.f32 %v6937, %v449
        %v6986 = vmul.f32 %v6938, %v450
        %v6987 = vmul.f32 %v6939, %v451
        %v6988 = vmul.f32 %v6940, %v452
        %v6989 = vmul.f32 %v6941, %v453
        %v6990 = vmul.f32 %v6942, %v454
        %v6991 = vmul.f32 %v6943, %v455
        %v6992 = vmul.f32 %v6944, %v456
        %v6993 = vmul.f32 %v6945, %v457
        %v6994 = vmul.f32 %v6946, %v458
        %v6995 = vmul.f32 %v6947, %v459
        %v6996 = vmul.f32 %v6948, %v460
        %v6997 = vmul.f32 %v6949, %v461
        %v6998 = vmul.f32 %v6950, %v462
        %v6999 = vmul.f32 %v6951, %v463
        %v7000 = vmul.f32 %v6952, %v464
        %v7001 = vmul.f32 %v6953, %v465
        %v7002 = vmul.f32 %v6954, %v466
        %v7003 = vmul.f32 %v6955, %v467
        %v7004 = vmul.f32 %v6956, %v468
        %v7005 = vmul.f32 %v6957, %v469
        %v7006 = vmul.f32 %v6815, %v4211
        %v7007 = vmul.f32 %v6817, %v4216
        %v7008 = vmul.f32 %v6819, %v4221
        %v7009 = vmul.f32 %v6821, %v4300
        %v7010 = vmul.f32 %v6823, %v4305
        %v7011 = vmul.f32 %v6825, %v4310
        %v7012 = vmul.f32 %v6827, %v4389
        %v7013 = vmul.f32 %v6829, %v4394
        %v7014 = vmul.f32 %v6831, %v4399
        %v7015 = vmul.f32 %v6833, %v4478
        %v7016 = vmul.f32 %v6835, %v4483
        %v7017 = vmul.f32 %v6837, %v4488
        %v7018 = vmul.f32 %v6839, %v4567
        %v7019 = vmul.f32 %v6841, %v4572
        %v7020 = vmul.f32 %v6843, %v4577
        %v7021 = vmul.f32 %v6845, %v4656
        %v7022 = vmul.f32 %v6847, %v4661
        %v7023 = vmul.f32 %v6849, %v4666
        %v7024 = vmul.f32 %v6851, %v4745
        %v7025 = vmul.f32 %v6853, %v4750
        %v7026 = vmul.f32 %v6855, %v4755
        %v7027 = vmul.f32 %v6857, %v4834
        %v7028 = vmul.f32 %v6859, %v4839
        %v7029 = vmul.f32 %v6861, %v4844
        %v7030 = vmul.f32 %v6863, %v4923
        %v7031 = vmul.f32 %v6865, %v4928
        %v7032 = vmul.f32 %v6867, %v4933
        %v7033 = vmul.f32 %v6869, %v5012
        %v7034 = vmul.f32 %v6871, %v5017
        %v7035 = vmul.f32 %v6873, %v5022
        %v7036 = vmul.f32 %v6875, %v5101
        %v7037 = vmul.f32 %v6877, %v5106
        %v7038 = vmul.f32 %v6879, %v5111
        %v7039 = vmul.f32 %v6881, %v5190
        %v7040 = vmul.f32 %v6883, %v5195
        %v7041 = vmul.f32 %v6885, %v5200
        %v7042 = vmul.f32 %v6887, %v5279
        %v7043 = vmul.f32 %v6889, %v5284
        %v7044 = vmul.f32 %v6891, %v5289
        %v7045 = vmul.f32 %v6893, %v5368
        %v7046 = vmul.f32 %v6895, %v5373
        %v7047 = vmul.f32 %v6897, %v5378
        %v7048 = vmul.f32 %v6899, %v5457
        %v7049 = vmul.f32 %v6901, %v5462
        %v7050 = vmul.f32 %v6903, %v5467
        %v7051 = vmul.f32 %v6905, %v5546
        %v7052 = vmul.f32 %v6907, %v5551
        %v7053 = vmul.f32 %v6909, %v5556
        %v7054 = vadd.f32 %v6958, %v7006
        %v7055 = vadd.f32 %v6959, %v7007
        %v7056 = vadd.f32 %v6960, %v7008
        %v7057 = vadd.f32 %v6961, %v7009
        %v7058 = vadd.f32 %v6962, %v7010
        %v7059 = vadd.f32 %v6963, %v7011
        %v7060 = vadd.f32 %v6964, %v7012
        %v7061 = vadd.f32 %v6965, %v7013
        %v7062 = vadd.f32 %v6966, %v7014
        %v7063 = vadd.f32 %v6967, %v7015
        %v7064 = vadd.f32 %v6968, %v7016
        %v7065 = vadd.f32 %v6969, %v7017
        %v7066 = vadd.f32 %v6970, %v7018
        %v7067 = vadd.f32 %v6971, %v7019
        %v7068 = vadd.f32 %v6972, %v7020
        %v7069 = vadd.f32 %v6973, %v7021
        %v7070 = vadd.f32 %v6974, %v7022
        %v7071 = vadd.f32 %v6975, %v7023
        %v7072 = vadd.f32 %v6976, %v7024
        %v7073 = vadd.f32 %v6977, %v7025
        %v7074 = vadd.f32 %v6978, %v7026
        %v7075 = vadd.f32 %v6979, %v7027
        %v7076 = vadd.f32 %v6980, %v7028
        %v7077 = vadd.f32 %v6981, %v7029
        %v7078 = vadd.f32 %v6982, %v7030
        %v7079 = vadd.f32 %v6983, %v7031
        %v7080 = vadd.f32 %v6984, %v7032
        %v7081 = vadd.f32 %v6985, %v7033
        %v7082 = vadd.f32 %v6986, %v7034
        %v7083 = vadd.f32 %v6987, %v7035
        %v7084 = vadd.f32 %v6988, %v7036
        %v7085 = vadd.f32 %v6989, %v7037
        %v7086 = vadd.f32 %v6990, %v7038
        %v7087 = vadd.f32 %v6991, %v7039
        %v7088 = vadd.f32 %v6992, %v7040
        %v7089 = vadd.f32 %v6993, %v7041
        %v7090 = vadd.f32 %v6994, %v7042
        %v7091 = vadd.f32 %v6995, %v7043
        %v7092 = vadd.f32 %v6996, %v7044
        %v7093 = vadd.f32 %v6997, %v7045
        %v7094 = vadd.f32 %v6998, %v7046
        %v7095 = vadd.f32 %v6999, %v7047
        %v7096 = vadd.f32 %v7000, %v7048
        %v7097 = vadd.f32 %v7001, %v7049
        %v7098 = vadd.f32 %v7002, %v7050
        %v7099 = vadd.f32 %v7003, %v7051
        %v7100 = vadd.f32 %v7004, %v7052
        %v7101 = vadd.f32 %v7005, %v7053
        %7102 = vst [vmem:[%s416] sm:$0xff] %v7054
        %7103 = vst [vmem:[%s416 + $0x8] sm:$0xff] %v7055
        %7104 = vst [vmem:[%s416 + $0x10] sm:$0xff] %v7056
        %7105 = vst [vmem:[%s416 + $0x18] sm:$0xff] %v7057
        %7106 = vst [vmem:[%s416 + $0x20] sm:$0xff] %v7058
        %7107 = vst [vmem:[%s416 + $0x28] sm:$0xff] %v7059
        %7108 = vst [vmem:[%s416 + $0x30] sm:$0xff] %v7060
        %7109 = vst [vmem:[%s416 + $0x38] sm:$0xff] %v7061
        %7110 = vst [vmem:[%s416 + $0x40] sm:$0xff] %v7062
        %7111 = vst [vmem:[%s416 + $0x48] sm:$0xff] %v7063
        %7112 = vst [vmem:[%s416 + $0x50] sm:$0xff] %v7064
        %7113 = vst [vmem:[%s416 + $0x58] sm:$0xff] %v7065
        %7114 = vst [vmem:[%s416 + $0x60] sm:$0xff] %v7066
        %7115 = vst [vmem:[%s416 + $0x68] sm:$0xff] %v7067
        %7116 = vst [vmem:[%s416 + $0x70] sm:$0xff] %v7068
        %7117 = vst [vmem:[%s416 + $0x78] sm:$0xff] %v7069
        %7118 = vst [vmem:[%s416 + $0x80] sm:$0xff] %v7070
        %7119 = vst [vmem:[%s416 + $0x88] sm:$0xff] %v7071
        %7120 = vst [vmem:[%s416 + $0x90] sm:$0xff] %v7072
        %7121 = vst [vmem:[%s416 + $0x98] sm:$0xff] %v7073
        %7122 = vst [vmem:[%s416 + $0xa0] sm:$0xff] %v7074
        %7123 = vst [vmem:[%s416 + $0xa8] sm:$0xff] %v7075
        %7124 = vst [vmem:[%s416 + $0xb0] sm:$0xff] %v7076
        %7125 = vst [vmem:[%s416 + $0xb8] sm:$0xff] %v7077
        %7126 = vst [vmem:[%s416 + $0xc0] sm:$0xff] %v7078
        %7127 = vst [vmem:[%s416 + $0xc8] sm:$0xff] %v7079
        %7128 = vst [vmem:[%s416 + $0xd0] sm:$0xff] %v7080
        %7129 = vst [vmem:[%s416 + $0xd8] sm:$0xff] %v7081
        %7130 = vst [vmem:[%s416 + $0xe0] sm:$0xff] %v7082
        %7131 = vst [vmem:[%s416 + $0xe8] sm:$0xff] %v7083
        %7132 = vst [vmem:[%s416 + $0xf0] sm:$0xff] %v7084
        %7133 = vst [vmem:[%s416 + $0xf8] sm:$0xff] %v7085
        %7134 = vst [vmem:[%s416 + $0x100] sm:$0xff] %v7086
        %7135 = vst [vmem:[%s416 + $0x108] sm:$0xff] %v7087
        %7136 = vst [vmem:[%s416 + $0x110] sm:$0xff] %v7088
        %7137 = vst [vmem:[%s416 + $0x118] sm:$0xff] %v7089
        %7138 = vst [vmem:[%s416 + $0x120] sm:$0xff] %v7090
        %7139 = vst [vmem:[%s416 + $0x128] sm:$0xff] %v7091
        %7140 = vst [vmem:[%s416 + $0x130] sm:$0xff] %v7092
        %7141 = vst [vmem:[%s416 + $0x138] sm:$0xff] %v7093
        %7142 = vst [vmem:[%s416 + $0x140] sm:$0xff] %v7094
        %7143 = vst [vmem:[%s416 + $0x148] sm:$0xff] %v7095
        %7144 = vst [vmem:[%s416 + $0x150] sm:$0xff] %v7096
        %7145 = vst [vmem:[%s416 + $0x158] sm:$0xff] %v7097
        %7146 = vst [vmem:[%s416 + $0x160] sm:$0xff] %v7098
        %7147 = vst [vmem:[%s416 + $0x168] sm:$0xff] %v7099
        %7148 = vst [vmem:[%s416 + $0x170] sm:$0xff] %v7100
        %7149 = vst [vmem:[%s416 + $0x178] sm:$0xff] %v7101
        %s7150 = sand.u32 %s184, 1
        %s7151 = scalar_lea.sflag [#allocation4], %s7150
        %s7152 = sand.u32 %s184, 1
        %s7153 = smul.addr %s7152, 384
        %s7154 = scalar_lea.vmem [#allocation13], %s7153
        // Predicated region
        $region69: #{tpu_custom_call.1} parent=43 // pred_check
          %p7155 = pneg %p194
        $region70: #{tpu_custom_call.1} parent=43 // pred_check_branch
          %7157 = sbr.rel (%p7155) target = $region72
        $region71: #{tpu_custom_call.1} parent=43 // pred_region
          %s7158 = smul.u32 16, %s30
          %s7160 = ssub.s32 6144, 6144
          %7161 = vsyncadd %s7151, %s7160
          %s7162 = smul.addr %s7158, 3
          %s7163 = smul.addr %s7162, 128
          %s7164 = scalar_lea.hbm %s6, %s7163
          %s7165 = sshll.u32 %s7154, 4
          %s7166 = int_to_ptr.vmem [resolvable:$true] %s7165
          %7171 = dma.vmem_to_hbm [thread:$0]  %s7166, 6144, %s7164, %s7151, 128, 128, 8
        $region72: #{tpu_custom_call.1} parent=43 // pred_fallthru
          _
      $region44: #{tpu_custom_call.1} parent=5 // pred_fallthru
        _
      %p7172 = scmp.le.s32.totalorder 2, %s25
      // Predicated region
      $region73: #{tpu_custom_call.1} parent=5 // pred_check
        %p7173 = pneg %p7172
      $region74: #{tpu_custom_call.1} parent=5 // pred_check_branch
        %7175 = sbr.rel (%p7173) target = $region76
      $region75: #{tpu_custom_call.1} parent=5 // pred_region
        %s7176 = ssub.s32 %s25, 2
        // Predicated region
        $region77: #{tpu_custom_call.1} parent=75 // pred_check
          %p7177 = pneg %p200
        $region78: #{tpu_custom_call.1} parent=75 // pred_check_branch
          %7179 = sbr.rel (%p7177) target = $region80
        $region79: #{tpu_custom_call.1} parent=75 // pred_region
          %s7180 = sand.u32 %s185, 1
          %s7181 = scalar_lea.sflag [#allocation4], %s7180
          %s7182 = sand.u32 %s185, 1
          %s7183 = smul.addr %s7182, 384
          %s7184 = scalar_lea.vmem [#allocation13], %s7183
          %7185 = dma.done %s7181, 6144
        $region80: #{tpu_custom_call.1} parent=75 // pred_fallthru
          _
      $region76: #{tpu_custom_call.1} parent=5 // pred_fallthru
        _
    $region6: #{tpu_custom_call.1} parent=1 // loop_footer
      %s29 = sadd.s32 1, %s25
    $region7: #{tpu_custom_call.1} parent=1 // loop_footer_branch
      %24 = sbr.rel target = $region3
    $region8: #{tpu_custom_call.1} parent=1 // loop_exit
      _
    %7186 = vsyncpa [#allocation3], 1
    %s7187 = scalar_lea.sflag [#allocation3], 1
    %7188 = vsyncpa %s7187, 1
    %7189 = vsyncpa [#allocation6], 1
    %s7190 = scalar_lea.sflag [#allocation6], 1
    %7191 = vsyncpa %s7190, 1
    %7192 = vsyncpa [#allocation9], 1
    %s7193 = scalar_lea.sflag [#allocation9], 1
    %7194 = vsyncpa %s7193, 1
    %7195 = vsyncpa [#allocation12], 1
    %7196 = vsyncpa [#allocation4], 1
    %s7197 = scalar_lea.sflag [#allocation4], 1
    %7198 = vsyncpa %s7197, 1

</llo_original>
